<compile_context>
chip_gen: v7x
topology: tpu7x:2x2x1
jax: 0.10.0
libtpu: 0.0.40
codegen_flags: <defaults>
</compile_context>

<pallas_src>
import functools
import math

import jax
import jax.numpy as jnp
from jax import lax
from jax.experimental import pallas as pl
from jax.experimental.pallas import tpu as pltpu

BN_EPS = 1e-5


# ----------------------------------------------------------------------------
# Elementwise math helpers (f32, VPU/EUP only)
# ----------------------------------------------------------------------------
def _erf(x):
    # Abramowitz & Stegun 7.1.26 (|err| <= 1.5e-7 ~ f32 precision); exp -> EUP.
    a1, a2, a3, a4, a5 = (0.254829592, -0.284496736, 1.421413741,
                          -1.453152027, 1.061405429)
    p = 0.3275911
    ax = jnp.abs(x)
    t = 1.0 / (1.0 + p * ax)
    poly = ((((a5 * t + a4) * t + a3) * t + a2) * t + a1) * t
    y = 1.0 - poly * jnp.exp(-ax * ax)
    return jnp.where(x >= 0, y, -y)


def _gelu(x):
    # exact (erf-based) GELU, matching torch.nn.GELU() default
    return 0.5 * x * (1.0 + _erf(x * 0.7071067811865476))


def _softplus(y):
    # stable softplus: max(y,0) + log(1 + exp(-|y|));
    # returns y exactly for y > 20 (matches torch.nn.Softplus threshold).
    return jnp.maximum(y, 0.0) + jnp.log(1.0 + jnp.exp(-jnp.abs(y)))


# ----------------------------------------------------------------------------
# Lane-axis helpers (exact, O(C*L) -- no one-hot iota/matmul machinery)
# ----------------------------------------------------------------------------
def _shift_lanes(h, off):
    """out[:, j] = h[:, j + off], zero-filled where j + off is outside [0, F)."""
    if off == 0:
        return h
    c, _ = h.shape
    z = jnp.zeros((c, abs(off)), h.dtype)
    if off > 0:
        return jnp.concatenate([h[:, off:], z], axis=1)
    return jnp.concatenate([z, h[:, :off]], axis=1)


def _tap_list(h, K, dil, tb):
    """K dilated, 'same'-zero-padded taps of h (C, F) f32, where F = tb * Ls is
    the lane-folded length (tb samples of per-sample length Ls).  Taps that
    cross a sample boundary are zeroed (== PyTorch 'same' zero padding)."""
    _, F = h.shape
    Ls = F // tb
    pad_left = (dil * (K - 1)) // 2            # PyTorch Conv1d(padding='same') split
    if tb > 1:
        base = lax.broadcasted_iota(jnp.int32, (1, Ls), 1)
        j_mod = jnp.concatenate([base] * tb, axis=1)   # lane index within a sample
    taps = []
    for k in range(K):
        off = k * dil - pad_left
        t = _shift_lanes(h, off)
        if off != 0 and tb > 1:
            valid = jnp.logical_and(j_mod + off >= 0, j_mod + off < Ls)
            t = jnp.where(valid, t, jnp.zeros_like(t))
        taps.append(t)
    return taps


def _maxpool(h, w, ds):
    """MaxPool1d(kernel=stride=w) on (C, F): window max via lane shifts, then one
    exact 0/1 stride-w downsample matmul (ds precomputed host-side, bf16)."""
    m = h
    for k in range(1, w):
        m = jnp.maximum(m, _shift_lanes(h, k))   # kept positions never see the fill
    # one-hot columns copy the bf16 window maxima exactly into f32
    return jnp.dot(m.astype(jnp.bfloat16), ds, preferred_element_type=jnp.float32)


def _crop(h, c, tb):
    """Crop1d(c, c) per sample along the lane-folded length axis."""
    _, F = h.shape
    Ls = F // tb
    pieces = [h[:, s * Ls + c:(s + 1) * Ls - c] for s in range(tb)]
    return pieces[0] if tb == 1 else jnp.concatenate(pieces, axis=1)


# ----------------------------------------------------------------------------
# Model definition:  name, Cin, Cout, K, dilation, pre_act(GELU+BN), softplus.
# Cin grows through res2a/res3a/cb5 because residual blocks CONCATENATE
# (ResidualConcatLayer), they do not add.
# ----------------------------------------------------------------------------
def _layer_defs(n_tracks):
    return (
        ("cb1",    4,  24, 12,  1, True,  False),
        ("cb2",   24,  32,  5,  1, True,  False),
        ("cb3",   32,  32,  5,  1, True,  False),
        ("cb4",   32,  32,  5,  1, True,  False),
        ("res1a", 32,  16,  3,  4, True,  False),
        ("res1b", 16,  32,  1,  1, True,  False),
        ("res2a", 64,  16,  3,  8, True,  False),
        ("res2b", 16,  32,  1,  1, True,  False),
        ("res3a", 96,  16,  3, 16, True,  False),
        ("res3b", 16,  32,  1,  1, True,  False),
        ("cb5",  128,  64,  1,  1, True,  False),
        ("head",  64, n_tracks, 1, 1, False, True),
    )


# ----------------------------------------------------------------------------
# Single fused kernel: whole forward pass for `tb` lane-folded batch samples.
# ----------------------------------------------------------------------------
def _fused_kernel(x_ref, *refs, layer_defs, n_params, tb):
    ds = (refs[0][...], refs[1][...], refs[2][...])    # VMEM-resident pool one-hots
    params = refs[3:3 + n_params]
    o_ref = refs[3 + n_params]

    # Unpack per-layer parameters (fixed order, see init_params()).
    P = {}
    idx = 0
    for (name, cin, cout, K, dil, pre_act, post_sp) in layer_defs:
        w2 = params[idx][...]
        b = params[idx + 1][...]
        idx += 2
        t = None
        if pre_act:
            t = params[idx][...]
            idx += 1
        P[name] = (w2, b, t, K, dil, post_sp)

    def conv(h, name):
        w2, b, t, K, dil, post_sp = P[name]
        if t is not None:                # GELU -> BatchNorm1d(eval); the BN scale is
            h = _gelu(h) + t             # folded into w2, only the shift remains here
        cin = h.shape[0]
        if K == 1:
            y = jnp.dot(w2, h.astype(jnp.bfloat16),
                        preferred_element_type=jnp.float32)
        elif cin % 8 == 0:
            # im2col: single MXU matmul; taps are cheap exact lane shifts, and the
            # sublane concat pieces are all 8-row aligned f32.
            xi = jnp.concatenate(_tap_list(h, K, dil, tb), axis=0)
            y = jnp.dot(w2, xi.astype(jnp.bfloat16),
                        preferred_element_type=jnp.float32)
        else:
            # 4-channel stem: accumulate per-tap matmuls instead of building an
            # unaligned-sublane im2col concat (lets us keep the raw 4-ch input).
            y = None
            for k, tap in enumerate(_tap_list(h, K, dil, tb)):
                wk = w2[:, k * cin:(k + 1) * cin]
                yk = jnp.dot(wk, tap.astype(jnp.bfloat16),
                             preferred_element_type=jnp.float32)
                y = yk if y is None else y + yk
        y = y + b
        if post_sp:                      # torch Softplus(beta=1, threshold=20)
            y = _softplus(y)
        return y

    # Fold tb batch samples onto the lane axis: (tb, 4, L) -> (4, tb*L).
    if tb > 1:
        h = jnp.concatenate([x_ref[s] for s in range(tb)], axis=1)
    else:
        h = x_ref[0]
    h = h.astype(jnp.float32)

    h = conv(h, "cb1"); h = _maxpool(h, 4, ds[0])      # (24, F/4)
    h = conv(h, "cb2"); h = _maxpool(h, 2, ds[1])      # (32, F/8)
    h = conv(h, "cb3"); h = _maxpool(h, 2, ds[2])      # (32, F/16)
    h = conv(h, "cb4")                                 # (32, F/16)

    # Dilated residual blocks -- ResidualConcatLayer:
    #   out = torch.cat([x, layer(x)], dim=1)   (dim 1 == channels == axis 0 here)
    for blk in ("res1", "res2", "res3"):
        r = conv(conv(h, blk + "a"), blk + "b")
        h = jnp.concatenate([h, r], axis=0)            # channels 32 -> 64 -> 96 -> 128

    h = _crop(h, 8, tb)                                # Crop1d(8, 8) per sample
    h = conv(h, "cb5")                                 # Dropout(0.05) = identity (eval)
    y = conv(h, "head")                                # Conv1d(64, n_tracks, 1) + Softplus
    o_ref[0] = y.astype(o_ref.dtype)                   # lane-dense (n_tracks, tb*Lc) store


# ----------------------------------------------------------------------------
# Parameters (deterministic, PyTorch-style kaiming-uniform bounds, eval-mode BN;
# the BN scale is folded into the conv weight columns).
# ----------------------------------------------------------------------------
def init_params(key, n_tracks=2):
    defs = _layer_defs(n_tracks)
    keys = jax.random.split(key, len(defs))
    flat = []
    for kk, (name, cin, cout, K, dil, pre_act, post_sp) in zip(keys, defs):
        kw, kb = jax.random.split(kk)
        bound = 1.0 / math.sqrt(cin * K)
        w = jax.random.uniform(kw, (cout, cin, K), jnp.float32, -bound, bound)
        b = jax.random.uniform(kb, (cout,), jnp.float32, -bound, bound)
        if pre_act:
            gamma = jnp.ones((cin,), jnp.float32)
            beta = jnp.zeros((cin,), jnp.float32)
            mean = jnp.zeros((cin,), jnp.float32)
            var = jnp.ones((cin,), jnp.float32)
            s = gamma * jax.lax.rsqrt(var + BN_EPS)    # BN eval scale
            w = w * s[None, :, None]                   # fold scale into the conv weight
            t_fold = beta / s - mean                   # remaining additive shift
        # im2col layout: X row index = k*cin + ci  ->  W2[co, k*cin + ci]
        w2 = jnp.transpose(w, (0, 2, 1)).reshape(cout, K * cin)
        flat.append(w2.astype(jnp.bfloat16))
        flat.append(b.reshape(cout, 1))
        if pre_act:
            flat.append(t_fold.reshape(cin, 1))
    return flat


def _downsample_onehot(n, w):
    """(n, n//w) 0/1 matrix with S[i, j] = 1 iff i == j*w (exact in bf16)."""
    rows = jnp.arange(n)[:, None]
    cols = jnp.arange(n // w)[None, :]
    return (rows == cols * w).astype(jnp.bfloat16)


# ----------------------------------------------------------------------------
# Wrapper: one pallas_call for the whole forward pass.
# ----------------------------------------------------------------------------
def forward(x, params, n_tracks=2, tb=None):
    """x: (B, 4, L) float32, PyTorch NCL layout.  Returns (B, n_tracks, L//16-16)."""
    B, cin, L = x.shape
    assert cin == 4 and L % 16 == 0 and L // 16 > 16, (cin, L)
    Lc = L // 16 - 16
    if tb is None:                                    # fold samples onto lanes until the
        tb = max(1, math.gcd(B, max(1, 128 // (L // 16))))   # deep stages reach ~128 lanes
    assert B % tb == 0, (B, tb)
    G = B // tb
    F = tb * L
    ds = (_downsample_onehot(F, 4),
          _downsample_onehot(F // 4, 2),
          _downsample_onehot(F // 8, 2))
    defs = _layer_defs(n_tracks)
    kernel = functools.partial(_fused_kernel, layer_defs=defs,
                               n_params=len(params), tb=tb)
    in_specs = [pl.BlockSpec((tb, 4, L), lambda g: (g, 0, 0))]
    in_specs += [pl.BlockSpec(d.shape, lambda g: (0, 0)) for d in ds]
    in_specs += [pl.BlockSpec(p.shape, lambda g: (0, 0)) for p in params]
    out = pl.pallas_call(
        kernel,
        out_shape=jax.ShapeDtypeStruct((G, n_tracks, tb * Lc), jnp.float32),
        grid=(G,),
        in_specs=in_specs,
        out_specs=pl.BlockSpec((1, n_tracks, tb * Lc), lambda g: (g, 0, 0)),
        compiler_params=pltpu.CompilerParams(
            dimension_semantics=("parallel",),
            vmem_limit_bytes=32 * 1024 * 1024),
    )(x, *ds, *params)
    # Unfold the lane-folded samples back to (B, n_tracks, Lc).
    out = out.reshape(G, n_tracks, tb, Lc).transpose(0, 2, 1, 3)
    return out.reshape(B, n_tracks, Lc)


if __name__ == "__main__":
    key = jax.random.PRNGKey(0)
    kx, kp = jax.random.split(key)
    B, L, n_tracks = 2, 512, 2                  # L must satisfy L % 16 == 0, L//16 > 16
    x = jax.random.normal(kx, (B, 4, L), jnp.float32)   # NCL, like the PyTorch module
    params = init_params(kp, n_tracks=n_tracks)
    out = jax.block_until_ready(forward(x, params, n_tracks=n_tracks))
    assert out.shape == (B, n_tracks, L // 16 - 16), out.shape
    assert bool(jnp.all(jnp.isfinite(out)))
    assert bool(jnp.all(out >= 0.0))            # Softplus output is non-negative
    print("KERNEL_OK")
</pallas_src>

<mosaic_0001>
module attributes {stable_mosaic.version = 11 : i64} {
  func.func @_fused_kernel(%arg0: i32, %arg1: memref<2x4x512xf32, #tpu.memory_space<vmem>>, %arg2: memref<1024x256xbf16, #tpu.memory_space<vmem>>, %arg3: memref<256x128xbf16, #tpu.memory_space<vmem>>, %arg4: memref<128x64xbf16, #tpu.memory_space<vmem>>, %arg5: memref<24x48xbf16, #tpu.memory_space<vmem>>, %arg6: memref<24x1xf32, #tpu.memory_space<vmem>>, %arg7: memref<4x1xf32, #tpu.memory_space<vmem>>, %arg8: memref<32x120xbf16, #tpu.memory_space<vmem>>, %arg9: memref<32x1xf32, #tpu.memory_space<vmem>>, %arg10: memref<24x1xf32, #tpu.memory_space<vmem>>, %arg11: memref<32x160xbf16, #tpu.memory_space<vmem>>, %arg12: memref<32x1xf32, #tpu.memory_space<vmem>>, %arg13: memref<32x1xf32, #tpu.memory_space<vmem>>, %arg14: memref<32x160xbf16, #tpu.memory_space<vmem>>, %arg15: memref<32x1xf32, #tpu.memory_space<vmem>>, %arg16: memref<32x1xf32, #tpu.memory_space<vmem>>, %arg17: memref<16x96xbf16, #tpu.memory_space<vmem>>, %arg18: memref<16x1xf32, #tpu.memory_space<vmem>>, %arg19: memref<32x1xf32, #tpu.memory_space<vmem>>, %arg20: memref<32x16xbf16, #tpu.memory_space<vmem>>, %arg21: memref<32x1xf32, #tpu.memory_space<vmem>>, %arg22: memref<16x1xf32, #tpu.memory_space<vmem>>, %arg23: memref<16x192xbf16, #tpu.memory_space<vmem>>, %arg24: memref<16x1xf32, #tpu.memory_space<vmem>>, %arg25: memref<64x1xf32, #tpu.memory_space<vmem>>, %arg26: memref<32x16xbf16, #tpu.memory_space<vmem>>, %arg27: memref<32x1xf32, #tpu.memory_space<vmem>>, %arg28: memref<16x1xf32, #tpu.memory_space<vmem>>, %arg29: memref<16x288xbf16, #tpu.memory_space<vmem>>, %arg30: memref<16x1xf32, #tpu.memory_space<vmem>>, %arg31: memref<96x1xf32, #tpu.memory_space<vmem>>, %arg32: memref<32x16xbf16, #tpu.memory_space<vmem>>, %arg33: memref<32x1xf32, #tpu.memory_space<vmem>>, %arg34: memref<16x1xf32, #tpu.memory_space<vmem>>, %arg35: memref<64x128xbf16, #tpu.memory_space<vmem>>, %arg36: memref<64x1xf32, #tpu.memory_space<vmem>>, %arg37: memref<128x1xf32, #tpu.memory_space<vmem>>, %arg38: memref<2x64xbf16, #tpu.memory_space<vmem>>, %arg39: memref<2x1xf32, #tpu.memory_space<vmem>>, %arg40: memref<1x2x32xf32, #tpu.memory_space<vmem>>) attributes {dimension_semantics = [#tpu.dimension_semantics<parallel>], iteration_bounds = array<i64: 1>, scalar_prefetch = 0 : i64, scratch_operands = 0 : i64, tpu.core_type = #tpu.core_type<tc>, window_params = [{transform_indices = @transform_0, window_bounds = array<i64: 2, 4, 512>}, {pipeline_mode = #tpu.pipeline_mode<synchronous>, transform_indices = @transform_1, window_bounds = array<i64: 1024, 256>}, {pipeline_mode = #tpu.pipeline_mode<synchronous>, transform_indices = @transform_2, window_bounds = array<i64: 256, 128>}, {pipeline_mode = #tpu.pipeline_mode<synchronous>, transform_indices = @transform_3, window_bounds = array<i64: 128, 64>}, {pipeline_mode = #tpu.pipeline_mode<synchronous>, transform_indices = @transform_4, window_bounds = array<i64: 24, 48>}, {pipeline_mode = #tpu.pipeline_mode<synchronous>, transform_indices = @transform_5, window_bounds = array<i64: 24, 1>}, {pipeline_mode = #tpu.pipeline_mode<synchronous>, transform_indices = @transform_6, window_bounds = array<i64: 4, 1>}, {pipeline_mode = #tpu.pipeline_mode<synchronous>, transform_indices = @transform_7, window_bounds = array<i64: 32, 120>}, {pipeline_mode = #tpu.pipeline_mode<synchronous>, transform_indices = @transform_8, window_bounds = array<i64: 32, 1>}, {pipeline_mode = #tpu.pipeline_mode<synchronous>, transform_indices = @transform_9, window_bounds = array<i64: 24, 1>}, {pipeline_mode = #tpu.pipeline_mode<synchronous>, transform_indices = @transform_10, window_bounds = array<i64: 32, 160>}, {pipeline_mode = #tpu.pipeline_mode<synchronous>, transform_indices = @transform_11, window_bounds = array<i64: 32, 1>}, {pipeline_mode = #tpu.pipeline_mode<synchronous>, transform_indices = @transform_12, window_bounds = array<i64: 32, 1>}, {pipeline_mode = #tpu.pipeline_mode<synchronous>, transform_indices = @transform_13, window_bounds = array<i64: 32, 160>}, {pipeline_mode = #tpu.pipeline_mode<synchronous>, transform_indices = @transform_14, window_bounds = array<i64: 32, 1>}, {pipeline_mode = #tpu.pipeline_mode<synchronous>, transform_indices = @transform_15, window_bounds = array<i64: 32, 1>}, {pipeline_mode = #tpu.pipeline_mode<synchronous>, transform_indices = @transform_16, window_bounds = array<i64: 16, 96>}, {pipeline_mode = #tpu.pipeline_mode<synchronous>, transform_indices = @transform_17, window_bounds = array<i64: 16, 1>}, {pipeline_mode = #tpu.pipeline_mode<synchronous>, transform_indices = @transform_18, window_bounds = array<i64: 32, 1>}, {pipeline_mode = #tpu.pipeline_mode<synchronous>, transform_indices = @transform_19, window_bounds = array<i64: 32, 16>}, {pipeline_mode = #tpu.pipeline_mode<synchronous>, transform_indices = @transform_20, window_bounds = array<i64: 32, 1>}, {pipeline_mode = #tpu.pipeline_mode<synchronous>, transform_indices = @transform_21, window_bounds = array<i64: 16, 1>}, {pipeline_mode = #tpu.pipeline_mode<synchronous>, transform_indices = @transform_22, window_bounds = array<i64: 16, 192>}, {pipeline_mode = #tpu.pipeline_mode<synchronous>, transform_indices = @transform_23, window_bounds = array<i64: 16, 1>}, {pipeline_mode = #tpu.pipeline_mode<synchronous>, transform_indices = @transform_24, window_bounds = array<i64: 64, 1>}, {pipeline_mode = #tpu.pipeline_mode<synchronous>, transform_indices = @transform_25, window_bounds = array<i64: 32, 16>}, {pipeline_mode = #tpu.pipeline_mode<synchronous>, transform_indices = @transform_26, window_bounds = array<i64: 32, 1>}, {pipeline_mode = #tpu.pipeline_mode<synchronous>, transform_indices = @transform_27, window_bounds = array<i64: 16, 1>}, {pipeline_mode = #tpu.pipeline_mode<synchronous>, transform_indices = @transform_28, window_bounds = array<i64: 16, 288>}, {pipeline_mode = #tpu.pipeline_mode<synchronous>, transform_indices = @transform_29, window_bounds = array<i64: 16, 1>}, {pipeline_mode = #tpu.pipeline_mode<synchronous>, transform_indices = @transform_30, window_bounds = array<i64: 96, 1>}, {pipeline_mode = #tpu.pipeline_mode<synchronous>, transform_indices = @transform_31, window_bounds = array<i64: 32, 16>}, {pipeline_mode = #tpu.pipeline_mode<synchronous>, transform_indices = @transform_32, window_bounds = array<i64: 32, 1>}, {pipeline_mode = #tpu.pipeline_mode<synchronous>, transform_indices = @transform_33, window_bounds = array<i64: 16, 1>}, {pipeline_mode = #tpu.pipeline_mode<synchronous>, transform_indices = @transform_34, window_bounds = array<i64: 64, 128>}, {pipeline_mode = #tpu.pipeline_mode<synchronous>, transform_indices = @transform_35, window_bounds = array<i64: 64, 1>}, {pipeline_mode = #tpu.pipeline_mode<synchronous>, transform_indices = @transform_36, window_bounds = array<i64: 128, 1>}, {pipeline_mode = #tpu.pipeline_mode<synchronous>, transform_indices = @transform_37, window_bounds = array<i64: 2, 64>}, {pipeline_mode = #tpu.pipeline_mode<synchronous>, transform_indices = @transform_38, window_bounds = array<i64: 2, 1>}, {transform_indices = @transform_39, window_bounds = array<i64: 1, 2, 32>}]} {
    %c0 = arith.constant 0 : index
    %c0_0 = arith.constant 0 : index
    %0 = vector.load %arg2[%c0, %c0_0] : memref<1024x256xbf16, #tpu.memory_space<vmem>>, vector<1024x256xbf16>
    %c0_1 = arith.constant 0 : index
    %c0_2 = arith.constant 0 : index
    %1 = vector.load %arg3[%c0_1, %c0_2] : memref<256x128xbf16, #tpu.memory_space<vmem>>, vector<256x128xbf16>
    %c0_3 = arith.constant 0 : index
    %c0_4 = arith.constant 0 : index
    %2 = vector.load %arg4[%c0_3, %c0_4] : memref<128x64xbf16, #tpu.memory_space<vmem>>, vector<128x64xbf16>
    %c0_5 = arith.constant 0 : index
    %c0_6 = arith.constant 0 : index
    %3 = vector.load %arg5[%c0_5, %c0_6] : memref<24x48xbf16, #tpu.memory_space<vmem>>, vector<24x48xbf16>
    %c0_7 = arith.constant 0 : index
    %c0_8 = arith.constant 0 : index
    %4 = vector.load %arg6[%c0_7, %c0_8] : memref<24x1xf32, #tpu.memory_space<vmem>>, vector<24x1xf32>
    %c0_9 = arith.constant 0 : index
    %c0_10 = arith.constant 0 : index
    %5 = vector.load %arg7[%c0_9, %c0_10] : memref<4x1xf32, #tpu.memory_space<vmem>>, vector<4x1xf32>
    %c0_11 = arith.constant 0 : index
    %c0_12 = arith.constant 0 : index
    %6 = vector.load %arg8[%c0_11, %c0_12] : memref<32x120xbf16, #tpu.memory_space<vmem>>, vector<32x120xbf16>
    %c0_13 = arith.constant 0 : index
    %c0_14 = arith.constant 0 : index
    %7 = vector.load %arg9[%c0_13, %c0_14] : memref<32x1xf32, #tpu.memory_space<vmem>>, vector<32x1xf32>
    %c0_15 = arith.constant 0 : index
    %c0_16 = arith.constant 0 : index
    %8 = vector.load %arg10[%c0_15, %c0_16] : memref<24x1xf32, #tpu.memory_space<vmem>>, vector<24x1xf32>
    %c0_17 = arith.constant 0 : index
    %c0_18 = arith.constant 0 : index
    %9 = vector.load %arg11[%c0_17, %c0_18] : memref<32x160xbf16, #tpu.memory_space<vmem>>, vector<32x160xbf16>
    %c0_19 = arith.constant 0 : index
    %c0_20 = arith.constant 0 : index
    %10 = vector.load %arg12[%c0_19, %c0_20] : memref<32x1xf32, #tpu.memory_space<vmem>>, vector<32x1xf32>
    %c0_21 = arith.constant 0 : index
    %c0_22 = arith.constant 0 : index
    %11 = vector.load %arg13[%c0_21, %c0_22] : memref<32x1xf32, #tpu.memory_space<vmem>>, vector<32x1xf32>
    %c0_23 = arith.constant 0 : index
    %c0_24 = arith.constant 0 : index
    %12 = vector.load %arg14[%c0_23, %c0_24] : memref<32x160xbf16, #tpu.memory_space<vmem>>, vector<32x160xbf16>
    %c0_25 = arith.constant 0 : index
    %c0_26 = arith.constant 0 : index
    %13 = vector.load %arg15[%c0_25, %c0_26] : memref<32x1xf32, #tpu.memory_space<vmem>>, vector<32x1xf32>
    %c0_27 = arith.constant 0 : index
    %c0_28 = arith.constant 0 : index
    %14 = vector.load %arg16[%c0_27, %c0_28] : memref<32x1xf32, #tpu.memory_space<vmem>>, vector<32x1xf32>
    %c0_29 = arith.constant 0 : index
    %c0_30 = arith.constant 0 : index
    %15 = vector.load %arg17[%c0_29, %c0_30] : memref<16x96xbf16, #tpu.memory_space<vmem>>, vector<16x96xbf16>
    %c0_31 = arith.constant 0 : index
    %c0_32 = arith.constant 0 : index
    %16 = vector.load %arg18[%c0_31, %c0_32] : memref<16x1xf32, #tpu.memory_space<vmem>>, vector<16x1xf32>
    %c0_33 = arith.constant 0 : index
    %c0_34 = arith.constant 0 : index
    %17 = vector.load %arg19[%c0_33, %c0_34] : memref<32x1xf32, #tpu.memory_space<vmem>>, vector<32x1xf32>
    %c0_35 = arith.constant 0 : index
    %c0_36 = arith.constant 0 : index
    %18 = vector.load %arg20[%c0_35, %c0_36] : memref<32x16xbf16, #tpu.memory_space<vmem>>, vector<32x16xbf16>
    %c0_37 = arith.constant 0 : index
    %c0_38 = arith.constant 0 : index
    %19 = vector.load %arg21[%c0_37, %c0_38] : memref<32x1xf32, #tpu.memory_space<vmem>>, vector<32x1xf32>
    %c0_39 = arith.constant 0 : index
    %c0_40 = arith.constant 0 : index
    %20 = vector.load %arg22[%c0_39, %c0_40] : memref<16x1xf32, #tpu.memory_space<vmem>>, vector<16x1xf32>
    %c0_41 = arith.constant 0 : index
    %c0_42 = arith.constant 0 : index
    %21 = vector.load %arg23[%c0_41, %c0_42] : memref<16x192xbf16, #tpu.memory_space<vmem>>, vector<16x192xbf16>
    %c0_43 = arith.constant 0 : index
    %c0_44 = arith.constant 0 : index
    %22 = vector.load %arg24[%c0_43, %c0_44] : memref<16x1xf32, #tpu.memory_space<vmem>>, vector<16x1xf32>
    %c0_45 = arith.constant 0 : index
    %c0_46 = arith.constant 0 : index
    %23 = vector.load %arg25[%c0_45, %c0_46] : memref<64x1xf32, #tpu.memory_space<vmem>>, vector<64x1xf32>
    %c0_47 = arith.constant 0 : index
    %c0_48 = arith.constant 0 : index
    %24 = vector.load %arg26[%c0_47, %c0_48] : memref<32x16xbf16, #tpu.memory_space<vmem>>, vector<32x16xbf16>
    %c0_49 = arith.constant 0 : index
    %c0_50 = arith.constant 0 : index
    %25 = vector.load %arg27[%c0_49, %c0_50] : memref<32x1xf32, #tpu.memory_space<vmem>>, vector<32x1xf32>
    %c0_51 = arith.constant 0 : index
    %c0_52 = arith.constant 0 : index
    %26 = vector.load %arg28[%c0_51, %c0_52] : memref<16x1xf32, #tpu.memory_space<vmem>>, vector<16x1xf32>
    %c0_53 = arith.constant 0 : index
    %c0_54 = arith.constant 0 : index
    %27 = vector.load %arg29[%c0_53, %c0_54] : memref<16x288xbf16, #tpu.memory_space<vmem>>, vector<16x288xbf16>
    %c0_55 = arith.constant 0 : index
    %c0_56 = arith.constant 0 : index
    %28 = vector.load %arg30[%c0_55, %c0_56] : memref<16x1xf32, #tpu.memory_space<vmem>>, vector<16x1xf32>
    %c0_57 = arith.constant 0 : index
    %c0_58 = arith.constant 0 : index
    %29 = vector.load %arg31[%c0_57, %c0_58] : memref<96x1xf32, #tpu.memory_space<vmem>>, vector<96x1xf32>
    %c0_59 = arith.constant 0 : index
    %c0_60 = arith.constant 0 : index
    %30 = vector.load %arg32[%c0_59, %c0_60] : memref<32x16xbf16, #tpu.memory_space<vmem>>, vector<32x16xbf16>
    %c0_61 = arith.constant 0 : index
    %c0_62 = arith.constant 0 : index
    %31 = vector.load %arg33[%c0_61, %c0_62] : memref<32x1xf32, #tpu.memory_space<vmem>>, vector<32x1xf32>
    %c0_63 = arith.constant 0 : index
    %c0_64 = arith.constant 0 : index
    %32 = vector.load %arg34[%c0_63, %c0_64] : memref<16x1xf32, #tpu.memory_space<vmem>>, vector<16x1xf32>
    %c0_65 = arith.constant 0 : index
    %c0_66 = arith.constant 0 : index
    %33 = vector.load %arg35[%c0_65, %c0_66] : memref<64x128xbf16, #tpu.memory_space<vmem>>, vector<64x128xbf16>
    %c0_67 = arith.constant 0 : index
    %c0_68 = arith.constant 0 : index
    %34 = vector.load %arg36[%c0_67, %c0_68] : memref<64x1xf32, #tpu.memory_space<vmem>>, vector<64x1xf32>
    %c0_69 = arith.constant 0 : index
    %c0_70 = arith.constant 0 : index
    %35 = vector.load %arg37[%c0_69, %c0_70] : memref<128x1xf32, #tpu.memory_space<vmem>>, vector<128x1xf32>
    %c0_71 = arith.constant 0 : index
    %c0_72 = arith.constant 0 : index
    %36 = vector.load %arg38[%c0_71, %c0_72] : memref<2x64xbf16, #tpu.memory_space<vmem>>, vector<2x64xbf16>
    %c0_73 = arith.constant 0 : index
    %c0_74 = arith.constant 0 : index
    %37 = vector.load %arg39[%c0_73, %c0_74] : memref<2x1xf32, #tpu.memory_space<vmem>>, vector<2x1xf32>
    %c0_75 = arith.constant 0 : index
    %c0_76 = arith.constant 0 : index
    %c0_77 = arith.constant 0 : index
    %38 = vector.load %arg1[%c0_75, %c0_76, %c0_77] : memref<2x4x512xf32, #tpu.memory_space<vmem>>, vector<1x4x512xf32>
    %39 = vector.shape_cast %38 : vector<1x4x512xf32> to vector<4x512xf32>
    %c1 = arith.constant 1 : index
    %c0_78 = arith.constant 0 : index
    %c0_79 = arith.constant 0 : index
    %40 = vector.load %arg1[%c1, %c0_78, %c0_79] : memref<2x4x512xf32, #tpu.memory_space<vmem>>, vector<1x4x512xf32>
    %41 = vector.shape_cast %40 : vector<1x4x512xf32> to vector<4x512xf32>
    %42 = tpu.concatenate %39, %41 in 1 : vector<4x512xf32>, vector<4x512xf32> -> vector<4x1024xf32>
    %cst = arith.constant 5.000000e-01 : f32
    %43 = vector.broadcast %cst : f32 to vector<4x1024xf32>
    %44 = arith.mulf %43, %42 : vector<4x1024xf32>
    %cst_80 = arith.constant 0.707106769 : f32
    %45 = vector.broadcast %cst_80 : f32 to vector<4x1024xf32>
    %46 = arith.mulf %42, %45 : vector<4x1024xf32>
    %47 = math.absf %46 : vector<4x1024xf32>
    %cst_81 = arith.constant 0.327591091 : f32
    %48 = vector.broadcast %cst_81 : f32 to vector<4x1024xf32>
    %49 = arith.mulf %48, %47 : vector<4x1024xf32>
    %cst_82 = arith.constant 1.000000e+00 : f32
    %50 = vector.broadcast %cst_82 : f32 to vector<4x1024xf32>
    %51 = arith.addf %50, %49 : vector<4x1024xf32>
    %cst_83 = arith.constant 1.000000e+00 : f32
    %52 = vector.broadcast %cst_83 : f32 to vector<4x1024xf32>
    %53 = arith.divf %52, %51 : vector<4x1024xf32>
    %cst_84 = arith.constant 1.06140542 : f32
    %54 = vector.broadcast %cst_84 : f32 to vector<4x1024xf32>
    %55 = arith.mulf %54, %53 : vector<4x1024xf32>
    %cst_85 = arith.constant -1.45315206 : f32
    %56 = vector.broadcast %cst_85 : f32 to vector<4x1024xf32>
    %57 = arith.addf %55, %56 : vector<4x1024xf32>
    %58 = arith.mulf %57, %53 : vector<4x1024xf32>
    %cst_86 = arith.constant 1.42141378 : f32
    %59 = vector.broadcast %cst_86 : f32 to vector<4x1024xf32>
    %60 = arith.addf %58, %59 : vector<4x1024xf32>
    %61 = arith.mulf %60, %53 : vector<4x1024xf32>
    %cst_87 = arith.constant -0.284496725 : f32
    %62 = vector.broadcast %cst_87 : f32 to vector<4x1024xf32>
    %63 = arith.addf %61, %62 : vector<4x1024xf32>
    %64 = arith.mulf %63, %53 : vector<4x1024xf32>
    %cst_88 = arith.constant 0.254829586 : f32
    %65 = vector.broadcast %cst_88 : f32 to vector<4x1024xf32>
    %66 = arith.addf %64, %65 : vector<4x1024xf32>
    %67 = arith.mulf %66, %53 : vector<4x1024xf32>
    %cst_89 = arith.constant 0.000000e+00 : f32
    %68 = vector.broadcast %cst_89 : f32 to vector<4x1024xf32>
    %69 = arith.subf %68, %47 : vector<4x1024xf32>
    %70 = arith.mulf %69, %47 : vector<4x1024xf32>
    %71 = math.exp %70 : vector<4x1024xf32>
    %72 = arith.mulf %67, %71 : vector<4x1024xf32>
    %cst_90 = arith.constant 1.000000e+00 : f32
    %73 = vector.broadcast %cst_90 : f32 to vector<4x1024xf32>
    %74 = arith.subf %73, %72 : vector<4x1024xf32>
    %cst_91 = arith.constant 0.000000e+00 : f32
    %75 = vector.broadcast %cst_91 : f32 to vector<4x1024xf32>
    %76 = arith.cmpf oge, %46, %75 : vector<4x1024xf32>
    %cst_92 = arith.constant 0.000000e+00 : f32
    %77 = vector.broadcast %cst_92 : f32 to vector<4x1024xf32>
    %78 = arith.subf %77, %74 : vector<4x1024xf32>
    %79 = arith.select %76, %74, %78 : vector<4x1024xi1>, vector<4x1024xf32>
    %cst_93 = arith.constant 1.000000e+00 : f32
    %80 = vector.broadcast %cst_93 : f32 to vector<4x1024xf32>
    %81 = arith.addf %80, %79 : vector<4x1024xf32>
    %82 = arith.mulf %44, %81 : vector<4x1024xf32>
    %83 = vector.broadcast %5 : vector<4x1xf32> to vector<4x1024xf32>
    %84 = arith.addf %82, %83 : vector<4x1024xf32>
    %85 = tpu.iota {dimensions = array<i32: 1>} : vector<1x512xi32>
    %86 = tpu.concatenate %85, %85 in 1 : vector<1x512xi32>, vector<1x512xi32> -> vector<1x1024xi32>
    %cst_94 = arith.constant 0.000000e+00 : f32
    %87 = vector.broadcast %cst_94 : f32 to vector<4x5xf32>
    %88 = vector.extract_strided_slice %84 {offsets = [0, 0], sizes = [4, 1019], strides = [1, 1]} : vector<4x1024xf32> to vector<4x1019xf32>
    %89 = tpu.concatenate %87, %88 in 1 : vector<4x5xf32>, vector<4x1019xf32> -> vector<4x1024xf32>
    %c-5_i32 = arith.constant -5 : i32
    %90 = vector.broadcast %c-5_i32 : i32 to vector<1x1024xi32>
    %91 = arith.addi %86, %90 : vector<1x1024xi32>
    %c0_i32 = arith.constant 0 : i32
    %92 = vector.broadcast %c0_i32 : i32 to vector<1x1024xi32>
    %93 = arith.cmpi sge, %91, %92 : vector<1x1024xi32>
    %c-5_i32_95 = arith.constant -5 : i32
    %94 = vector.broadcast %c-5_i32_95 : i32 to vector<1x1024xi32>
    %95 = arith.addi %86, %94 : vector<1x1024xi32>
    %c512_i32 = arith.constant 512 : i32
    %96 = vector.broadcast %c512_i32 : i32 to vector<1x1024xi32>
    %97 = arith.cmpi slt, %95, %96 : vector<1x1024xi32>
    %98 = arith.andi %93, %97 : vector<1x1024xi1>
    %cst_96 = arith.constant 0.000000e+00 : f32
    %99 = vector.broadcast %cst_96 : f32 to vector<4x1024xf32>
    %100 = vector.shape_cast %98 : vector<1x1024xi1> to vector<1x1024xi1>
    %101 = vector.broadcast %100 : vector<1x1024xi1> to vector<4x1024xi1>
    %102 = arith.select %101, %89, %99 : vector<4x1024xi1>, vector<4x1024xf32>
    %cst_97 = arith.constant 0.000000e+00 : f32
    %103 = vector.broadcast %cst_97 : f32 to vector<4x4xf32>
    %104 = vector.extract_strided_slice %84 {offsets = [0, 0], sizes = [4, 1020], strides = [1, 1]} : vector<4x1024xf32> to vector<4x1020xf32>
    %105 = tpu.concatenate %103, %104 in 1 : vector<4x4xf32>, vector<4x1020xf32> -> vector<4x1024xf32>
    %c-4_i32 = arith.constant -4 : i32
    %106 = vector.broadcast %c-4_i32 : i32 to vector<1x1024xi32>
    %107 = arith.addi %86, %106 : vector<1x1024xi32>
    %c0_i32_98 = arith.constant 0 : i32
    %108 = vector.broadcast %c0_i32_98 : i32 to vector<1x1024xi32>
    %109 = arith.cmpi sge, %107, %108 : vector<1x1024xi32>
    %c-4_i32_99 = arith.constant -4 : i32
    %110 = vector.broadcast %c-4_i32_99 : i32 to vector<1x1024xi32>
    %111 = arith.addi %86, %110 : vector<1x1024xi32>
    %c512_i32_100 = arith.constant 512 : i32
    %112 = vector.broadcast %c512_i32_100 : i32 to vector<1x1024xi32>
    %113 = arith.cmpi slt, %111, %112 : vector<1x1024xi32>
    %114 = arith.andi %109, %113 : vector<1x1024xi1>
    %cst_101 = arith.constant 0.000000e+00 : f32
    %115 = vector.broadcast %cst_101 : f32 to vector<4x1024xf32>
    %116 = vector.shape_cast %114 : vector<1x1024xi1> to vector<1x1024xi1>
    %117 = vector.broadcast %116 : vector<1x1024xi1> to vector<4x1024xi1>
    %118 = arith.select %117, %105, %115 : vector<4x1024xi1>, vector<4x1024xf32>
    %cst_102 = arith.constant 0.000000e+00 : f32
    %119 = vector.broadcast %cst_102 : f32 to vector<4x3xf32>
    %120 = vector.extract_strided_slice %84 {offsets = [0, 0], sizes = [4, 1021], strides = [1, 1]} : vector<4x1024xf32> to vector<4x1021xf32>
    %121 = tpu.concatenate %119, %120 in 1 : vector<4x3xf32>, vector<4x1021xf32> -> vector<4x1024xf32>
    %c-3_i32 = arith.constant -3 : i32
    %122 = vector.broadcast %c-3_i32 : i32 to vector<1x1024xi32>
    %123 = arith.addi %86, %122 : vector<1x1024xi32>
    %c0_i32_103 = arith.constant 0 : i32
    %124 = vector.broadcast %c0_i32_103 : i32 to vector<1x1024xi32>
    %125 = arith.cmpi sge, %123, %124 : vector<1x1024xi32>
    %c-3_i32_104 = arith.constant -3 : i32
    %126 = vector.broadcast %c-3_i32_104 : i32 to vector<1x1024xi32>
    %127 = arith.addi %86, %126 : vector<1x1024xi32>
    %c512_i32_105 = arith.constant 512 : i32
    %128 = vector.broadcast %c512_i32_105 : i32 to vector<1x1024xi32>
    %129 = arith.cmpi slt, %127, %128 : vector<1x1024xi32>
    %130 = arith.andi %125, %129 : vector<1x1024xi1>
    %cst_106 = arith.constant 0.000000e+00 : f32
    %131 = vector.broadcast %cst_106 : f32 to vector<4x1024xf32>
    %132 = vector.shape_cast %130 : vector<1x1024xi1> to vector<1x1024xi1>
    %133 = vector.broadcast %132 : vector<1x1024xi1> to vector<4x1024xi1>
    %134 = arith.select %133, %121, %131 : vector<4x1024xi1>, vector<4x1024xf32>
    %cst_107 = arith.constant 0.000000e+00 : f32
    %135 = vector.broadcast %cst_107 : f32 to vector<4x2xf32>
    %136 = vector.extract_strided_slice %84 {offsets = [0, 0], sizes = [4, 1022], strides = [1, 1]} : vector<4x1024xf32> to vector<4x1022xf32>
    %137 = tpu.concatenate %135, %136 in 1 : vector<4x2xf32>, vector<4x1022xf32> -> vector<4x1024xf32>
    %c-2_i32 = arith.constant -2 : i32
    %138 = vector.broadcast %c-2_i32 : i32 to vector<1x1024xi32>
    %139 = arith.addi %86, %138 : vector<1x1024xi32>
    %c0_i32_108 = arith.constant 0 : i32
    %140 = vector.broadcast %c0_i32_108 : i32 to vector<1x1024xi32>
    %141 = arith.cmpi sge, %139, %140 : vector<1x1024xi32>
    %c-2_i32_109 = arith.constant -2 : i32
    %142 = vector.broadcast %c-2_i32_109 : i32 to vector<1x1024xi32>
    %143 = arith.addi %86, %142 : vector<1x1024xi32>
    %c512_i32_110 = arith.constant 512 : i32
    %144 = vector.broadcast %c512_i32_110 : i32 to vector<1x1024xi32>
    %145 = arith.cmpi slt, %143, %144 : vector<1x1024xi32>
    %146 = arith.andi %141, %145 : vector<1x1024xi1>
    %cst_111 = arith.constant 0.000000e+00 : f32
    %147 = vector.broadcast %cst_111 : f32 to vector<4x1024xf32>
    %148 = vector.shape_cast %146 : vector<1x1024xi1> to vector<1x1024xi1>
    %149 = vector.broadcast %148 : vector<1x1024xi1> to vector<4x1024xi1>
    %150 = arith.select %149, %137, %147 : vector<4x1024xi1>, vector<4x1024xf32>
    %cst_112 = arith.constant 0.000000e+00 : f32
    %151 = vector.broadcast %cst_112 : f32 to vector<4x1xf32>
    %152 = vector.extract_strided_slice %84 {offsets = [0, 0], sizes = [4, 1023], strides = [1, 1]} : vector<4x1024xf32> to vector<4x1023xf32>
    %153 = tpu.concatenate %151, %152 in 1 : vector<4x1xf32>, vector<4x1023xf32> -> vector<4x1024xf32>
    %c-1_i32 = arith.constant -1 : i32
    %154 = vector.broadcast %c-1_i32 : i32 to vector<1x1024xi32>
    %155 = arith.addi %86, %154 : vector<1x1024xi32>
    %c0_i32_113 = arith.constant 0 : i32
    %156 = vector.broadcast %c0_i32_113 : i32 to vector<1x1024xi32>
    %157 = arith.cmpi sge, %155, %156 : vector<1x1024xi32>
    %c-1_i32_114 = arith.constant -1 : i32
    %158 = vector.broadcast %c-1_i32_114 : i32 to vector<1x1024xi32>
    %159 = arith.addi %86, %158 : vector<1x1024xi32>
    %c512_i32_115 = arith.constant 512 : i32
    %160 = vector.broadcast %c512_i32_115 : i32 to vector<1x1024xi32>
    %161 = arith.cmpi slt, %159, %160 : vector<1x1024xi32>
    %162 = arith.andi %157, %161 : vector<1x1024xi1>
    %cst_116 = arith.constant 0.000000e+00 : f32
    %163 = vector.broadcast %cst_116 : f32 to vector<4x1024xf32>
    %164 = vector.shape_cast %162 : vector<1x1024xi1> to vector<1x1024xi1>
    %165 = vector.broadcast %164 : vector<1x1024xi1> to vector<4x1024xi1>
    %166 = arith.select %165, %153, %163 : vector<4x1024xi1>, vector<4x1024xf32>
    %cst_117 = arith.constant 0.000000e+00 : f32
    %167 = vector.broadcast %cst_117 : f32 to vector<4x1xf32>
    %168 = vector.extract_strided_slice %84 {offsets = [0, 1], sizes = [4, 1023], strides = [1, 1]} : vector<4x1024xf32> to vector<4x1023xf32>
    %169 = tpu.concatenate %168, %167 in 1 : vector<4x1023xf32>, vector<4x1xf32> -> vector<4x1024xf32>
    %c1_i32 = arith.constant 1 : i32
    %170 = vector.broadcast %c1_i32 : i32 to vector<1x1024xi32>
    %171 = arith.addi %86, %170 : vector<1x1024xi32>
    %c0_i32_118 = arith.constant 0 : i32
    %172 = vector.broadcast %c0_i32_118 : i32 to vector<1x1024xi32>
    %173 = arith.cmpi sge, %171, %172 : vector<1x1024xi32>
    %c1_i32_119 = arith.constant 1 : i32
    %174 = vector.broadcast %c1_i32_119 : i32 to vector<1x1024xi32>
    %175 = arith.addi %86, %174 : vector<1x1024xi32>
    %c512_i32_120 = arith.constant 512 : i32
    %176 = vector.broadcast %c512_i32_120 : i32 to vector<1x1024xi32>
    %177 = arith.cmpi slt, %175, %176 : vector<1x1024xi32>
    %178 = arith.andi %173, %177 : vector<1x1024xi1>
    %cst_121 = arith.constant 0.000000e+00 : f32
    %179 = vector.broadcast %cst_121 : f32 to vector<4x1024xf32>
    %180 = vector.shape_cast %178 : vector<1x1024xi1> to vector<1x1024xi1>
    %181 = vector.broadcast %180 : vector<1x1024xi1> to vector<4x1024xi1>
    %182 = arith.select %181, %169, %179 : vector<4x1024xi1>, vector<4x1024xf32>
    %cst_122 = arith.constant 0.000000e+00 : f32
    %183 = vector.broadcast %cst_122 : f32 to vector<4x2xf32>
    %184 = vector.extract_strided_slice %84 {offsets = [0, 2], sizes = [4, 1022], strides = [1, 1]} : vector<4x1024xf32> to vector<4x1022xf32>
    %185 = tpu.concatenate %184, %183 in 1 : vector<4x1022xf32>, vector<4x2xf32> -> vector<4x1024xf32>
    %c2_i32 = arith.constant 2 : i32
    %186 = vector.broadcast %c2_i32 : i32 to vector<1x1024xi32>
    %187 = arith.addi %86, %186 : vector<1x1024xi32>
    %c0_i32_123 = arith.constant 0 : i32
    %188 = vector.broadcast %c0_i32_123 : i32 to vector<1x1024xi32>
    %189 = arith.cmpi sge, %187, %188 : vector<1x1024xi32>
    %c2_i32_124 = arith.constant 2 : i32
    %190 = vector.broadcast %c2_i32_124 : i32 to vector<1x1024xi32>
    %191 = arith.addi %86, %190 : vector<1x1024xi32>
    %c512_i32_125 = arith.constant 512 : i32
    %192 = vector.broadcast %c512_i32_125 : i32 to vector<1x1024xi32>
    %193 = arith.cmpi slt, %191, %192 : vector<1x1024xi32>
    %194 = arith.andi %189, %193 : vector<1x1024xi1>
    %cst_126 = arith.constant 0.000000e+00 : f32
    %195 = vector.broadcast %cst_126 : f32 to vector<4x1024xf32>
    %196 = vector.shape_cast %194 : vector<1x1024xi1> to vector<1x1024xi1>
    %197 = vector.broadcast %196 : vector<1x1024xi1> to vector<4x1024xi1>
    %198 = arith.select %197, %185, %195 : vector<4x1024xi1>, vector<4x1024xf32>
    %cst_127 = arith.constant 0.000000e+00 : f32
    %199 = vector.broadcast %cst_127 : f32 to vector<4x3xf32>
    %200 = vector.extract_strided_slice %84 {offsets = [0, 3], sizes = [4, 1021], strides = [1, 1]} : vector<4x1024xf32> to vector<4x1021xf32>
    %201 = tpu.concatenate %200, %199 in 1 : vector<4x1021xf32>, vector<4x3xf32> -> vector<4x1024xf32>
    %c3_i32 = arith.constant 3 : i32
    %202 = vector.broadcast %c3_i32 : i32 to vector<1x1024xi32>
    %203 = arith.addi %86, %202 : vector<1x1024xi32>
    %c0_i32_128 = arith.constant 0 : i32
    %204 = vector.broadcast %c0_i32_128 : i32 to vector<1x1024xi32>
    %205 = arith.cmpi sge, %203, %204 : vector<1x1024xi32>
    %c3_i32_129 = arith.constant 3 : i32
    %206 = vector.broadcast %c3_i32_129 : i32 to vector<1x1024xi32>
    %207 = arith.addi %86, %206 : vector<1x1024xi32>
    %c512_i32_130 = arith.constant 512 : i32
    %208 = vector.broadcast %c512_i32_130 : i32 to vector<1x1024xi32>
    %209 = arith.cmpi slt, %207, %208 : vector<1x1024xi32>
    %210 = arith.andi %205, %209 : vector<1x1024xi1>
    %cst_131 = arith.constant 0.000000e+00 : f32
    %211 = vector.broadcast %cst_131 : f32 to vector<4x1024xf32>
    %212 = vector.shape_cast %210 : vector<1x1024xi1> to vector<1x1024xi1>
    %213 = vector.broadcast %212 : vector<1x1024xi1> to vector<4x1024xi1>
    %214 = arith.select %213, %201, %211 : vector<4x1024xi1>, vector<4x1024xf32>
    %cst_132 = arith.constant 0.000000e+00 : f32
    %215 = vector.broadcast %cst_132 : f32 to vector<4x4xf32>
    %216 = vector.extract_strided_slice %84 {offsets = [0, 4], sizes = [4, 1020], strides = [1, 1]} : vector<4x1024xf32> to vector<4x1020xf32>
    %217 = tpu.concatenate %216, %215 in 1 : vector<4x1020xf32>, vector<4x4xf32> -> vector<4x1024xf32>
    %c4_i32 = arith.constant 4 : i32
    %218 = vector.broadcast %c4_i32 : i32 to vector<1x1024xi32>
    %219 = arith.addi %86, %218 : vector<1x1024xi32>
    %c0_i32_133 = arith.constant 0 : i32
    %220 = vector.broadcast %c0_i32_133 : i32 to vector<1x1024xi32>
    %221 = arith.cmpi sge, %219, %220 : vector<1x1024xi32>
    %c4_i32_134 = arith.constant 4 : i32
    %222 = vector.broadcast %c4_i32_134 : i32 to vector<1x1024xi32>
    %223 = arith.addi %86, %222 : vector<1x1024xi32>
    %c512_i32_135 = arith.constant 512 : i32
    %224 = vector.broadcast %c512_i32_135 : i32 to vector<1x1024xi32>
    %225 = arith.cmpi slt, %223, %224 : vector<1x1024xi32>
    %226 = arith.andi %221, %225 : vector<1x1024xi1>
    %cst_136 = arith.constant 0.000000e+00 : f32
    %227 = vector.broadcast %cst_136 : f32 to vector<4x1024xf32>
    %228 = vector.shape_cast %226 : vector<1x1024xi1> to vector<1x1024xi1>
    %229 = vector.broadcast %228 : vector<1x1024xi1> to vector<4x1024xi1>
    %230 = arith.select %229, %217, %227 : vector<4x1024xi1>, vector<4x1024xf32>
    %cst_137 = arith.constant 0.000000e+00 : f32
    %231 = vector.broadcast %cst_137 : f32 to vector<4x5xf32>
    %232 = vector.extract_strided_slice %84 {offsets = [0, 5], sizes = [4, 1019], strides = [1, 1]} : vector<4x1024xf32> to vector<4x1019xf32>
    %233 = tpu.concatenate %232, %231 in 1 : vector<4x1019xf32>, vector<4x5xf32> -> vector<4x1024xf32>
    %c5_i32 = arith.constant 5 : i32
    %234 = vector.broadcast %c5_i32 : i32 to vector<1x1024xi32>
    %235 = arith.addi %86, %234 : vector<1x1024xi32>
    %c0_i32_138 = arith.constant 0 : i32
    %236 = vector.broadcast %c0_i32_138 : i32 to vector<1x1024xi32>
    %237 = arith.cmpi sge, %235, %236 : vector<1x1024xi32>
    %c5_i32_139 = arith.constant 5 : i32
    %238 = vector.broadcast %c5_i32_139 : i32 to vector<1x1024xi32>
    %239 = arith.addi %86, %238 : vector<1x1024xi32>
    %c512_i32_140 = arith.constant 512 : i32
    %240 = vector.broadcast %c512_i32_140 : i32 to vector<1x1024xi32>
    %241 = arith.cmpi slt, %239, %240 : vector<1x1024xi32>
    %242 = arith.andi %237, %241 : vector<1x1024xi1>
    %cst_141 = arith.constant 0.000000e+00 : f32
    %243 = vector.broadcast %cst_141 : f32 to vector<4x1024xf32>
    %244 = vector.shape_cast %242 : vector<1x1024xi1> to vector<1x1024xi1>
    %245 = vector.broadcast %244 : vector<1x1024xi1> to vector<4x1024xi1>
    %246 = arith.select %245, %233, %243 : vector<4x1024xi1>, vector<4x1024xf32>
    %cst_142 = arith.constant 0.000000e+00 : f32
    %247 = vector.broadcast %cst_142 : f32 to vector<4x6xf32>
    %248 = vector.extract_strided_slice %84 {offsets = [0, 6], sizes = [4, 1018], strides = [1, 1]} : vector<4x1024xf32> to vector<4x1018xf32>
    %249 = tpu.concatenate %248, %247 in 1 : vector<4x1018xf32>, vector<4x6xf32> -> vector<4x1024xf32>
    %c6_i32 = arith.constant 6 : i32
    %250 = vector.broadcast %c6_i32 : i32 to vector<1x1024xi32>
    %251 = arith.addi %86, %250 : vector<1x1024xi32>
    %c0_i32_143 = arith.constant 0 : i32
    %252 = vector.broadcast %c0_i32_143 : i32 to vector<1x1024xi32>
    %253 = arith.cmpi sge, %251, %252 : vector<1x1024xi32>
    %c6_i32_144 = arith.constant 6 : i32
    %254 = vector.broadcast %c6_i32_144 : i32 to vector<1x1024xi32>
    %255 = arith.addi %86, %254 : vector<1x1024xi32>
    %c512_i32_145 = arith.constant 512 : i32
    %256 = vector.broadcast %c512_i32_145 : i32 to vector<1x1024xi32>
    %257 = arith.cmpi slt, %255, %256 : vector<1x1024xi32>
    %258 = arith.andi %253, %257 : vector<1x1024xi1>
    %cst_146 = arith.constant 0.000000e+00 : f32
    %259 = vector.broadcast %cst_146 : f32 to vector<4x1024xf32>
    %260 = vector.shape_cast %258 : vector<1x1024xi1> to vector<1x1024xi1>
    %261 = vector.broadcast %260 : vector<1x1024xi1> to vector<4x1024xi1>
    %262 = arith.select %261, %249, %259 : vector<4x1024xi1>, vector<4x1024xf32>
    %263 = vector.extract_strided_slice %3 {offsets = [0, 0], sizes = [24, 4], strides = [1, 1]} : vector<24x48xbf16> to vector<24x4xbf16>
    %264 = arith.truncf %102 : vector<4x1024xf32> to vector<4x1024xbf16>
    %cst_147 = arith.constant dense<0.000000e+00> : vector<24x1024xf32>
    %265 = tpu.matmul %263, %264, %cst_147 {dimension_numbers = #tpu.dot_dimension_numbers<[1], [0], [0], [1], [0, 0, 1, 1], [], []>} : vector<24x4xbf16>, vector<4x1024xbf16>, vector<24x1024xf32> -> vector<24x1024xf32>
    %266 = vector.extract_strided_slice %3 {offsets = [0, 4], sizes = [24, 4], strides = [1, 1]} : vector<24x48xbf16> to vector<24x4xbf16>
    %267 = arith.truncf %118 : vector<4x1024xf32> to vector<4x1024xbf16>
    %cst_148 = arith.constant dense<0.000000e+00> : vector<24x1024xf32>
    %268 = tpu.matmul %266, %267, %cst_148 {dimension_numbers = #tpu.dot_dimension_numbers<[1], [0], [0], [1], [0, 0, 1, 1], [], []>} : vector<24x4xbf16>, vector<4x1024xbf16>, vector<24x1024xf32> -> vector<24x1024xf32>
    %269 = arith.addf %265, %268 : vector<24x1024xf32>
    %270 = vector.extract_strided_slice %3 {offsets = [0, 8], sizes = [24, 4], strides = [1, 1]} : vector<24x48xbf16> to vector<24x4xbf16>
    %271 = arith.truncf %134 : vector<4x1024xf32> to vector<4x1024xbf16>
    %cst_149 = arith.constant dense<0.000000e+00> : vector<24x1024xf32>
    %272 = tpu.matmul %270, %271, %cst_149 {dimension_numbers = #tpu.dot_dimension_numbers<[1], [0], [0], [1], [0, 0, 1, 1], [], []>} : vector<24x4xbf16>, vector<4x1024xbf16>, vector<24x1024xf32> -> vector<24x1024xf32>
    %273 = arith.addf %269, %272 : vector<24x1024xf32>
    %274 = vector.extract_strided_slice %3 {offsets = [0, 12], sizes = [24, 4], strides = [1, 1]} : vector<24x48xbf16> to vector<24x4xbf16>
    %275 = arith.truncf %150 : vector<4x1024xf32> to vector<4x1024xbf16>
    %cst_150 = arith.constant dense<0.000000e+00> : vector<24x1024xf32>
    %276 = tpu.matmul %274, %275, %cst_150 {dimension_numbers = #tpu.dot_dimension_numbers<[1], [0], [0], [1], [0, 0, 1, 1], [], []>} : vector<24x4xbf16>, vector<4x1024xbf16>, vector<24x1024xf32> -> vector<24x1024xf32>
    %277 = arith.addf %273, %276 : vector<24x1024xf32>
    %278 = vector.extract_strided_slice %3 {offsets = [0, 16], sizes = [24, 4], strides = [1, 1]} : vector<24x48xbf16> to vector<24x4xbf16>
    %279 = arith.truncf %166 : vector<4x1024xf32> to vector<4x1024xbf16>
    %cst_151 = arith.constant dense<0.000000e+00> : vector<24x1024xf32>
    %280 = tpu.matmul %278, %279, %cst_151 {dimension_numbers = #tpu.dot_dimension_numbers<[1], [0], [0], [1], [0, 0, 1, 1], [], []>} : vector<24x4xbf16>, vector<4x1024xbf16>, vector<24x1024xf32> -> vector<24x1024xf32>
    %281 = arith.addf %277, %280 : vector<24x1024xf32>
    %282 = vector.extract_strided_slice %3 {offsets = [0, 20], sizes = [24, 4], strides = [1, 1]} : vector<24x48xbf16> to vector<24x4xbf16>
    %283 = arith.truncf %84 : vector<4x1024xf32> to vector<4x1024xbf16>
    %cst_152 = arith.constant dense<0.000000e+00> : vector<24x1024xf32>
    %284 = tpu.matmul %282, %283, %cst_152 {dimension_numbers = #tpu.dot_dimension_numbers<[1], [0], [0], [1], [0, 0, 1, 1], [], []>} : vector<24x4xbf16>, vector<4x1024xbf16>, vector<24x1024xf32> -> vector<24x1024xf32>
    %285 = arith.addf %281, %284 : vector<24x1024xf32>
    %286 = vector.extract_strided_slice %3 {offsets = [0, 24], sizes = [24, 4], strides = [1, 1]} : vector<24x48xbf16> to vector<24x4xbf16>
    %287 = arith.truncf %182 : vector<4x1024xf32> to vector<4x1024xbf16>
    %cst_153 = arith.constant dense<0.000000e+00> : vector<24x1024xf32>
    %288 = tpu.matmul %286, %287, %cst_153 {dimension_numbers = #tpu.dot_dimension_numbers<[1], [0], [0], [1], [0, 0, 1, 1], [], []>} : vector<24x4xbf16>, vector<4x1024xbf16>, vector<24x1024xf32> -> vector<24x1024xf32>
    %289 = arith.addf %285, %288 : vector<24x1024xf32>
    %290 = vector.extract_strided_slice %3 {offsets = [0, 28], sizes = [24, 4], strides = [1, 1]} : vector<24x48xbf16> to vector<24x4xbf16>
    %291 = arith.truncf %198 : vector<4x1024xf32> to vector<4x1024xbf16>
    %cst_154 = arith.constant dense<0.000000e+00> : vector<24x1024xf32>
    %292 = tpu.matmul %290, %291, %cst_154 {dimension_numbers = #tpu.dot_dimension_numbers<[1], [0], [0], [1], [0, 0, 1, 1], [], []>} : vector<24x4xbf16>, vector<4x1024xbf16>, vector<24x1024xf32> -> vector<24x1024xf32>
    %293 = arith.addf %289, %292 : vector<24x1024xf32>
    %294 = vector.extract_strided_slice %3 {offsets = [0, 32], sizes = [24, 4], strides = [1, 1]} : vector<24x48xbf16> to vector<24x4xbf16>
    %295 = arith.truncf %214 : vector<4x1024xf32> to vector<4x1024xbf16>
    %cst_155 = arith.constant dense<0.000000e+00> : vector<24x1024xf32>
    %296 = tpu.matmul %294, %295, %cst_155 {dimension_numbers = #tpu.dot_dimension_numbers<[1], [0], [0], [1], [0, 0, 1, 1], [], []>} : vector<24x4xbf16>, vector<4x1024xbf16>, vector<24x1024xf32> -> vector<24x1024xf32>
    %297 = arith.addf %293, %296 : vector<24x1024xf32>
    %298 = vector.extract_strided_slice %3 {offsets = [0, 36], sizes = [24, 4], strides = [1, 1]} : vector<24x48xbf16> to vector<24x4xbf16>
    %299 = arith.truncf %230 : vector<4x1024xf32> to vector<4x1024xbf16>
    %cst_156 = arith.constant dense<0.000000e+00> : vector<24x1024xf32>
    %300 = tpu.matmul %298, %299, %cst_156 {dimension_numbers = #tpu.dot_dimension_numbers<[1], [0], [0], [1], [0, 0, 1, 1], [], []>} : vector<24x4xbf16>, vector<4x1024xbf16>, vector<24x1024xf32> -> vector<24x1024xf32>
    %301 = arith.addf %297, %300 : vector<24x1024xf32>
    %302 = vector.extract_strided_slice %3 {offsets = [0, 40], sizes = [24, 4], strides = [1, 1]} : vector<24x48xbf16> to vector<24x4xbf16>
    %303 = arith.truncf %246 : vector<4x1024xf32> to vector<4x1024xbf16>
    %cst_157 = arith.constant dense<0.000000e+00> : vector<24x1024xf32>
    %304 = tpu.matmul %302, %303, %cst_157 {dimension_numbers = #tpu.dot_dimension_numbers<[1], [0], [0], [1], [0, 0, 1, 1], [], []>} : vector<24x4xbf16>, vector<4x1024xbf16>, vector<24x1024xf32> -> vector<24x1024xf32>
    %305 = arith.addf %301, %304 : vector<24x1024xf32>
    %306 = vector.extract_strided_slice %3 {offsets = [0, 44], sizes = [24, 4], strides = [1, 1]} : vector<24x48xbf16> to vector<24x4xbf16>
    %307 = arith.truncf %262 : vector<4x1024xf32> to vector<4x1024xbf16>
    %cst_158 = arith.constant dense<0.000000e+00> : vector<24x1024xf32>
    %308 = tpu.matmul %306, %307, %cst_158 {dimension_numbers = #tpu.dot_dimension_numbers<[1], [0], [0], [1], [0, 0, 1, 1], [], []>} : vector<24x4xbf16>, vector<4x1024xbf16>, vector<24x1024xf32> -> vector<24x1024xf32>
    %309 = arith.addf %305, %308 : vector<24x1024xf32>
    %310 = vector.broadcast %4 : vector<24x1xf32> to vector<24x1024xf32>
    %311 = arith.addf %309, %310 : vector<24x1024xf32>
    %cst_159 = arith.constant 0.000000e+00 : f32
    %312 = vector.broadcast %cst_159 : f32 to vector<24x1xf32>
    %313 = vector.extract_strided_slice %311 {offsets = [0, 1], sizes = [24, 1023], strides = [1, 1]} : vector<24x1024xf32> to vector<24x1023xf32>
    %314 = tpu.concatenate %313, %312 in 1 : vector<24x1023xf32>, vector<24x1xf32> -> vector<24x1024xf32>
    %315 = arith.maximumf %311, %314 : vector<24x1024xf32>
    %cst_160 = arith.constant 0.000000e+00 : f32
    %316 = vector.broadcast %cst_160 : f32 to vector<24x2xf32>
    %317 = vector.extract_strided_slice %311 {offsets = [0, 2], sizes = [24, 1022], strides = [1, 1]} : vector<24x1024xf32> to vector<24x1022xf32>
    %318 = tpu.concatenate %317, %316 in 1 : vector<24x1022xf32>, vector<24x2xf32> -> vector<24x1024xf32>
    %319 = arith.maximumf %315, %318 : vector<24x1024xf32>
    %cst_161 = arith.constant 0.000000e+00 : f32
    %320 = vector.broadcast %cst_161 : f32 to vector<24x3xf32>
    %321 = vector.extract_strided_slice %311 {offsets = [0, 3], sizes = [24, 1021], strides = [1, 1]} : vector<24x1024xf32> to vector<24x1021xf32>
    %322 = tpu.concatenate %321, %320 in 1 : vector<24x1021xf32>, vector<24x3xf32> -> vector<24x1024xf32>
    %323 = arith.maximumf %319, %322 : vector<24x1024xf32>
    %324 = arith.truncf %323 : vector<24x1024xf32> to vector<24x1024xbf16>
    %cst_162 = arith.constant dense<0.000000e+00> : vector<24x256xf32>
    %325 = tpu.matmul %324, %0, %cst_162 {dimension_numbers = #tpu.dot_dimension_numbers<[1], [0], [0], [1], [0, 0, 1, 1], [], []>} : vector<24x1024xbf16>, vector<1024x256xbf16>, vector<24x256xf32> -> vector<24x256xf32>
    %cst_163 = arith.constant 5.000000e-01 : f32
    %326 = vector.broadcast %cst_163 : f32 to vector<24x256xf32>
    %327 = arith.mulf %326, %325 : vector<24x256xf32>
    %cst_164 = arith.constant 0.707106769 : f32
    %328 = vector.broadcast %cst_164 : f32 to vector<24x256xf32>
    %329 = arith.mulf %325, %328 : vector<24x256xf32>
    %330 = math.absf %329 : vector<24x256xf32>
    %cst_165 = arith.constant 0.327591091 : f32
    %331 = vector.broadcast %cst_165 : f32 to vector<24x256xf32>
    %332 = arith.mulf %331, %330 : vector<24x256xf32>
    %cst_166 = arith.constant 1.000000e+00 : f32
    %333 = vector.broadcast %cst_166 : f32 to vector<24x256xf32>
    %334 = arith.addf %333, %332 : vector<24x256xf32>
    %cst_167 = arith.constant 1.000000e+00 : f32
    %335 = vector.broadcast %cst_167 : f32 to vector<24x256xf32>
    %336 = arith.divf %335, %334 : vector<24x256xf32>
    %cst_168 = arith.constant 1.06140542 : f32
    %337 = vector.broadcast %cst_168 : f32 to vector<24x256xf32>
    %338 = arith.mulf %337, %336 : vector<24x256xf32>
    %cst_169 = arith.constant -1.45315206 : f32
    %339 = vector.broadcast %cst_169 : f32 to vector<24x256xf32>
    %340 = arith.addf %338, %339 : vector<24x256xf32>
    %341 = arith.mulf %340, %336 : vector<24x256xf32>
    %cst_170 = arith.constant 1.42141378 : f32
    %342 = vector.broadcast %cst_170 : f32 to vector<24x256xf32>
    %343 = arith.addf %341, %342 : vector<24x256xf32>
    %344 = arith.mulf %343, %336 : vector<24x256xf32>
    %cst_171 = arith.constant -0.284496725 : f32
    %345 = vector.broadcast %cst_171 : f32 to vector<24x256xf32>
    %346 = arith.addf %344, %345 : vector<24x256xf32>
    %347 = arith.mulf %346, %336 : vector<24x256xf32>
    %cst_172 = arith.constant 0.254829586 : f32
    %348 = vector.broadcast %cst_172 : f32 to vector<24x256xf32>
    %349 = arith.addf %347, %348 : vector<24x256xf32>
    %350 = arith.mulf %349, %336 : vector<24x256xf32>
    %cst_173 = arith.constant 0.000000e+00 : f32
    %351 = vector.broadcast %cst_173 : f32 to vector<24x256xf32>
    %352 = arith.subf %351, %330 : vector<24x256xf32>
    %353 = arith.mulf %352, %330 : vector<24x256xf32>
    %354 = math.exp %353 : vector<24x256xf32>
    %355 = arith.mulf %350, %354 : vector<24x256xf32>
    %cst_174 = arith.constant 1.000000e+00 : f32
    %356 = vector.broadcast %cst_174 : f32 to vector<24x256xf32>
    %357 = arith.subf %356, %355 : vector<24x256xf32>
    %cst_175 = arith.constant 0.000000e+00 : f32
    %358 = vector.broadcast %cst_175 : f32 to vector<24x256xf32>
    %359 = arith.cmpf oge, %329, %358 : vector<24x256xf32>
    %cst_176 = arith.constant 0.000000e+00 : f32
    %360 = vector.broadcast %cst_176 : f32 to vector<24x256xf32>
    %361 = arith.subf %360, %357 : vector<24x256xf32>
    %362 = arith.select %359, %357, %361 : vector<24x256xi1>, vector<24x256xf32>
    %cst_177 = arith.constant 1.000000e+00 : f32
    %363 = vector.broadcast %cst_177 : f32 to vector<24x256xf32>
    %364 = arith.addf %363, %362 : vector<24x256xf32>
    %365 = arith.mulf %327, %364 : vector<24x256xf32>
    %366 = vector.broadcast %8 : vector<24x1xf32> to vector<24x256xf32>
    %367 = arith.addf %365, %366 : vector<24x256xf32>
    %368 = tpu.iota {dimensions = array<i32: 1>} : vector<1x128xi32>
    %369 = tpu.concatenate %368, %368 in 1 : vector<1x128xi32>, vector<1x128xi32> -> vector<1x256xi32>
    %cst_178 = arith.constant 0.000000e+00 : f32
    %370 = vector.broadcast %cst_178 : f32 to vector<24x2xf32>
    %371 = vector.extract_strided_slice %367 {offsets = [0, 0], sizes = [24, 254], strides = [1, 1]} : vector<24x256xf32> to vector<24x254xf32>
    %372 = tpu.concatenate %370, %371 in 1 : vector<24x2xf32>, vector<24x254xf32> -> vector<24x256xf32>
    %c-2_i32_179 = arith.constant -2 : i32
    %373 = vector.broadcast %c-2_i32_179 : i32 to vector<1x256xi32>
    %374 = arith.addi %369, %373 : vector<1x256xi32>
    %c0_i32_180 = arith.constant 0 : i32
    %375 = vector.broadcast %c0_i32_180 : i32 to vector<1x256xi32>
    %376 = arith.cmpi sge, %374, %375 : vector<1x256xi32>
    %c-2_i32_181 = arith.constant -2 : i32
    %377 = vector.broadcast %c-2_i32_181 : i32 to vector<1x256xi32>
    %378 = arith.addi %369, %377 : vector<1x256xi32>
    %c128_i32 = arith.constant 128 : i32
    %379 = vector.broadcast %c128_i32 : i32 to vector<1x256xi32>
    %380 = arith.cmpi slt, %378, %379 : vector<1x256xi32>
    %381 = arith.andi %376, %380 : vector<1x256xi1>
    %cst_182 = arith.constant 0.000000e+00 : f32
    %382 = vector.broadcast %cst_182 : f32 to vector<24x256xf32>
    %383 = vector.shape_cast %381 : vector<1x256xi1> to vector<1x256xi1>
    %384 = vector.broadcast %383 : vector<1x256xi1> to vector<24x256xi1>
    %385 = arith.select %384, %372, %382 : vector<24x256xi1>, vector<24x256xf32>
    %cst_183 = arith.constant 0.000000e+00 : f32
    %386 = vector.broadcast %cst_183 : f32 to vector<24x1xf32>
    %387 = vector.extract_strided_slice %367 {offsets = [0, 0], sizes = [24, 255], strides = [1, 1]} : vector<24x256xf32> to vector<24x255xf32>
    %388 = tpu.concatenate %386, %387 in 1 : vector<24x1xf32>, vector<24x255xf32> -> vector<24x256xf32>
    %c-1_i32_184 = arith.constant -1 : i32
    %389 = vector.broadcast %c-1_i32_184 : i32 to vector<1x256xi32>
    %390 = arith.addi %369, %389 : vector<1x256xi32>
    %c0_i32_185 = arith.constant 0 : i32
    %391 = vector.broadcast %c0_i32_185 : i32 to vector<1x256xi32>
    %392 = arith.cmpi sge, %390, %391 : vector<1x256xi32>
    %c-1_i32_186 = arith.constant -1 : i32
    %393 = vector.broadcast %c-1_i32_186 : i32 to vector<1x256xi32>
    %394 = arith.addi %369, %393 : vector<1x256xi32>
    %c128_i32_187 = arith.constant 128 : i32
    %395 = vector.broadcast %c128_i32_187 : i32 to vector<1x256xi32>
    %396 = arith.cmpi slt, %394, %395 : vector<1x256xi32>
    %397 = arith.andi %392, %396 : vector<1x256xi1>
    %cst_188 = arith.constant 0.000000e+00 : f32
    %398 = vector.broadcast %cst_188 : f32 to vector<24x256xf32>
    %399 = vector.shape_cast %397 : vector<1x256xi1> to vector<1x256xi1>
    %400 = vector.broadcast %399 : vector<1x256xi1> to vector<24x256xi1>
    %401 = arith.select %400, %388, %398 : vector<24x256xi1>, vector<24x256xf32>
    %cst_189 = arith.constant 0.000000e+00 : f32
    %402 = vector.broadcast %cst_189 : f32 to vector<24x1xf32>
    %403 = vector.extract_strided_slice %367 {offsets = [0, 1], sizes = [24, 255], strides = [1, 1]} : vector<24x256xf32> to vector<24x255xf32>
    %404 = tpu.concatenate %403, %402 in 1 : vector<24x255xf32>, vector<24x1xf32> -> vector<24x256xf32>
    %c1_i32_190 = arith.constant 1 : i32
    %405 = vector.broadcast %c1_i32_190 : i32 to vector<1x256xi32>
    %406 = arith.addi %369, %405 : vector<1x256xi32>
    %c0_i32_191 = arith.constant 0 : i32
    %407 = vector.broadcast %c0_i32_191 : i32 to vector<1x256xi32>
    %408 = arith.cmpi sge, %406, %407 : vector<1x256xi32>
    %c1_i32_192 = arith.constant 1 : i32
    %409 = vector.broadcast %c1_i32_192 : i32 to vector<1x256xi32>
    %410 = arith.addi %369, %409 : vector<1x256xi32>
    %c128_i32_193 = arith.constant 128 : i32
    %411 = vector.broadcast %c128_i32_193 : i32 to vector<1x256xi32>
    %412 = arith.cmpi slt, %410, %411 : vector<1x256xi32>
    %413 = arith.andi %408, %412 : vector<1x256xi1>
    %cst_194 = arith.constant 0.000000e+00 : f32
    %414 = vector.broadcast %cst_194 : f32 to vector<24x256xf32>
    %415 = vector.shape_cast %413 : vector<1x256xi1> to vector<1x256xi1>
    %416 = vector.broadcast %415 : vector<1x256xi1> to vector<24x256xi1>
    %417 = arith.select %416, %404, %414 : vector<24x256xi1>, vector<24x256xf32>
    %cst_195 = arith.constant 0.000000e+00 : f32
    %418 = vector.broadcast %cst_195 : f32 to vector<24x2xf32>
    %419 = vector.extract_strided_slice %367 {offsets = [0, 2], sizes = [24, 254], strides = [1, 1]} : vector<24x256xf32> to vector<24x254xf32>
    %420 = tpu.concatenate %419, %418 in 1 : vector<24x254xf32>, vector<24x2xf32> -> vector<24x256xf32>
    %c2_i32_196 = arith.constant 2 : i32
    %421 = vector.broadcast %c2_i32_196 : i32 to vector<1x256xi32>
    %422 = arith.addi %369, %421 : vector<1x256xi32>
    %c0_i32_197 = arith.constant 0 : i32
    %423 = vector.broadcast %c0_i32_197 : i32 to vector<1x256xi32>
    %424 = arith.cmpi sge, %422, %423 : vector<1x256xi32>
    %c2_i32_198 = arith.constant 2 : i32
    %425 = vector.broadcast %c2_i32_198 : i32 to vector<1x256xi32>
    %426 = arith.addi %369, %425 : vector<1x256xi32>
    %c128_i32_199 = arith.constant 128 : i32
    %427 = vector.broadcast %c128_i32_199 : i32 to vector<1x256xi32>
    %428 = arith.cmpi slt, %426, %427 : vector<1x256xi32>
    %429 = arith.andi %424, %428 : vector<1x256xi1>
    %cst_200 = arith.constant 0.000000e+00 : f32
    %430 = vector.broadcast %cst_200 : f32 to vector<24x256xf32>
    %431 = vector.shape_cast %429 : vector<1x256xi1> to vector<1x256xi1>
    %432 = vector.broadcast %431 : vector<1x256xi1> to vector<24x256xi1>
    %433 = arith.select %432, %420, %430 : vector<24x256xi1>, vector<24x256xf32>
    %434 = tpu.concatenate %385, %401, %367, %417, %433 in 0 : vector<24x256xf32>, vector<24x256xf32>, vector<24x256xf32>, vector<24x256xf32>, vector<24x256xf32> -> vector<120x256xf32>
    %435 = arith.truncf %434 : vector<120x256xf32> to vector<120x256xbf16>
    %cst_201 = arith.constant dense<0.000000e+00> : vector<32x256xf32>
    %436 = tpu.matmul %6, %435, %cst_201 {dimension_numbers = #tpu.dot_dimension_numbers<[1], [0], [0], [1], [0, 0, 1, 1], [], []>} : vector<32x120xbf16>, vector<120x256xbf16>, vector<32x256xf32> -> vector<32x256xf32>
    %437 = vector.broadcast %7 : vector<32x1xf32> to vector<32x256xf32>
    %438 = arith.addf %436, %437 : vector<32x256xf32>
    %cst_202 = arith.constant 0.000000e+00 : f32
    %439 = vector.broadcast %cst_202 : f32 to vector<32x1xf32>
    %440 = vector.extract_strided_slice %438 {offsets = [0, 1], sizes = [32, 255], strides = [1, 1]} : vector<32x256xf32> to vector<32x255xf32>
    %441 = tpu.concatenate %440, %439 in 1 : vector<32x255xf32>, vector<32x1xf32> -> vector<32x256xf32>
    %442 = arith.maximumf %438, %441 : vector<32x256xf32>
    %443 = arith.truncf %442 : vector<32x256xf32> to vector<32x256xbf16>
    %cst_203 = arith.constant dense<0.000000e+00> : vector<32x128xf32>
    %444 = tpu.matmul %443, %1, %cst_203 {dimension_numbers = #tpu.dot_dimension_numbers<[1], [0], [0], [1], [0, 0, 1, 1], [], []>} : vector<32x256xbf16>, vector<256x128xbf16>, vector<32x128xf32> -> vector<32x128xf32>
    %cst_204 = arith.constant 5.000000e-01 : f32
    %445 = vector.broadcast %cst_204 : f32 to vector<32x128xf32>
    %446 = arith.mulf %445, %444 : vector<32x128xf32>
    %cst_205 = arith.constant 0.707106769 : f32
    %447 = vector.broadcast %cst_205 : f32 to vector<32x128xf32>
    %448 = arith.mulf %444, %447 : vector<32x128xf32>
    %449 = math.absf %448 : vector<32x128xf32>
    %cst_206 = arith.constant 0.327591091 : f32
    %450 = vector.broadcast %cst_206 : f32 to vector<32x128xf32>
    %451 = arith.mulf %450, %449 : vector<32x128xf32>
    %cst_207 = arith.constant 1.000000e+00 : f32
    %452 = vector.broadcast %cst_207 : f32 to vector<32x128xf32>
    %453 = arith.addf %452, %451 : vector<32x128xf32>
    %cst_208 = arith.constant 1.000000e+00 : f32
    %454 = vector.broadcast %cst_208 : f32 to vector<32x128xf32>
    %455 = arith.divf %454, %453 : vector<32x128xf32>
    %cst_209 = arith.constant 1.06140542 : f32
    %456 = vector.broadcast %cst_209 : f32 to vector<32x128xf32>
    %457 = arith.mulf %456, %455 : vector<32x128xf32>
    %cst_210 = arith.constant -1.45315206 : f32
    %458 = vector.broadcast %cst_210 : f32 to vector<32x128xf32>
    %459 = arith.addf %457, %458 : vector<32x128xf32>
    %460 = arith.mulf %459, %455 : vector<32x128xf32>
    %cst_211 = arith.constant 1.42141378 : f32
    %461 = vector.broadcast %cst_211 : f32 to vector<32x128xf32>
    %462 = arith.addf %460, %461 : vector<32x128xf32>
    %463 = arith.mulf %462, %455 : vector<32x128xf32>
    %cst_212 = arith.constant -0.284496725 : f32
    %464 = vector.broadcast %cst_212 : f32 to vector<32x128xf32>
    %465 = arith.addf %463, %464 : vector<32x128xf32>
    %466 = arith.mulf %465, %455 : vector<32x128xf32>
    %cst_213 = arith.constant 0.254829586 : f32
    %467 = vector.broadcast %cst_213 : f32 to vector<32x128xf32>
    %468 = arith.addf %466, %467 : vector<32x128xf32>
    %469 = arith.mulf %468, %455 : vector<32x128xf32>
    %cst_214 = arith.constant 0.000000e+00 : f32
    %470 = vector.broadcast %cst_214 : f32 to vector<32x128xf32>
    %471 = arith.subf %470, %449 : vector<32x128xf32>
    %472 = arith.mulf %471, %449 : vector<32x128xf32>
    %473 = math.exp %472 : vector<32x128xf32>
    %474 = arith.mulf %469, %473 : vector<32x128xf32>
    %cst_215 = arith.constant 1.000000e+00 : f32
    %475 = vector.broadcast %cst_215 : f32 to vector<32x128xf32>
    %476 = arith.subf %475, %474 : vector<32x128xf32>
    %cst_216 = arith.constant 0.000000e+00 : f32
    %477 = vector.broadcast %cst_216 : f32 to vector<32x128xf32>
    %478 = arith.cmpf oge, %448, %477 : vector<32x128xf32>
    %cst_217 = arith.constant 0.000000e+00 : f32
    %479 = vector.broadcast %cst_217 : f32 to vector<32x128xf32>
    %480 = arith.subf %479, %476 : vector<32x128xf32>
    %481 = arith.select %478, %476, %480 : vector<32x128xi1>, vector<32x128xf32>
    %cst_218 = arith.constant 1.000000e+00 : f32
    %482 = vector.broadcast %cst_218 : f32 to vector<32x128xf32>
    %483 = arith.addf %482, %481 : vector<32x128xf32>
    %484 = arith.mulf %446, %483 : vector<32x128xf32>
    %485 = vector.broadcast %11 : vector<32x1xf32> to vector<32x128xf32>
    %486 = arith.addf %484, %485 : vector<32x128xf32>
    %487 = tpu.iota {dimensions = array<i32: 1>} : vector<1x64xi32>
    %488 = tpu.concatenate %487, %487 in 1 : vector<1x64xi32>, vector<1x64xi32> -> vector<1x128xi32>
    %cst_219 = arith.constant 0.000000e+00 : f32
    %489 = vector.broadcast %cst_219 : f32 to vector<32x2xf32>
    %490 = vector.extract_strided_slice %486 {offsets = [0, 0], sizes = [32, 126], strides = [1, 1]} : vector<32x128xf32> to vector<32x126xf32>
    %491 = tpu.concatenate %489, %490 in 1 : vector<32x2xf32>, vector<32x126xf32> -> vector<32x128xf32>
    %c-2_i32_220 = arith.constant -2 : i32
    %492 = vector.broadcast %c-2_i32_220 : i32 to vector<1x128xi32>
    %493 = arith.addi %488, %492 : vector<1x128xi32>
    %c0_i32_221 = arith.constant 0 : i32
    %494 = vector.broadcast %c0_i32_221 : i32 to vector<1x128xi32>
    %495 = arith.cmpi sge, %493, %494 : vector<1x128xi32>
    %c-2_i32_222 = arith.constant -2 : i32
    %496 = vector.broadcast %c-2_i32_222 : i32 to vector<1x128xi32>
    %497 = arith.addi %488, %496 : vector<1x128xi32>
    %c64_i32 = arith.constant 64 : i32
    %498 = vector.broadcast %c64_i32 : i32 to vector<1x128xi32>
    %499 = arith.cmpi slt, %497, %498 : vector<1x128xi32>
    %500 = arith.andi %495, %499 : vector<1x128xi1>
    %cst_223 = arith.constant 0.000000e+00 : f32
    %501 = vector.broadcast %cst_223 : f32 to vector<32x128xf32>
    %502 = vector.shape_cast %500 : vector<1x128xi1> to vector<1x128xi1>
    %503 = vector.broadcast %502 : vector<1x128xi1> to vector<32x128xi1>
    %504 = arith.select %503, %491, %501 : vector<32x128xi1>, vector<32x128xf32>
    %cst_224 = arith.constant 0.000000e+00 : f32
    %505 = vector.broadcast %cst_224 : f32 to vector<32x1xf32>
    %506 = vector.extract_strided_slice %486 {offsets = [0, 0], sizes = [32, 127], strides = [1, 1]} : vector<32x128xf32> to vector<32x127xf32>
    %507 = tpu.concatenate %505, %506 in 1 : vector<32x1xf32>, vector<32x127xf32> -> vector<32x128xf32>
    %c-1_i32_225 = arith.constant -1 : i32
    %508 = vector.broadcast %c-1_i32_225 : i32 to vector<1x128xi32>
    %509 = arith.addi %488, %508 : vector<1x128xi32>
    %c0_i32_226 = arith.constant 0 : i32
    %510 = vector.broadcast %c0_i32_226 : i32 to vector<1x128xi32>
    %511 = arith.cmpi sge, %509, %510 : vector<1x128xi32>
    %c-1_i32_227 = arith.constant -1 : i32
    %512 = vector.broadcast %c-1_i32_227 : i32 to vector<1x128xi32>
    %513 = arith.addi %488, %512 : vector<1x128xi32>
    %c64_i32_228 = arith.constant 64 : i32
    %514 = vector.broadcast %c64_i32_228 : i32 to vector<1x128xi32>
    %515 = arith.cmpi slt, %513, %514 : vector<1x128xi32>
    %516 = arith.andi %511, %515 : vector<1x128xi1>
    %cst_229 = arith.constant 0.000000e+00 : f32
    %517 = vector.broadcast %cst_229 : f32 to vector<32x128xf32>
    %518 = vector.shape_cast %516 : vector<1x128xi1> to vector<1x128xi1>
    %519 = vector.broadcast %518 : vector<1x128xi1> to vector<32x128xi1>
    %520 = arith.select %519, %507, %517 : vector<32x128xi1>, vector<32x128xf32>
    %cst_230 = arith.constant 0.000000e+00 : f32
    %521 = vector.broadcast %cst_230 : f32 to vector<32x1xf32>
    %522 = vector.extract_strided_slice %486 {offsets = [0, 1], sizes = [32, 127], strides = [1, 1]} : vector<32x128xf32> to vector<32x127xf32>
    %523 = tpu.concatenate %522, %521 in 1 : vector<32x127xf32>, vector<32x1xf32> -> vector<32x128xf32>
    %c1_i32_231 = arith.constant 1 : i32
    %524 = vector.broadcast %c1_i32_231 : i32 to vector<1x128xi32>
    %525 = arith.addi %488, %524 : vector<1x128xi32>
    %c0_i32_232 = arith.constant 0 : i32
    %526 = vector.broadcast %c0_i32_232 : i32 to vector<1x128xi32>
    %527 = arith.cmpi sge, %525, %526 : vector<1x128xi32>
    %c1_i32_233 = arith.constant 1 : i32
    %528 = vector.broadcast %c1_i32_233 : i32 to vector<1x128xi32>
    %529 = arith.addi %488, %528 : vector<1x128xi32>
    %c64_i32_234 = arith.constant 64 : i32
    %530 = vector.broadcast %c64_i32_234 : i32 to vector<1x128xi32>
    %531 = arith.cmpi slt, %529, %530 : vector<1x128xi32>
    %532 = arith.andi %527, %531 : vector<1x128xi1>
    %cst_235 = arith.constant 0.000000e+00 : f32
    %533 = vector.broadcast %cst_235 : f32 to vector<32x128xf32>
    %534 = vector.shape_cast %532 : vector<1x128xi1> to vector<1x128xi1>
    %535 = vector.broadcast %534 : vector<1x128xi1> to vector<32x128xi1>
    %536 = arith.select %535, %523, %533 : vector<32x128xi1>, vector<32x128xf32>
    %cst_236 = arith.constant 0.000000e+00 : f32
    %537 = vector.broadcast %cst_236 : f32 to vector<32x2xf32>
    %538 = vector.extract_strided_slice %486 {offsets = [0, 2], sizes = [32, 126], strides = [1, 1]} : vector<32x128xf32> to vector<32x126xf32>
    %539 = tpu.concatenate %538, %537 in 1 : vector<32x126xf32>, vector<32x2xf32> -> vector<32x128xf32>
    %c2_i32_237 = arith.constant 2 : i32
    %540 = vector.broadcast %c2_i32_237 : i32 to vector<1x128xi32>
    %541 = arith.addi %488, %540 : vector<1x128xi32>
    %c0_i32_238 = arith.constant 0 : i32
    %542 = vector.broadcast %c0_i32_238 : i32 to vector<1x128xi32>
    %543 = arith.cmpi sge, %541, %542 : vector<1x128xi32>
    %c2_i32_239 = arith.constant 2 : i32
    %544 = vector.broadcast %c2_i32_239 : i32 to vector<1x128xi32>
    %545 = arith.addi %488, %544 : vector<1x128xi32>
    %c64_i32_240 = arith.constant 64 : i32
    %546 = vector.broadcast %c64_i32_240 : i32 to vector<1x128xi32>
    %547 = arith.cmpi slt, %545, %546 : vector<1x128xi32>
    %548 = arith.andi %543, %547 : vector<1x128xi1>
    %cst_241 = arith.constant 0.000000e+00 : f32
    %549 = vector.broadcast %cst_241 : f32 to vector<32x128xf32>
    %550 = vector.shape_cast %548 : vector<1x128xi1> to vector<1x128xi1>
    %551 = vector.broadcast %550 : vector<1x128xi1> to vector<32x128xi1>
    %552 = arith.select %551, %539, %549 : vector<32x128xi1>, vector<32x128xf32>
    %553 = tpu.concatenate %504, %520, %486, %536, %552 in 0 : vector<32x128xf32>, vector<32x128xf32>, vector<32x128xf32>, vector<32x128xf32>, vector<32x128xf32> -> vector<160x128xf32>
    %554 = arith.truncf %553 : vector<160x128xf32> to vector<160x128xbf16>
    %cst_242 = arith.constant dense<0.000000e+00> : vector<32x128xf32>
    %555 = tpu.matmul %9, %554, %cst_242 {dimension_numbers = #tpu.dot_dimension_numbers<[1], [0], [0], [1], [0, 0, 1, 1], [], []>} : vector<32x160xbf16>, vector<160x128xbf16>, vector<32x128xf32> -> vector<32x128xf32>
    %556 = vector.broadcast %10 : vector<32x1xf32> to vector<32x128xf32>
    %557 = arith.addf %555, %556 : vector<32x128xf32>
    %cst_243 = arith.constant 0.000000e+00 : f32
    %558 = vector.broadcast %cst_243 : f32 to vector<32x1xf32>
    %559 = vector.extract_strided_slice %557 {offsets = [0, 1], sizes = [32, 127], strides = [1, 1]} : vector<32x128xf32> to vector<32x127xf32>
    %560 = tpu.concatenate %559, %558 in 1 : vector<32x127xf32>, vector<32x1xf32> -> vector<32x128xf32>
    %561 = arith.maximumf %557, %560 : vector<32x128xf32>
    %562 = arith.truncf %561 : vector<32x128xf32> to vector<32x128xbf16>
    %cst_244 = arith.constant dense<0.000000e+00> : vector<32x64xf32>
    %563 = tpu.matmul %562, %2, %cst_244 {dimension_numbers = #tpu.dot_dimension_numbers<[1], [0], [0], [1], [0, 0, 1, 1], [], []>} : vector<32x128xbf16>, vector<128x64xbf16>, vector<32x64xf32> -> vector<32x64xf32>
    %cst_245 = arith.constant 5.000000e-01 : f32
    %564 = vector.broadcast %cst_245 : f32 to vector<32x64xf32>
    %565 = arith.mulf %564, %563 : vector<32x64xf32>
    %cst_246 = arith.constant 0.707106769 : f32
    %566 = vector.broadcast %cst_246 : f32 to vector<32x64xf32>
    %567 = arith.mulf %563, %566 : vector<32x64xf32>
    %568 = math.absf %567 : vector<32x64xf32>
    %cst_247 = arith.constant 0.327591091 : f32
    %569 = vector.broadcast %cst_247 : f32 to vector<32x64xf32>
    %570 = arith.mulf %569, %568 : vector<32x64xf32>
    %cst_248 = arith.constant 1.000000e+00 : f32
    %571 = vector.broadcast %cst_248 : f32 to vector<32x64xf32>
    %572 = arith.addf %571, %570 : vector<32x64xf32>
    %cst_249 = arith.constant 1.000000e+00 : f32
    %573 = vector.broadcast %cst_249 : f32 to vector<32x64xf32>
    %574 = arith.divf %573, %572 : vector<32x64xf32>
    %cst_250 = arith.constant 1.06140542 : f32
    %575 = vector.broadcast %cst_250 : f32 to vector<32x64xf32>
    %576 = arith.mulf %575, %574 : vector<32x64xf32>
    %cst_251 = arith.constant -1.45315206 : f32
    %577 = vector.broadcast %cst_251 : f32 to vector<32x64xf32>
    %578 = arith.addf %576, %577 : vector<32x64xf32>
    %579 = arith.mulf %578, %574 : vector<32x64xf32>
    %cst_252 = arith.constant 1.42141378 : f32
    %580 = vector.broadcast %cst_252 : f32 to vector<32x64xf32>
    %581 = arith.addf %579, %580 : vector<32x64xf32>
    %582 = arith.mulf %581, %574 : vector<32x64xf32>
    %cst_253 = arith.constant -0.284496725 : f32
    %583 = vector.broadcast %cst_253 : f32 to vector<32x64xf32>
    %584 = arith.addf %582, %583 : vector<32x64xf32>
    %585 = arith.mulf %584, %574 : vector<32x64xf32>
    %cst_254 = arith.constant 0.254829586 : f32
    %586 = vector.broadcast %cst_254 : f32 to vector<32x64xf32>
    %587 = arith.addf %585, %586 : vector<32x64xf32>
    %588 = arith.mulf %587, %574 : vector<32x64xf32>
    %cst_255 = arith.constant 0.000000e+00 : f32
    %589 = vector.broadcast %cst_255 : f32 to vector<32x64xf32>
    %590 = arith.subf %589, %568 : vector<32x64xf32>
    %591 = arith.mulf %590, %568 : vector<32x64xf32>
    %592 = math.exp %591 : vector<32x64xf32>
    %593 = arith.mulf %588, %592 : vector<32x64xf32>
    %cst_256 = arith.constant 1.000000e+00 : f32
    %594 = vector.broadcast %cst_256 : f32 to vector<32x64xf32>
    %595 = arith.subf %594, %593 : vector<32x64xf32>
    %cst_257 = arith.constant 0.000000e+00 : f32
    %596 = vector.broadcast %cst_257 : f32 to vector<32x64xf32>
    %597 = arith.cmpf oge, %567, %596 : vector<32x64xf32>
    %cst_258 = arith.constant 0.000000e+00 : f32
    %598 = vector.broadcast %cst_258 : f32 to vector<32x64xf32>
    %599 = arith.subf %598, %595 : vector<32x64xf32>
    %600 = arith.select %597, %595, %599 : vector<32x64xi1>, vector<32x64xf32>
    %cst_259 = arith.constant 1.000000e+00 : f32
    %601 = vector.broadcast %cst_259 : f32 to vector<32x64xf32>
    %602 = arith.addf %601, %600 : vector<32x64xf32>
    %603 = arith.mulf %565, %602 : vector<32x64xf32>
    %604 = vector.broadcast %14 : vector<32x1xf32> to vector<32x64xf32>
    %605 = arith.addf %603, %604 : vector<32x64xf32>
    %606 = tpu.iota {dimensions = array<i32: 1>} : vector<1x32xi32>
    %607 = tpu.concatenate %606, %606 in 1 : vector<1x32xi32>, vector<1x32xi32> -> vector<1x64xi32>
    %cst_260 = arith.constant 0.000000e+00 : f32
    %608 = vector.broadcast %cst_260 : f32 to vector<32x2xf32>
    %609 = vector.extract_strided_slice %605 {offsets = [0, 0], sizes = [32, 62], strides = [1, 1]} : vector<32x64xf32> to vector<32x62xf32>
    %610 = tpu.concatenate %608, %609 in 1 : vector<32x2xf32>, vector<32x62xf32> -> vector<32x64xf32>
    %c-2_i32_261 = arith.constant -2 : i32
    %611 = vector.broadcast %c-2_i32_261 : i32 to vector<1x64xi32>
    %612 = arith.addi %607, %611 : vector<1x64xi32>
    %c0_i32_262 = arith.constant 0 : i32
    %613 = vector.broadcast %c0_i32_262 : i32 to vector<1x64xi32>
    %614 = arith.cmpi sge, %612, %613 : vector<1x64xi32>
    %c-2_i32_263 = arith.constant -2 : i32
    %615 = vector.broadcast %c-2_i32_263 : i32 to vector<1x64xi32>
    %616 = arith.addi %607, %615 : vector<1x64xi32>
    %c32_i32 = arith.constant 32 : i32
    %617 = vector.broadcast %c32_i32 : i32 to vector<1x64xi32>
    %618 = arith.cmpi slt, %616, %617 : vector<1x64xi32>
    %619 = arith.andi %614, %618 : vector<1x64xi1>
    %cst_264 = arith.constant 0.000000e+00 : f32
    %620 = vector.broadcast %cst_264 : f32 to vector<32x64xf32>
    %621 = vector.shape_cast %619 : vector<1x64xi1> to vector<1x64xi1>
    %622 = vector.broadcast %621 : vector<1x64xi1> to vector<32x64xi1>
    %623 = arith.select %622, %610, %620 : vector<32x64xi1>, vector<32x64xf32>
    %cst_265 = arith.constant 0.000000e+00 : f32
    %624 = vector.broadcast %cst_265 : f32 to vector<32x1xf32>
    %625 = vector.extract_strided_slice %605 {offsets = [0, 0], sizes = [32, 63], strides = [1, 1]} : vector<32x64xf32> to vector<32x63xf32>
    %626 = tpu.concatenate %624, %625 in 1 : vector<32x1xf32>, vector<32x63xf32> -> vector<32x64xf32>
    %c-1_i32_266 = arith.constant -1 : i32
    %627 = vector.broadcast %c-1_i32_266 : i32 to vector<1x64xi32>
    %628 = arith.addi %607, %627 : vector<1x64xi32>
    %c0_i32_267 = arith.constant 0 : i32
    %629 = vector.broadcast %c0_i32_267 : i32 to vector<1x64xi32>
    %630 = arith.cmpi sge, %628, %629 : vector<1x64xi32>
    %c-1_i32_268 = arith.constant -1 : i32
    %631 = vector.broadcast %c-1_i32_268 : i32 to vector<1x64xi32>
    %632 = arith.addi %607, %631 : vector<1x64xi32>
    %c32_i32_269 = arith.constant 32 : i32
    %633 = vector.broadcast %c32_i32_269 : i32 to vector<1x64xi32>
    %634 = arith.cmpi slt, %632, %633 : vector<1x64xi32>
    %635 = arith.andi %630, %634 : vector<1x64xi1>
    %cst_270 = arith.constant 0.000000e+00 : f32
    %636 = vector.broadcast %cst_270 : f32 to vector<32x64xf32>
    %637 = vector.shape_cast %635 : vector<1x64xi1> to vector<1x64xi1>
    %638 = vector.broadcast %637 : vector<1x64xi1> to vector<32x64xi1>
    %639 = arith.select %638, %626, %636 : vector<32x64xi1>, vector<32x64xf32>
    %cst_271 = arith.constant 0.000000e+00 : f32
    %640 = vector.broadcast %cst_271 : f32 to vector<32x1xf32>
    %641 = vector.extract_strided_slice %605 {offsets = [0, 1], sizes = [32, 63], strides = [1, 1]} : vector<32x64xf32> to vector<32x63xf32>
    %642 = tpu.concatenate %641, %640 in 1 : vector<32x63xf32>, vector<32x1xf32> -> vector<32x64xf32>
    %c1_i32_272 = arith.constant 1 : i32
    %643 = vector.broadcast %c1_i32_272 : i32 to vector<1x64xi32>
    %644 = arith.addi %607, %643 : vector<1x64xi32>
    %c0_i32_273 = arith.constant 0 : i32
    %645 = vector.broadcast %c0_i32_273 : i32 to vector<1x64xi32>
    %646 = arith.cmpi sge, %644, %645 : vector<1x64xi32>
    %c1_i32_274 = arith.constant 1 : i32
    %647 = vector.broadcast %c1_i32_274 : i32 to vector<1x64xi32>
    %648 = arith.addi %607, %647 : vector<1x64xi32>
    %c32_i32_275 = arith.constant 32 : i32
    %649 = vector.broadcast %c32_i32_275 : i32 to vector<1x64xi32>
    %650 = arith.cmpi slt, %648, %649 : vector<1x64xi32>
    %651 = arith.andi %646, %650 : vector<1x64xi1>
    %cst_276 = arith.constant 0.000000e+00 : f32
    %652 = vector.broadcast %cst_276 : f32 to vector<32x64xf32>
    %653 = vector.shape_cast %651 : vector<1x64xi1> to vector<1x64xi1>
    %654 = vector.broadcast %653 : vector<1x64xi1> to vector<32x64xi1>
    %655 = arith.select %654, %642, %652 : vector<32x64xi1>, vector<32x64xf32>
    %cst_277 = arith.constant 0.000000e+00 : f32
    %656 = vector.broadcast %cst_277 : f32 to vector<32x2xf32>
    %657 = vector.extract_strided_slice %605 {offsets = [0, 2], sizes = [32, 62], strides = [1, 1]} : vector<32x64xf32> to vector<32x62xf32>
    %658 = tpu.concatenate %657, %656 in 1 : vector<32x62xf32>, vector<32x2xf32> -> vector<32x64xf32>
    %c2_i32_278 = arith.constant 2 : i32
    %659 = vector.broadcast %c2_i32_278 : i32 to vector<1x64xi32>
    %660 = arith.addi %607, %659 : vector<1x64xi32>
    %c0_i32_279 = arith.constant 0 : i32
    %661 = vector.broadcast %c0_i32_279 : i32 to vector<1x64xi32>
    %662 = arith.cmpi sge, %660, %661 : vector<1x64xi32>
    %c2_i32_280 = arith.constant 2 : i32
    %663 = vector.broadcast %c2_i32_280 : i32 to vector<1x64xi32>
    %664 = arith.addi %607, %663 : vector<1x64xi32>
    %c32_i32_281 = arith.constant 32 : i32
    %665 = vector.broadcast %c32_i32_281 : i32 to vector<1x64xi32>
    %666 = arith.cmpi slt, %664, %665 : vector<1x64xi32>
    %667 = arith.andi %662, %666 : vector<1x64xi1>
    %cst_282 = arith.constant 0.000000e+00 : f32
    %668 = vector.broadcast %cst_282 : f32 to vector<32x64xf32>
    %669 = vector.shape_cast %667 : vector<1x64xi1> to vector<1x64xi1>
    %670 = vector.broadcast %669 : vector<1x64xi1> to vector<32x64xi1>
    %671 = arith.select %670, %658, %668 : vector<32x64xi1>, vector<32x64xf32>
    %672 = tpu.concatenate %623, %639, %605, %655, %671 in 0 : vector<32x64xf32>, vector<32x64xf32>, vector<32x64xf32>, vector<32x64xf32>, vector<32x64xf32> -> vector<160x64xf32>
    %673 = arith.truncf %672 : vector<160x64xf32> to vector<160x64xbf16>
    %cst_283 = arith.constant dense<0.000000e+00> : vector<32x64xf32>
    %674 = tpu.matmul %12, %673, %cst_283 {dimension_numbers = #tpu.dot_dimension_numbers<[1], [0], [0], [1], [0, 0, 1, 1], [], []>} : vector<32x160xbf16>, vector<160x64xbf16>, vector<32x64xf32> -> vector<32x64xf32>
    %675 = vector.broadcast %13 : vector<32x1xf32> to vector<32x64xf32>
    %676 = arith.addf %674, %675 : vector<32x64xf32>
    %cst_284 = arith.constant 5.000000e-01 : f32
    %677 = vector.broadcast %cst_284 : f32 to vector<32x64xf32>
    %678 = arith.mulf %677, %676 : vector<32x64xf32>
    %cst_285 = arith.constant 0.707106769 : f32
    %679 = vector.broadcast %cst_285 : f32 to vector<32x64xf32>
    %680 = arith.mulf %676, %679 : vector<32x64xf32>
    %681 = math.absf %680 : vector<32x64xf32>
    %cst_286 = arith.constant 0.327591091 : f32
    %682 = vector.broadcast %cst_286 : f32 to vector<32x64xf32>
    %683 = arith.mulf %682, %681 : vector<32x64xf32>
    %cst_287 = arith.constant 1.000000e+00 : f32
    %684 = vector.broadcast %cst_287 : f32 to vector<32x64xf32>
    %685 = arith.addf %684, %683 : vector<32x64xf32>
    %cst_288 = arith.constant 1.000000e+00 : f32
    %686 = vector.broadcast %cst_288 : f32 to vector<32x64xf32>
    %687 = arith.divf %686, %685 : vector<32x64xf32>
    %cst_289 = arith.constant 1.06140542 : f32
    %688 = vector.broadcast %cst_289 : f32 to vector<32x64xf32>
    %689 = arith.mulf %688, %687 : vector<32x64xf32>
    %cst_290 = arith.constant -1.45315206 : f32
    %690 = vector.broadcast %cst_290 : f32 to vector<32x64xf32>
    %691 = arith.addf %689, %690 : vector<32x64xf32>
    %692 = arith.mulf %691, %687 : vector<32x64xf32>
    %cst_291 = arith.constant 1.42141378 : f32
    %693 = vector.broadcast %cst_291 : f32 to vector<32x64xf32>
    %694 = arith.addf %692, %693 : vector<32x64xf32>
    %695 = arith.mulf %694, %687 : vector<32x64xf32>
    %cst_292 = arith.constant -0.284496725 : f32
    %696 = vector.broadcast %cst_292 : f32 to vector<32x64xf32>
    %697 = arith.addf %695, %696 : vector<32x64xf32>
    %698 = arith.mulf %697, %687 : vector<32x64xf32>
    %cst_293 = arith.constant 0.254829586 : f32
    %699 = vector.broadcast %cst_293 : f32 to vector<32x64xf32>
    %700 = arith.addf %698, %699 : vector<32x64xf32>
    %701 = arith.mulf %700, %687 : vector<32x64xf32>
    %cst_294 = arith.constant 0.000000e+00 : f32
    %702 = vector.broadcast %cst_294 : f32 to vector<32x64xf32>
    %703 = arith.subf %702, %681 : vector<32x64xf32>
    %704 = arith.mulf %703, %681 : vector<32x64xf32>
    %705 = math.exp %704 : vector<32x64xf32>
    %706 = arith.mulf %701, %705 : vector<32x64xf32>
    %cst_295 = arith.constant 1.000000e+00 : f32
    %707 = vector.broadcast %cst_295 : f32 to vector<32x64xf32>
    %708 = arith.subf %707, %706 : vector<32x64xf32>
    %cst_296 = arith.constant 0.000000e+00 : f32
    %709 = vector.broadcast %cst_296 : f32 to vector<32x64xf32>
    %710 = arith.cmpf oge, %680, %709 : vector<32x64xf32>
    %cst_297 = arith.constant 0.000000e+00 : f32
    %711 = vector.broadcast %cst_297 : f32 to vector<32x64xf32>
    %712 = arith.subf %711, %708 : vector<32x64xf32>
    %713 = arith.select %710, %708, %712 : vector<32x64xi1>, vector<32x64xf32>
    %cst_298 = arith.constant 1.000000e+00 : f32
    %714 = vector.broadcast %cst_298 : f32 to vector<32x64xf32>
    %715 = arith.addf %714, %713 : vector<32x64xf32>
    %716 = arith.mulf %678, %715 : vector<32x64xf32>
    %717 = vector.broadcast %17 : vector<32x1xf32> to vector<32x64xf32>
    %718 = arith.addf %716, %717 : vector<32x64xf32>
    %719 = tpu.iota {dimensions = array<i32: 1>} : vector<1x32xi32>
    %720 = tpu.concatenate %719, %719 in 1 : vector<1x32xi32>, vector<1x32xi32> -> vector<1x64xi32>
    %cst_299 = arith.constant 0.000000e+00 : f32
    %721 = vector.broadcast %cst_299 : f32 to vector<32x4xf32>
    %722 = vector.extract_strided_slice %718 {offsets = [0, 0], sizes = [32, 60], strides = [1, 1]} : vector<32x64xf32> to vector<32x60xf32>
    %723 = tpu.concatenate %721, %722 in 1 : vector<32x4xf32>, vector<32x60xf32> -> vector<32x64xf32>
    %c-4_i32_300 = arith.constant -4 : i32
    %724 = vector.broadcast %c-4_i32_300 : i32 to vector<1x64xi32>
    %725 = arith.addi %720, %724 : vector<1x64xi32>
    %c0_i32_301 = arith.constant 0 : i32
    %726 = vector.broadcast %c0_i32_301 : i32 to vector<1x64xi32>
    %727 = arith.cmpi sge, %725, %726 : vector<1x64xi32>
    %c-4_i32_302 = arith.constant -4 : i32
    %728 = vector.broadcast %c-4_i32_302 : i32 to vector<1x64xi32>
    %729 = arith.addi %720, %728 : vector<1x64xi32>
    %c32_i32_303 = arith.constant 32 : i32
    %730 = vector.broadcast %c32_i32_303 : i32 to vector<1x64xi32>
    %731 = arith.cmpi slt, %729, %730 : vector<1x64xi32>
    %732 = arith.andi %727, %731 : vector<1x64xi1>
    %cst_304 = arith.constant 0.000000e+00 : f32
    %733 = vector.broadcast %cst_304 : f32 to vector<32x64xf32>
    %734 = vector.shape_cast %732 : vector<1x64xi1> to vector<1x64xi1>
    %735 = vector.broadcast %734 : vector<1x64xi1> to vector<32x64xi1>
    %736 = arith.select %735, %723, %733 : vector<32x64xi1>, vector<32x64xf32>
    %cst_305 = arith.constant 0.000000e+00 : f32
    %737 = vector.broadcast %cst_305 : f32 to vector<32x4xf32>
    %738 = vector.extract_strided_slice %718 {offsets = [0, 4], sizes = [32, 60], strides = [1, 1]} : vector<32x64xf32> to vector<32x60xf32>
    %739 = tpu.concatenate %738, %737 in 1 : vector<32x60xf32>, vector<32x4xf32> -> vector<32x64xf32>
    %c4_i32_306 = arith.constant 4 : i32
    %740 = vector.broadcast %c4_i32_306 : i32 to vector<1x64xi32>
    %741 = arith.addi %720, %740 : vector<1x64xi32>
    %c0_i32_307 = arith.constant 0 : i32
    %742 = vector.broadcast %c0_i32_307 : i32 to vector<1x64xi32>
    %743 = arith.cmpi sge, %741, %742 : vector<1x64xi32>
    %c4_i32_308 = arith.constant 4 : i32
    %744 = vector.broadcast %c4_i32_308 : i32 to vector<1x64xi32>
    %745 = arith.addi %720, %744 : vector<1x64xi32>
    %c32_i32_309 = arith.constant 32 : i32
    %746 = vector.broadcast %c32_i32_309 : i32 to vector<1x64xi32>
    %747 = arith.cmpi slt, %745, %746 : vector<1x64xi32>
    %748 = arith.andi %743, %747 : vector<1x64xi1>
    %cst_310 = arith.constant 0.000000e+00 : f32
    %749 = vector.broadcast %cst_310 : f32 to vector<32x64xf32>
    %750 = vector.shape_cast %748 : vector<1x64xi1> to vector<1x64xi1>
    %751 = vector.broadcast %750 : vector<1x64xi1> to vector<32x64xi1>
    %752 = arith.select %751, %739, %749 : vector<32x64xi1>, vector<32x64xf32>
    %753 = tpu.concatenate %736, %718, %752 in 0 : vector<32x64xf32>, vector<32x64xf32>, vector<32x64xf32> -> vector<96x64xf32>
    %754 = arith.truncf %753 : vector<96x64xf32> to vector<96x64xbf16>
    %cst_311 = arith.constant dense<0.000000e+00> : vector<16x64xf32>
    %755 = tpu.matmul %15, %754, %cst_311 {dimension_numbers = #tpu.dot_dimension_numbers<[1], [0], [0], [1], [0, 0, 1, 1], [], []>} : vector<16x96xbf16>, vector<96x64xbf16>, vector<16x64xf32> -> vector<16x64xf32>
    %756 = vector.broadcast %16 : vector<16x1xf32> to vector<16x64xf32>
    %757 = arith.addf %755, %756 : vector<16x64xf32>
    %cst_312 = arith.constant 5.000000e-01 : f32
    %758 = vector.broadcast %cst_312 : f32 to vector<16x64xf32>
    %759 = arith.mulf %758, %757 : vector<16x64xf32>
    %cst_313 = arith.constant 0.707106769 : f32
    %760 = vector.broadcast %cst_313 : f32 to vector<16x64xf32>
    %761 = arith.mulf %757, %760 : vector<16x64xf32>
    %762 = math.absf %761 : vector<16x64xf32>
    %cst_314 = arith.constant 0.327591091 : f32
    %763 = vector.broadcast %cst_314 : f32 to vector<16x64xf32>
    %764 = arith.mulf %763, %762 : vector<16x64xf32>
    %cst_315 = arith.constant 1.000000e+00 : f32
    %765 = vector.broadcast %cst_315 : f32 to vector<16x64xf32>
    %766 = arith.addf %765, %764 : vector<16x64xf32>
    %cst_316 = arith.constant 1.000000e+00 : f32
    %767 = vector.broadcast %cst_316 : f32 to vector<16x64xf32>
    %768 = arith.divf %767, %766 : vector<16x64xf32>
    %cst_317 = arith.constant 1.06140542 : f32
    %769 = vector.broadcast %cst_317 : f32 to vector<16x64xf32>
    %770 = arith.mulf %769, %768 : vector<16x64xf32>
    %cst_318 = arith.constant -1.45315206 : f32
    %771 = vector.broadcast %cst_318 : f32 to vector<16x64xf32>
    %772 = arith.addf %770, %771 : vector<16x64xf32>
    %773 = arith.mulf %772, %768 : vector<16x64xf32>
    %cst_319 = arith.constant 1.42141378 : f32
    %774 = vector.broadcast %cst_319 : f32 to vector<16x64xf32>
    %775 = arith.addf %773, %774 : vector<16x64xf32>
    %776 = arith.mulf %775, %768 : vector<16x64xf32>
    %cst_320 = arith.constant -0.284496725 : f32
    %777 = vector.broadcast %cst_320 : f32 to vector<16x64xf32>
    %778 = arith.addf %776, %777 : vector<16x64xf32>
    %779 = arith.mulf %778, %768 : vector<16x64xf32>
    %cst_321 = arith.constant 0.254829586 : f32
    %780 = vector.broadcast %cst_321 : f32 to vector<16x64xf32>
    %781 = arith.addf %779, %780 : vector<16x64xf32>
    %782 = arith.mulf %781, %768 : vector<16x64xf32>
    %cst_322 = arith.constant 0.000000e+00 : f32
    %783 = vector.broadcast %cst_322 : f32 to vector<16x64xf32>
    %784 = arith.subf %783, %762 : vector<16x64xf32>
    %785 = arith.mulf %784, %762 : vector<16x64xf32>
    %786 = math.exp %785 : vector<16x64xf32>
    %787 = arith.mulf %782, %786 : vector<16x64xf32>
    %cst_323 = arith.constant 1.000000e+00 : f32
    %788 = vector.broadcast %cst_323 : f32 to vector<16x64xf32>
    %789 = arith.subf %788, %787 : vector<16x64xf32>
    %cst_324 = arith.constant 0.000000e+00 : f32
    %790 = vector.broadcast %cst_324 : f32 to vector<16x64xf32>
    %791 = arith.cmpf oge, %761, %790 : vector<16x64xf32>
    %cst_325 = arith.constant 0.000000e+00 : f32
    %792 = vector.broadcast %cst_325 : f32 to vector<16x64xf32>
    %793 = arith.subf %792, %789 : vector<16x64xf32>
    %794 = arith.select %791, %789, %793 : vector<16x64xi1>, vector<16x64xf32>
    %cst_326 = arith.constant 1.000000e+00 : f32
    %795 = vector.broadcast %cst_326 : f32 to vector<16x64xf32>
    %796 = arith.addf %795, %794 : vector<16x64xf32>
    %797 = arith.mulf %759, %796 : vector<16x64xf32>
    %798 = vector.broadcast %20 : vector<16x1xf32> to vector<16x64xf32>
    %799 = arith.addf %797, %798 : vector<16x64xf32>
    %800 = arith.truncf %799 : vector<16x64xf32> to vector<16x64xbf16>
    %cst_327 = arith.constant dense<0.000000e+00> : vector<32x64xf32>
    %801 = tpu.matmul %18, %800, %cst_327 {dimension_numbers = #tpu.dot_dimension_numbers<[1], [0], [0], [1], [0, 0, 1, 1], [], []>} : vector<32x16xbf16>, vector<16x64xbf16>, vector<32x64xf32> -> vector<32x64xf32>
    %802 = vector.broadcast %19 : vector<32x1xf32> to vector<32x64xf32>
    %803 = arith.addf %801, %802 : vector<32x64xf32>
    %804 = tpu.concatenate %676, %803 in 0 : vector<32x64xf32>, vector<32x64xf32> -> vector<64x64xf32>
    %cst_328 = arith.constant 5.000000e-01 : f32
    %805 = vector.broadcast %cst_328 : f32 to vector<64x64xf32>
    %806 = arith.mulf %805, %804 : vector<64x64xf32>
    %cst_329 = arith.constant 0.707106769 : f32
    %807 = vector.broadcast %cst_329 : f32 to vector<64x64xf32>
    %808 = arith.mulf %804, %807 : vector<64x64xf32>
    %809 = math.absf %808 : vector<64x64xf32>
    %cst_330 = arith.constant 0.327591091 : f32
    %810 = vector.broadcast %cst_330 : f32 to vector<64x64xf32>
    %811 = arith.mulf %810, %809 : vector<64x64xf32>
    %cst_331 = arith.constant 1.000000e+00 : f32
    %812 = vector.broadcast %cst_331 : f32 to vector<64x64xf32>
    %813 = arith.addf %812, %811 : vector<64x64xf32>
    %cst_332 = arith.constant 1.000000e+00 : f32
    %814 = vector.broadcast %cst_332 : f32 to vector<64x64xf32>
    %815 = arith.divf %814, %813 : vector<64x64xf32>
    %cst_333 = arith.constant 1.06140542 : f32
    %816 = vector.broadcast %cst_333 : f32 to vector<64x64xf32>
    %817 = arith.mulf %816, %815 : vector<64x64xf32>
    %cst_334 = arith.constant -1.45315206 : f32
    %818 = vector.broadcast %cst_334 : f32 to vector<64x64xf32>
    %819 = arith.addf %817, %818 : vector<64x64xf32>
    %820 = arith.mulf %819, %815 : vector<64x64xf32>
    %cst_335 = arith.constant 1.42141378 : f32
    %821 = vector.broadcast %cst_335 : f32 to vector<64x64xf32>
    %822 = arith.addf %820, %821 : vector<64x64xf32>
    %823 = arith.mulf %822, %815 : vector<64x64xf32>
    %cst_336 = arith.constant -0.284496725 : f32
    %824 = vector.broadcast %cst_336 : f32 to vector<64x64xf32>
    %825 = arith.addf %823, %824 : vector<64x64xf32>
    %826 = arith.mulf %825, %815 : vector<64x64xf32>
    %cst_337 = arith.constant 0.254829586 : f32
    %827 = vector.broadcast %cst_337 : f32 to vector<64x64xf32>
    %828 = arith.addf %826, %827 : vector<64x64xf32>
    %829 = arith.mulf %828, %815 : vector<64x64xf32>
    %cst_338 = arith.constant 0.000000e+00 : f32
    %830 = vector.broadcast %cst_338 : f32 to vector<64x64xf32>
    %831 = arith.subf %830, %809 : vector<64x64xf32>
    %832 = arith.mulf %831, %809 : vector<64x64xf32>
    %833 = math.exp %832 : vector<64x64xf32>
    %834 = arith.mulf %829, %833 : vector<64x64xf32>
    %cst_339 = arith.constant 1.000000e+00 : f32
    %835 = vector.broadcast %cst_339 : f32 to vector<64x64xf32>
    %836 = arith.subf %835, %834 : vector<64x64xf32>
    %cst_340 = arith.constant 0.000000e+00 : f32
    %837 = vector.broadcast %cst_340 : f32 to vector<64x64xf32>
    %838 = arith.cmpf oge, %808, %837 : vector<64x64xf32>
    %cst_341 = arith.constant 0.000000e+00 : f32
    %839 = vector.broadcast %cst_341 : f32 to vector<64x64xf32>
    %840 = arith.subf %839, %836 : vector<64x64xf32>
    %841 = arith.select %838, %836, %840 : vector<64x64xi1>, vector<64x64xf32>
    %cst_342 = arith.constant 1.000000e+00 : f32
    %842 = vector.broadcast %cst_342 : f32 to vector<64x64xf32>
    %843 = arith.addf %842, %841 : vector<64x64xf32>
    %844 = arith.mulf %806, %843 : vector<64x64xf32>
    %845 = vector.broadcast %23 : vector<64x1xf32> to vector<64x64xf32>
    %846 = arith.addf %844, %845 : vector<64x64xf32>
    %847 = tpu.iota {dimensions = array<i32: 1>} : vector<1x32xi32>
    %848 = tpu.concatenate %847, %847 in 1 : vector<1x32xi32>, vector<1x32xi32> -> vector<1x64xi32>
    %cst_343 = arith.constant 0.000000e+00 : f32
    %849 = vector.broadcast %cst_343 : f32 to vector<64x8xf32>
    %850 = vector.extract_strided_slice %846 {offsets = [0, 0], sizes = [64, 56], strides = [1, 1]} : vector<64x64xf32> to vector<64x56xf32>
    %851 = tpu.concatenate %849, %850 in 1 : vector<64x8xf32>, vector<64x56xf32> -> vector<64x64xf32>
    %c-8_i32 = arith.constant -8 : i32
    %852 = vector.broadcast %c-8_i32 : i32 to vector<1x64xi32>
    %853 = arith.addi %848, %852 : vector<1x64xi32>
    %c0_i32_344 = arith.constant 0 : i32
    %854 = vector.broadcast %c0_i32_344 : i32 to vector<1x64xi32>
    %855 = arith.cmpi sge, %853, %854 : vector<1x64xi32>
    %c-8_i32_345 = arith.constant -8 : i32
    %856 = vector.broadcast %c-8_i32_345 : i32 to vector<1x64xi32>
    %857 = arith.addi %848, %856 : vector<1x64xi32>
    %c32_i32_346 = arith.constant 32 : i32
    %858 = vector.broadcast %c32_i32_346 : i32 to vector<1x64xi32>
    %859 = arith.cmpi slt, %857, %858 : vector<1x64xi32>
    %860 = arith.andi %855, %859 : vector<1x64xi1>
    %cst_347 = arith.constant 0.000000e+00 : f32
    %861 = vector.broadcast %cst_347 : f32 to vector<64x64xf32>
    %862 = vector.shape_cast %860 : vector<1x64xi1> to vector<1x64xi1>
    %863 = vector.broadcast %862 : vector<1x64xi1> to vector<64x64xi1>
    %864 = arith.select %863, %851, %861 : vector<64x64xi1>, vector<64x64xf32>
    %cst_348 = arith.constant 0.000000e+00 : f32
    %865 = vector.broadcast %cst_348 : f32 to vector<64x8xf32>
    %866 = vector.extract_strided_slice %846 {offsets = [0, 8], sizes = [64, 56], strides = [1, 1]} : vector<64x64xf32> to vector<64x56xf32>
    %867 = tpu.concatenate %866, %865 in 1 : vector<64x56xf32>, vector<64x8xf32> -> vector<64x64xf32>
    %c8_i32 = arith.constant 8 : i32
    %868 = vector.broadcast %c8_i32 : i32 to vector<1x64xi32>
    %869 = arith.addi %848, %868 : vector<1x64xi32>
    %c0_i32_349 = arith.constant 0 : i32
    %870 = vector.broadcast %c0_i32_349 : i32 to vector<1x64xi32>
    %871 = arith.cmpi sge, %869, %870 : vector<1x64xi32>
    %c8_i32_350 = arith.constant 8 : i32
    %872 = vector.broadcast %c8_i32_350 : i32 to vector<1x64xi32>
    %873 = arith.addi %848, %872 : vector<1x64xi32>
    %c32_i32_351 = arith.constant 32 : i32
    %874 = vector.broadcast %c32_i32_351 : i32 to vector<1x64xi32>
    %875 = arith.cmpi slt, %873, %874 : vector<1x64xi32>
    %876 = arith.andi %871, %875 : vector<1x64xi1>
    %cst_352 = arith.constant 0.000000e+00 : f32
    %877 = vector.broadcast %cst_352 : f32 to vector<64x64xf32>
    %878 = vector.shape_cast %876 : vector<1x64xi1> to vector<1x64xi1>
    %879 = vector.broadcast %878 : vector<1x64xi1> to vector<64x64xi1>
    %880 = arith.select %879, %867, %877 : vector<64x64xi1>, vector<64x64xf32>
    %881 = tpu.concatenate %864, %846, %880 in 0 : vector<64x64xf32>, vector<64x64xf32>, vector<64x64xf32> -> vector<192x64xf32>
    %882 = arith.truncf %881 : vector<192x64xf32> to vector<192x64xbf16>
    %cst_353 = arith.constant dense<0.000000e+00> : vector<16x64xf32>
    %883 = tpu.matmul %21, %882, %cst_353 {dimension_numbers = #tpu.dot_dimension_numbers<[1], [0], [0], [1], [0, 0, 1, 1], [], []>} : vector<16x192xbf16>, vector<192x64xbf16>, vector<16x64xf32> -> vector<16x64xf32>
    %884 = vector.broadcast %22 : vector<16x1xf32> to vector<16x64xf32>
    %885 = arith.addf %883, %884 : vector<16x64xf32>
    %cst_354 = arith.constant 5.000000e-01 : f32
    %886 = vector.broadcast %cst_354 : f32 to vector<16x64xf32>
    %887 = arith.mulf %886, %885 : vector<16x64xf32>
    %cst_355 = arith.constant 0.707106769 : f32
    %888 = vector.broadcast %cst_355 : f32 to vector<16x64xf32>
    %889 = arith.mulf %885, %888 : vector<16x64xf32>
    %890 = math.absf %889 : vector<16x64xf32>
    %cst_356 = arith.constant 0.327591091 : f32
    %891 = vector.broadcast %cst_356 : f32 to vector<16x64xf32>
    %892 = arith.mulf %891, %890 : vector<16x64xf32>
    %cst_357 = arith.constant 1.000000e+00 : f32
    %893 = vector.broadcast %cst_357 : f32 to vector<16x64xf32>
    %894 = arith.addf %893, %892 : vector<16x64xf32>
    %cst_358 = arith.constant 1.000000e+00 : f32
    %895 = vector.broadcast %cst_358 : f32 to vector<16x64xf32>
    %896 = arith.divf %895, %894 : vector<16x64xf32>
    %cst_359 = arith.constant 1.06140542 : f32
    %897 = vector.broadcast %cst_359 : f32 to vector<16x64xf32>
    %898 = arith.mulf %897, %896 : vector<16x64xf32>
    %cst_360 = arith.constant -1.45315206 : f32
    %899 = vector.broadcast %cst_360 : f32 to vector<16x64xf32>
    %900 = arith.addf %898, %899 : vector<16x64xf32>
    %901 = arith.mulf %900, %896 : vector<16x64xf32>
    %cst_361 = arith.constant 1.42141378 : f32
    %902 = vector.broadcast %cst_361 : f32 to vector<16x64xf32>
    %903 = arith.addf %901, %902 : vector<16x64xf32>
    %904 = arith.mulf %903, %896 : vector<16x64xf32>
    %cst_362 = arith.constant -0.284496725 : f32
    %905 = vector.broadcast %cst_362 : f32 to vector<16x64xf32>
    %906 = arith.addf %904, %905 : vector<16x64xf32>
    %907 = arith.mulf %906, %896 : vector<16x64xf32>
    %cst_363 = arith.constant 0.254829586 : f32
    %908 = vector.broadcast %cst_363 : f32 to vector<16x64xf32>
    %909 = arith.addf %907, %908 : vector<16x64xf32>
    %910 = arith.mulf %909, %896 : vector<16x64xf32>
    %cst_364 = arith.constant 0.000000e+00 : f32
    %911 = vector.broadcast %cst_364 : f32 to vector<16x64xf32>
    %912 = arith.subf %911, %890 : vector<16x64xf32>
    %913 = arith.mulf %912, %890 : vector<16x64xf32>
    %914 = math.exp %913 : vector<16x64xf32>
    %915 = arith.mulf %910, %914 : vector<16x64xf32>
    %cst_365 = arith.constant 1.000000e+00 : f32
    %916 = vector.broadcast %cst_365 : f32 to vector<16x64xf32>
    %917 = arith.subf %916, %915 : vector<16x64xf32>
    %cst_366 = arith.constant 0.000000e+00 : f32
    %918 = vector.broadcast %cst_366 : f32 to vector<16x64xf32>
    %919 = arith.cmpf oge, %889, %918 : vector<16x64xf32>
    %cst_367 = arith.constant 0.000000e+00 : f32
    %920 = vector.broadcast %cst_367 : f32 to vector<16x64xf32>
    %921 = arith.subf %920, %917 : vector<16x64xf32>
    %922 = arith.select %919, %917, %921 : vector<16x64xi1>, vector<16x64xf32>
    %cst_368 = arith.constant 1.000000e+00 : f32
    %923 = vector.broadcast %cst_368 : f32 to vector<16x64xf32>
    %924 = arith.addf %923, %922 : vector<16x64xf32>
    %925 = arith.mulf %887, %924 : vector<16x64xf32>
    %926 = vector.broadcast %26 : vector<16x1xf32> to vector<16x64xf32>
    %927 = arith.addf %925, %926 : vector<16x64xf32>
    %928 = arith.truncf %927 : vector<16x64xf32> to vector<16x64xbf16>
    %cst_369 = arith.constant dense<0.000000e+00> : vector<32x64xf32>
    %929 = tpu.matmul %24, %928, %cst_369 {dimension_numbers = #tpu.dot_dimension_numbers<[1], [0], [0], [1], [0, 0, 1, 1], [], []>} : vector<32x16xbf16>, vector<16x64xbf16>, vector<32x64xf32> -> vector<32x64xf32>
    %930 = vector.broadcast %25 : vector<32x1xf32> to vector<32x64xf32>
    %931 = arith.addf %929, %930 : vector<32x64xf32>
    %932 = tpu.concatenate %804, %931 in 0 : vector<64x64xf32>, vector<32x64xf32> -> vector<96x64xf32>
    %cst_370 = arith.constant 5.000000e-01 : f32
    %933 = vector.broadcast %cst_370 : f32 to vector<96x64xf32>
    %934 = arith.mulf %933, %932 : vector<96x64xf32>
    %cst_371 = arith.constant 0.707106769 : f32
    %935 = vector.broadcast %cst_371 : f32 to vector<96x64xf32>
    %936 = arith.mulf %932, %935 : vector<96x64xf32>
    %937 = math.absf %936 : vector<96x64xf32>
    %cst_372 = arith.constant 0.327591091 : f32
    %938 = vector.broadcast %cst_372 : f32 to vector<96x64xf32>
    %939 = arith.mulf %938, %937 : vector<96x64xf32>
    %cst_373 = arith.constant 1.000000e+00 : f32
    %940 = vector.broadcast %cst_373 : f32 to vector<96x64xf32>
    %941 = arith.addf %940, %939 : vector<96x64xf32>
    %cst_374 = arith.constant 1.000000e+00 : f32
    %942 = vector.broadcast %cst_374 : f32 to vector<96x64xf32>
    %943 = arith.divf %942, %941 : vector<96x64xf32>
    %cst_375 = arith.constant 1.06140542 : f32
    %944 = vector.broadcast %cst_375 : f32 to vector<96x64xf32>
    %945 = arith.mulf %944, %943 : vector<96x64xf32>
    %cst_376 = arith.constant -1.45315206 : f32
    %946 = vector.broadcast %cst_376 : f32 to vector<96x64xf32>
    %947 = arith.addf %945, %946 : vector<96x64xf32>
    %948 = arith.mulf %947, %943 : vector<96x64xf32>
    %cst_377 = arith.constant 1.42141378 : f32
    %949 = vector.broadcast %cst_377 : f32 to vector<96x64xf32>
    %950 = arith.addf %948, %949 : vector<96x64xf32>
    %951 = arith.mulf %950, %943 : vector<96x64xf32>
    %cst_378 = arith.constant -0.284496725 : f32
    %952 = vector.broadcast %cst_378 : f32 to vector<96x64xf32>
    %953 = arith.addf %951, %952 : vector<96x64xf32>
    %954 = arith.mulf %953, %943 : vector<96x64xf32>
    %cst_379 = arith.constant 0.254829586 : f32
    %955 = vector.broadcast %cst_379 : f32 to vector<96x64xf32>
    %956 = arith.addf %954, %955 : vector<96x64xf32>
    %957 = arith.mulf %956, %943 : vector<96x64xf32>
    %cst_380 = arith.constant 0.000000e+00 : f32
    %958 = vector.broadcast %cst_380 : f32 to vector<96x64xf32>
    %959 = arith.subf %958, %937 : vector<96x64xf32>
    %960 = arith.mulf %959, %937 : vector<96x64xf32>
    %961 = math.exp %960 : vector<96x64xf32>
    %962 = arith.mulf %957, %961 : vector<96x64xf32>
    %cst_381 = arith.constant 1.000000e+00 : f32
    %963 = vector.broadcast %cst_381 : f32 to vector<96x64xf32>
    %964 = arith.subf %963, %962 : vector<96x64xf32>
    %cst_382 = arith.constant 0.000000e+00 : f32
    %965 = vector.broadcast %cst_382 : f32 to vector<96x64xf32>
    %966 = arith.cmpf oge, %936, %965 : vector<96x64xf32>
    %cst_383 = arith.constant 0.000000e+00 : f32
    %967 = vector.broadcast %cst_383 : f32 to vector<96x64xf32>
    %968 = arith.subf %967, %964 : vector<96x64xf32>
    %969 = arith.select %966, %964, %968 : vector<96x64xi1>, vector<96x64xf32>
    %cst_384 = arith.constant 1.000000e+00 : f32
    %970 = vector.broadcast %cst_384 : f32 to vector<96x64xf32>
    %971 = arith.addf %970, %969 : vector<96x64xf32>
    %972 = arith.mulf %934, %971 : vector<96x64xf32>
    %973 = vector.broadcast %29 : vector<96x1xf32> to vector<96x64xf32>
    %974 = arith.addf %972, %973 : vector<96x64xf32>
    %975 = tpu.iota {dimensions = array<i32: 1>} : vector<1x32xi32>
    %976 = tpu.concatenate %975, %975 in 1 : vector<1x32xi32>, vector<1x32xi32> -> vector<1x64xi32>
    %cst_385 = arith.constant 0.000000e+00 : f32
    %977 = vector.broadcast %cst_385 : f32 to vector<96x16xf32>
    %978 = vector.extract_strided_slice %974 {offsets = [0, 0], sizes = [96, 48], strides = [1, 1]} : vector<96x64xf32> to vector<96x48xf32>
    %979 = tpu.concatenate %977, %978 in 1 : vector<96x16xf32>, vector<96x48xf32> -> vector<96x64xf32>
    %c-16_i32 = arith.constant -16 : i32
    %980 = vector.broadcast %c-16_i32 : i32 to vector<1x64xi32>
    %981 = arith.addi %976, %980 : vector<1x64xi32>
    %c0_i32_386 = arith.constant 0 : i32
    %982 = vector.broadcast %c0_i32_386 : i32 to vector<1x64xi32>
    %983 = arith.cmpi sge, %981, %982 : vector<1x64xi32>
    %c-16_i32_387 = arith.constant -16 : i32
    %984 = vector.broadcast %c-16_i32_387 : i32 to vector<1x64xi32>
    %985 = arith.addi %976, %984 : vector<1x64xi32>
    %c32_i32_388 = arith.constant 32 : i32
    %986 = vector.broadcast %c32_i32_388 : i32 to vector<1x64xi32>
    %987 = arith.cmpi slt, %985, %986 : vector<1x64xi32>
    %988 = arith.andi %983, %987 : vector<1x64xi1>
    %cst_389 = arith.constant 0.000000e+00 : f32
    %989 = vector.broadcast %cst_389 : f32 to vector<96x64xf32>
    %990 = vector.shape_cast %988 : vector<1x64xi1> to vector<1x64xi1>
    %991 = vector.broadcast %990 : vector<1x64xi1> to vector<96x64xi1>
    %992 = arith.select %991, %979, %989 : vector<96x64xi1>, vector<96x64xf32>
    %cst_390 = arith.constant 0.000000e+00 : f32
    %993 = vector.broadcast %cst_390 : f32 to vector<96x16xf32>
    %994 = vector.extract_strided_slice %974 {offsets = [0, 16], sizes = [96, 48], strides = [1, 1]} : vector<96x64xf32> to vector<96x48xf32>
    %995 = tpu.concatenate %994, %993 in 1 : vector<96x48xf32>, vector<96x16xf32> -> vector<96x64xf32>
    %c16_i32 = arith.constant 16 : i32
    %996 = vector.broadcast %c16_i32 : i32 to vector<1x64xi32>
    %997 = arith.addi %976, %996 : vector<1x64xi32>
    %c0_i32_391 = arith.constant 0 : i32
    %998 = vector.broadcast %c0_i32_391 : i32 to vector<1x64xi32>
    %999 = arith.cmpi sge, %997, %998 : vector<1x64xi32>
    %c16_i32_392 = arith.constant 16 : i32
    %1000 = vector.broadcast %c16_i32_392 : i32 to vector<1x64xi32>
    %1001 = arith.addi %976, %1000 : vector<1x64xi32>
    %c32_i32_393 = arith.constant 32 : i32
    %1002 = vector.broadcast %c32_i32_393 : i32 to vector<1x64xi32>
    %1003 = arith.cmpi slt, %1001, %1002 : vector<1x64xi32>
    %1004 = arith.andi %999, %1003 : vector<1x64xi1>
    %cst_394 = arith.constant 0.000000e+00 : f32
    %1005 = vector.broadcast %cst_394 : f32 to vector<96x64xf32>
    %1006 = vector.shape_cast %1004 : vector<1x64xi1> to vector<1x64xi1>
    %1007 = vector.broadcast %1006 : vector<1x64xi1> to vector<96x64xi1>
    %1008 = arith.select %1007, %995, %1005 : vector<96x64xi1>, vector<96x64xf32>
    %1009 = tpu.concatenate %992, %974, %1008 in 0 : vector<96x64xf32>, vector<96x64xf32>, vector<96x64xf32> -> vector<288x64xf32>
    %1010 = arith.truncf %1009 : vector<288x64xf32> to vector<288x64xbf16>
    %cst_395 = arith.constant dense<0.000000e+00> : vector<16x64xf32>
    %1011 = tpu.matmul %27, %1010, %cst_395 {dimension_numbers = #tpu.dot_dimension_numbers<[1], [0], [0], [1], [0, 0, 1, 1], [], []>} : vector<16x288xbf16>, vector<288x64xbf16>, vector<16x64xf32> -> vector<16x64xf32>
    %1012 = vector.broadcast %28 : vector<16x1xf32> to vector<16x64xf32>
    %1013 = arith.addf %1011, %1012 : vector<16x64xf32>
    %cst_396 = arith.constant 5.000000e-01 : f32
    %1014 = vector.broadcast %cst_396 : f32 to vector<16x64xf32>
    %1015 = arith.mulf %1014, %1013 : vector<16x64xf32>
    %cst_397 = arith.constant 0.707106769 : f32
    %1016 = vector.broadcast %cst_397 : f32 to vector<16x64xf32>
    %1017 = arith.mulf %1013, %1016 : vector<16x64xf32>
    %1018 = math.absf %1017 : vector<16x64xf32>
    %cst_398 = arith.constant 0.327591091 : f32
    %1019 = vector.broadcast %cst_398 : f32 to vector<16x64xf32>
    %1020 = arith.mulf %1019, %1018 : vector<16x64xf32>
    %cst_399 = arith.constant 1.000000e+00 : f32
    %1021 = vector.broadcast %cst_399 : f32 to vector<16x64xf32>
    %1022 = arith.addf %1021, %1020 : vector<16x64xf32>
    %cst_400 = arith.constant 1.000000e+00 : f32
    %1023 = vector.broadcast %cst_400 : f32 to vector<16x64xf32>
    %1024 = arith.divf %1023, %1022 : vector<16x64xf32>
    %cst_401 = arith.constant 1.06140542 : f32
    %1025 = vector.broadcast %cst_401 : f32 to vector<16x64xf32>
    %1026 = arith.mulf %1025, %1024 : vector<16x64xf32>
    %cst_402 = arith.constant -1.45315206 : f32
    %1027 = vector.broadcast %cst_402 : f32 to vector<16x64xf32>
    %1028 = arith.addf %1026, %1027 : vector<16x64xf32>
    %1029 = arith.mulf %1028, %1024 : vector<16x64xf32>
    %cst_403 = arith.constant 1.42141378 : f32
    %1030 = vector.broadcast %cst_403 : f32 to vector<16x64xf32>
    %1031 = arith.addf %1029, %1030 : vector<16x64xf32>
    %1032 = arith.mulf %1031, %1024 : vector<16x64xf32>
    %cst_404 = arith.constant -0.284496725 : f32
    %1033 = vector.broadcast %cst_404 : f32 to vector<16x64xf32>
    %1034 = arith.addf %1032, %1033 : vector<16x64xf32>
    %1035 = arith.mulf %1034, %1024 : vector<16x64xf32>
    %cst_405 = arith.constant 0.254829586 : f32
    %1036 = vector.broadcast %cst_405 : f32 to vector<16x64xf32>
    %1037 = arith.addf %1035, %1036 : vector<16x64xf32>
    %1038 = arith.mulf %1037, %1024 : vector<16x64xf32>
    %cst_406 = arith.constant 0.000000e+00 : f32
    %1039 = vector.broadcast %cst_406 : f32 to vector<16x64xf32>
    %1040 = arith.subf %1039, %1018 : vector<16x64xf32>
    %1041 = arith.mulf %1040, %1018 : vector<16x64xf32>
    %1042 = math.exp %1041 : vector<16x64xf32>
    %1043 = arith.mulf %1038, %1042 : vector<16x64xf32>
    %cst_407 = arith.constant 1.000000e+00 : f32
    %1044 = vector.broadcast %cst_407 : f32 to vector<16x64xf32>
    %1045 = arith.subf %1044, %1043 : vector<16x64xf32>
    %cst_408 = arith.constant 0.000000e+00 : f32
    %1046 = vector.broadcast %cst_408 : f32 to vector<16x64xf32>
    %1047 = arith.cmpf oge, %1017, %1046 : vector<16x64xf32>
    %cst_409 = arith.constant 0.000000e+00 : f32
    %1048 = vector.broadcast %cst_409 : f32 to vector<16x64xf32>
    %1049 = arith.subf %1048, %1045 : vector<16x64xf32>
    %1050 = arith.select %1047, %1045, %1049 : vector<16x64xi1>, vector<16x64xf32>
    %cst_410 = arith.constant 1.000000e+00 : f32
    %1051 = vector.broadcast %cst_410 : f32 to vector<16x64xf32>
    %1052 = arith.addf %1051, %1050 : vector<16x64xf32>
    %1053 = arith.mulf %1015, %1052 : vector<16x64xf32>
    %1054 = vector.broadcast %32 : vector<16x1xf32> to vector<16x64xf32>
    %1055 = arith.addf %1053, %1054 : vector<16x64xf32>
    %1056 = arith.truncf %1055 : vector<16x64xf32> to vector<16x64xbf16>
    %cst_411 = arith.constant dense<0.000000e+00> : vector<32x64xf32>
    %1057 = tpu.matmul %30, %1056, %cst_411 {dimension_numbers = #tpu.dot_dimension_numbers<[1], [0], [0], [1], [0, 0, 1, 1], [], []>} : vector<32x16xbf16>, vector<16x64xbf16>, vector<32x64xf32> -> vector<32x64xf32>
    %1058 = vector.broadcast %31 : vector<32x1xf32> to vector<32x64xf32>
    %1059 = arith.addf %1057, %1058 : vector<32x64xf32>
    %1060 = tpu.concatenate %932, %1059 in 0 : vector<96x64xf32>, vector<32x64xf32> -> vector<128x64xf32>
    %1061 = vector.extract_strided_slice %1060 {offsets = [0, 8], sizes = [128, 16], strides = [1, 1]} : vector<128x64xf32> to vector<128x16xf32>
    %1062 = vector.extract_strided_slice %1060 {offsets = [0, 40], sizes = [128, 16], strides = [1, 1]} : vector<128x64xf32> to vector<128x16xf32>
    %1063 = tpu.concatenate %1061, %1062 in 1 : vector<128x16xf32>, vector<128x16xf32> -> vector<128x32xf32>
    %cst_412 = arith.constant 5.000000e-01 : f32
    %1064 = vector.broadcast %cst_412 : f32 to vector<128x32xf32>
    %1065 = arith.mulf %1064, %1063 : vector<128x32xf32>
    %cst_413 = arith.constant 0.707106769 : f32
    %1066 = vector.broadcast %cst_413 : f32 to vector<128x32xf32>
    %1067 = arith.mulf %1063, %1066 : vector<128x32xf32>
    %1068 = math.absf %1067 : vector<128x32xf32>
    %cst_414 = arith.constant 0.327591091 : f32
    %1069 = vector.broadcast %cst_414 : f32 to vector<128x32xf32>
    %1070 = arith.mulf %1069, %1068 : vector<128x32xf32>
    %cst_415 = arith.constant 1.000000e+00 : f32
    %1071 = vector.broadcast %cst_415 : f32 to vector<128x32xf32>
    %1072 = arith.addf %1071, %1070 : vector<128x32xf32>
    %cst_416 = arith.constant 1.000000e+00 : f32
    %1073 = vector.broadcast %cst_416 : f32 to vector<128x32xf32>
    %1074 = arith.divf %1073, %1072 : vector<128x32xf32>
    %cst_417 = arith.constant 1.06140542 : f32
    %1075 = vector.broadcast %cst_417 : f32 to vector<128x32xf32>
    %1076 = arith.mulf %1075, %1074 : vector<128x32xf32>
    %cst_418 = arith.constant -1.45315206 : f32
    %1077 = vector.broadcast %cst_418 : f32 to vector<128x32xf32>
    %1078 = arith.addf %1076, %1077 : vector<128x32xf32>
    %1079 = arith.mulf %1078, %1074 : vector<128x32xf32>
    %cst_419 = arith.constant 1.42141378 : f32
    %1080 = vector.broadcast %cst_419 : f32 to vector<128x32xf32>
    %1081 = arith.addf %1079, %1080 : vector<128x32xf32>
    %1082 = arith.mulf %1081, %1074 : vector<128x32xf32>
    %cst_420 = arith.constant -0.284496725 : f32
    %1083 = vector.broadcast %cst_420 : f32 to vector<128x32xf32>
    %1084 = arith.addf %1082, %1083 : vector<128x32xf32>
    %1085 = arith.mulf %1084, %1074 : vector<128x32xf32>
    %cst_421 = arith.constant 0.254829586 : f32
    %1086 = vector.broadcast %cst_421 : f32 to vector<128x32xf32>
    %1087 = arith.addf %1085, %1086 : vector<128x32xf32>
    %1088 = arith.mulf %1087, %1074 : vector<128x32xf32>
    %cst_422 = arith.constant 0.000000e+00 : f32
    %1089 = vector.broadcast %cst_422 : f32 to vector<128x32xf32>
    %1090 = arith.subf %1089, %1068 : vector<128x32xf32>
    %1091 = arith.mulf %1090, %1068 : vector<128x32xf32>
    %1092 = math.exp %1091 : vector<128x32xf32>
    %1093 = arith.mulf %1088, %1092 : vector<128x32xf32>
    %cst_423 = arith.constant 1.000000e+00 : f32
    %1094 = vector.broadcast %cst_423 : f32 to vector<128x32xf32>
    %1095 = arith.subf %1094, %1093 : vector<128x32xf32>
    %cst_424 = arith.constant 0.000000e+00 : f32
    %1096 = vector.broadcast %cst_424 : f32 to vector<128x32xf32>
    %1097 = arith.cmpf oge, %1067, %1096 : vector<128x32xf32>
    %cst_425 = arith.constant 0.000000e+00 : f32
    %1098 = vector.broadcast %cst_425 : f32 to vector<128x32xf32>
    %1099 = arith.subf %1098, %1095 : vector<128x32xf32>
    %1100 = arith.select %1097, %1095, %1099 : vector<128x32xi1>, vector<128x32xf32>
    %cst_426 = arith.constant 1.000000e+00 : f32
    %1101 = vector.broadcast %cst_426 : f32 to vector<128x32xf32>
    %1102 = arith.addf %1101, %1100 : vector<128x32xf32>
    %1103 = arith.mulf %1065, %1102 : vector<128x32xf32>
    %1104 = vector.broadcast %35 : vector<128x1xf32> to vector<128x32xf32>
    %1105 = arith.addf %1103, %1104 : vector<128x32xf32>
    %1106 = arith.truncf %1105 : vector<128x32xf32> to vector<128x32xbf16>
    %cst_427 = arith.constant dense<0.000000e+00> : vector<64x32xf32>
    %1107 = tpu.matmul %33, %1106, %cst_427 {dimension_numbers = #tpu.dot_dimension_numbers<[1], [0], [0], [1], [0, 0, 1, 1], [], []>} : vector<64x128xbf16>, vector<128x32xbf16>, vector<64x32xf32> -> vector<64x32xf32>
    %1108 = vector.broadcast %34 : vector<64x1xf32> to vector<64x32xf32>
    %1109 = arith.addf %1107, %1108 : vector<64x32xf32>
    %1110 = arith.truncf %1109 : vector<64x32xf32> to vector<64x32xbf16>
    %cst_428 = arith.constant dense<0.000000e+00> : vector<2x32xf32>
    %1111 = tpu.matmul %36, %1110, %cst_428 {dimension_numbers = #tpu.dot_dimension_numbers<[1], [0], [0], [1], [0, 0, 1, 1], [], []>} : vector<2x64xbf16>, vector<64x32xbf16>, vector<2x32xf32> -> vector<2x32xf32>
    %1112 = vector.broadcast %37 : vector<2x1xf32> to vector<2x32xf32>
    %1113 = arith.addf %1111, %1112 : vector<2x32xf32>
    %cst_429 = arith.constant 0.000000e+00 : f32
    %1114 = vector.broadcast %cst_429 : f32 to vector<2x32xf32>
    %1115 = arith.maximumf %1113, %1114 : vector<2x32xf32>
    %1116 = math.absf %1113 : vector<2x32xf32>
    %cst_430 = arith.constant 0.000000e+00 : f32
    %1117 = vector.broadcast %cst_430 : f32 to vector<2x32xf32>
    %1118 = arith.subf %1117, %1116 : vector<2x32xf32>
    %1119 = math.exp %1118 : vector<2x32xf32>
    %cst_431 = arith.constant 1.000000e+00 : f32
    %1120 = vector.broadcast %cst_431 : f32 to vector<2x32xf32>
    %1121 = arith.addf %1120, %1119 : vector<2x32xf32>
    %1122 = math.log %1121 : vector<2x32xf32>
    %1123 = arith.addf %1115, %1122 : vector<2x32xf32>
    %c0_432 = arith.constant 0 : index
    %c0_433 = arith.constant 0 : index
    %c0_434 = arith.constant 0 : index
    %1124 = vector.load %arg40[%c0_432, %c0_433, %c0_434] : memref<1x2x32xf32, #tpu.memory_space<vmem>>, vector<1x2x32xf32>
    %1125 = vector.shape_cast %1124 : vector<1x2x32xf32> to vector<2x32xf32>
    %1126 = vector.shape_cast %1123 : vector<2x32xf32> to vector<1x2x32xf32>
    tpu.vector_store %arg40[%c0_432, %c0_433, %c0_434], %1126 {strides = array<i32>} : memref<1x2x32xf32, #tpu.memory_space<vmem>>, vector<1x2x32xf32>,
    return
  }
  func.func @transform_0(%arg0: i32) -> (i32, i32, i32) {
    %c0_i32 = arith.constant 0 : i32
    %c0_i32_0 = arith.constant 0 : i32
    %c0_i32_1 = arith.constant 0 : i32
    return %arg0, %c0_i32, %c0_i32_0 : i32, i32, i32
  }
  func.func @transform_1(%arg0: i32) -> (i32, i32) {
    %c0_i32 = arith.constant 0 : i32
    %c0_i32_0 = arith.constant 0 : i32
    %c0_i32_1 = arith.constant 0 : i32
    return %c0_i32, %c0_i32_0 : i32, i32
  }
  func.func @transform_2(%arg0: i32) -> (i32, i32) {
    %c0_i32 = arith.constant 0 : i32
    %c0_i32_0 = arith.constant 0 : i32
    %c0_i32_1 = arith.constant 0 : i32
    return %c0_i32, %c0_i32_0 : i32, i32
  }
  func.func @transform_3(%arg0: i32) -> (i32, i32) {
    %c0_i32 = arith.constant 0 : i32
    %c0_i32_0 = arith.constant 0 : i32
    %c0_i32_1 = arith.constant 0 : i32
    return %c0_i32, %c0_i32_0 : i32, i32
  }
  func.func @transform_4(%arg0: i32) -> (i32, i32) {
    %c0_i32 = arith.constant 0 : i32
    %c0_i32_0 = arith.constant 0 : i32
    %c0_i32_1 = arith.constant 0 : i32
    return %c0_i32, %c0_i32_0 : i32, i32
  }
  func.func @transform_5(%arg0: i32) -> (i32, i32) {
    %c0_i32 = arith.constant 0 : i32
    %c0_i32_0 = arith.constant 0 : i32
    %c0_i32_1 = arith.constant 0 : i32
    return %c0_i32, %c0_i32_0 : i32, i32
  }
  func.func @transform_6(%arg0: i32) -> (i32, i32) {
    %c0_i32 = arith.constant 0 : i32
    %c0_i32_0 = arith.constant 0 : i32
    %c0_i32_1 = arith.constant 0 : i32
    return %c0_i32, %c0_i32_0 : i32, i32
  }
  func.func @transform_7(%arg0: i32) -> (i32, i32) {
    %c0_i32 = arith.constant 0 : i32
    %c0_i32_0 = arith.constant 0 : i32
    %c0_i32_1 = arith.constant 0 : i32
    return %c0_i32, %c0_i32_0 : i32, i32
  }
  func.func @transform_8(%arg0: i32) -> (i32, i32) {
    %c0_i32 = arith.constant 0 : i32
    %c0_i32_0 = arith.constant 0 : i32
    %c0_i32_1 = arith.constant 0 : i32
    return %c0_i32, %c0_i32_0 : i32, i32
  }
  func.func @transform_9(%arg0: i32) -> (i32, i32) {
    %c0_i32 = arith.constant 0 : i32
    %c0_i32_0 = arith.constant 0 : i32
    %c0_i32_1 = arith.constant 0 : i32
    return %c0_i32, %c0_i32_0 : i32, i32
  }
  func.func @transform_10(%arg0: i32) -> (i32, i32) {
    %c0_i32 = arith.constant 0 : i32
    %c0_i32_0 = arith.constant 0 : i32
    %c0_i32_1 = arith.constant 0 : i32
    return %c0_i32, %c0_i32_0 : i32, i32
  }
  func.func @transform_11(%arg0: i32) -> (i32, i32) {
    %c0_i32 = arith.constant 0 : i32
    %c0_i32_0 = arith.constant 0 : i32
    %c0_i32_1 = arith.constant 0 : i32
    return %c0_i32, %c0_i32_0 : i32, i32
  }
  func.func @transform_12(%arg0: i32) -> (i32, i32) {
    %c0_i32 = arith.constant 0 : i32
    %c0_i32_0 = arith.constant 0 : i32
    %c0_i32_1 = arith.constant 0 : i32
    return %c0_i32, %c0_i32_0 : i32, i32
  }
  func.func @transform_13(%arg0: i32) -> (i32, i32) {
    %c0_i32 = arith.constant 0 : i32
    %c0_i32_0 = arith.constant 0 : i32
    %c0_i32_1 = arith.constant 0 : i32
    return %c0_i32, %c0_i32_0 : i32, i32
  }
  func.func @transform_14(%arg0: i32) -> (i32, i32) {
    %c0_i32 = arith.constant 0 : i32
    %c0_i32_0 = arith.constant 0 : i32
    %c0_i32_1 = arith.constant 0 : i32
    return %c0_i32, %c0_i32_0 : i32, i32
  }
  func.func @transform_15(%arg0: i32) -> (i32, i32) {
    %c0_i32 = arith.constant 0 : i32
    %c0_i32_0 = arith.constant 0 : i32
    %c0_i32_1 = arith.constant 0 : i32
    return %c0_i32, %c0_i32_0 : i32, i32
  }
  func.func @transform_16(%arg0: i32) -> (i32, i32) {
    %c0_i32 = arith.constant 0 : i32
    %c0_i32_0 = arith.constant 0 : i32
    %c0_i32_1 = arith.constant 0 : i32
    return %c0_i32, %c0_i32_0 : i32, i32
  }
  func.func @transform_17(%arg0: i32) -> (i32, i32) {
    %c0_i32 = arith.constant 0 : i32
    %c0_i32_0 = arith.constant 0 : i32
    %c0_i32_1 = arith.constant 0 : i32
    return %c0_i32, %c0_i32_0 : i32, i32
  }
  func.func @transform_18(%arg0: i32) -> (i32, i32) {
    %c0_i32 = arith.constant 0 : i32
    %c0_i32_0 = arith.constant 0 : i32
    %c0_i32_1 = arith.constant 0 : i32
    return %c0_i32, %c0_i32_0 : i32, i32
  }
  func.func @transform_19(%arg0: i32) -> (i32, i32) {
    %c0_i32 = arith.constant 0 : i32
    %c0_i32_0 = arith.constant 0 : i32
    %c0_i32_1 = arith.constant 0 : i32
    return %c0_i32, %c0_i32_0 : i32, i32
  }
  func.func @transform_20(%arg0: i32) -> (i32, i32) {
    %c0_i32 = arith.constant 0 : i32
    %c0_i32_0 = arith.constant 0 : i32
    %c0_i32_1 = arith.constant 0 : i32
    return %c0_i32, %c0_i32_0 : i32, i32
  }
  func.func @transform_21(%arg0: i32) -> (i32, i32) {
    %c0_i32 = arith.constant 0 : i32
    %c0_i32_0 = arith.constant 0 : i32
    %c0_i32_1 = arith.constant 0 : i32
    return %c0_i32, %c0_i32_0 : i32, i32
  }
  func.func @transform_22(%arg0: i32) -> (i32, i32) {
    %c0_i32 = arith.constant 0 : i32
    %c0_i32_0 = arith.constant 0 : i32
    %c0_i32_1 = arith.constant 0 : i32
    return %c0_i32, %c0_i32_0 : i32, i32
  }
  func.func @transform_23(%arg0: i32) -> (i32, i32) {
    %c0_i32 = arith.constant 0 : i32
    %c0_i32_0 = arith.constant 0 : i32
    %c0_i32_1 = arith.constant 0 : i32
    return %c0_i32, %c0_i32_0 : i32, i32
  }
  func.func @transform_24(%arg0: i32) -> (i32, i32) {
    %c0_i32 = arith.constant 0 : i32
    %c0_i32_0 = arith.constant 0 : i32
    %c0_i32_1 = arith.constant 0 : i32
    return %c0_i32, %c0_i32_0 : i32, i32
  }
  func.func @transform_25(%arg0: i32) -> (i32, i32) {
    %c0_i32 = arith.constant 0 : i32
    %c0_i32_0 = arith.constant 0 : i32
    %c0_i32_1 = arith.constant 0 : i32
    return %c0_i32, %c0_i32_0 : i32, i32
  }
  func.func @transform_26(%arg0: i32) -> (i32, i32) {
    %c0_i32 = arith.constant 0 : i32
    %c0_i32_0 = arith.constant 0 : i32
    %c0_i32_1 = arith.constant 0 : i32
    return %c0_i32, %c0_i32_0 : i32, i32
  }
  func.func @transform_27(%arg0: i32) -> (i32, i32) {
    %c0_i32 = arith.constant 0 : i32
    %c0_i32_0 = arith.constant 0 : i32
    %c0_i32_1 = arith.constant 0 : i32
    return %c0_i32, %c0_i32_0 : i32, i32
  }
  func.func @transform_28(%arg0: i32) -> (i32, i32) {
    %c0_i32 = arith.constant 0 : i32
    %c0_i32_0 = arith.constant 0 : i32
    %c0_i32_1 = arith.constant 0 : i32
    return %c0_i32, %c0_i32_0 : i32, i32
  }
  func.func @transform_29(%arg0: i32) -> (i32, i32) {
    %c0_i32 = arith.constant 0 : i32
    %c0_i32_0 = arith.constant 0 : i32
    %c0_i32_1 = arith.constant 0 : i32
    return %c0_i32, %c0_i32_0 : i32, i32
  }
  func.func @transform_30(%arg0: i32) -> (i32, i32) {
    %c0_i32 = arith.constant 0 : i32
    %c0_i32_0 = arith.constant 0 : i32
    %c0_i32_1 = arith.constant 0 : i32
    return %c0_i32, %c0_i32_0 : i32, i32
  }
  func.func @transform_31(%arg0: i32) -> (i32, i32) {
    %c0_i32 = arith.constant 0 : i32
    %c0_i32_0 = arith.constant 0 : i32
    %c0_i32_1 = arith.constant 0 : i32
    return %c0_i32, %c0_i32_0 : i32, i32
  }
  func.func @transform_32(%arg0: i32) -> (i32, i32) {
    %c0_i32 = arith.constant 0 : i32
    %c0_i32_0 = arith.constant 0 : i32
    %c0_i32_1 = arith.constant 0 : i32
    return %c0_i32, %c0_i32_0 : i32, i32
  }
  func.func @transform_33(%arg0: i32) -> (i32, i32) {
    %c0_i32 = arith.constant 0 : i32
    %c0_i32_0 = arith.constant 0 : i32
    %c0_i32_1 = arith.constant 0 : i32
    return %c0_i32, %c0_i32_0 : i32, i32
  }
  func.func @transform_34(%arg0: i32) -> (i32, i32) {
    %c0_i32 = arith.constant 0 : i32
    %c0_i32_0 = arith.constant 0 : i32
    %c0_i32_1 = arith.constant 0 : i32
    return %c0_i32, %c0_i32_0 : i32, i32
  }
  func.func @transform_35(%arg0: i32) -> (i32, i32) {
    %c0_i32 = arith.constant 0 : i32
    %c0_i32_0 = arith.constant 0 : i32
    %c0_i32_1 = arith.constant 0 : i32
    return %c0_i32, %c0_i32_0 : i32, i32
  }
  func.func @transform_36(%arg0: i32) -> (i32, i32) {
    %c0_i32 = arith.constant 0 : i32
    %c0_i32_0 = arith.constant 0 : i32
    %c0_i32_1 = arith.constant 0 : i32
    return %c0_i32, %c0_i32_0 : i32, i32
  }
  func.func @transform_37(%arg0: i32) -> (i32, i32) {
    %c0_i32 = arith.constant 0 : i32
    %c0_i32_0 = arith.constant 0 : i32
    %c0_i32_1 = arith.constant 0 : i32
    return %c0_i32, %c0_i32_0 : i32, i32
  }
  func.func @transform_38(%arg0: i32) -> (i32, i32) {
    %c0_i32 = arith.constant 0 : i32
    %c0_i32_0 = arith.constant 0 : i32
    %c0_i32_1 = arith.constant 0 : i32
    return %c0_i32, %c0_i32_0 : i32, i32
  }
  func.func @transform_39(%arg0: i32) -> (i32, i32, i32) {
    %c0_i32 = arith.constant 0 : i32
    %c0_i32_0 = arith.constant 0 : i32
    %c0_i32_1 = arith.constant 0 : i32
    return %arg0, %c0_i32, %c0_i32_0 : i32, i32, i32
  }
}

</mosaic_0001>

<llo_original>
// kernel: tpu_custom_call.1
$region0: #{tpu_custom_call.1}
  #allocation0 [shape = 'u32[]', space=smem, size = 0x4, offset = 0x4, fixed_abs, tag = 'smem constant byte address 0x4 - core index']
  #allocation1 [shape = 'u32[144,128]{1,0:T(1,128)}', space=vmem, size = 0x12000, scoped, tag = 'internal scratch']
  %s0 = inlined_call_operand.smem [shape: u32[40], index: -1, kind: input, shape index: {}]
  %s1 = sld [smem:[%s0]]
  %s2 = scalar_lea.smem %s0, 1
  %s3 = sld [smem:[%s2]]
  %s4 = scalar_lea.smem %s0, 2
  %s5 = sld [smem:[%s4]]
  %s6 = scalar_lea.smem %s0, 3
  %s7 = sld [smem:[%s6]]
  %s8 = scalar_lea.smem %s0, 4
  %s9 = sld [smem:[%s8]]
  %s10 = scalar_lea.smem %s0, 5
  %s11 = sld [smem:[%s10]]
  %s12 = scalar_lea.smem %s0, 6
  %s13 = sld [smem:[%s12]]
  %s14 = scalar_lea.smem %s0, 7
  %s15 = sld [smem:[%s14]]
  %s16 = scalar_lea.smem %s0, 8
  %s17 = sld [smem:[%s16]]
  %s18 = scalar_lea.smem %s0, 9
  %s19 = sld [smem:[%s18]]
  %s20 = scalar_lea.smem %s0, 10
  %s21 = sld [smem:[%s20]]
  %s22 = scalar_lea.smem %s0, 11
  %s23 = sld [smem:[%s22]]
  %s24 = scalar_lea.smem %s0, 12
  %s25 = sld [smem:[%s24]]
  %s26 = scalar_lea.smem %s0, 13
  %s27 = sld [smem:[%s26]]
  %s28 = scalar_lea.smem %s0, 14
  %s29 = sld [smem:[%s28]]
  %s30 = scalar_lea.smem %s0, 15
  %s31 = sld [smem:[%s30]]
  %s32 = scalar_lea.smem %s0, 16
  %s33 = sld [smem:[%s32]]
  %s34 = scalar_lea.smem %s0, 17
  %s35 = sld [smem:[%s34]]
  %s36 = scalar_lea.smem %s0, 18
  %s37 = sld [smem:[%s36]]
  %s38 = scalar_lea.smem %s0, 19
  %s39 = sld [smem:[%s38]]
  %s40 = scalar_lea.smem %s0, 20
  %s41 = sld [smem:[%s40]]
  %s42 = scalar_lea.smem %s0, 21
  %s43 = sld [smem:[%s42]]
  %s44 = scalar_lea.smem %s0, 22
  %s45 = sld [smem:[%s44]]
  %s46 = scalar_lea.smem %s0, 23
  %s47 = sld [smem:[%s46]]
  %s48 = scalar_lea.smem %s0, 24
  %s49 = sld [smem:[%s48]]
  %s50 = scalar_lea.smem %s0, 25
  %s51 = sld [smem:[%s50]]
  %s52 = scalar_lea.smem %s0, 26
  %s53 = sld [smem:[%s52]]
  %s54 = scalar_lea.smem %s0, 27
  %s55 = sld [smem:[%s54]]
  %s56 = scalar_lea.smem %s0, 28
  %s57 = sld [smem:[%s56]]
  %s58 = scalar_lea.smem %s0, 29
  %s59 = sld [smem:[%s58]]
  %s60 = scalar_lea.smem %s0, 30
  %s61 = sld [smem:[%s60]]
  %s62 = scalar_lea.smem %s0, 31
  %s63 = sld [smem:[%s62]]
  %s64 = scalar_lea.smem %s0, 32
  %s65 = sld [smem:[%s64]]
  %s66 = scalar_lea.smem %s0, 33
  %s67 = sld [smem:[%s66]]
  %s68 = scalar_lea.smem %s0, 34
  %s69 = sld [smem:[%s68]]
  %s70 = scalar_lea.smem %s0, 35
  %s71 = sld [smem:[%s70]]
  %s72 = scalar_lea.smem %s0, 36
  %s73 = sld [smem:[%s72]]
  %s74 = scalar_lea.smem %s0, 37
  %s75 = sld [smem:[%s74]]
  %s76 = scalar_lea.smem %s0, 38
  %s77 = sld [smem:[%s76]]
  %s78 = scalar_lea.smem %s0, 39
  %s79 = sld [smem:[%s78]]
  %s80 = sld [smem:[#allocation0]]
  $region170: #{tpu_custom_call.1} parent=0
    _
  %s82 = ssub.s32 1, %s80
  %s83 = scalar_select 0, %s82, %s80
  $region1: #{tpu_custom_call.1} parent=0
    #allocation2 [shape = 'u8[524288]{0}', space=vmem, size = 0x80000, scoped, tag = 'input window, operand 1, single buffered']
    #allocation3 [shape = 's32[1]{0}', space=sflag, size = 0x4, scoped, tag = 'scoped memory for tpu_custom_call.1']
    #allocation4 [shape = 's32[1]{0}', space=sflag, size = 0x4, scoped, tag = 'scoped memory for tpu_custom_call.1']
    #allocation5 [shape = 'u8[1024]{0}', space=vmem, size = 0x400, scoped, tag = 'output window, operand 0, single buffered']
    %84 = vsyncpa [#allocation3], 0
    %85 = vsyncpa [#allocation4], 0
    // Predicated region
    $region2: #{tpu_custom_call.1} parent=1 // pred_check
      _
    $region3: #{tpu_custom_call.1} parent=1 // pred_check_branch
      %87 = sbr.rel (0) target = $region5
    $region4: #{tpu_custom_call.1} parent=1 // pred_region
      _
    $region5: #{tpu_custom_call.1} parent=1 // pred_fallthru
      _
    // Predicated region
    $region6: #{tpu_custom_call.1} parent=1 // pred_check
      _
    $region7: #{tpu_custom_call.1} parent=1 // pred_check_branch
      %89 = sbr.rel (0) target = $region9
    $region8: #{tpu_custom_call.1} parent=1 // pred_region
      %s91 = ssub.s32 16384, 16384
      %92 = vsyncadd [#allocation3], %s91
      %s93 = sshll.u32 [#allocation2], 4
      %s94 = int_to_ptr.vmem [resolvable:$true] %s93
      %99 = dma.hbm_to_vmem [thread:$0]  %s3, 16384, %s94, [#allocation3], 128, 128, 8
    $region9: #{tpu_custom_call.1} parent=1 // pred_fallthru
      _
    // Predicated region
    $region10: #{tpu_custom_call.1} parent=1 // pred_check
      _
    $region11: #{tpu_custom_call.1} parent=1 // pred_check_branch
      %101 = sbr.rel (0) target = $region13
    $region12: #{tpu_custom_call.1} parent=1 // pred_region
      _
    $region13: #{tpu_custom_call.1} parent=1 // pred_fallthru
      _
    // Predicated region
    $region14: #{tpu_custom_call.1} parent=1 // pred_check
      _
    $region15: #{tpu_custom_call.1} parent=1 // pred_check_branch
      %103 = sbr.rel (0) target = $region17
    $region16: #{tpu_custom_call.1} parent=1 // pred_region
      _
    $region17: #{tpu_custom_call.1} parent=1 // pred_fallthru
      _
    // Predicated region
    $region18: #{tpu_custom_call.1} parent=1 // pred_check
      _
    $region19: #{tpu_custom_call.1} parent=1 // pred_check_branch
      %105 = sbr.rel (0) target = $region21
    $region20: #{tpu_custom_call.1} parent=1 // pred_region
      _
    $region21: #{tpu_custom_call.1} parent=1 // pred_fallthru
      _
    // Predicated region
    $region22: #{tpu_custom_call.1} parent=1 // pred_check
      _
    $region23: #{tpu_custom_call.1} parent=1 // pred_check_branch
      %107 = sbr.rel (0) target = $region25
    $region24: #{tpu_custom_call.1} parent=1 // pred_region
      _
    $region25: #{tpu_custom_call.1} parent=1 // pred_fallthru
      _
    // Predicated region
    $region26: #{tpu_custom_call.1} parent=1 // pred_check
      _
    $region27: #{tpu_custom_call.1} parent=1 // pred_check_branch
      %109 = sbr.rel (0) target = $region29
    $region28: #{tpu_custom_call.1} parent=1 // pred_region
      _
    $region29: #{tpu_custom_call.1} parent=1 // pred_fallthru
      _
    // Predicated region
    $region30: #{tpu_custom_call.1} parent=1 // pred_check
      _
    $region31: #{tpu_custom_call.1} parent=1 // pred_check_branch
      %111 = sbr.rel (0) target = $region33
    $region32: #{tpu_custom_call.1} parent=1 // pred_region
      _
    $region33: #{tpu_custom_call.1} parent=1 // pred_fallthru
      _
    // Predicated region
    $region34: #{tpu_custom_call.1} parent=1 // pred_check
      _
    $region35: #{tpu_custom_call.1} parent=1 // pred_check_branch
      %113 = sbr.rel (0) target = $region37
    $region36: #{tpu_custom_call.1} parent=1 // pred_region
      _
    $region37: #{tpu_custom_call.1} parent=1 // pred_fallthru
      _
    // Predicated region
    $region38: #{tpu_custom_call.1} parent=1 // pred_check
      _
    $region39: #{tpu_custom_call.1} parent=1 // pred_check_branch
      %115 = sbr.rel (0) target = $region41
    $region40: #{tpu_custom_call.1} parent=1 // pred_region
      _
    $region41: #{tpu_custom_call.1} parent=1 // pred_fallthru
      _
    // Predicated region
    $region42: #{tpu_custom_call.1} parent=1 // pred_check
      _
    $region43: #{tpu_custom_call.1} parent=1 // pred_check_branch
      %117 = sbr.rel (0) target = $region45
    $region44: #{tpu_custom_call.1} parent=1 // pred_region
      _
    $region45: #{tpu_custom_call.1} parent=1 // pred_fallthru
      _
    // Predicated region
    $region46: #{tpu_custom_call.1} parent=1 // pred_check
      _
    $region47: #{tpu_custom_call.1} parent=1 // pred_check_branch
      %119 = sbr.rel (0) target = $region49
    $region48: #{tpu_custom_call.1} parent=1 // pred_region
      _
    $region49: #{tpu_custom_call.1} parent=1 // pred_fallthru
      _
    // Predicated region
    $region50: #{tpu_custom_call.1} parent=1 // pred_check
      _
    $region51: #{tpu_custom_call.1} parent=1 // pred_check_branch
      %121 = sbr.rel (0) target = $region53
    $region52: #{tpu_custom_call.1} parent=1 // pred_region
      _
    $region53: #{tpu_custom_call.1} parent=1 // pred_fallthru
      _
    // Predicated region
    $region54: #{tpu_custom_call.1} parent=1 // pred_check
      _
    $region55: #{tpu_custom_call.1} parent=1 // pred_check_branch
      %123 = sbr.rel (0) target = $region57
    $region56: #{tpu_custom_call.1} parent=1 // pred_region
      _
    $region57: #{tpu_custom_call.1} parent=1 // pred_fallthru
      _
    // Predicated region
    $region58: #{tpu_custom_call.1} parent=1 // pred_check
      _
    $region59: #{tpu_custom_call.1} parent=1 // pred_check_branch
      %125 = sbr.rel (0) target = $region61
    $region60: #{tpu_custom_call.1} parent=1 // pred_region
      _
    $region61: #{tpu_custom_call.1} parent=1 // pred_fallthru
      _
    // Predicated region
    $region62: #{tpu_custom_call.1} parent=1 // pred_check
      _
    $region63: #{tpu_custom_call.1} parent=1 // pred_check_branch
      %127 = sbr.rel (0) target = $region65
    $region64: #{tpu_custom_call.1} parent=1 // pred_region
      _
    $region65: #{tpu_custom_call.1} parent=1 // pred_fallthru
      _
    // Predicated region
    $region66: #{tpu_custom_call.1} parent=1 // pred_check
      _
    $region67: #{tpu_custom_call.1} parent=1 // pred_check_branch
      %129 = sbr.rel (0) target = $region69
    $region68: #{tpu_custom_call.1} parent=1 // pred_region
      _
    $region69: #{tpu_custom_call.1} parent=1 // pred_fallthru
      _
    // Predicated region
    $region70: #{tpu_custom_call.1} parent=1 // pred_check
      _
    $region71: #{tpu_custom_call.1} parent=1 // pred_check_branch
      %131 = sbr.rel (0) target = $region73
    $region72: #{tpu_custom_call.1} parent=1 // pred_region
      _
    $region73: #{tpu_custom_call.1} parent=1 // pred_fallthru
      _
    // Predicated region
    $region74: #{tpu_custom_call.1} parent=1 // pred_check
      _
    $region75: #{tpu_custom_call.1} parent=1 // pred_check_branch
      %133 = sbr.rel (0) target = $region77
    $region76: #{tpu_custom_call.1} parent=1 // pred_region
      _
    $region77: #{tpu_custom_call.1} parent=1 // pred_fallthru
      _
    // Predicated region
    $region78: #{tpu_custom_call.1} parent=1 // pred_check
      _
    $region79: #{tpu_custom_call.1} parent=1 // pred_check_branch
      %135 = sbr.rel (0) target = $region81
    $region80: #{tpu_custom_call.1} parent=1 // pred_region
      _
    $region81: #{tpu_custom_call.1} parent=1 // pred_fallthru
      _
    // Predicated region
    $region82: #{tpu_custom_call.1} parent=1 // pred_check
      _
    $region83: #{tpu_custom_call.1} parent=1 // pred_check_branch
      %137 = sbr.rel (0) target = $region85
    $region84: #{tpu_custom_call.1} parent=1 // pred_region
      _
    $region85: #{tpu_custom_call.1} parent=1 // pred_fallthru
      _
    // Predicated region
    $region86: #{tpu_custom_call.1} parent=1 // pred_check
      _
    $region87: #{tpu_custom_call.1} parent=1 // pred_check_branch
      %139 = sbr.rel (0) target = $region89
    $region88: #{tpu_custom_call.1} parent=1 // pred_region
      _
    $region89: #{tpu_custom_call.1} parent=1 // pred_fallthru
      _
    // Predicated region
    $region90: #{tpu_custom_call.1} parent=1 // pred_check
      _
    $region91: #{tpu_custom_call.1} parent=1 // pred_check_branch
      %141 = sbr.rel (0) target = $region93
    $region92: #{tpu_custom_call.1} parent=1 // pred_region
      _
    $region93: #{tpu_custom_call.1} parent=1 // pred_fallthru
      _
    // Predicated region
    $region94: #{tpu_custom_call.1} parent=1 // pred_check
      _
    $region95: #{tpu_custom_call.1} parent=1 // pred_check_branch
      %143 = sbr.rel (0) target = $region97
    $region96: #{tpu_custom_call.1} parent=1 // pred_region
      _
    $region97: #{tpu_custom_call.1} parent=1 // pred_fallthru
      _
    // Predicated region
    $region98: #{tpu_custom_call.1} parent=1 // pred_check
      _
    $region99: #{tpu_custom_call.1} parent=1 // pred_check_branch
      %145 = sbr.rel (0) target = $region101
    $region100: #{tpu_custom_call.1} parent=1 // pred_region
      _
    $region101: #{tpu_custom_call.1} parent=1 // pred_fallthru
      _
    // Predicated region
    $region102: #{tpu_custom_call.1} parent=1 // pred_check
      _
    $region103: #{tpu_custom_call.1} parent=1 // pred_check_branch
      %147 = sbr.rel (0) target = $region105
    $region104: #{tpu_custom_call.1} parent=1 // pred_region
      _
    $region105: #{tpu_custom_call.1} parent=1 // pred_fallthru
      _
    // Predicated region
    $region106: #{tpu_custom_call.1} parent=1 // pred_check
      _
    $region107: #{tpu_custom_call.1} parent=1 // pred_check_branch
      %149 = sbr.rel (0) target = $region109
    $region108: #{tpu_custom_call.1} parent=1 // pred_region
      _
    $region109: #{tpu_custom_call.1} parent=1 // pred_fallthru
      _
    // Predicated region
    $region110: #{tpu_custom_call.1} parent=1 // pred_check
      _
    $region111: #{tpu_custom_call.1} parent=1 // pred_check_branch
      %151 = sbr.rel (0) target = $region113
    $region112: #{tpu_custom_call.1} parent=1 // pred_region
      _
    $region113: #{tpu_custom_call.1} parent=1 // pred_fallthru
      _
    // Predicated region
    $region114: #{tpu_custom_call.1} parent=1 // pred_check
      _
    $region115: #{tpu_custom_call.1} parent=1 // pred_check_branch
      %153 = sbr.rel (0) target = $region117
    $region116: #{tpu_custom_call.1} parent=1 // pred_region
      _
    $region117: #{tpu_custom_call.1} parent=1 // pred_fallthru
      _
    // Predicated region
    $region118: #{tpu_custom_call.1} parent=1 // pred_check
      _
    $region119: #{tpu_custom_call.1} parent=1 // pred_check_branch
      %155 = sbr.rel (0) target = $region121
    $region120: #{tpu_custom_call.1} parent=1 // pred_region
      _
    $region121: #{tpu_custom_call.1} parent=1 // pred_fallthru
      _
    // Predicated region
    $region122: #{tpu_custom_call.1} parent=1 // pred_check
      _
    $region123: #{tpu_custom_call.1} parent=1 // pred_check_branch
      %157 = sbr.rel (0) target = $region125
    $region124: #{tpu_custom_call.1} parent=1 // pred_region
      _
    $region125: #{tpu_custom_call.1} parent=1 // pred_fallthru
      _
    // Predicated region
    $region126: #{tpu_custom_call.1} parent=1 // pred_check
      _
    $region127: #{tpu_custom_call.1} parent=1 // pred_check_branch
      %159 = sbr.rel (0) target = $region129
    $region128: #{tpu_custom_call.1} parent=1 // pred_region
      _
    $region129: #{tpu_custom_call.1} parent=1 // pred_fallthru
      _
    // Predicated region
    $region130: #{tpu_custom_call.1} parent=1 // pred_check
      _
    $region131: #{tpu_custom_call.1} parent=1 // pred_check_branch
      %161 = sbr.rel (0) target = $region133
    $region132: #{tpu_custom_call.1} parent=1 // pred_region
      _
    $region133: #{tpu_custom_call.1} parent=1 // pred_fallthru
      _
    // Predicated region
    $region134: #{tpu_custom_call.1} parent=1 // pred_check
      _
    $region135: #{tpu_custom_call.1} parent=1 // pred_check_branch
      %163 = sbr.rel (0) target = $region137
    $region136: #{tpu_custom_call.1} parent=1 // pred_region
      _
    $region137: #{tpu_custom_call.1} parent=1 // pred_fallthru
      _
    // Predicated region
    $region138: #{tpu_custom_call.1} parent=1 // pred_check
      _
    $region139: #{tpu_custom_call.1} parent=1 // pred_check_branch
      %165 = sbr.rel (0) target = $region141
    $region140: #{tpu_custom_call.1} parent=1 // pred_region
      _
    $region141: #{tpu_custom_call.1} parent=1 // pred_fallthru
      _
    // Predicated region
    $region142: #{tpu_custom_call.1} parent=1 // pred_check
      _
    $region143: #{tpu_custom_call.1} parent=1 // pred_check_branch
      %167 = sbr.rel (0) target = $region145
    $region144: #{tpu_custom_call.1} parent=1 // pred_region
      _
    $region145: #{tpu_custom_call.1} parent=1 // pred_fallthru
      _
    // Predicated region
    $region146: #{tpu_custom_call.1} parent=1 // pred_check
      _
    $region147: #{tpu_custom_call.1} parent=1 // pred_check_branch
      %169 = sbr.rel (0) target = $region149
    $region148: #{tpu_custom_call.1} parent=1 // pred_region
      _
    $region149: #{tpu_custom_call.1} parent=1 // pred_fallthru
      _
    // Predicated region
    $region150: #{tpu_custom_call.1} parent=1 // pred_check
      _
    $region151: #{tpu_custom_call.1} parent=1 // pred_check_branch
      %171 = sbr.rel (0) target = $region153
    $region152: #{tpu_custom_call.1} parent=1 // pred_region
      _
    $region153: #{tpu_custom_call.1} parent=1 // pred_fallthru
      _
    // Predicated region
    $region154: #{tpu_custom_call.1} parent=1 // pred_check
      _
    $region155: #{tpu_custom_call.1} parent=1 // pred_check_branch
      %173 = sbr.rel (0) target = $region157
    $region156: #{tpu_custom_call.1} parent=1 // pred_region
      _
    $region157: #{tpu_custom_call.1} parent=1 // pred_fallthru
      _
    // Predicated region
    $region158: #{tpu_custom_call.1} parent=1 // pred_check
      _
    $region159: #{tpu_custom_call.1} parent=1 // pred_check_branch
      %175 = sbr.rel (0) target = $region161
    $region160: #{tpu_custom_call.1} parent=1 // pred_region
      %176 = dma.done [#allocation3], 16384
    $region161: #{tpu_custom_call.1} parent=1 // pred_fallthru
      _
    %v178 = vld [vmem:[#allocation2] sm:$0xff]
    %v179 = vld [vmem:[#allocation2 + $0x8] sm:$0xff]
    %v180 = vld [vmem:[#allocation2 + $0x10] sm:$0xff]
    %v181 = vld [vmem:[#allocation2 + $0x18] sm:$0xff]
    %v182 = vld [vmem:[#allocation2 + $0x20] sm:$0xff]
    %v183 = vld [vmem:[#allocation2 + $0x28] sm:$0xff]
    %v184 = vld [vmem:[#allocation2 + $0x30] sm:$0xff]
    %v185 = vld [vmem:[#allocation2 + $0x38] sm:$0xff]
    %v186 = vld [vmem:[#allocation2 + $0x40] sm:$0xff]
    %v187 = vld [vmem:[#allocation2 + $0x48] sm:$0xff]
    %v188 = vld [vmem:[#allocation2 + $0x50] sm:$0xff]
    %v189 = vld [vmem:[#allocation2 + $0x58] sm:$0xff]
    %v190 = vld [vmem:[#allocation2 + $0x60] sm:$0xff]
    %v191 = vld [vmem:[#allocation2 + $0x68] sm:$0xff]
    %v192 = vld [vmem:[#allocation2 + $0x70] sm:$0xff]
    %v193 = vld [vmem:[#allocation2 + $0x78] sm:$0xff]
    %v194 = vld [vmem:[#allocation2 + $0x80] sm:$0xff]
    %v195 = vld [vmem:[#allocation2 + $0x88] sm:$0xff]
    %v196 = vld [vmem:[#allocation2 + $0x90] sm:$0xff]
    %v197 = vld [vmem:[#allocation2 + $0x98] sm:$0xff]
    %v198 = vld [vmem:[#allocation2 + $0xa0] sm:$0xff]
    %v199 = vld [vmem:[#allocation2 + $0xa8] sm:$0xff]
    %v200 = vld [vmem:[#allocation2 + $0xb0] sm:$0xff]
    %v201 = vld [vmem:[#allocation2 + $0xb8] sm:$0xff]
    %v202 = vld [vmem:[#allocation2 + $0xc0] sm:$0xff]
    %v203 = vld [vmem:[#allocation2 + $0xc8] sm:$0xff]
    %v204 = vld [vmem:[#allocation2 + $0xd0] sm:$0xff]
    %v205 = vld [vmem:[#allocation2 + $0xd8] sm:$0xff]
    %v206 = vld [vmem:[#allocation2 + $0xe0] sm:$0xff]
    %v207 = vld [vmem:[#allocation2 + $0xe8] sm:$0xff]
    %v208 = vld [vmem:[#allocation2 + $0xf0] sm:$0xff]
    %v209 = vld [vmem:[#allocation2 + $0xf8] sm:$0xff]
    %v210 = vld [vmem:[#allocation2 + $0x100] sm:$0xff]
    %v211 = vld [vmem:[#allocation2 + $0x108] sm:$0xff]
    %v212 = vld [vmem:[#allocation2 + $0x110] sm:$0xff]
    %v213 = vld [vmem:[#allocation2 + $0x118] sm:$0xff]
    %v214 = vld [vmem:[#allocation2 + $0x120] sm:$0xff]
    %v215 = vld [vmem:[#allocation2 + $0x128] sm:$0xff]
    %v216 = vld [vmem:[#allocation2 + $0x130] sm:$0xff]
    %v217 = vld [vmem:[#allocation2 + $0x138] sm:$0xff]
    %v218 = vld [vmem:[#allocation2 + $0x140] sm:$0xff]
    %v219 = vld [vmem:[#allocation2 + $0x148] sm:$0xff]
    %v220 = vld [vmem:[#allocation2 + $0x150] sm:$0xff]
    %v221 = vld [vmem:[#allocation2 + $0x158] sm:$0xff]
    %v222 = vld [vmem:[#allocation2 + $0x160] sm:$0xff]
    %v223 = vld [vmem:[#allocation2 + $0x168] sm:$0xff]
    %v224 = vld [vmem:[#allocation2 + $0x170] sm:$0xff]
    %v225 = vld [vmem:[#allocation2 + $0x178] sm:$0xff]
    %v226 = vld [vmem:[#allocation2 + $0x180] sm:$0xff]
    %v227 = vld [vmem:[#allocation2 + $0x188] sm:$0xff]
    %v228 = vld [vmem:[#allocation2 + $0x190] sm:$0xff]
    %v229 = vld [vmem:[#allocation2 + $0x198] sm:$0xff]
    %v230 = vld [vmem:[#allocation2 + $0x1a0] sm:$0xff]
    %v231 = vld [vmem:[#allocation2 + $0x1a8] sm:$0xff]
    %v232 = vld [vmem:[#allocation2 + $0x1b0] sm:$0xff]
    %v233 = vld [vmem:[#allocation2 + $0x1b8] sm:$0xff]
    %v234 = vld [vmem:[#allocation2 + $0x1c0] sm:$0xff]
    %v235 = vld [vmem:[#allocation2 + $0x1c8] sm:$0xff]
    %v236 = vld [vmem:[#allocation2 + $0x1d0] sm:$0xff]
    %v237 = vld [vmem:[#allocation2 + $0x1d8] sm:$0xff]
    %v238 = vld [vmem:[#allocation2 + $0x1e0] sm:$0xff]
    %v239 = vld [vmem:[#allocation2 + $0x1e8] sm:$0xff]
    %v240 = vld [vmem:[#allocation2 + $0x1f0] sm:$0xff]
    %v241 = vld [vmem:[#allocation2 + $0x1f8] sm:$0xff]
    %v242 = vld [vmem:[#allocation2 + $0x200] sm:$0xff]
    %v243 = vld [vmem:[#allocation2 + $0x208] sm:$0xff]
    %v244 = vld [vmem:[#allocation2 + $0x210] sm:$0xff]
    %v245 = vld [vmem:[#allocation2 + $0x218] sm:$0xff]
    %v246 = vld [vmem:[#allocation2 + $0x220] sm:$0xff]
    %v247 = vld [vmem:[#allocation2 + $0x228] sm:$0xff]
    %v248 = vld [vmem:[#allocation2 + $0x230] sm:$0xff]
    %v249 = vld [vmem:[#allocation2 + $0x238] sm:$0xff]
    %v250 = vld [vmem:[#allocation2 + $0x240] sm:$0xff]
    %v251 = vld [vmem:[#allocation2 + $0x248] sm:$0xff]
    %v252 = vld [vmem:[#allocation2 + $0x250] sm:$0xff]
    %v253 = vld [vmem:[#allocation2 + $0x258] sm:$0xff]
    %v254 = vld [vmem:[#allocation2 + $0x260] sm:$0xff]
    %v255 = vld [vmem:[#allocation2 + $0x268] sm:$0xff]
    %v256 = vld [vmem:[#allocation2 + $0x270] sm:$0xff]
    %v257 = vld [vmem:[#allocation2 + $0x278] sm:$0xff]
    %v258 = vld [vmem:[#allocation2 + $0x280] sm:$0xff]
    %v259 = vld [vmem:[#allocation2 + $0x288] sm:$0xff]
    %v260 = vld [vmem:[#allocation2 + $0x290] sm:$0xff]
    %v261 = vld [vmem:[#allocation2 + $0x298] sm:$0xff]
    %v262 = vld [vmem:[#allocation2 + $0x2a0] sm:$0xff]
    %v263 = vld [vmem:[#allocation2 + $0x2a8] sm:$0xff]
    %v264 = vld [vmem:[#allocation2 + $0x2b0] sm:$0xff]
    %v265 = vld [vmem:[#allocation2 + $0x2b8] sm:$0xff]
    %v266 = vld [vmem:[#allocation2 + $0x2c0] sm:$0xff]
    %v267 = vld [vmem:[#allocation2 + $0x2c8] sm:$0xff]
    %v268 = vld [vmem:[#allocation2 + $0x2d0] sm:$0xff]
    %v269 = vld [vmem:[#allocation2 + $0x2d8] sm:$0xff]
    %v270 = vld [vmem:[#allocation2 + $0x2e0] sm:$0xff]
    %v271 = vld [vmem:[#allocation2 + $0x2e8] sm:$0xff]
    %v272 = vld [vmem:[#allocation2 + $0x2f0] sm:$0xff]
    %v273 = vld [vmem:[#allocation2 + $0x2f8] sm:$0xff]
    %v274 = vld [vmem:[#allocation2 + $0x300] sm:$0xff]
    %v275 = vld [vmem:[#allocation2 + $0x308] sm:$0xff]
    %v276 = vld [vmem:[#allocation2 + $0x310] sm:$0xff]
    %v277 = vld [vmem:[#allocation2 + $0x318] sm:$0xff]
    %v278 = vld [vmem:[#allocation2 + $0x320] sm:$0xff]
    %v279 = vld [vmem:[#allocation2 + $0x328] sm:$0xff]
    %v280 = vld [vmem:[#allocation2 + $0x330] sm:$0xff]
    %v281 = vld [vmem:[#allocation2 + $0x338] sm:$0xff]
    %v282 = vld [vmem:[#allocation2 + $0x340] sm:$0xff]
    %v283 = vld [vmem:[#allocation2 + $0x348] sm:$0xff]
    %v284 = vld [vmem:[#allocation2 + $0x350] sm:$0xff]
    %v285 = vld [vmem:[#allocation2 + $0x358] sm:$0xff]
    %v286 = vld [vmem:[#allocation2 + $0x360] sm:$0xff]
    %v287 = vld [vmem:[#allocation2 + $0x368] sm:$0xff]
    %v288 = vld [vmem:[#allocation2 + $0x370] sm:$0xff]
    %v289 = vld [vmem:[#allocation2 + $0x378] sm:$0xff]
    %v290 = vld [vmem:[#allocation2 + $0x380] sm:$0xff]
    %v291 = vld [vmem:[#allocation2 + $0x388] sm:$0xff]
    %v292 = vld [vmem:[#allocation2 + $0x390] sm:$0xff]
    %v293 = vld [vmem:[#allocation2 + $0x398] sm:$0xff]
    %v294 = vld [vmem:[#allocation2 + $0x3a0] sm:$0xff]
    %v295 = vld [vmem:[#allocation2 + $0x3a8] sm:$0xff]
    %v296 = vld [vmem:[#allocation2 + $0x3b0] sm:$0xff]
    %v297 = vld [vmem:[#allocation2 + $0x3b8] sm:$0xff]
    %v298 = vld [vmem:[#allocation2 + $0x3c0] sm:$0xff]
    %v299 = vld [vmem:[#allocation2 + $0x3c8] sm:$0xff]
    %v300 = vld [vmem:[#allocation2 + $0x3d0] sm:$0xff]
    %v301 = vld [vmem:[#allocation2 + $0x3d8] sm:$0xff]
    %v302 = vld [vmem:[#allocation2 + $0x3e0] sm:$0xff]
    %v303 = vld [vmem:[#allocation2 + $0x3e8] sm:$0xff]
    %v304 = vld [vmem:[#allocation2 + $0x3f0] sm:$0xff]
    %v305 = vld [vmem:[#allocation2 + $0x3f8] sm:$0xff]
    %v306 = vld [vmem:[%s5] sm:$0xf]
    %v307 = vld [vmem:[%s5 + $0x4] sm:$0xf]
    %v308 = vld [vmem:[%s5 + $0x8] sm:$0xf]
    %v309 = vld [vmem:[%s5 + $0xc] sm:$0xf]
    %v310 = vld [vmem:[%s5 + $0x10] sm:$0xf]
    %v311 = vld [vmem:[%s5 + $0x14] sm:$0xf]
    %v312 = vld [vmem:[%s5 + $0x18] sm:$0xf]
    %v313 = vld [vmem:[%s5 + $0x1c] sm:$0xf]
    %v314 = vld [vmem:[%s5 + $0x20] sm:$0xf]
    %v315 = vld [vmem:[%s5 + $0x24] sm:$0xf]
    %v316 = vld [vmem:[%s5 + $0x28] sm:$0xf]
    %v317 = vld [vmem:[%s5 + $0x2c] sm:$0xf]
    %v318 = vld [vmem:[%s5 + $0x30] sm:$0xf]
    %v319 = vld [vmem:[%s5 + $0x34] sm:$0xf]
    %v320 = vld [vmem:[%s5 + $0x38] sm:$0xf]
    %v321 = vld [vmem:[%s5 + $0x3c] sm:$0xf]
    %v322 = vld [vmem:[%s5 + $0x40] sm:$0xf]
    %v323 = vld [vmem:[%s5 + $0x44] sm:$0xf]
    %v324 = vld [vmem:[%s5 + $0x48] sm:$0xf]
    %v325 = vld [vmem:[%s5 + $0x4c] sm:$0xf]
    %v326 = vld [vmem:[%s5 + $0x50] sm:$0xf]
    %v327 = vld [vmem:[%s5 + $0x54] sm:$0xf]
    %v328 = vld [vmem:[%s5 + $0x58] sm:$0xf]
    %v329 = vld [vmem:[%s5 + $0x5c] sm:$0xf]
    %v330 = vld [vmem:[%s5 + $0x60] sm:$0xf]
    %v331 = vld [vmem:[%s5 + $0x64] sm:$0xf]
    %v332 = vld [vmem:[%s5 + $0x68] sm:$0xf]
    %v333 = vld [vmem:[%s5 + $0x6c] sm:$0xf]
    %v334 = vld [vmem:[%s5 + $0x70] sm:$0xf]
    %v335 = vld [vmem:[%s5 + $0x74] sm:$0xf]
    %v336 = vld [vmem:[%s5 + $0x78] sm:$0xf]
    %v337 = vld [vmem:[%s5 + $0x7c] sm:$0xf]
    %v338 = vld [vmem:[%s7] sm:$0xf]
    %v339 = vld [vmem:[%s7 + $0x4] sm:$0xf]
    %v340 = vld [vmem:[%s7 + $0x8] sm:$0xf]
    %v341 = vld [vmem:[%s7 + $0xc] sm:$0xf]
    %v342 = vld [vmem:[%s7 + $0x10] sm:$0xf]
    %v343 = vld [vmem:[%s7 + $0x14] sm:$0xf]
    %v344 = vld [vmem:[%s7 + $0x18] sm:$0xf]
    %v345 = vld [vmem:[%s7 + $0x1c] sm:$0xf]
    %v346 = vld [vmem:[%s7 + $0x20] sm:$0xf]
    %v347 = vld [vmem:[%s7 + $0x24] sm:$0xf]
    %v348 = vld [vmem:[%s7 + $0x28] sm:$0xf]
    %v349 = vld [vmem:[%s7 + $0x2c] sm:$0xf]
    %v350 = vld [vmem:[%s7 + $0x30] sm:$0xf]
    %v351 = vld [vmem:[%s7 + $0x34] sm:$0xf]
    %v352 = vld [vmem:[%s7 + $0x38] sm:$0xf]
    %v353 = vld [vmem:[%s7 + $0x3c] sm:$0xf]
    %v354 = vld [vmem:[%s9] sm:$0xf]
    %v355 = vld [vmem:[%s9 + $0x4] sm:$0xf]
    %v356 = vld [vmem:[%s9 + $0x8] sm:$0xf]
    %v357 = vld [vmem:[%s11] sm:$0xff]
    %v358 = vld [vmem:[%s11 + $0x8] sm:$0xff]
    %v359 = vld [vmem:[%s11 + $0x10] sm:$0xff]
    %v360 = vld [vmem:[%s13] sm:$0xf]
    %v361 = vld [vmem:[%s15] sm:$0xf]
    %v362 = vld [vmem:[%s15 + $0x4] sm:$0xf]
    %v363 = vld [vmem:[%s15 + $0x8] sm:$0xf]
    %v364 = vld [vmem:[%s15 + $0xc] sm:$0xf]
    %v365 = vld [vmem:[%s17] sm:$0xff]
    %v366 = vld [vmem:[%s17 + $0x8] sm:$0xff]
    %v367 = vld [vmem:[%s17 + $0x10] sm:$0xff]
    %v368 = vld [vmem:[%s17 + $0x18] sm:$0xff]
    %v369 = vld [vmem:[%s19] sm:$0xff]
    %v370 = vld [vmem:[%s19 + $0x8] sm:$0xff]
    %v371 = vld [vmem:[%s19 + $0x10] sm:$0xff]
    %v372 = vld [vmem:[%s21] sm:$0xff]
    %v373 = vld [vmem:[%s21 + $0x8] sm:$0xff]
    %v374 = vld [vmem:[%s21 + $0x10] sm:$0xff]
    %v375 = vld [vmem:[%s21 + $0x18] sm:$0xff]
    %v376 = vld [vmem:[%s23] sm:$0xff]
    %v377 = vld [vmem:[%s23 + $0x8] sm:$0xff]
    %v378 = vld [vmem:[%s23 + $0x10] sm:$0xff]
    %v379 = vld [vmem:[%s23 + $0x18] sm:$0xff]
    %v380 = vld [vmem:[%s25] sm:$0xff]
    %v381 = vld [vmem:[%s25 + $0x8] sm:$0xff]
    %v382 = vld [vmem:[%s25 + $0x10] sm:$0xff]
    %v383 = vld [vmem:[%s25 + $0x18] sm:$0xff]
    %v384 = vld [vmem:[%s27] sm:$0xff]
    %v385 = vld [vmem:[%s27 + $0x8] sm:$0xff]
    %v386 = vld [vmem:[%s27 + $0x10] sm:$0xff]
    %v387 = vld [vmem:[%s27 + $0x18] sm:$0xff]
    %v388 = vld [vmem:[%s29] sm:$0xff]
    %v389 = vld [vmem:[%s29 + $0x8] sm:$0xff]
    %v390 = vld [vmem:[%s29 + $0x10] sm:$0xff]
    %v391 = vld [vmem:[%s29 + $0x18] sm:$0xff]
    %v392 = vld [vmem:[%s31] sm:$0xff]
    %v393 = vld [vmem:[%s31 + $0x8] sm:$0xff]
    %v394 = vld [vmem:[%s31 + $0x10] sm:$0xff]
    %v395 = vld [vmem:[%s31 + $0x18] sm:$0xff]
    %v396 = vld [vmem:[%s33] sm:$0xf]
    %v397 = vld [vmem:[%s33 + $0x4] sm:$0xf]
    %v398 = vld [vmem:[%s35] sm:$0xff]
    %v399 = vld [vmem:[%s35 + $0x8] sm:$0xff]
    %v400 = vld [vmem:[%s37] sm:$0xff]
    %v401 = vld [vmem:[%s37 + $0x8] sm:$0xff]
    %v402 = vld [vmem:[%s37 + $0x10] sm:$0xff]
    %v403 = vld [vmem:[%s37 + $0x18] sm:$0xff]
    %v404 = vld [vmem:[%s39] sm:$0xf]
    %v405 = vld [vmem:[%s39 + $0x4] sm:$0xf]
    %v406 = vld [vmem:[%s39 + $0x8] sm:$0xf]
    %v407 = vld [vmem:[%s39 + $0xc] sm:$0xf]
    %v408 = vld [vmem:[%s41] sm:$0xff]
    %v409 = vld [vmem:[%s41 + $0x8] sm:$0xff]
    %v410 = vld [vmem:[%s41 + $0x10] sm:$0xff]
    %v411 = vld [vmem:[%s41 + $0x18] sm:$0xff]
    %v412 = vld [vmem:[%s43] sm:$0xff]
    %v413 = vld [vmem:[%s43 + $0x8] sm:$0xff]
    %v414 = vld [vmem:[%s45] sm:$0xff]
    %v415 = vld [vmem:[%s45 + $0x8] sm:$0xff]
    %v416 = vld [vmem:[%s47] sm:$0xff]
    %v417 = vld [vmem:[%s47 + $0x8] sm:$0xff]
    %v418 = vld [vmem:[%s49] sm:$0xff]
    %v419 = vld [vmem:[%s49 + $0x8] sm:$0xff]
    %v420 = vld [vmem:[%s49 + $0x10] sm:$0xff]
    %v421 = vld [vmem:[%s49 + $0x18] sm:$0xff]
    %v422 = vld [vmem:[%s49 + $0x20] sm:$0xff]
    %v423 = vld [vmem:[%s49 + $0x28] sm:$0xff]
    %v424 = vld [vmem:[%s49 + $0x30] sm:$0xff]
    %v425 = vld [vmem:[%s49 + $0x38] sm:$0xff]
    %v426 = vld [vmem:[%s51] sm:$0xf]
    %v427 = vld [vmem:[%s51 + $0x4] sm:$0xf]
    %v428 = vld [vmem:[%s51 + $0x8] sm:$0xf]
    %v429 = vld [vmem:[%s51 + $0xc] sm:$0xf]
    %v430 = vld [vmem:[%s53] sm:$0xff]
    %v431 = vld [vmem:[%s53 + $0x8] sm:$0xff]
    %v432 = vld [vmem:[%s53 + $0x10] sm:$0xff]
    %v433 = vld [vmem:[%s53 + $0x18] sm:$0xff]
    %v434 = vld [vmem:[%s55] sm:$0xff]
    %v435 = vld [vmem:[%s55 + $0x8] sm:$0xff]
    %v436 = vld [vmem:[%s57] sm:$0xff]
    %v437 = vld [vmem:[%s57 + $0x8] sm:$0xf]
    %v438 = vld [vmem:[%s57 + $0xc] sm:$0xff]
    %v439 = vld [vmem:[%s57 + $0x14] sm:$0xf]
    %v440 = vld [vmem:[%s59] sm:$0xff]
    %v441 = vld [vmem:[%s59 + $0x8] sm:$0xff]
    %v442 = vld [vmem:[%s61] sm:$0xff]
    %v443 = vld [vmem:[%s61 + $0x8] sm:$0xff]
    %v444 = vld [vmem:[%s61 + $0x10] sm:$0xff]
    %v445 = vld [vmem:[%s61 + $0x18] sm:$0xff]
    %v446 = vld [vmem:[%s61 + $0x20] sm:$0xff]
    %v447 = vld [vmem:[%s61 + $0x28] sm:$0xff]
    %v448 = vld [vmem:[%s61 + $0x30] sm:$0xff]
    %v449 = vld [vmem:[%s61 + $0x38] sm:$0xff]
    %v450 = vld [vmem:[%s61 + $0x40] sm:$0xff]
    %v451 = vld [vmem:[%s61 + $0x48] sm:$0xff]
    %v452 = vld [vmem:[%s61 + $0x50] sm:$0xff]
    %v453 = vld [vmem:[%s61 + $0x58] sm:$0xff]
    %v454 = vld [vmem:[%s63] sm:$0xf]
    %v455 = vld [vmem:[%s63 + $0x4] sm:$0xf]
    %v456 = vld [vmem:[%s63 + $0x8] sm:$0xf]
    %v457 = vld [vmem:[%s63 + $0xc] sm:$0xf]
    %v458 = vld [vmem:[%s65] sm:$0xff]
    %v459 = vld [vmem:[%s65 + $0x8] sm:$0xff]
    %v460 = vld [vmem:[%s65 + $0x10] sm:$0xff]
    %v461 = vld [vmem:[%s65 + $0x18] sm:$0xff]
    %v462 = vld [vmem:[%s67] sm:$0xff]
    %v463 = vld [vmem:[%s67 + $0x8] sm:$0xff]
    %v464 = vld [vmem:[%s69] sm:$0xf]
    %v465 = vld [vmem:[%s69 + $0x4] sm:$0xf]
    %v466 = vld [vmem:[%s69 + $0x8] sm:$0xf]
    %v467 = vld [vmem:[%s69 + $0xc] sm:$0xf]
    %v468 = vld [vmem:[%s69 + $0x10] sm:$0xf]
    %v469 = vld [vmem:[%s69 + $0x14] sm:$0xf]
    %v470 = vld [vmem:[%s69 + $0x18] sm:$0xf]
    %v471 = vld [vmem:[%s69 + $0x1c] sm:$0xf]
    %v472 = vld [vmem:[%s71] sm:$0xff]
    %v473 = vld [vmem:[%s71 + $0x8] sm:$0xff]
    %v474 = vld [vmem:[%s71 + $0x10] sm:$0xff]
    %v475 = vld [vmem:[%s71 + $0x18] sm:$0xff]
    %v476 = vld [vmem:[%s71 + $0x20] sm:$0xff]
    %v477 = vld [vmem:[%s71 + $0x28] sm:$0xff]
    %v478 = vld [vmem:[%s71 + $0x30] sm:$0xff]
    %v479 = vld [vmem:[%s71 + $0x38] sm:$0xff]
    %v480 = vld [vmem:[%s73] sm:$0xff]
    %v481 = vld [vmem:[%s73 + $0x8] sm:$0xff]
    %v482 = vld [vmem:[%s73 + $0x10] sm:$0xff]
    %v483 = vld [vmem:[%s73 + $0x18] sm:$0xff]
    %v484 = vld [vmem:[%s73 + $0x20] sm:$0xff]
    %v485 = vld [vmem:[%s73 + $0x28] sm:$0xff]
    %v486 = vld [vmem:[%s73 + $0x30] sm:$0xff]
    %v487 = vld [vmem:[%s73 + $0x38] sm:$0xff]
    %v488 = vld [vmem:[%s73 + $0x40] sm:$0xff]
    %v489 = vld [vmem:[%s73 + $0x48] sm:$0xff]
    %v490 = vld [vmem:[%s73 + $0x50] sm:$0xff]
    %v491 = vld [vmem:[%s73 + $0x58] sm:$0xff]
    %v492 = vld [vmem:[%s73 + $0x60] sm:$0xff]
    %v493 = vld [vmem:[%s73 + $0x68] sm:$0xff]
    %v494 = vld [vmem:[%s73 + $0x70] sm:$0xff]
    %v495 = vld [vmem:[%s73 + $0x78] sm:$0xff]
    %v496 = vld [vmem:[%s75] sm:$0x1]
    %v497 = vld [vmem:[%s77] sm:$0x3]
    %v498 = vld [vmem:[%s1] sm:$0xff]
    %v499 = vld [vmem:[%s1 + $0x8] sm:$0xff]
    %s500 = scalar_lea.vmem %s1, 16
    %v501 = vld [vmem:[%s500] sm:$0xff]
    %v502 = vld [vmem:[%s500 + $0x8] sm:$0xff]
    %v505 = vcombine.high %v498, %v498
    %v506 = vcombine.high %v499, %v499
    %v511 = vcombine.high %v501, %v501
    %v512 = vcombine.high %v502, %v502
    %v515 = vmul.f32 %v498, 0.5
    %v516 = vmul.f32 %v505, 0.5
    %v517 = vmul.f32 %v499, 0.5
    %v518 = vmul.f32 %v506, 0.5
    %v519 = vmul.f32 %v501, 0.5
    %v520 = vmul.f32 %v511, 0.5
    %v521 = vmul.f32 %v502, 0.5
    %v522 = vmul.f32 %v512, 0.5
    %v523 = vmul.f32 %v498, 0.70710677
    %v524 = vmul.f32 %v505, 0.70710677
    %v525 = vmul.f32 %v499, 0.70710677
    %v526 = vmul.f32 %v506, 0.70710677
    %v527 = vmul.f32 %v501, 0.70710677
    %v528 = vmul.f32 %v511, 0.70710677
    %v529 = vmul.f32 %v502, 0.70710677
    %v530 = vmul.f32 %v512, 0.70710677
    %v531 = vand.u32 2147483647, %v523
    %v532 = vand.u32 2147483647, %v524
    %v533 = vand.u32 2147483647, %v525
    %v534 = vand.u32 2147483647, %v526
    %v535 = vand.u32 2147483647, %v527
    %v536 = vand.u32 2147483647, %v528
    %v537 = vand.u32 2147483647, %v529
    %v538 = vand.u32 2147483647, %v530
    %v539 = vmul.f32 %v531, 0.3275911
    %v540 = vmul.f32 %v532, 0.3275911
    %v541 = vmul.f32 %v533, 0.3275911
    %v542 = vmul.f32 %v534, 0.3275911
    %v543 = vmul.f32 %v535, 0.3275911
    %v544 = vmul.f32 %v536, 0.3275911
    %v545 = vmul.f32 %v537, 0.3275911
    %v546 = vmul.f32 %v538, 0.3275911
    %v547 = vadd.f32 %v539, 1.0
    %v548 = vadd.f32 %v540, 1.0
    %v549 = vadd.f32 %v541, 1.0
    %v550 = vadd.f32 %v542, 1.0
    %v551 = vadd.f32 %v543, 1.0
    %v552 = vadd.f32 %v544, 1.0
    %v553 = vadd.f32 %v545, 1.0
    %v554 = vadd.f32 %v546, 1.0
    %v555 = vrcp.pop %v547
    %v556 = vmul.f32 1.0, %v555
    %v557 = vrcp.pop %v548
    %v558 = vmul.f32 1.0, %v557
    %v559 = vrcp.pop %v549
    %v560 = vmul.f32 1.0, %v559
    %v561 = vrcp.pop %v550
    %v562 = vmul.f32 1.0, %v561
    %v563 = vrcp.pop %v551
    %v564 = vmul.f32 1.0, %v563
    %v565 = vrcp.pop %v552
    %v566 = vmul.f32 1.0, %v565
    %v567 = vrcp.pop %v553
    %v568 = vmul.f32 1.0, %v567
    %v569 = vrcp.pop %v554
    %v570 = vmul.f32 1.0, %v569
    %v571 = vmul.f32 %v556, 1.0614054
    %v572 = vmul.f32 %v558, 1.0614054
    %v573 = vmul.f32 %v560, 1.0614054
    %v574 = vmul.f32 %v562, 1.0614054
    %v575 = vmul.f32 %v564, 1.0614054
    %v576 = vmul.f32 %v566, 1.0614054
    %v577 = vmul.f32 %v568, 1.0614054
    %v578 = vmul.f32 %v570, 1.0614054
    %v579 = vadd.f32 %v571, -1.4531521
    %v580 = vadd.f32 %v572, -1.4531521
    %v581 = vadd.f32 %v573, -1.4531521
    %v582 = vadd.f32 %v574, -1.4531521
    %v583 = vadd.f32 %v575, -1.4531521
    %v584 = vadd.f32 %v576, -1.4531521
    %v585 = vadd.f32 %v577, -1.4531521
    %v586 = vadd.f32 %v578, -1.4531521
    %v587 = vmul.f32 %v579, %v556
    %v588 = vmul.f32 %v580, %v558
    %v589 = vmul.f32 %v581, %v560
    %v590 = vmul.f32 %v582, %v562
    %v591 = vmul.f32 %v583, %v564
    %v592 = vmul.f32 %v584, %v566
    %v593 = vmul.f32 %v585, %v568
    %v594 = vmul.f32 %v586, %v570
    %v595 = vadd.f32 %v587, 1.4214138
    %v596 = vadd.f32 %v588, 1.4214138
    %v597 = vadd.f32 %v589, 1.4214138
    %v598 = vadd.f32 %v590, 1.4214138
    %v599 = vadd.f32 %v591, 1.4214138
    %v600 = vadd.f32 %v592, 1.4214138
    %v601 = vadd.f32 %v593, 1.4214138
    %v602 = vadd.f32 %v594, 1.4214138
    %v603 = vmul.f32 %v595, %v556
    %v604 = vmul.f32 %v596, %v558
    %v605 = vmul.f32 %v597, %v560
    %v606 = vmul.f32 %v598, %v562
    %v607 = vmul.f32 %v599, %v564
    %v608 = vmul.f32 %v600, %v566
    %v609 = vmul.f32 %v601, %v568
    %v610 = vmul.f32 %v602, %v570
    %v611 = vadd.f32 %v603, -0.28449672
    %v612 = vadd.f32 %v604, -0.28449672
    %v613 = vadd.f32 %v605, -0.28449672
    %v614 = vadd.f32 %v606, -0.28449672
    %v615 = vadd.f32 %v607, -0.28449672
    %v616 = vadd.f32 %v608, -0.28449672
    %v617 = vadd.f32 %v609, -0.28449672
    %v618 = vadd.f32 %v610, -0.28449672
    %v619 = vmul.f32 %v611, %v556
    %v620 = vmul.f32 %v612, %v558
    %v621 = vmul.f32 %v613, %v560
    %v622 = vmul.f32 %v614, %v562
    %v623 = vmul.f32 %v615, %v564
    %v624 = vmul.f32 %v616, %v566
    %v625 = vmul.f32 %v617, %v568
    %v626 = vmul.f32 %v618, %v570
    %v627 = vadd.f32 %v619, 0.2548296
    %v628 = vadd.f32 %v620, 0.2548296
    %v629 = vadd.f32 %v621, 0.2548296
    %v630 = vadd.f32 %v622, 0.2548296
    %v631 = vadd.f32 %v623, 0.2548296
    %v632 = vadd.f32 %v624, 0.2548296
    %v633 = vadd.f32 %v625, 0.2548296
    %v634 = vadd.f32 %v626, 0.2548296
    %v635 = vmul.f32 %v627, %v556
    %v636 = vmul.f32 %v628, %v558
    %v637 = vmul.f32 %v629, %v560
    %v638 = vmul.f32 %v630, %v562
    %v639 = vmul.f32 %v631, %v564
    %v640 = vmul.f32 %v632, %v566
    %v641 = vmul.f32 %v633, %v568
    %v642 = vmul.f32 %v634, %v570
    %v643 = vsub.f32 0.0, %v531
    %v644 = vsub.f32 0.0, %v532
    %v645 = vsub.f32 0.0, %v533
    %v646 = vsub.f32 0.0, %v534
    %v647 = vsub.f32 0.0, %v535
    %v648 = vsub.f32 0.0, %v536
    %v649 = vsub.f32 0.0, %v537
    %v650 = vsub.f32 0.0, %v538
    %v651 = vmul.f32 %v643, %v531
    %v652 = vmul.f32 %v644, %v532
    %v653 = vmul.f32 %v645, %v533
    %v654 = vmul.f32 %v646, %v534
    %v655 = vmul.f32 %v647, %v535
    %v656 = vmul.f32 %v648, %v536
    %v657 = vmul.f32 %v649, %v537
    %v658 = vmul.f32 %v650, %v538
    %v659 = vmul.f32 %v651, 1.442695
    %v660 = vpow.pop %v659
    %v661 = vmul.f32 %v652, 1.442695
    %v662 = vpow.pop %v661
    %v663 = vmul.f32 %v653, 1.442695
    %v664 = vpow.pop %v663
    %v665 = vmul.f32 %v654, 1.442695
    %v666 = vpow.pop %v665
    %v667 = vmul.f32 %v655, 1.442695
    %v668 = vpow.pop %v667
    %v669 = vmul.f32 %v656, 1.442695
    %v670 = vpow.pop %v669
    %v671 = vmul.f32 %v657, 1.442695
    %v672 = vpow.pop %v671
    %v673 = vmul.f32 %v658, 1.442695
    %v674 = vpow.pop %v673
    %v675 = vmul.f32 %v635, %v660
    %v676 = vmul.f32 %v636, %v662
    %v677 = vmul.f32 %v637, %v664
    %v678 = vmul.f32 %v638, %v666
    %v679 = vmul.f32 %v639, %v668
    %v680 = vmul.f32 %v640, %v670
    %v681 = vmul.f32 %v641, %v672
    %v682 = vmul.f32 %v642, %v674
    %v683 = vsub.f32 1.0, %v675
    %v684 = vsub.f32 1.0, %v676
    %v685 = vsub.f32 1.0, %v677
    %v686 = vsub.f32 1.0, %v678
    %v687 = vsub.f32 1.0, %v679
    %v688 = vsub.f32 1.0, %v680
    %v689 = vsub.f32 1.0, %v681
    %v690 = vsub.f32 1.0, %v682
    %vm691 = vcmp.ge.f32.partialorder %v523, 0.0
    %vm692 = vcmp.ge.f32.partialorder %v524, 0.0
    %vm693 = vcmp.ge.f32.partialorder %v525, 0.0
    %vm694 = vcmp.ge.f32.partialorder %v526, 0.0
    %vm695 = vcmp.ge.f32.partialorder %v527, 0.0
    %vm696 = vcmp.ge.f32.partialorder %v528, 0.0
    %vm697 = vcmp.ge.f32.partialorder %v529, 0.0
    %vm698 = vcmp.ge.f32.partialorder %v530, 0.0
    %v699 = vsub.f32 0.0, %v683
    %v700 = vsub.f32 0.0, %v684
    %v701 = vsub.f32 0.0, %v685
    %v702 = vsub.f32 0.0, %v686
    %v703 = vsub.f32 0.0, %v687
    %v704 = vsub.f32 0.0, %v688
    %v705 = vsub.f32 0.0, %v689
    %v706 = vsub.f32 0.0, %v690
    %v707 = vsel %vm691, %v683, %v699
    %v708 = vsel %vm692, %v684, %v700
    %v709 = vsel %vm693, %v685, %v701
    %v710 = vsel %vm694, %v686, %v702
    %v711 = vsel %vm695, %v687, %v703
    %v712 = vsel %vm696, %v688, %v704
    %v713 = vsel %vm697, %v689, %v705
    %v714 = vsel %vm698, %v690, %v706
    %v715 = vadd.f32 %v707, 1.0
    %v716 = vadd.f32 %v708, 1.0
    %v717 = vadd.f32 %v709, 1.0
    %v718 = vadd.f32 %v710, 1.0
    %v719 = vadd.f32 %v711, 1.0
    %v720 = vadd.f32 %v712, 1.0
    %v721 = vadd.f32 %v713, 1.0
    %v722 = vadd.f32 %v714, 1.0
    %v723 = vmul.f32 %v515, %v715
    %v724 = vmul.f32 %v516, %v716
    %v725 = vmul.f32 %v517, %v717
    %v726 = vmul.f32 %v518, %v718
    %v727 = vmul.f32 %v519, %v719
    %v728 = vmul.f32 %v520, %v720
    %v729 = vmul.f32 %v521, %v721
    %v730 = vmul.f32 %v522, %v722
    %732 = vset.pattern.permute.xlu0 0
    %733 = vperm.xlu0 %732, %v360
    %v734 = vpop.permute.xlu0 %733
    %v736 = vadd.f32 %v723, %v734
    %v737 = vadd.f32 %v724, %v734
    %v738 = vadd.f32 %v725, %v734
    %v739 = vadd.f32 %v726, %v734
    %v740 = vadd.f32 %v727, %v734
    %v741 = vadd.f32 %v728, %v734
    %v742 = vadd.f32 %v729, %v734
    %v743 = vadd.f32 %v730, %v734
    %v744 = vlaneseq
    %v745 = vand.u32 %v744, 127
    %v746 = vadd.s32 %v745, 128
    %v747 = vadd.s32 %v745, 256
    %v748 = vadd.s32 %v745, 384
    %757 = vrot.lane.b32.xlu0 %v736, 5
    %v758 = vpop.permute.xlu0 %757
    %759 = vrot.lane.b32.xlu0 %v737, 5
    %v760 = vpop.permute.xlu0 %759
    %761 = vrot.lane.b32.xlu0 %v738, 5
    %v762 = vpop.permute.xlu0 %761
    %763 = vrot.lane.b32.xlu0 %v739, 5
    %v764 = vpop.permute.xlu0 %763
    %765 = vrot.lane.b32.xlu0 %v740, 5
    %v766 = vpop.permute.xlu0 %765
    %767 = vrot.lane.b32.xlu0 %v741, 5
    %v768 = vpop.permute.xlu0 %767
    %769 = vrot.lane.b32.xlu0 %v742, 5
    %v770 = vpop.permute.xlu0 %769
    %771 = vrot.lane.b32.xlu0 %v743, 5
    %v772 = vpop.permute.xlu0 %771
    %vm773 = vcmask 39936
    %v774 = vsel %vm773, %v758, %v760
    %v775 = vsel %vm773, %v760, %v762
    %v776 = vsel %vm773, %v762, %v764
    %v777 = vsel %vm773, %v764, %v766
    %v778 = vsel %vm773, %v766, %v768
    %v779 = vsel %vm773, %v768, %v770
    %v780 = vsel %vm773, %v770, %v772
    %v789 = vsel %vm773, 0.0, %v758
    %v790 = vadd.s32 %v745, 4294967291
    %v791 = vadd.s32 %v746, 4294967291
    %v792 = vadd.s32 %v747, 4294967291
    %v793 = vadd.s32 %v748, 4294967291
    %vm794 = vcmp.ge.s32.totalorder %v790, 0
    %vm795 = vcmp.ge.s32.totalorder %v791, 0
    %vm796 = vcmp.ge.s32.totalorder %v792, 0
    %vm797 = vcmp.ge.s32.totalorder %v793, 0
    %vm798 = vcmp.lt.s32.totalorder %v790, 512
    %vm799 = vcmp.lt.s32.totalorder %v791, 512
    %vm800 = vcmp.lt.s32.totalorder %v792, 512
    %vm801 = vcmp.lt.s32.totalorder %v793, 512
    %vm802 = vmand %vm794, %vm798
    %vm803 = vmand %vm795, %vm799
    %vm804 = vmand %vm796, %vm800
    %vm805 = vmand %vm797, %vm801
    %v806 = vsel %vm802, 1, 0
    %v807 = vsel %vm803, 1, 0
    %v808 = vsel %vm804, 1, 0
    %v809 = vsel %vm805, 1, 0
    %v810 = vlaneseq
    %v811 = vshrl.u32 %v810, 7
    %v812 = vsub.s32 0, %v811
    %v813 = vrot.slane %v806, %v812
    %v814 = vlaneseq
    %v815 = vshrl.u32 %v814, 7
    %v816 = vsub.s32 0, %v815
    %v817 = vrot.slane %v807, %v816
    %v818 = vlaneseq
    %v819 = vshrl.u32 %v818, 7
    %v820 = vsub.s32 0, %v819
    %v821 = vrot.slane %v808, %v820
    %v822 = vlaneseq
    %v823 = vshrl.u32 %v822, 7
    %v824 = vsub.s32 0, %v823
    %v825 = vrot.slane %v809, %v824
    %vm826 = vcmp.eq.s32.totalorder %v813, 1
    %vm827 = vcmp.eq.s32.totalorder %v817, 1
    %vm828 = vcmp.eq.s32.totalorder %v821, 1
    %vm829 = vcmp.eq.s32.totalorder %v825, 1
    %v830 = vsel %vm826, %v789, 0.0
    %v831 = vsel %vm827, %v774, 0.0
    %v832 = vsel %vm828, %v775, 0.0
    %v833 = vsel %vm829, %v776, 0.0
    %v834 = vsel %vm826, %v777, 0.0
    %v835 = vsel %vm827, %v778, 0.0
    %v836 = vsel %vm828, %v779, 0.0
    %v837 = vsel %vm829, %v780, 0.0
    %838 = vrot.lane.b32.xlu0 %v736, 4
    %v839 = vpop.permute.xlu0 %838
    %840 = vrot.lane.b32.xlu0 %v737, 4
    %v841 = vpop.permute.xlu0 %840
    %842 = vrot.lane.b32.xlu0 %v738, 4
    %v843 = vpop.permute.xlu0 %842
    %844 = vrot.lane.b32.xlu0 %v739, 4
    %v845 = vpop.permute.xlu0 %844
    %846 = vrot.lane.b32.xlu0 %v740, 4
    %v847 = vpop.permute.xlu0 %846
    %848 = vrot.lane.b32.xlu0 %v741, 4
    %v849 = vpop.permute.xlu0 %848
    %850 = vrot.lane.b32.xlu0 %v742, 4
    %v851 = vpop.permute.xlu0 %850
    %852 = vrot.lane.b32.xlu0 %v743, 4
    %v853 = vpop.permute.xlu0 %852
    %vm854 = vcmask 31744
    %v855 = vsel %vm854, %v839, %v841
    %v856 = vsel %vm854, %v841, %v843
    %v857 = vsel %vm854, %v843, %v845
    %v858 = vsel %vm854, %v845, %v847
    %v859 = vsel %vm854, %v847, %v849
    %v860 = vsel %vm854, %v849, %v851
    %v861 = vsel %vm854, %v851, %v853
    %v870 = vsel %vm854, 0.0, %v839
    %v871 = vadd.s32 %v745, 4294967292
    %v872 = vadd.s32 %v746, 4294967292
    %v873 = vadd.s32 %v747, 4294967292
    %v874 = vadd.s32 %v748, 4294967292
    %vm875 = vcmp.ge.s32.totalorder %v871, 0
    %vm876 = vcmp.ge.s32.totalorder %v872, 0
    %vm877 = vcmp.ge.s32.totalorder %v873, 0
    %vm878 = vcmp.ge.s32.totalorder %v874, 0
    %vm879 = vcmp.lt.s32.totalorder %v871, 512
    %vm880 = vcmp.lt.s32.totalorder %v872, 512
    %vm881 = vcmp.lt.s32.totalorder %v873, 512
    %vm882 = vcmp.lt.s32.totalorder %v874, 512
    %vm883 = vmand %vm875, %vm879
    %vm884 = vmand %vm876, %vm880
    %vm885 = vmand %vm877, %vm881
    %vm886 = vmand %vm878, %vm882
    %v887 = vsel %vm883, 1, 0
    %v888 = vsel %vm884, 1, 0
    %v889 = vsel %vm885, 1, 0
    %v890 = vsel %vm886, 1, 0
    %v891 = vlaneseq
    %v892 = vshrl.u32 %v891, 7
    %v893 = vsub.s32 0, %v892
    %v894 = vrot.slane %v887, %v893
    %v895 = vlaneseq
    %v896 = vshrl.u32 %v895, 7
    %v897 = vsub.s32 0, %v896
    %v898 = vrot.slane %v888, %v897
    %v899 = vlaneseq
    %v900 = vshrl.u32 %v899, 7
    %v901 = vsub.s32 0, %v900
    %v902 = vrot.slane %v889, %v901
    %v903 = vlaneseq
    %v904 = vshrl.u32 %v903, 7
    %v905 = vsub.s32 0, %v904
    %v906 = vrot.slane %v890, %v905
    %vm907 = vcmp.eq.s32.totalorder %v894, 1
    %vm908 = vcmp.eq.s32.totalorder %v898, 1
    %vm909 = vcmp.eq.s32.totalorder %v902, 1
    %vm910 = vcmp.eq.s32.totalorder %v906, 1
    %v911 = vsel %vm907, %v870, 0.0
    %v912 = vsel %vm908, %v855, 0.0
    %v913 = vsel %vm909, %v856, 0.0
    %v914 = vsel %vm910, %v857, 0.0
    %v915 = vsel %vm907, %v858, 0.0
    %v916 = vsel %vm908, %v859, 0.0
    %v917 = vsel %vm909, %v860, 0.0
    %v918 = vsel %vm910, %v861, 0.0
    %919 = vrot.lane.b32.xlu0 %v736, 3
    %v920 = vpop.permute.xlu0 %919
    %921 = vrot.lane.b32.xlu0 %v737, 3
    %v922 = vpop.permute.xlu0 %921
    %923 = vrot.lane.b32.xlu0 %v738, 3
    %v924 = vpop.permute.xlu0 %923
    %925 = vrot.lane.b32.xlu0 %v739, 3
    %v926 = vpop.permute.xlu0 %925
    %927 = vrot.lane.b32.xlu0 %v740, 3
    %v928 = vpop.permute.xlu0 %927
    %929 = vrot.lane.b32.xlu0 %v741, 3
    %v930 = vpop.permute.xlu0 %929
    %931 = vrot.lane.b32.xlu0 %v742, 3
    %v932 = vpop.permute.xlu0 %931
    %933 = vrot.lane.b32.xlu0 %v743, 3
    %v934 = vpop.permute.xlu0 %933
    %vm935 = vcmask 23552
    %v936 = vsel %vm935, %v920, %v922
    %v937 = vsel %vm935, %v922, %v924
    %v938 = vsel %vm935, %v924, %v926
    %v939 = vsel %vm935, %v926, %v928
    %v940 = vsel %vm935, %v928, %v930
    %v941 = vsel %vm935, %v930, %v932
    %v942 = vsel %vm935, %v932, %v934
    %v951 = vsel %vm935, 0.0, %v920
    %v952 = vadd.s32 %v745, 4294967293
    %v953 = vadd.s32 %v746, 4294967293
    %v954 = vadd.s32 %v747, 4294967293
    %v955 = vadd.s32 %v748, 4294967293
    %vm956 = vcmp.ge.s32.totalorder %v952, 0
    %vm957 = vcmp.ge.s32.totalorder %v953, 0
    %vm958 = vcmp.ge.s32.totalorder %v954, 0
    %vm959 = vcmp.ge.s32.totalorder %v955, 0
    %vm960 = vcmp.lt.s32.totalorder %v952, 512
    %vm961 = vcmp.lt.s32.totalorder %v953, 512
    %vm962 = vcmp.lt.s32.totalorder %v954, 512
    %vm963 = vcmp.lt.s32.totalorder %v955, 512
    %vm964 = vmand %vm956, %vm960
    %vm965 = vmand %vm957, %vm961
    %vm966 = vmand %vm958, %vm962
    %vm967 = vmand %vm959, %vm963
    %v968 = vsel %vm964, 1, 0
    %v969 = vsel %vm965, 1, 0
    %v970 = vsel %vm966, 1, 0
    %v971 = vsel %vm967, 1, 0
    %v972 = vlaneseq
    %v973 = vshrl.u32 %v972, 7
    %v974 = vsub.s32 0, %v973
    %v975 = vrot.slane %v968, %v974
    %v976 = vlaneseq
    %v977 = vshrl.u32 %v976, 7
    %v978 = vsub.s32 0, %v977
    %v979 = vrot.slane %v969, %v978
    %v980 = vlaneseq
    %v981 = vshrl.u32 %v980, 7
    %v982 = vsub.s32 0, %v981
    %v983 = vrot.slane %v970, %v982
    %v984 = vlaneseq
    %v985 = vshrl.u32 %v984, 7
    %v986 = vsub.s32 0, %v985
    %v987 = vrot.slane %v971, %v986
    %vm988 = vcmp.eq.s32.totalorder %v975, 1
    %vm989 = vcmp.eq.s32.totalorder %v979, 1
    %vm990 = vcmp.eq.s32.totalorder %v983, 1
    %vm991 = vcmp.eq.s32.totalorder %v987, 1
    %v992 = vsel %vm988, %v951, 0.0
    %v993 = vsel %vm989, %v936, 0.0
    %v994 = vsel %vm990, %v937, 0.0
    %v995 = vsel %vm991, %v938, 0.0
    %v996 = vsel %vm988, %v939, 0.0
    %v997 = vsel %vm989, %v940, 0.0
    %v998 = vsel %vm990, %v941, 0.0
    %v999 = vsel %vm991, %v942, 0.0
    %1000 = vrot.lane.b32.xlu0 %v736, 2
    %v1001 = vpop.permute.xlu0 %1000
    %1002 = vrot.lane.b32.xlu0 %v737, 2
    %v1003 = vpop.permute.xlu0 %1002
    %1004 = vrot.lane.b32.xlu0 %v738, 2
    %v1005 = vpop.permute.xlu0 %1004
    %1006 = vrot.lane.b32.xlu0 %v739, 2
    %v1007 = vpop.permute.xlu0 %1006
    %1008 = vrot.lane.b32.xlu0 %v740, 2
    %v1009 = vpop.permute.xlu0 %1008
    %1010 = vrot.lane.b32.xlu0 %v741, 2
    %v1011 = vpop.permute.xlu0 %1010
    %1012 = vrot.lane.b32.xlu0 %v742, 2
    %v1013 = vpop.permute.xlu0 %1012
    %1014 = vrot.lane.b32.xlu0 %v743, 2
    %v1015 = vpop.permute.xlu0 %1014
    %vm1016 = vcmask 15360
    %v1017 = vsel %vm1016, %v1001, %v1003
    %v1018 = vsel %vm1016, %v1003, %v1005
    %v1019 = vsel %vm1016, %v1005, %v1007
    %v1020 = vsel %vm1016, %v1007, %v1009
    %v1021 = vsel %vm1016, %v1009, %v1011
    %v1022 = vsel %vm1016, %v1011, %v1013
    %v1023 = vsel %vm1016, %v1013, %v1015
    %v1032 = vsel %vm1016, 0.0, %v1001
    %v1033 = vadd.s32 %v745, 4294967294
    %v1034 = vadd.s32 %v746, 4294967294
    %v1035 = vadd.s32 %v747, 4294967294
    %v1036 = vadd.s32 %v748, 4294967294
    %vm1037 = vcmp.ge.s32.totalorder %v1033, 0
    %vm1038 = vcmp.ge.s32.totalorder %v1034, 0
    %vm1039 = vcmp.ge.s32.totalorder %v1035, 0
    %vm1040 = vcmp.ge.s32.totalorder %v1036, 0
    %vm1041 = vcmp.lt.s32.totalorder %v1033, 512
    %vm1042 = vcmp.lt.s32.totalorder %v1034, 512
    %vm1043 = vcmp.lt.s32.totalorder %v1035, 512
    %vm1044 = vcmp.lt.s32.totalorder %v1036, 512
    %vm1045 = vmand %vm1037, %vm1041
    %vm1046 = vmand %vm1038, %vm1042
    %vm1047 = vmand %vm1039, %vm1043
    %vm1048 = vmand %vm1040, %vm1044
    %v1049 = vsel %vm1045, 1, 0
    %v1050 = vsel %vm1046, 1, 0
    %v1051 = vsel %vm1047, 1, 0
    %v1052 = vsel %vm1048, 1, 0
    %v1053 = vlaneseq
    %v1054 = vshrl.u32 %v1053, 7
    %v1055 = vsub.s32 0, %v1054
    %v1056 = vrot.slane %v1049, %v1055
    %v1057 = vlaneseq
    %v1058 = vshrl.u32 %v1057, 7
    %v1059 = vsub.s32 0, %v1058
    %v1060 = vrot.slane %v1050, %v1059
    %v1061 = vlaneseq
    %v1062 = vshrl.u32 %v1061, 7
    %v1063 = vsub.s32 0, %v1062
    %v1064 = vrot.slane %v1051, %v1063
    %v1065 = vlaneseq
    %v1066 = vshrl.u32 %v1065, 7
    %v1067 = vsub.s32 0, %v1066
    %v1068 = vrot.slane %v1052, %v1067
    %vm1069 = vcmp.eq.s32.totalorder %v1056, 1
    %vm1070 = vcmp.eq.s32.totalorder %v1060, 1
    %vm1071 = vcmp.eq.s32.totalorder %v1064, 1
    %vm1072 = vcmp.eq.s32.totalorder %v1068, 1
    %v1073 = vsel %vm1069, %v1032, 0.0
    %v1074 = vsel %vm1070, %v1017, 0.0
    %v1075 = vsel %vm1071, %v1018, 0.0
    %v1076 = vsel %vm1072, %v1019, 0.0
    %v1077 = vsel %vm1069, %v1020, 0.0
    %v1078 = vsel %vm1070, %v1021, 0.0
    %v1079 = vsel %vm1071, %v1022, 0.0
    %v1080 = vsel %vm1072, %v1023, 0.0
    %1081 = vrot.lane.b32.xlu0 %v736, 1
    %v1082 = vpop.permute.xlu0 %1081
    %1083 = vrot.lane.b32.xlu0 %v737, 1
    %v1084 = vpop.permute.xlu0 %1083
    %1085 = vrot.lane.b32.xlu0 %v738, 1
    %v1086 = vpop.permute.xlu0 %1085
    %1087 = vrot.lane.b32.xlu0 %v739, 1
    %v1088 = vpop.permute.xlu0 %1087
    %1089 = vrot.lane.b32.xlu0 %v740, 1
    %v1090 = vpop.permute.xlu0 %1089
    %1091 = vrot.lane.b32.xlu0 %v741, 1
    %v1092 = vpop.permute.xlu0 %1091
    %1093 = vrot.lane.b32.xlu0 %v742, 1
    %v1094 = vpop.permute.xlu0 %1093
    %1095 = vrot.lane.b32.xlu0 %v743, 1
    %v1096 = vpop.permute.xlu0 %1095
    %vm1097 = vcmask 7168
    %v1098 = vsel %vm1097, %v1082, %v1084
    %v1099 = vsel %vm1097, %v1084, %v1086
    %v1100 = vsel %vm1097, %v1086, %v1088
    %v1101 = vsel %vm1097, %v1088, %v1090
    %v1102 = vsel %vm1097, %v1090, %v1092
    %v1103 = vsel %vm1097, %v1092, %v1094
    %v1104 = vsel %vm1097, %v1094, %v1096
    %v1113 = vsel %vm1097, 0.0, %v1082
    %v1114 = vadd.s32 %v745, 4294967295
    %v1115 = vadd.s32 %v746, 4294967295
    %v1116 = vadd.s32 %v747, 4294967295
    %v1117 = vadd.s32 %v748, 4294967295
    %vm1118 = vcmp.ge.s32.totalorder %v1114, 0
    %vm1119 = vcmp.ge.s32.totalorder %v1115, 0
    %vm1120 = vcmp.ge.s32.totalorder %v1116, 0
    %vm1121 = vcmp.ge.s32.totalorder %v1117, 0
    %vm1122 = vcmp.lt.s32.totalorder %v1114, 512
    %vm1123 = vcmp.lt.s32.totalorder %v1115, 512
    %vm1124 = vcmp.lt.s32.totalorder %v1116, 512
    %vm1125 = vcmp.lt.s32.totalorder %v1117, 512
    %vm1126 = vmand %vm1118, %vm1122
    %vm1127 = vmand %vm1119, %vm1123
    %vm1128 = vmand %vm1120, %vm1124
    %vm1129 = vmand %vm1121, %vm1125
    %v1130 = vsel %vm1126, 1, 0
    %v1131 = vsel %vm1127, 1, 0
    %v1132 = vsel %vm1128, 1, 0
    %v1133 = vsel %vm1129, 1, 0
    %v1134 = vlaneseq
    %v1135 = vshrl.u32 %v1134, 7
    %v1136 = vsub.s32 0, %v1135
    %v1137 = vrot.slane %v1130, %v1136
    %v1138 = vlaneseq
    %v1139 = vshrl.u32 %v1138, 7
    %v1140 = vsub.s32 0, %v1139
    %v1141 = vrot.slane %v1131, %v1140
    %v1142 = vlaneseq
    %v1143 = vshrl.u32 %v1142, 7
    %v1144 = vsub.s32 0, %v1143
    %v1145 = vrot.slane %v1132, %v1144
    %v1146 = vlaneseq
    %v1147 = vshrl.u32 %v1146, 7
    %v1148 = vsub.s32 0, %v1147
    %v1149 = vrot.slane %v1133, %v1148
    %vm1150 = vcmp.eq.s32.totalorder %v1137, 1
    %vm1151 = vcmp.eq.s32.totalorder %v1141, 1
    %vm1152 = vcmp.eq.s32.totalorder %v1145, 1
    %vm1153 = vcmp.eq.s32.totalorder %v1149, 1
    %v1154 = vsel %vm1150, %v1113, 0.0
    %v1155 = vsel %vm1151, %v1098, 0.0
    %v1156 = vsel %vm1152, %v1099, 0.0
    %v1157 = vsel %vm1153, %v1100, 0.0
    %v1158 = vsel %vm1150, %v1101, 0.0
    %v1159 = vsel %vm1151, %v1102, 0.0
    %v1160 = vsel %vm1152, %v1103, 0.0
    %v1161 = vsel %vm1153, %v1104, 0.0
    %1162 = vrot.lane.b32.xlu0 %v736, 127
    %v1163 = vpop.permute.xlu0 %1162
    %1164 = vrot.lane.b32.xlu0 %v737, 127
    %v1165 = vpop.permute.xlu0 %1164
    %1166 = vrot.lane.b32.xlu0 %v738, 127
    %v1167 = vpop.permute.xlu0 %1166
    %1168 = vrot.lane.b32.xlu0 %v739, 127
    %v1169 = vpop.permute.xlu0 %1168
    %1170 = vrot.lane.b32.xlu0 %v740, 127
    %v1171 = vpop.permute.xlu0 %1170
    %1172 = vrot.lane.b32.xlu0 %v741, 127
    %v1173 = vpop.permute.xlu0 %1172
    %1174 = vrot.lane.b32.xlu0 %v742, 127
    %v1175 = vpop.permute.xlu0 %1174
    %1176 = vrot.lane.b32.xlu0 %v743, 127
    %v1177 = vpop.permute.xlu0 %1176
    %vm1178 = vcmask 1039360
    %v1179 = vsel %vm1178, %v1163, %v1165
    %v1180 = vsel %vm1178, %v1165, %v1167
    %v1181 = vsel %vm1178, %v1167, %v1169
    %v1182 = vsel %vm1178, %v1169, %v1171
    %v1183 = vsel %vm1178, %v1171, %v1173
    %v1184 = vsel %vm1178, %v1173, %v1175
    %v1185 = vsel %vm1178, %v1175, %v1177
    %v1194 = vsel %vm1178, %v1177, 0.0
    %v1195 = vadd.s32 %v745, 1
    %v1196 = vadd.s32 %v746, 1
    %v1197 = vadd.s32 %v747, 1
    %v1198 = vadd.s32 %v748, 1
    %vm1199 = vcmp.ge.s32.totalorder %v1195, 0
    %vm1200 = vcmp.ge.s32.totalorder %v1196, 0
    %vm1201 = vcmp.ge.s32.totalorder %v1197, 0
    %vm1202 = vcmp.ge.s32.totalorder %v1198, 0
    %vm1203 = vcmp.lt.s32.totalorder %v1195, 512
    %vm1204 = vcmp.lt.s32.totalorder %v1196, 512
    %vm1205 = vcmp.lt.s32.totalorder %v1197, 512
    %vm1206 = vcmp.lt.s32.totalorder %v1198, 512
    %vm1207 = vmand %vm1199, %vm1203
    %vm1208 = vmand %vm1200, %vm1204
    %vm1209 = vmand %vm1201, %vm1205
    %vm1210 = vmand %vm1202, %vm1206
    %v1211 = vsel %vm1207, 1, 0
    %v1212 = vsel %vm1208, 1, 0
    %v1213 = vsel %vm1209, 1, 0
    %v1214 = vsel %vm1210, 1, 0
    %v1215 = vlaneseq
    %v1216 = vshrl.u32 %v1215, 7
    %v1217 = vsub.s32 0, %v1216
    %v1218 = vrot.slane %v1211, %v1217
    %v1219 = vlaneseq
    %v1220 = vshrl.u32 %v1219, 7
    %v1221 = vsub.s32 0, %v1220
    %v1222 = vrot.slane %v1212, %v1221
    %v1223 = vlaneseq
    %v1224 = vshrl.u32 %v1223, 7
    %v1225 = vsub.s32 0, %v1224
    %v1226 = vrot.slane %v1213, %v1225
    %v1227 = vlaneseq
    %v1228 = vshrl.u32 %v1227, 7
    %v1229 = vsub.s32 0, %v1228
    %v1230 = vrot.slane %v1214, %v1229
    %vm1231 = vcmp.eq.s32.totalorder %v1218, 1
    %vm1232 = vcmp.eq.s32.totalorder %v1222, 1
    %vm1233 = vcmp.eq.s32.totalorder %v1226, 1
    %vm1234 = vcmp.eq.s32.totalorder %v1230, 1
    %v1235 = vsel %vm1231, %v1179, 0.0
    %v1236 = vsel %vm1232, %v1180, 0.0
    %v1237 = vsel %vm1233, %v1181, 0.0
    %v1238 = vsel %vm1234, %v1182, 0.0
    %v1239 = vsel %vm1231, %v1183, 0.0
    %v1240 = vsel %vm1232, %v1184, 0.0
    %v1241 = vsel %vm1233, %v1185, 0.0
    %v1242 = vsel %vm1234, %v1194, 0.0
    %1243 = vrot.lane.b32.xlu0 %v736, 126
    %v1244 = vpop.permute.xlu0 %1243
    %1245 = vrot.lane.b32.xlu0 %v737, 126
    %v1246 = vpop.permute.xlu0 %1245
    %1247 = vrot.lane.b32.xlu0 %v738, 126
    %v1248 = vpop.permute.xlu0 %1247
    %1249 = vrot.lane.b32.xlu0 %v739, 126
    %v1250 = vpop.permute.xlu0 %1249
    %1251 = vrot.lane.b32.xlu0 %v740, 126
    %v1252 = vpop.permute.xlu0 %1251
    %1253 = vrot.lane.b32.xlu0 %v741, 126
    %v1254 = vpop.permute.xlu0 %1253
    %1255 = vrot.lane.b32.xlu0 %v742, 126
    %v1256 = vpop.permute.xlu0 %1255
    %1257 = vrot.lane.b32.xlu0 %v743, 126
    %v1258 = vpop.permute.xlu0 %1257
    %vm1259 = vcmask 1031168
    %v1260 = vsel %vm1259, %v1244, %v1246
    %v1261 = vsel %vm1259, %v1246, %v1248
    %v1262 = vsel %vm1259, %v1248, %v1250
    %v1263 = vsel %vm1259, %v1250, %v1252
    %v1264 = vsel %vm1259, %v1252, %v1254
    %v1265 = vsel %vm1259, %v1254, %v1256
    %v1266 = vsel %vm1259, %v1256, %v1258
    %v1275 = vsel %vm1259, %v1258, 0.0
    %v1276 = vadd.s32 %v745, 2
    %v1277 = vadd.s32 %v746, 2
    %v1278 = vadd.s32 %v747, 2
    %v1279 = vadd.s32 %v748, 2
    %vm1280 = vcmp.ge.s32.totalorder %v1276, 0
    %vm1281 = vcmp.ge.s32.totalorder %v1277, 0
    %vm1282 = vcmp.ge.s32.totalorder %v1278, 0
    %vm1283 = vcmp.ge.s32.totalorder %v1279, 0
    %vm1284 = vcmp.lt.s32.totalorder %v1276, 512
    %vm1285 = vcmp.lt.s32.totalorder %v1277, 512
    %vm1286 = vcmp.lt.s32.totalorder %v1278, 512
    %vm1287 = vcmp.lt.s32.totalorder %v1279, 512
    %vm1288 = vmand %vm1280, %vm1284
    %vm1289 = vmand %vm1281, %vm1285
    %vm1290 = vmand %vm1282, %vm1286
    %vm1291 = vmand %vm1283, %vm1287
    %v1292 = vsel %vm1288, 1, 0
    %v1293 = vsel %vm1289, 1, 0
    %v1294 = vsel %vm1290, 1, 0
    %v1295 = vsel %vm1291, 1, 0
    %v1296 = vlaneseq
    %v1297 = vshrl.u32 %v1296, 7
    %v1298 = vsub.s32 0, %v1297
    %v1299 = vrot.slane %v1292, %v1298
    %v1300 = vlaneseq
    %v1301 = vshrl.u32 %v1300, 7
    %v1302 = vsub.s32 0, %v1301
    %v1303 = vrot.slane %v1293, %v1302
    %v1304 = vlaneseq
    %v1305 = vshrl.u32 %v1304, 7
    %v1306 = vsub.s32 0, %v1305
    %v1307 = vrot.slane %v1294, %v1306
    %v1308 = vlaneseq
    %v1309 = vshrl.u32 %v1308, 7
    %v1310 = vsub.s32 0, %v1309
    %v1311 = vrot.slane %v1295, %v1310
    %vm1312 = vcmp.eq.s32.totalorder %v1299, 1
    %vm1313 = vcmp.eq.s32.totalorder %v1303, 1
    %vm1314 = vcmp.eq.s32.totalorder %v1307, 1
    %vm1315 = vcmp.eq.s32.totalorder %v1311, 1
    %v1316 = vsel %vm1312, %v1260, 0.0
    %v1317 = vsel %vm1313, %v1261, 0.0
    %v1318 = vsel %vm1314, %v1262, 0.0
    %v1319 = vsel %vm1315, %v1263, 0.0
    %v1320 = vsel %vm1312, %v1264, 0.0
    %v1321 = vsel %vm1313, %v1265, 0.0
    %v1322 = vsel %vm1314, %v1266, 0.0
    %v1323 = vsel %vm1315, %v1275, 0.0
    %1324 = vrot.lane.b32.xlu0 %v736, 125
    %v1325 = vpop.permute.xlu0 %1324
    %1326 = vrot.lane.b32.xlu0 %v737, 125
    %v1327 = vpop.permute.xlu0 %1326
    %1328 = vrot.lane.b32.xlu0 %v738, 125
    %v1329 = vpop.permute.xlu0 %1328
    %1330 = vrot.lane.b32.xlu0 %v739, 125
    %v1331 = vpop.permute.xlu0 %1330
    %1332 = vrot.lane.b32.xlu0 %v740, 125
    %v1333 = vpop.permute.xlu0 %1332
    %1334 = vrot.lane.b32.xlu0 %v741, 125
    %v1335 = vpop.permute.xlu0 %1334
    %1336 = vrot.lane.b32.xlu0 %v742, 125
    %v1337 = vpop.permute.xlu0 %1336
    %1338 = vrot.lane.b32.xlu0 %v743, 125
    %v1339 = vpop.permute.xlu0 %1338
    %vm1340 = vcmask 1022976
    %v1341 = vsel %vm1340, %v1325, %v1327
    %v1342 = vsel %vm1340, %v1327, %v1329
    %v1343 = vsel %vm1340, %v1329, %v1331
    %v1344 = vsel %vm1340, %v1331, %v1333
    %v1345 = vsel %vm1340, %v1333, %v1335
    %v1346 = vsel %vm1340, %v1335, %v1337
    %v1347 = vsel %vm1340, %v1337, %v1339
    %v1356 = vsel %vm1340, %v1339, 0.0
    %v1357 = vadd.s32 %v745, 3
    %v1358 = vadd.s32 %v746, 3
    %v1359 = vadd.s32 %v747, 3
    %v1360 = vadd.s32 %v748, 3
    %vm1361 = vcmp.ge.s32.totalorder %v1357, 0
    %vm1362 = vcmp.ge.s32.totalorder %v1358, 0
    %vm1363 = vcmp.ge.s32.totalorder %v1359, 0
    %vm1364 = vcmp.ge.s32.totalorder %v1360, 0
    %vm1365 = vcmp.lt.s32.totalorder %v1357, 512
    %vm1366 = vcmp.lt.s32.totalorder %v1358, 512
    %vm1367 = vcmp.lt.s32.totalorder %v1359, 512
    %vm1368 = vcmp.lt.s32.totalorder %v1360, 512
    %vm1369 = vmand %vm1361, %vm1365
    %vm1370 = vmand %vm1362, %vm1366
    %vm1371 = vmand %vm1363, %vm1367
    %vm1372 = vmand %vm1364, %vm1368
    %v1373 = vsel %vm1369, 1, 0
    %v1374 = vsel %vm1370, 1, 0
    %v1375 = vsel %vm1371, 1, 0
    %v1376 = vsel %vm1372, 1, 0
    %v1377 = vlaneseq
    %v1378 = vshrl.u32 %v1377, 7
    %v1379 = vsub.s32 0, %v1378
    %v1380 = vrot.slane %v1373, %v1379
    %v1381 = vlaneseq
    %v1382 = vshrl.u32 %v1381, 7
    %v1383 = vsub.s32 0, %v1382
    %v1384 = vrot.slane %v1374, %v1383
    %v1385 = vlaneseq
    %v1386 = vshrl.u32 %v1385, 7
    %v1387 = vsub.s32 0, %v1386
    %v1388 = vrot.slane %v1375, %v1387
    %v1389 = vlaneseq
    %v1390 = vshrl.u32 %v1389, 7
    %v1391 = vsub.s32 0, %v1390
    %v1392 = vrot.slane %v1376, %v1391
    %vm1393 = vcmp.eq.s32.totalorder %v1380, 1
    %vm1394 = vcmp.eq.s32.totalorder %v1384, 1
    %vm1395 = vcmp.eq.s32.totalorder %v1388, 1
    %vm1396 = vcmp.eq.s32.totalorder %v1392, 1
    %v1397 = vsel %vm1393, %v1341, 0.0
    %v1398 = vsel %vm1394, %v1342, 0.0
    %v1399 = vsel %vm1395, %v1343, 0.0
    %v1400 = vsel %vm1396, %v1344, 0.0
    %v1401 = vsel %vm1393, %v1345, 0.0
    %v1402 = vsel %vm1394, %v1346, 0.0
    %v1403 = vsel %vm1395, %v1347, 0.0
    %v1404 = vsel %vm1396, %v1356, 0.0
    %1405 = vrot.lane.b32.xlu0 %v736, 124
    %v1406 = vpop.permute.xlu0 %1405
    %1407 = vrot.lane.b32.xlu0 %v737, 124
    %v1408 = vpop.permute.xlu0 %1407
    %1409 = vrot.lane.b32.xlu0 %v738, 124
    %v1410 = vpop.permute.xlu0 %1409
    %1411 = vrot.lane.b32.xlu0 %v739, 124
    %v1412 = vpop.permute.xlu0 %1411
    %1413 = vrot.lane.b32.xlu0 %v740, 124
    %v1414 = vpop.permute.xlu0 %1413
    %1415 = vrot.lane.b32.xlu0 %v741, 124
    %v1416 = vpop.permute.xlu0 %1415
    %1417 = vrot.lane.b32.xlu0 %v742, 124
    %v1418 = vpop.permute.xlu0 %1417
    %1419 = vrot.lane.b32.xlu0 %v743, 124
    %v1420 = vpop.permute.xlu0 %1419
    %vm1421 = vcmask 1014784
    %v1422 = vsel %vm1421, %v1406, %v1408
    %v1423 = vsel %vm1421, %v1408, %v1410
    %v1424 = vsel %vm1421, %v1410, %v1412
    %v1425 = vsel %vm1421, %v1412, %v1414
    %v1426 = vsel %vm1421, %v1414, %v1416
    %v1427 = vsel %vm1421, %v1416, %v1418
    %v1428 = vsel %vm1421, %v1418, %v1420
    %v1437 = vsel %vm1421, %v1420, 0.0
    %v1438 = vadd.s32 %v745, 4
    %v1439 = vadd.s32 %v746, 4
    %v1440 = vadd.s32 %v747, 4
    %v1441 = vadd.s32 %v748, 4
    %vm1442 = vcmp.ge.s32.totalorder %v1438, 0
    %vm1443 = vcmp.ge.s32.totalorder %v1439, 0
    %vm1444 = vcmp.ge.s32.totalorder %v1440, 0
    %vm1445 = vcmp.ge.s32.totalorder %v1441, 0
    %vm1446 = vcmp.lt.s32.totalorder %v1438, 512
    %vm1447 = vcmp.lt.s32.totalorder %v1439, 512
    %vm1448 = vcmp.lt.s32.totalorder %v1440, 512
    %vm1449 = vcmp.lt.s32.totalorder %v1441, 512
    %vm1450 = vmand %vm1442, %vm1446
    %vm1451 = vmand %vm1443, %vm1447
    %vm1452 = vmand %vm1444, %vm1448
    %vm1453 = vmand %vm1445, %vm1449
    %v1454 = vsel %vm1450, 1, 0
    %v1455 = vsel %vm1451, 1, 0
    %v1456 = vsel %vm1452, 1, 0
    %v1457 = vsel %vm1453, 1, 0
    %v1458 = vlaneseq
    %v1459 = vshrl.u32 %v1458, 7
    %v1460 = vsub.s32 0, %v1459
    %v1461 = vrot.slane %v1454, %v1460
    %v1462 = vlaneseq
    %v1463 = vshrl.u32 %v1462, 7
    %v1464 = vsub.s32 0, %v1463
    %v1465 = vrot.slane %v1455, %v1464
    %v1466 = vlaneseq
    %v1467 = vshrl.u32 %v1466, 7
    %v1468 = vsub.s32 0, %v1467
    %v1469 = vrot.slane %v1456, %v1468
    %v1470 = vlaneseq
    %v1471 = vshrl.u32 %v1470, 7
    %v1472 = vsub.s32 0, %v1471
    %v1473 = vrot.slane %v1457, %v1472
    %vm1474 = vcmp.eq.s32.totalorder %v1461, 1
    %vm1475 = vcmp.eq.s32.totalorder %v1465, 1
    %vm1476 = vcmp.eq.s32.totalorder %v1469, 1
    %vm1477 = vcmp.eq.s32.totalorder %v1473, 1
    %v1478 = vsel %vm1474, %v1422, 0.0
    %v1479 = vsel %vm1475, %v1423, 0.0
    %v1480 = vsel %vm1476, %v1424, 0.0
    %v1481 = vsel %vm1477, %v1425, 0.0
    %v1482 = vsel %vm1474, %v1426, 0.0
    %v1483 = vsel %vm1475, %v1427, 0.0
    %v1484 = vsel %vm1476, %v1428, 0.0
    %v1485 = vsel %vm1477, %v1437, 0.0
    %1486 = vrot.lane.b32.xlu0 %v736, 123
    %v1487 = vpop.permute.xlu0 %1486
    %1488 = vrot.lane.b32.xlu0 %v737, 123
    %v1489 = vpop.permute.xlu0 %1488
    %1490 = vrot.lane.b32.xlu0 %v738, 123
    %v1491 = vpop.permute.xlu0 %1490
    %1492 = vrot.lane.b32.xlu0 %v739, 123
    %v1493 = vpop.permute.xlu0 %1492
    %1494 = vrot.lane.b32.xlu0 %v740, 123
    %v1495 = vpop.permute.xlu0 %1494
    %1496 = vrot.lane.b32.xlu0 %v741, 123
    %v1497 = vpop.permute.xlu0 %1496
    %1498 = vrot.lane.b32.xlu0 %v742, 123
    %v1499 = vpop.permute.xlu0 %1498
    %1500 = vrot.lane.b32.xlu0 %v743, 123
    %v1501 = vpop.permute.xlu0 %1500
    %vm1502 = vcmask 1006592
    %v1503 = vsel %vm1502, %v1487, %v1489
    %v1504 = vsel %vm1502, %v1489, %v1491
    %v1505 = vsel %vm1502, %v1491, %v1493
    %v1506 = vsel %vm1502, %v1493, %v1495
    %v1507 = vsel %vm1502, %v1495, %v1497
    %v1508 = vsel %vm1502, %v1497, %v1499
    %v1509 = vsel %vm1502, %v1499, %v1501
    %v1518 = vsel %vm1502, %v1501, 0.0
    %v1519 = vadd.s32 %v745, 5
    %v1520 = vadd.s32 %v746, 5
    %v1521 = vadd.s32 %v747, 5
    %v1522 = vadd.s32 %v748, 5
    %vm1523 = vcmp.ge.s32.totalorder %v1519, 0
    %vm1524 = vcmp.ge.s32.totalorder %v1520, 0
    %vm1525 = vcmp.ge.s32.totalorder %v1521, 0
    %vm1526 = vcmp.ge.s32.totalorder %v1522, 0
    %vm1527 = vcmp.lt.s32.totalorder %v1519, 512
    %vm1528 = vcmp.lt.s32.totalorder %v1520, 512
    %vm1529 = vcmp.lt.s32.totalorder %v1521, 512
    %vm1530 = vcmp.lt.s32.totalorder %v1522, 512
    %vm1531 = vmand %vm1523, %vm1527
    %vm1532 = vmand %vm1524, %vm1528
    %vm1533 = vmand %vm1525, %vm1529
    %vm1534 = vmand %vm1526, %vm1530
    %v1535 = vsel %vm1531, 1, 0
    %v1536 = vsel %vm1532, 1, 0
    %v1537 = vsel %vm1533, 1, 0
    %v1538 = vsel %vm1534, 1, 0
    %v1539 = vlaneseq
    %v1540 = vshrl.u32 %v1539, 7
    %v1541 = vsub.s32 0, %v1540
    %v1542 = vrot.slane %v1535, %v1541
    %v1543 = vlaneseq
    %v1544 = vshrl.u32 %v1543, 7
    %v1545 = vsub.s32 0, %v1544
    %v1546 = vrot.slane %v1536, %v1545
    %v1547 = vlaneseq
    %v1548 = vshrl.u32 %v1547, 7
    %v1549 = vsub.s32 0, %v1548
    %v1550 = vrot.slane %v1537, %v1549
    %v1551 = vlaneseq
    %v1552 = vshrl.u32 %v1551, 7
    %v1553 = vsub.s32 0, %v1552
    %v1554 = vrot.slane %v1538, %v1553
    %vm1555 = vcmp.eq.s32.totalorder %v1542, 1
    %vm1556 = vcmp.eq.s32.totalorder %v1546, 1
    %vm1557 = vcmp.eq.s32.totalorder %v1550, 1
    %vm1558 = vcmp.eq.s32.totalorder %v1554, 1
    %v1559 = vsel %vm1555, %v1503, 0.0
    %v1560 = vsel %vm1556, %v1504, 0.0
    %v1561 = vsel %vm1557, %v1505, 0.0
    %v1562 = vsel %vm1558, %v1506, 0.0
    %v1563 = vsel %vm1555, %v1507, 0.0
    %v1564 = vsel %vm1556, %v1508, 0.0
    %v1565 = vsel %vm1557, %v1509, 0.0
    %v1566 = vsel %vm1558, %v1518, 0.0
    %1567 = vrot.lane.b32.xlu0 %v736, 122
    %v1568 = vpop.permute.xlu0 %1567
    %1569 = vrot.lane.b32.xlu0 %v737, 122
    %v1570 = vpop.permute.xlu0 %1569
    %1571 = vrot.lane.b32.xlu0 %v738, 122
    %v1572 = vpop.permute.xlu0 %1571
    %1573 = vrot.lane.b32.xlu0 %v739, 122
    %v1574 = vpop.permute.xlu0 %1573
    %1575 = vrot.lane.b32.xlu0 %v740, 122
    %v1576 = vpop.permute.xlu0 %1575
    %1577 = vrot.lane.b32.xlu0 %v741, 122
    %v1578 = vpop.permute.xlu0 %1577
    %1579 = vrot.lane.b32.xlu0 %v742, 122
    %v1580 = vpop.permute.xlu0 %1579
    %1581 = vrot.lane.b32.xlu0 %v743, 122
    %v1582 = vpop.permute.xlu0 %1581
    %vm1583 = vcmask 998400
    %v1584 = vsel %vm1583, %v1568, %v1570
    %v1585 = vsel %vm1583, %v1570, %v1572
    %v1586 = vsel %vm1583, %v1572, %v1574
    %v1587 = vsel %vm1583, %v1574, %v1576
    %v1588 = vsel %vm1583, %v1576, %v1578
    %v1589 = vsel %vm1583, %v1578, %v1580
    %v1590 = vsel %vm1583, %v1580, %v1582
    %v1599 = vsel %vm1583, %v1582, 0.0
    %v1600 = vadd.s32 %v745, 6
    %v1601 = vadd.s32 %v746, 6
    %v1602 = vadd.s32 %v747, 6
    %v1603 = vadd.s32 %v748, 6
    %vm1604 = vcmp.ge.s32.totalorder %v1600, 0
    %vm1605 = vcmp.ge.s32.totalorder %v1601, 0
    %vm1606 = vcmp.ge.s32.totalorder %v1602, 0
    %vm1607 = vcmp.ge.s32.totalorder %v1603, 0
    %vm1608 = vcmp.lt.s32.totalorder %v1600, 512
    %vm1609 = vcmp.lt.s32.totalorder %v1601, 512
    %vm1610 = vcmp.lt.s32.totalorder %v1602, 512
    %vm1611 = vcmp.lt.s32.totalorder %v1603, 512
    %vm1612 = vmand %vm1604, %vm1608
    %vm1613 = vmand %vm1605, %vm1609
    %vm1614 = vmand %vm1606, %vm1610
    %vm1615 = vmand %vm1607, %vm1611
    %v1616 = vsel %vm1612, 1, 0
    %v1617 = vsel %vm1613, 1, 0
    %v1618 = vsel %vm1614, 1, 0
    %v1619 = vsel %vm1615, 1, 0
    %v1620 = vlaneseq
    %v1621 = vshrl.u32 %v1620, 7
    %v1622 = vsub.s32 0, %v1621
    %v1623 = vrot.slane %v1616, %v1622
    %v1624 = vlaneseq
    %v1625 = vshrl.u32 %v1624, 7
    %v1626 = vsub.s32 0, %v1625
    %v1627 = vrot.slane %v1617, %v1626
    %v1628 = vlaneseq
    %v1629 = vshrl.u32 %v1628, 7
    %v1630 = vsub.s32 0, %v1629
    %v1631 = vrot.slane %v1618, %v1630
    %v1632 = vlaneseq
    %v1633 = vshrl.u32 %v1632, 7
    %v1634 = vsub.s32 0, %v1633
    %v1635 = vrot.slane %v1619, %v1634
    %vm1636 = vcmp.eq.s32.totalorder %v1623, 1
    %vm1637 = vcmp.eq.s32.totalorder %v1627, 1
    %vm1638 = vcmp.eq.s32.totalorder %v1631, 1
    %vm1639 = vcmp.eq.s32.totalorder %v1635, 1
    %v1640 = vsel %vm1636, %v1584, 0.0
    %v1641 = vsel %vm1637, %v1585, 0.0
    %v1642 = vsel %vm1638, %v1586, 0.0
    %v1643 = vsel %vm1639, %v1587, 0.0
    %v1644 = vsel %vm1636, %v1588, 0.0
    %v1645 = vsel %vm1637, %v1589, 0.0
    %v1646 = vsel %vm1638, %v1590, 0.0
    %v1647 = vsel %vm1639, %v1599, 0.0
    %v1648 = vpack.c.bf16 %v830, %v830
    %v1649 = vpack.c.bf16 %v831, %v831
    %v1650 = vpack.c.bf16 %v832, %v832
    %v1651 = vpack.c.bf16 %v833, %v833
    %v1652 = vpack.c.bf16 %v834, %v834
    %v1653 = vpack.c.bf16 %v835, %v835
    %v1654 = vpack.c.bf16 %v836, %v836
    %v1655 = vpack.c.bf16 %v837, %v837
    %v1656 = vpack.c.bf16 %v911, %v911
    %v1657 = vpack.c.bf16 %v912, %v912
    %v1658 = vpack.c.bf16 %v913, %v913
    %v1659 = vpack.c.bf16 %v914, %v914
    %v1660 = vpack.c.bf16 %v915, %v915
    %v1661 = vpack.c.bf16 %v916, %v916
    %v1662 = vpack.c.bf16 %v917, %v917
    %v1663 = vpack.c.bf16 %v918, %v918
    %v1667 = vunpack.c.l.b16 %v354
    %v1668 = vunpack.c.l.b16 %v355
    %v1669 = vunpack.c.l.b16 %v356
    %v1670 = vpack.c.b16 %v1668, %v1667
    %v1671 = vpack.c.b16 %v1669, %v1669
    %1672 = vrot.lane.b32.xlu0 %v1670, 124
    %v1673 = vpop.permute.xlu0 %1672
    %1674 = vrot.lane.b32.xlu0 %v1671, 124
    %v1675 = vpop.permute.xlu0 %1674
    %v1677 = vsel %vm854, %v1673, 0
    %v1680 = vsel %vm854, %v1675, 0
    %vm1682 = vcmask 1041408
    %v1684 = vsel %vm1682, %v1656, 0
    %v1687 = vsel %vm1682, %v1657, 0
    %v1690 = vsel %vm1682, %v1658, 0
    %v1693 = vsel %vm1682, %v1659, 0
    %v1696 = vsel %vm1682, %v1660, 0
    %v1699 = vsel %vm1682, %v1661, 0
    %v1702 = vsel %vm1682, %v1662, 0
    %v1705 = vsel %vm1682, %v1663, 0
    %1707 = vmatprep.subr.bf16.mxu0 %v1687
    %1708 = vmatpush1.bf16.msra.mxu0 %v1684
    %1709 = vmatprep.subr.bf16.mxu0 0
    %1710 = vmatpush1.bf16.msra.mxu0 0
    %1711 = vmatprep.subr.bf16.mxu0 0
    %1712 = vmatpush1.bf16.msra.mxu0 0
    %1713 = vmatprep.subr.bf16.mxu0 0
    %1714 = vmatpush1.bf16.msra.mxu0 0
    %1715 = vmatprep.subr.bf16.mxu0 0
    %1716 = vmatpush1.bf16.msra.mxu0 0
    %1717 = vmatprep.subr.bf16.mxu0 0
    %1718 = vmatpush1.bf16.msra.mxu0 0
    %1719 = vmatprep.subr.bf16.mxu0 0
    %1720 = vmatpush1.bf16.msra.mxu0 0
    %1721 = vmatprep.subr.bf16.mxu0 0
    %1722 = vmatpush1.bf16.msra.mxu0 0
    %1723 = vmatprep.subr.bf16.mxu0 0
    %1724 = vmatpush1.bf16.msra.mxu0 0
    %1725 = vmatprep.subr.bf16.mxu0 0
    %1726 = vmatpush1.bf16.msra.mxu0 0
    %1727 = vmatprep.subr.bf16.mxu0 0
    %1728 = vmatpush1.bf16.msra.mxu0 0
    %1729 = vmatprep.subr.bf16.mxu0 0
    %1730 = vmatpush1.bf16.msra.mxu0 0
    %1731 = vmatprep.subr.bf16.mxu0 0
    %1732 = vmatpush1.bf16.msra.mxu0 0
    %1733 = vmatprep.subr.bf16.mxu0 0
    %1734 = vmatpush1.bf16.msra.mxu0 0
    %1735 = vmatprep.subr.bf16.mxu0 0
    %1736 = vmatpush1.bf16.msra.mxu0 0
    %1737 = vmatprep.subr.bf16.mxu0 0
    %1738 = vmatpush1.bf16.msra.mxu0 0
    %1739 = vmatprep.mubr.bf16.mxu0 0
    %1740 = vmatmul.mubr.bf16.gmra.mrb[0].mxu0 %v1677
    %v1741 = vpop.f32.mrb[0].mxu0
    %v1742 = vadd.f32 0.0, %v1741
    %v1743 = vpop.f32.mrb[0].mxu0
    %v1744 = vadd.f32 0.0, %v1743
    %v1745 = vpop.f32.mrb[0].mxu0
    %v1746 = vadd.f32 0.0, %v1745
    %v1747 = vpop.f32.mrb[0].mxu0
    %v1748 = vadd.f32 0.0, %v1747
    %1749 = vmatprep.mubr.bf16.mxu0 0
    %1750 = vmatmul.mubr.bf16.gmra.mrb[0].mxu0 %v1680
    %v1751 = vpop.f32.mrb[0].mxu0
    %v1752 = vadd.f32 0.0, %v1751
    %v1753 = vpop.f32.mrb[0].mxu0
    %v1754 = vadd.f32 0.0, %v1753
    %v1755 = vpop.f32.mrb[0].mxu0
    %v1756 = vpop.f32.mrb[0].mxu0
    %1757 = vdwg.mxu0
    %1758 = vmatprep.subr.bf16.mxu0 %v1693
    %1759 = vmatpush1.bf16.msra.mxu0 %v1690
    %1760 = vmatprep.subr.bf16.mxu0 0
    %1761 = vmatpush1.bf16.msra.mxu0 0
    %1762 = vmatprep.subr.bf16.mxu0 0
    %1763 = vmatpush1.bf16.msra.mxu0 0
    %1764 = vmatprep.subr.bf16.mxu0 0
    %1765 = vmatpush1.bf16.msra.mxu0 0
    %1766 = vmatprep.subr.bf16.mxu0 0
    %1767 = vmatpush1.bf16.msra.mxu0 0
    %1768 = vmatprep.subr.bf16.mxu0 0
    %1769 = vmatpush1.bf16.msra.mxu0 0
    %1770 = vmatprep.subr.bf16.mxu0 0
    %1771 = vmatpush1.bf16.msra.mxu0 0
    %1772 = vmatprep.subr.bf16.mxu0 0
    %1773 = vmatpush1.bf16.msra.mxu0 0
    %1774 = vmatprep.subr.bf16.mxu0 0
    %1775 = vmatpush1.bf16.msra.mxu0 0
    %1776 = vmatprep.subr.bf16.mxu0 0
    %1777 = vmatpush1.bf16.msra.mxu0 0
    %1778 = vmatprep.subr.bf16.mxu0 0
    %1779 = vmatpush1.bf16.msra.mxu0 0
    %1780 = vmatprep.subr.bf16.mxu0 0
    %1781 = vmatpush1.bf16.msra.mxu0 0
    %1782 = vmatprep.subr.bf16.mxu0 0
    %1783 = vmatpush1.bf16.msra.mxu0 0
    %1784 = vmatprep.subr.bf16.mxu0 0
    %1785 = vmatpush1.bf16.msra.mxu0 0
    %1786 = vmatprep.subr.bf16.mxu0 0
    %1787 = vmatpush1.bf16.msra.mxu0 0
    %1788 = vmatprep.subr.bf16.mxu0 0
    %1789 = vmatpush1.bf16.msra.mxu0 0
    %1790 = vmatprep.mubr.bf16.mxu0 0
    %1791 = vmatmul.mubr.bf16.gmra.mrb[0].mxu0 %v1677
    %v1792 = vpop.f32.mrb[0].mxu0
    %v1793 = vadd.f32 0.0, %v1792
    %v1794 = vpop.f32.mrb[0].mxu0
    %v1795 = vadd.f32 0.0, %v1794
    %v1796 = vpop.f32.mrb[0].mxu0
    %v1797 = vadd.f32 0.0, %v1796
    %v1798 = vpop.f32.mrb[0].mxu0
    %v1799 = vadd.f32 0.0, %v1798
    %1800 = vmatprep.mubr.bf16.mxu0 0
    %1801 = vmatmul.mubr.bf16.gmra.mrb[0].mxu0 %v1680
    %v1802 = vpop.f32.mrb[0].mxu0
    %v1803 = vadd.f32 0.0, %v1802
    %v1804 = vpop.f32.mrb[0].mxu0
    %v1805 = vadd.f32 0.0, %v1804
    %v1806 = vpop.f32.mrb[0].mxu0
    %v1807 = vpop.f32.mrb[0].mxu0
    %1808 = vdwg.mxu0
    %1809 = vmatprep.subr.bf16.mxu0 %v1699
    %1810 = vmatpush1.bf16.msra.mxu0 %v1696
    %1811 = vmatprep.subr.bf16.mxu0 0
    %1812 = vmatpush1.bf16.msra.mxu0 0
    %1813 = vmatprep.subr.bf16.mxu0 0
    %1814 = vmatpush1.bf16.msra.mxu0 0
    %1815 = vmatprep.subr.bf16.mxu0 0
    %1816 = vmatpush1.bf16.msra.mxu0 0
    %1817 = vmatprep.subr.bf16.mxu0 0
    %1818 = vmatpush1.bf16.msra.mxu0 0
    %1819 = vmatprep.subr.bf16.mxu0 0
    %1820 = vmatpush1.bf16.msra.mxu0 0
    %1821 = vmatprep.subr.bf16.mxu0 0
    %1822 = vmatpush1.bf16.msra.mxu0 0
    %1823 = vmatprep.subr.bf16.mxu0 0
    %1824 = vmatpush1.bf16.msra.mxu0 0
    %1825 = vmatprep.subr.bf16.mxu0 0
    %1826 = vmatpush1.bf16.msra.mxu0 0
    %1827 = vmatprep.subr.bf16.mxu0 0
    %1828 = vmatpush1.bf16.msra.mxu0 0
    %1829 = vmatprep.subr.bf16.mxu0 0
    %1830 = vmatpush1.bf16.msra.mxu0 0
    %1831 = vmatprep.subr.bf16.mxu0 0
    %1832 = vmatpush1.bf16.msra.mxu0 0
    %1833 = vmatprep.subr.bf16.mxu0 0
    %1834 = vmatpush1.bf16.msra.mxu0 0
    %1835 = vmatprep.subr.bf16.mxu0 0
    %1836 = vmatpush1.bf16.msra.mxu0 0
    %1837 = vmatprep.subr.bf16.mxu0 0
    %1838 = vmatpush1.bf16.msra.mxu0 0
    %1839 = vmatprep.subr.bf16.mxu0 0
    %1840 = vmatpush1.bf16.msra.mxu0 0
    %1841 = vmatprep.mubr.bf16.mxu0 0
    %1842 = vmatmul.mubr.bf16.gmra.mrb[0].mxu0 %v1677
    %v1843 = vpop.f32.mrb[0].mxu0
    %v1844 = vadd.f32 0.0, %v1843
    %v1845 = vpop.f32.mrb[0].mxu0
    %v1846 = vadd.f32 0.0, %v1845
    %v1847 = vpop.f32.mrb[0].mxu0
    %v1848 = vadd.f32 0.0, %v1847
    %v1849 = vpop.f32.mrb[0].mxu0
    %v1850 = vadd.f32 0.0, %v1849
    %1851 = vmatprep.mubr.bf16.mxu0 0
    %1852 = vmatmul.mubr.bf16.gmra.mrb[0].mxu0 %v1680
    %v1853 = vpop.f32.mrb[0].mxu0
    %v1854 = vadd.f32 0.0, %v1853
    %v1855 = vpop.f32.mrb[0].mxu0
    %v1856 = vadd.f32 0.0, %v1855
    %v1857 = vpop.f32.mrb[0].mxu0
    %v1858 = vpop.f32.mrb[0].mxu0
    %1859 = vdwg.mxu0
    %1860 = vmatprep.subr.bf16.mxu0 %v1705
    %1861 = vmatpush1.bf16.msra.mxu0 %v1702
    %1862 = vmatprep.subr.bf16.mxu0 0
    %1863 = vmatpush1.bf16.msra.mxu0 0
    %1864 = vmatprep.subr.bf16.mxu0 0
    %1865 = vmatpush1.bf16.msra.mxu0 0
    %1866 = vmatprep.subr.bf16.mxu0 0
    %1867 = vmatpush1.bf16.msra.mxu0 0
    %1868 = vmatprep.subr.bf16.mxu0 0
    %1869 = vmatpush1.bf16.msra.mxu0 0
    %1870 = vmatprep.subr.bf16.mxu0 0
    %1871 = vmatpush1.bf16.msra.mxu0 0
    %1872 = vmatprep.subr.bf16.mxu0 0
    %1873 = vmatpush1.bf16.msra.mxu0 0
    %1874 = vmatprep.subr.bf16.mxu0 0
    %1875 = vmatpush1.bf16.msra.mxu0 0
    %1876 = vmatprep.subr.bf16.mxu0 0
    %1877 = vmatpush1.bf16.msra.mxu0 0
    %1878 = vmatprep.subr.bf16.mxu0 0
    %1879 = vmatpush1.bf16.msra.mxu0 0
    %1880 = vmatprep.subr.bf16.mxu0 0
    %1881 = vmatpush1.bf16.msra.mxu0 0
    %1882 = vmatprep.subr.bf16.mxu0 0
    %1883 = vmatpush1.bf16.msra.mxu0 0
    %1884 = vmatprep.subr.bf16.mxu0 0
    %1885 = vmatpush1.bf16.msra.mxu0 0
    %1886 = vmatprep.subr.bf16.mxu0 0
    %1887 = vmatpush1.bf16.msra.mxu0 0
    %1888 = vmatprep.subr.bf16.mxu0 0
    %1889 = vmatpush1.bf16.msra.mxu0 0
    %1890 = vmatprep.subr.bf16.mxu0 0
    %1891 = vmatpush1.bf16.msra.mxu0 0
    %1892 = vmatprep.mubr.bf16.mxu0 0
    %1893 = vmatmul.mubr.bf16.gmra.mrb[0].mxu0 %v1677
    %v1894 = vpop.f32.mrb[0].mxu0
    %v1895 = vadd.f32 0.0, %v1894
    %v1896 = vpop.f32.mrb[0].mxu0
    %v1897 = vadd.f32 0.0, %v1896
    %v1898 = vpop.f32.mrb[0].mxu0
    %v1899 = vadd.f32 0.0, %v1898
    %v1900 = vpop.f32.mrb[0].mxu0
    %v1901 = vadd.f32 0.0, %v1900
    %1902 = vmatprep.mubr.bf16.mxu0 0
    %1903 = vmatmul.mubr.bf16.gmra.mrb[0].mxu0 %v1680
    %v1904 = vpop.f32.mrb[0].mxu0
    %v1905 = vadd.f32 0.0, %v1904
    %v1906 = vpop.f32.mrb[0].mxu0
    %v1907 = vadd.f32 0.0, %v1906
    %v1908 = vpop.f32.mrb[0].mxu0
    %v1909 = vpop.f32.mrb[0].mxu0
    %1910 = vdwg.mxu0
    %v1912 = vsel %vm854, %v1670, 0
    %v1915 = vsel %vm854, %v1671, 0
    %v1918 = vsel %vm1682, %v1648, 0
    %v1921 = vsel %vm1682, %v1649, 0
    %v1924 = vsel %vm1682, %v1650, 0
    %v1927 = vsel %vm1682, %v1651, 0
    %v1930 = vsel %vm1682, %v1652, 0
    %v1933 = vsel %vm1682, %v1653, 0
    %v1936 = vsel %vm1682, %v1654, 0
    %v1939 = vsel %vm1682, %v1655, 0
    %1941 = vmatprep.subr.bf16.mxu0 %v1921
    %1942 = vmatpush1.bf16.msra.mxu0 %v1918
    %1943 = vmatprep.subr.bf16.mxu0 0
    %1944 = vmatpush1.bf16.msra.mxu0 0
    %1945 = vmatprep.subr.bf16.mxu0 0
    %1946 = vmatpush1.bf16.msra.mxu0 0
    %1947 = vmatprep.subr.bf16.mxu0 0
    %1948 = vmatpush1.bf16.msra.mxu0 0
    %1949 = vmatprep.subr.bf16.mxu0 0
    %1950 = vmatpush1.bf16.msra.mxu0 0
    %1951 = vmatprep.subr.bf16.mxu0 0
    %1952 = vmatpush1.bf16.msra.mxu0 0
    %1953 = vmatprep.subr.bf16.mxu0 0
    %1954 = vmatpush1.bf16.msra.mxu0 0
    %1955 = vmatprep.subr.bf16.mxu0 0
    %1956 = vmatpush1.bf16.msra.mxu0 0
    %1957 = vmatprep.subr.bf16.mxu0 0
    %1958 = vmatpush1.bf16.msra.mxu0 0
    %1959 = vmatprep.subr.bf16.mxu0 0
    %1960 = vmatpush1.bf16.msra.mxu0 0
    %1961 = vmatprep.subr.bf16.mxu0 0
    %1962 = vmatpush1.bf16.msra.mxu0 0
    %1963 = vmatprep.subr.bf16.mxu0 0
    %1964 = vmatpush1.bf16.msra.mxu0 0
    %1965 = vmatprep.subr.bf16.mxu0 0
    %1966 = vmatpush1.bf16.msra.mxu0 0
    %1967 = vmatprep.subr.bf16.mxu0 0
    %1968 = vmatpush1.bf16.msra.mxu0 0
    %1969 = vmatprep.subr.bf16.mxu0 0
    %1970 = vmatpush1.bf16.msra.mxu0 0
    %1971 = vmatprep.subr.bf16.mxu0 0
    %1972 = vmatpush1.bf16.msra.mxu0 0
    %1973 = vmatprep.mubr.bf16.mxu0 0
    %1974 = vmatmul.mubr.bf16.gmra.mrb[0].mxu0 %v1912
    %v1975 = vpop.f32.mrb[0].mxu0
    %v1976 = vadd.f32 %v1742, %v1975
    %v1977 = vpop.f32.mrb[0].mxu0
    %v1978 = vadd.f32 %v1744, %v1977
    %v1979 = vpop.f32.mrb[0].mxu0
    %v1980 = vadd.f32 %v1746, %v1979
    %v1981 = vpop.f32.mrb[0].mxu0
    %v1982 = vadd.f32 %v1748, %v1981
    %1983 = vmatprep.mubr.bf16.mxu0 0
    %1984 = vmatmul.mubr.bf16.gmra.mrb[0].mxu0 %v1915
    %v1985 = vpop.f32.mrb[0].mxu0
    %v1986 = vadd.f32 %v1752, %v1985
    %v1987 = vpop.f32.mrb[0].mxu0
    %v1988 = vadd.f32 %v1754, %v1987
    %v1989 = vpop.f32.mrb[0].mxu0
    %v1990 = vpop.f32.mrb[0].mxu0
    %1991 = vdwg.mxu0
    %1992 = vmatprep.subr.bf16.mxu0 %v1927
    %1993 = vmatpush1.bf16.msra.mxu0 %v1924
    %1994 = vmatprep.subr.bf16.mxu0 0
    %1995 = vmatpush1.bf16.msra.mxu0 0
    %1996 = vmatprep.subr.bf16.mxu0 0
    %1997 = vmatpush1.bf16.msra.mxu0 0
    %1998 = vmatprep.subr.bf16.mxu0 0
    %1999 = vmatpush1.bf16.msra.mxu0 0
    %2000 = vmatprep.subr.bf16.mxu0 0
    %2001 = vmatpush1.bf16.msra.mxu0 0
    %2002 = vmatprep.subr.bf16.mxu0 0
    %2003 = vmatpush1.bf16.msra.mxu0 0
    %2004 = vmatprep.subr.bf16.mxu0 0
    %2005 = vmatpush1.bf16.msra.mxu0 0
    %2006 = vmatprep.subr.bf16.mxu0 0
    %2007 = vmatpush1.bf16.msra.mxu0 0
    %2008 = vmatprep.subr.bf16.mxu0 0
    %2009 = vmatpush1.bf16.msra.mxu0 0
    %2010 = vmatprep.subr.bf16.mxu0 0
    %2011 = vmatpush1.bf16.msra.mxu0 0
    %2012 = vmatprep.subr.bf16.mxu0 0
    %2013 = vmatpush1.bf16.msra.mxu0 0
    %2014 = vmatprep.subr.bf16.mxu0 0
    %2015 = vmatpush1.bf16.msra.mxu0 0
    %2016 = vmatprep.subr.bf16.mxu0 0
    %2017 = vmatpush1.bf16.msra.mxu0 0
    %2018 = vmatprep.subr.bf16.mxu0 0
    %2019 = vmatpush1.bf16.msra.mxu0 0
    %2020 = vmatprep.subr.bf16.mxu0 0
    %2021 = vmatpush1.bf16.msra.mxu0 0
    %2022 = vmatprep.subr.bf16.mxu0 0
    %2023 = vmatpush1.bf16.msra.mxu0 0
    %2024 = vmatprep.mubr.bf16.mxu0 0
    %2025 = vmatmul.mubr.bf16.gmra.mrb[0].mxu0 %v1912
    %v2026 = vpop.f32.mrb[0].mxu0
    %v2027 = vadd.f32 %v1793, %v2026
    %v2028 = vpop.f32.mrb[0].mxu0
    %v2029 = vadd.f32 %v1795, %v2028
    %v2030 = vpop.f32.mrb[0].mxu0
    %v2031 = vadd.f32 %v1797, %v2030
    %v2032 = vpop.f32.mrb[0].mxu0
    %v2033 = vadd.f32 %v1799, %v2032
    %2034 = vmatprep.mubr.bf16.mxu0 0
    %2035 = vmatmul.mubr.bf16.gmra.mrb[0].mxu0 %v1915
    %v2036 = vpop.f32.mrb[0].mxu0
    %v2037 = vadd.f32 %v1803, %v2036
    %v2038 = vpop.f32.mrb[0].mxu0
    %v2039 = vadd.f32 %v1805, %v2038
    %v2040 = vpop.f32.mrb[0].mxu0
    %v2041 = vpop.f32.mrb[0].mxu0
    %2042 = vdwg.mxu0
    %2043 = vmatprep.subr.bf16.mxu0 %v1933
    %2044 = vmatpush1.bf16.msra.mxu0 %v1930
    %2045 = vmatprep.subr.bf16.mxu0 0
    %2046 = vmatpush1.bf16.msra.mxu0 0
    %2047 = vmatprep.subr.bf16.mxu0 0
    %2048 = vmatpush1.bf16.msra.mxu0 0
    %2049 = vmatprep.subr.bf16.mxu0 0
    %2050 = vmatpush1.bf16.msra.mxu0 0
    %2051 = vmatprep.subr.bf16.mxu0 0
    %2052 = vmatpush1.bf16.msra.mxu0 0
    %2053 = vmatprep.subr.bf16.mxu0 0
    %2054 = vmatpush1.bf16.msra.mxu0 0
    %2055 = vmatprep.subr.bf16.mxu0 0
    %2056 = vmatpush1.bf16.msra.mxu0 0
    %2057 = vmatprep.subr.bf16.mxu0 0
    %2058 = vmatpush1.bf16.msra.mxu0 0
    %2059 = vmatprep.subr.bf16.mxu0 0
    %2060 = vmatpush1.bf16.msra.mxu0 0
    %2061 = vmatprep.subr.bf16.mxu0 0
    %2062 = vmatpush1.bf16.msra.mxu0 0
    %2063 = vmatprep.subr.bf16.mxu0 0
    %2064 = vmatpush1.bf16.msra.mxu0 0
    %2065 = vmatprep.subr.bf16.mxu0 0
    %2066 = vmatpush1.bf16.msra.mxu0 0
    %2067 = vmatprep.subr.bf16.mxu0 0
    %2068 = vmatpush1.bf16.msra.mxu0 0
    %2069 = vmatprep.subr.bf16.mxu0 0
    %2070 = vmatpush1.bf16.msra.mxu0 0
    %2071 = vmatprep.subr.bf16.mxu0 0
    %2072 = vmatpush1.bf16.msra.mxu0 0
    %2073 = vmatprep.subr.bf16.mxu0 0
    %2074 = vmatpush1.bf16.msra.mxu0 0
    %2075 = vmatprep.mubr.bf16.mxu0 0
    %2076 = vmatmul.mubr.bf16.gmra.mrb[0].mxu0 %v1912
    %v2077 = vpop.f32.mrb[0].mxu0
    %v2078 = vadd.f32 %v1844, %v2077
    %v2079 = vpop.f32.mrb[0].mxu0
    %v2080 = vadd.f32 %v1846, %v2079
    %v2081 = vpop.f32.mrb[0].mxu0
    %v2082 = vadd.f32 %v1848, %v2081
    %v2083 = vpop.f32.mrb[0].mxu0
    %v2084 = vadd.f32 %v1850, %v2083
    %2085 = vmatprep.mubr.bf16.mxu0 0
    %2086 = vmatmul.mubr.bf16.gmra.mrb[0].mxu0 %v1915
    %v2087 = vpop.f32.mrb[0].mxu0
    %v2088 = vadd.f32 %v1854, %v2087
    %v2089 = vpop.f32.mrb[0].mxu0
    %v2090 = vadd.f32 %v1856, %v2089
    %v2091 = vpop.f32.mrb[0].mxu0
    %v2092 = vpop.f32.mrb[0].mxu0
    %2093 = vdwg.mxu0
    %2094 = vmatprep.subr.bf16.mxu0 %v1939
    %2095 = vmatpush1.bf16.msra.mxu0 %v1936
    %2096 = vmatprep.subr.bf16.mxu0 0
    %2097 = vmatpush1.bf16.msra.mxu0 0
    %2098 = vmatprep.subr.bf16.mxu0 0
    %2099 = vmatpush1.bf16.msra.mxu0 0
    %2100 = vmatprep.subr.bf16.mxu0 0
    %2101 = vmatpush1.bf16.msra.mxu0 0
    %2102 = vmatprep.subr.bf16.mxu0 0
    %2103 = vmatpush1.bf16.msra.mxu0 0
    %2104 = vmatprep.subr.bf16.mxu0 0
    %2105 = vmatpush1.bf16.msra.mxu0 0
    %2106 = vmatprep.subr.bf16.mxu0 0
    %2107 = vmatpush1.bf16.msra.mxu0 0
    %2108 = vmatprep.subr.bf16.mxu0 0
    %2109 = vmatpush1.bf16.msra.mxu0 0
    %2110 = vmatprep.subr.bf16.mxu0 0
    %2111 = vmatpush1.bf16.msra.mxu0 0
    %2112 = vmatprep.subr.bf16.mxu0 0
    %2113 = vmatpush1.bf16.msra.mxu0 0
    %2114 = vmatprep.subr.bf16.mxu0 0
    %2115 = vmatpush1.bf16.msra.mxu0 0
    %2116 = vmatprep.subr.bf16.mxu0 0
    %2117 = vmatpush1.bf16.msra.mxu0 0
    %2118 = vmatprep.subr.bf16.mxu0 0
    %2119 = vmatpush1.bf16.msra.mxu0 0
    %2120 = vmatprep.subr.bf16.mxu0 0
    %2121 = vmatpush1.bf16.msra.mxu0 0
    %2122 = vmatprep.subr.bf16.mxu0 0
    %2123 = vmatpush1.bf16.msra.mxu0 0
    %2124 = vmatprep.subr.bf16.mxu0 0
    %2125 = vmatpush1.bf16.msra.mxu0 0
    %2126 = vmatprep.mubr.bf16.mxu0 0
    %2127 = vmatmul.mubr.bf16.gmra.mrb[0].mxu0 %v1912
    %v2128 = vpop.f32.mrb[0].mxu0
    %v2129 = vadd.f32 %v1895, %v2128
    %v2130 = vpop.f32.mrb[0].mxu0
    %v2131 = vadd.f32 %v1897, %v2130
    %v2132 = vpop.f32.mrb[0].mxu0
    %v2133 = vadd.f32 %v1899, %v2132
    %v2134 = vpop.f32.mrb[0].mxu0
    %v2135 = vadd.f32 %v1901, %v2134
    %2136 = vmatprep.mubr.bf16.mxu0 0
    %2137 = vmatmul.mubr.bf16.gmra.mrb[0].mxu0 %v1915
    %v2138 = vpop.f32.mrb[0].mxu0
    %v2139 = vadd.f32 %v1905, %v2138
    %v2140 = vpop.f32.mrb[0].mxu0
    %v2141 = vadd.f32 %v1907, %v2140
    %v2142 = vpop.f32.mrb[0].mxu0
    %v2143 = vpop.f32.mrb[0].mxu0
    %2144 = vdwg.mxu0
    %v2145 = vpack.c.bf16 %v992, %v992
    %v2146 = vpack.c.bf16 %v993, %v993
    %v2147 = vpack.c.bf16 %v994, %v994
    %v2148 = vpack.c.bf16 %v995, %v995
    %v2149 = vpack.c.bf16 %v996, %v996
    %v2150 = vpack.c.bf16 %v997, %v997
    %v2151 = vpack.c.bf16 %v998, %v998
    %v2152 = vpack.c.bf16 %v999, %v999
    %2153 = vrot.lane.b32.xlu0 %v1670, 120
    %v2154 = vpop.permute.xlu0 %2153
    %2155 = vrot.lane.b32.xlu0 %v1671, 120
    %v2156 = vpop.permute.xlu0 %2155
    %v2158 = vsel %vm854, %v2154, 0
    %v2161 = vsel %vm854, %v2156, 0
    %v2164 = vsel %vm1682, %v2145, 0
    %v2167 = vsel %vm1682, %v2146, 0
    %v2170 = vsel %vm1682, %v2147, 0
    %v2173 = vsel %vm1682, %v2148, 0
    %v2176 = vsel %vm1682, %v2149, 0
    %v2179 = vsel %vm1682, %v2150, 0
    %v2182 = vsel %vm1682, %v2151, 0
    %v2185 = vsel %vm1682, %v2152, 0
    %2187 = vmatprep.subr.bf16.mxu0 %v2167
    %2188 = vmatpush1.bf16.msra.mxu0 %v2164
    %2189 = vmatprep.subr.bf16.mxu0 0
    %2190 = vmatpush1.bf16.msra.mxu0 0
    %2191 = vmatprep.subr.bf16.mxu0 0
    %2192 = vmatpush1.bf16.msra.mxu0 0
    %2193 = vmatprep.subr.bf16.mxu0 0
    %2194 = vmatpush1.bf16.msra.mxu0 0
    %2195 = vmatprep.subr.bf16.mxu0 0
    %2196 = vmatpush1.bf16.msra.mxu0 0
    %2197 = vmatprep.subr.bf16.mxu0 0
    %2198 = vmatpush1.bf16.msra.mxu0 0
    %2199 = vmatprep.subr.bf16.mxu0 0
    %2200 = vmatpush1.bf16.msra.mxu0 0
    %2201 = vmatprep.subr.bf16.mxu0 0
    %2202 = vmatpush1.bf16.msra.mxu0 0
    %2203 = vmatprep.subr.bf16.mxu0 0
    %2204 = vmatpush1.bf16.msra.mxu0 0
    %2205 = vmatprep.subr.bf16.mxu0 0
    %2206 = vmatpush1.bf16.msra.mxu0 0
    %2207 = vmatprep.subr.bf16.mxu0 0
    %2208 = vmatpush1.bf16.msra.mxu0 0
    %2209 = vmatprep.subr.bf16.mxu0 0
    %2210 = vmatpush1.bf16.msra.mxu0 0
    %2211 = vmatprep.subr.bf16.mxu0 0
    %2212 = vmatpush1.bf16.msra.mxu0 0
    %2213 = vmatprep.subr.bf16.mxu0 0
    %2214 = vmatpush1.bf16.msra.mxu0 0
    %2215 = vmatprep.subr.bf16.mxu0 0
    %2216 = vmatpush1.bf16.msra.mxu0 0
    %2217 = vmatprep.subr.bf16.mxu0 0
    %2218 = vmatpush1.bf16.msra.mxu0 0
    %2219 = vmatprep.mubr.bf16.mxu0 0
    %2220 = vmatmul.mubr.bf16.gmra.mrb[0].mxu0 %v2158
    %v2221 = vpop.f32.mrb[0].mxu0
    %v2222 = vadd.f32 0.0, %v2221
    %v2223 = vpop.f32.mrb[0].mxu0
    %v2224 = vadd.f32 0.0, %v2223
    %v2225 = vpop.f32.mrb[0].mxu0
    %v2226 = vadd.f32 0.0, %v2225
    %v2227 = vpop.f32.mrb[0].mxu0
    %v2228 = vadd.f32 0.0, %v2227
    %2229 = vmatprep.mubr.bf16.mxu0 0
    %2230 = vmatmul.mubr.bf16.gmra.mrb[0].mxu0 %v2161
    %v2231 = vpop.f32.mrb[0].mxu0
    %v2232 = vadd.f32 0.0, %v2231
    %v2233 = vpop.f32.mrb[0].mxu0
    %v2234 = vadd.f32 0.0, %v2233
    %v2235 = vpop.f32.mrb[0].mxu0
    %v2236 = vpop.f32.mrb[0].mxu0
    %2237 = vdwg.mxu0
    %2238 = vmatprep.subr.bf16.mxu0 %v2173
    %2239 = vmatpush1.bf16.msra.mxu0 %v2170
    %2240 = vmatprep.subr.bf16.mxu0 0
    %2241 = vmatpush1.bf16.msra.mxu0 0
    %2242 = vmatprep.subr.bf16.mxu0 0
    %2243 = vmatpush1.bf16.msra.mxu0 0
    %2244 = vmatprep.subr.bf16.mxu0 0
    %2245 = vmatpush1.bf16.msra.mxu0 0
    %2246 = vmatprep.subr.bf16.mxu0 0
    %2247 = vmatpush1.bf16.msra.mxu0 0
    %2248 = vmatprep.subr.bf16.mxu0 0
    %2249 = vmatpush1.bf16.msra.mxu0 0
    %2250 = vmatprep.subr.bf16.mxu0 0
    %2251 = vmatpush1.bf16.msra.mxu0 0
    %2252 = vmatprep.subr.bf16.mxu0 0
    %2253 = vmatpush1.bf16.msra.mxu0 0
    %2254 = vmatprep.subr.bf16.mxu0 0
    %2255 = vmatpush1.bf16.msra.mxu0 0
    %2256 = vmatprep.subr.bf16.mxu0 0
    %2257 = vmatpush1.bf16.msra.mxu0 0
    %2258 = vmatprep.subr.bf16.mxu0 0
    %2259 = vmatpush1.bf16.msra.mxu0 0
    %2260 = vmatprep.subr.bf16.mxu0 0
    %2261 = vmatpush1.bf16.msra.mxu0 0
    %2262 = vmatprep.subr.bf16.mxu0 0
    %2263 = vmatpush1.bf16.msra.mxu0 0
    %2264 = vmatprep.subr.bf16.mxu0 0
    %2265 = vmatpush1.bf16.msra.mxu0 0
    %2266 = vmatprep.subr.bf16.mxu0 0
    %2267 = vmatpush1.bf16.msra.mxu0 0
    %2268 = vmatprep.subr.bf16.mxu0 0
    %2269 = vmatpush1.bf16.msra.mxu0 0
    %2270 = vmatprep.mubr.bf16.mxu0 0
    %2271 = vmatmul.mubr.bf16.gmra.mrb[0].mxu0 %v2158
    %v2272 = vpop.f32.mrb[0].mxu0
    %v2273 = vadd.f32 0.0, %v2272
    %v2274 = vpop.f32.mrb[0].mxu0
    %v2275 = vadd.f32 0.0, %v2274
    %v2276 = vpop.f32.mrb[0].mxu0
    %v2277 = vadd.f32 0.0, %v2276
    %v2278 = vpop.f32.mrb[0].mxu0
    %v2279 = vadd.f32 0.0, %v2278
    %2280 = vmatprep.mubr.bf16.mxu0 0
    %2281 = vmatmul.mubr.bf16.gmra.mrb[0].mxu0 %v2161
    %v2282 = vpop.f32.mrb[0].mxu0
    %v2283 = vadd.f32 0.0, %v2282
    %v2284 = vpop.f32.mrb[0].mxu0
    %v2285 = vadd.f32 0.0, %v2284
    %v2286 = vpop.f32.mrb[0].mxu0
    %v2287 = vpop.f32.mrb[0].mxu0
    %2288 = vdwg.mxu0
    %2289 = vmatprep.subr.bf16.mxu0 %v2179
    %2290 = vmatpush1.bf16.msra.mxu0 %v2176
    %2291 = vmatprep.subr.bf16.mxu0 0
    %2292 = vmatpush1.bf16.msra.mxu0 0
    %2293 = vmatprep.subr.bf16.mxu0 0
    %2294 = vmatpush1.bf16.msra.mxu0 0
    %2295 = vmatprep.subr.bf16.mxu0 0
    %2296 = vmatpush1.bf16.msra.mxu0 0
    %2297 = vmatprep.subr.bf16.mxu0 0
    %2298 = vmatpush1.bf16.msra.mxu0 0
    %2299 = vmatprep.subr.bf16.mxu0 0
    %2300 = vmatpush1.bf16.msra.mxu0 0
    %2301 = vmatprep.subr.bf16.mxu0 0
    %2302 = vmatpush1.bf16.msra.mxu0 0
    %2303 = vmatprep.subr.bf16.mxu0 0
    %2304 = vmatpush1.bf16.msra.mxu0 0
    %2305 = vmatprep.subr.bf16.mxu0 0
    %2306 = vmatpush1.bf16.msra.mxu0 0
    %2307 = vmatprep.subr.bf16.mxu0 0
    %2308 = vmatpush1.bf16.msra.mxu0 0
    %2309 = vmatprep.subr.bf16.mxu0 0
    %2310 = vmatpush1.bf16.msra.mxu0 0
    %2311 = vmatprep.subr.bf16.mxu0 0
    %2312 = vmatpush1.bf16.msra.mxu0 0
    %2313 = vmatprep.subr.bf16.mxu0 0
    %2314 = vmatpush1.bf16.msra.mxu0 0
    %2315 = vmatprep.subr.bf16.mxu0 0
    %2316 = vmatpush1.bf16.msra.mxu0 0
    %2317 = vmatprep.subr.bf16.mxu0 0
    %2318 = vmatpush1.bf16.msra.mxu0 0
    %2319 = vmatprep.subr.bf16.mxu0 0
    %2320 = vmatpush1.bf16.msra.mxu0 0
    %2321 = vmatprep.mubr.bf16.mxu0 0
    %2322 = vmatmul.mubr.bf16.gmra.mrb[0].mxu0 %v2158
    %v2323 = vpop.f32.mrb[0].mxu0
    %v2324 = vadd.f32 0.0, %v2323
    %v2325 = vpop.f32.mrb[0].mxu0
    %v2326 = vadd.f32 0.0, %v2325
    %v2327 = vpop.f32.mrb[0].mxu0
    %v2328 = vadd.f32 0.0, %v2327
    %v2329 = vpop.f32.mrb[0].mxu0
    %v2330 = vadd.f32 0.0, %v2329
    %2331 = vmatprep.mubr.bf16.mxu0 0
    %2332 = vmatmul.mubr.bf16.gmra.mrb[0].mxu0 %v2161
    %v2333 = vpop.f32.mrb[0].mxu0
    %v2334 = vadd.f32 0.0, %v2333
    %v2335 = vpop.f32.mrb[0].mxu0
    %v2336 = vadd.f32 0.0, %v2335
    %v2337 = vpop.f32.mrb[0].mxu0
    %v2338 = vpop.f32.mrb[0].mxu0
    %2339 = vdwg.mxu0
    %2340 = vmatprep.subr.bf16.mxu0 %v2185
    %2341 = vmatpush1.bf16.msra.mxu0 %v2182
    %2342 = vmatprep.subr.bf16.mxu0 0
    %2343 = vmatpush1.bf16.msra.mxu0 0
    %2344 = vmatprep.subr.bf16.mxu0 0
    %2345 = vmatpush1.bf16.msra.mxu0 0
    %2346 = vmatprep.subr.bf16.mxu0 0
    %2347 = vmatpush1.bf16.msra.mxu0 0
    %2348 = vmatprep.subr.bf16.mxu0 0
    %2349 = vmatpush1.bf16.msra.mxu0 0
    %2350 = vmatprep.subr.bf16.mxu0 0
    %2351 = vmatpush1.bf16.msra.mxu0 0
    %2352 = vmatprep.subr.bf16.mxu0 0
    %2353 = vmatpush1.bf16.msra.mxu0 0
    %2354 = vmatprep.subr.bf16.mxu0 0
    %2355 = vmatpush1.bf16.msra.mxu0 0
    %2356 = vmatprep.subr.bf16.mxu0 0
    %2357 = vmatpush1.bf16.msra.mxu0 0
    %2358 = vmatprep.subr.bf16.mxu0 0
    %2359 = vmatpush1.bf16.msra.mxu0 0
    %2360 = vmatprep.subr.bf16.mxu0 0
    %2361 = vmatpush1.bf16.msra.mxu0 0
    %2362 = vmatprep.subr.bf16.mxu0 0
    %2363 = vmatpush1.bf16.msra.mxu0 0
    %2364 = vmatprep.subr.bf16.mxu0 0
    %2365 = vmatpush1.bf16.msra.mxu0 0
    %2366 = vmatprep.subr.bf16.mxu0 0
    %2367 = vmatpush1.bf16.msra.mxu0 0
    %2368 = vmatprep.subr.bf16.mxu0 0
    %2369 = vmatpush1.bf16.msra.mxu0 0
    %2370 = vmatprep.subr.bf16.mxu0 0
    %2371 = vmatpush1.bf16.msra.mxu0 0
    %2372 = vmatprep.mubr.bf16.mxu0 0
    %2373 = vmatmul.mubr.bf16.gmra.mrb[0].mxu0 %v2158
    %v2374 = vpop.f32.mrb[0].mxu0
    %v2375 = vadd.f32 0.0, %v2374
    %v2376 = vpop.f32.mrb[0].mxu0
    %v2377 = vadd.f32 0.0, %v2376
    %v2378 = vpop.f32.mrb[0].mxu0
    %v2379 = vadd.f32 0.0, %v2378
    %v2380 = vpop.f32.mrb[0].mxu0
    %v2381 = vadd.f32 0.0, %v2380
    %2382 = vmatprep.mubr.bf16.mxu0 0
    %2383 = vmatmul.mubr.bf16.gmra.mrb[0].mxu0 %v2161
    %v2384 = vpop.f32.mrb[0].mxu0
    %v2385 = vadd.f32 0.0, %v2384
    %v2386 = vpop.f32.mrb[0].mxu0
    %v2387 = vadd.f32 0.0, %v2386
    %v2388 = vpop.f32.mrb[0].mxu0
    %v2389 = vpop.f32.mrb[0].mxu0
    %2390 = vdwg.mxu0
    %v2391 = vadd.f32 %v1976, %v2222
    %v2392 = vadd.f32 %v1978, %v2224
    %v2393 = vadd.f32 %v2027, %v2273
    %v2394 = vadd.f32 %v2029, %v2275
    %v2395 = vadd.f32 %v2078, %v2324
    %v2396 = vadd.f32 %v2080, %v2326
    %v2397 = vadd.f32 %v2129, %v2375
    %v2398 = vadd.f32 %v2131, %v2377
    %v2399 = vadd.f32 %v1980, %v2226
    %v2400 = vadd.f32 %v1982, %v2228
    %v2401 = vadd.f32 %v2031, %v2277
    %v2402 = vadd.f32 %v2033, %v2279
    %v2403 = vadd.f32 %v2082, %v2328
    %v2404 = vadd.f32 %v2084, %v2330
    %v2405 = vadd.f32 %v2133, %v2379
    %v2406 = vadd.f32 %v2135, %v2381
    %v2407 = vadd.f32 %v1986, %v2232
    %v2408 = vadd.f32 %v1988, %v2234
    %v2409 = vadd.f32 %v2037, %v2283
    %v2410 = vadd.f32 %v2039, %v2285
    %v2411 = vadd.f32 %v2088, %v2334
    %v2412 = vadd.f32 %v2090, %v2336
    %v2413 = vadd.f32 %v2139, %v2385
    %v2414 = vadd.f32 %v2141, %v2387
    %v2415 = vpack.c.bf16 %v1073, %v1073
    %v2416 = vpack.c.bf16 %v1074, %v1074
    %v2417 = vpack.c.bf16 %v1075, %v1075
    %v2418 = vpack.c.bf16 %v1076, %v1076
    %v2419 = vpack.c.bf16 %v1077, %v1077
    %v2420 = vpack.c.bf16 %v1078, %v1078
    %v2421 = vpack.c.bf16 %v1079, %v1079
    %v2422 = vpack.c.bf16 %v1080, %v1080
    %2423 = vrot.lane.b32.xlu0 %v1670, 116
    %v2424 = vpop.permute.xlu0 %2423
    %2425 = vrot.lane.b32.xlu0 %v1671, 116
    %v2426 = vpop.permute.xlu0 %2425
    %v2428 = vsel %vm854, %v2424, 0
    %v2431 = vsel %vm854, %v2426, 0
    %v2434 = vsel %vm1682, %v2415, 0
    %v2437 = vsel %vm1682, %v2416, 0
    %v2440 = vsel %vm1682, %v2417, 0
    %v2443 = vsel %vm1682, %v2418, 0
    %v2446 = vsel %vm1682, %v2419, 0
    %v2449 = vsel %vm1682, %v2420, 0
    %v2452 = vsel %vm1682, %v2421, 0
    %v2455 = vsel %vm1682, %v2422, 0
    %2457 = vmatprep.subr.bf16.mxu0 %v2437
    %2458 = vmatpush1.bf16.msra.mxu0 %v2434
    %2459 = vmatprep.subr.bf16.mxu0 0
    %2460 = vmatpush1.bf16.msra.mxu0 0
    %2461 = vmatprep.subr.bf16.mxu0 0
    %2462 = vmatpush1.bf16.msra.mxu0 0
    %2463 = vmatprep.subr.bf16.mxu0 0
    %2464 = vmatpush1.bf16.msra.mxu0 0
    %2465 = vmatprep.subr.bf16.mxu0 0
    %2466 = vmatpush1.bf16.msra.mxu0 0
    %2467 = vmatprep.subr.bf16.mxu0 0
    %2468 = vmatpush1.bf16.msra.mxu0 0
    %2469 = vmatprep.subr.bf16.mxu0 0
    %2470 = vmatpush1.bf16.msra.mxu0 0
    %2471 = vmatprep.subr.bf16.mxu0 0
    %2472 = vmatpush1.bf16.msra.mxu0 0
    %2473 = vmatprep.subr.bf16.mxu0 0
    %2474 = vmatpush1.bf16.msra.mxu0 0
    %2475 = vmatprep.subr.bf16.mxu0 0
    %2476 = vmatpush1.bf16.msra.mxu0 0
    %2477 = vmatprep.subr.bf16.mxu0 0
    %2478 = vmatpush1.bf16.msra.mxu0 0
    %2479 = vmatprep.subr.bf16.mxu0 0
    %2480 = vmatpush1.bf16.msra.mxu0 0
    %2481 = vmatprep.subr.bf16.mxu0 0
    %2482 = vmatpush1.bf16.msra.mxu0 0
    %2483 = vmatprep.subr.bf16.mxu0 0
    %2484 = vmatpush1.bf16.msra.mxu0 0
    %2485 = vmatprep.subr.bf16.mxu0 0
    %2486 = vmatpush1.bf16.msra.mxu0 0
    %2487 = vmatprep.subr.bf16.mxu0 0
    %2488 = vmatpush1.bf16.msra.mxu0 0
    %2489 = vmatprep.mubr.bf16.mxu0 0
    %2490 = vmatmul.mubr.bf16.gmra.mrb[0].mxu0 %v2428
    %v2491 = vpop.f32.mrb[0].mxu0
    %v2492 = vadd.f32 0.0, %v2491
    %v2493 = vpop.f32.mrb[0].mxu0
    %v2494 = vadd.f32 0.0, %v2493
    %v2495 = vpop.f32.mrb[0].mxu0
    %v2496 = vadd.f32 0.0, %v2495
    %v2497 = vpop.f32.mrb[0].mxu0
    %v2498 = vadd.f32 0.0, %v2497
    %2499 = vmatprep.mubr.bf16.mxu0 0
    %2500 = vmatmul.mubr.bf16.gmra.mrb[0].mxu0 %v2431
    %v2501 = vpop.f32.mrb[0].mxu0
    %v2502 = vadd.f32 0.0, %v2501
    %v2503 = vpop.f32.mrb[0].mxu0
    %v2504 = vadd.f32 0.0, %v2503
    %v2505 = vpop.f32.mrb[0].mxu0
    %v2506 = vpop.f32.mrb[0].mxu0
    %2507 = vdwg.mxu0
    %2508 = vmatprep.subr.bf16.mxu0 %v2443
    %2509 = vmatpush1.bf16.msra.mxu0 %v2440
    %2510 = vmatprep.subr.bf16.mxu0 0
    %2511 = vmatpush1.bf16.msra.mxu0 0
    %2512 = vmatprep.subr.bf16.mxu0 0
    %2513 = vmatpush1.bf16.msra.mxu0 0
    %2514 = vmatprep.subr.bf16.mxu0 0
    %2515 = vmatpush1.bf16.msra.mxu0 0
    %2516 = vmatprep.subr.bf16.mxu0 0
    %2517 = vmatpush1.bf16.msra.mxu0 0
    %2518 = vmatprep.subr.bf16.mxu0 0
    %2519 = vmatpush1.bf16.msra.mxu0 0
    %2520 = vmatprep.subr.bf16.mxu0 0
    %2521 = vmatpush1.bf16.msra.mxu0 0
    %2522 = vmatprep.subr.bf16.mxu0 0
    %2523 = vmatpush1.bf16.msra.mxu0 0
    %2524 = vmatprep.subr.bf16.mxu0 0
    %2525 = vmatpush1.bf16.msra.mxu0 0
    %2526 = vmatprep.subr.bf16.mxu0 0
    %2527 = vmatpush1.bf16.msra.mxu0 0
    %2528 = vmatprep.subr.bf16.mxu0 0
    %2529 = vmatpush1.bf16.msra.mxu0 0
    %2530 = vmatprep.subr.bf16.mxu0 0
    %2531 = vmatpush1.bf16.msra.mxu0 0
    %2532 = vmatprep.subr.bf16.mxu0 0
    %2533 = vmatpush1.bf16.msra.mxu0 0
    %2534 = vmatprep.subr.bf16.mxu0 0
    %2535 = vmatpush1.bf16.msra.mxu0 0
    %2536 = vmatprep.subr.bf16.mxu0 0
    %2537 = vmatpush1.bf16.msra.mxu0 0
    %2538 = vmatprep.subr.bf16.mxu0 0
    %2539 = vmatpush1.bf16.msra.mxu0 0
    %2540 = vmatprep.mubr.bf16.mxu0 0
    %2541 = vmatmul.mubr.bf16.gmra.mrb[0].mxu0 %v2428
    %v2542 = vpop.f32.mrb[0].mxu0
    %v2543 = vadd.f32 0.0, %v2542
    %v2544 = vpop.f32.mrb[0].mxu0
    %v2545 = vadd.f32 0.0, %v2544
    %v2546 = vpop.f32.mrb[0].mxu0
    %v2547 = vadd.f32 0.0, %v2546
    %v2548 = vpop.f32.mrb[0].mxu0
    %v2549 = vadd.f32 0.0, %v2548
    %2550 = vmatprep.mubr.bf16.mxu0 0
    %2551 = vmatmul.mubr.bf16.gmra.mrb[0].mxu0 %v2431
    %v2552 = vpop.f32.mrb[0].mxu0
    %v2553 = vadd.f32 0.0, %v2552
    %v2554 = vpop.f32.mrb[0].mxu0
    %v2555 = vadd.f32 0.0, %v2554
    %v2556 = vpop.f32.mrb[0].mxu0
    %v2557 = vpop.f32.mrb[0].mxu0
    %2558 = vdwg.mxu0
    %2559 = vmatprep.subr.bf16.mxu0 %v2449
    %2560 = vmatpush1.bf16.msra.mxu0 %v2446
    %2561 = vmatprep.subr.bf16.mxu0 0
    %2562 = vmatpush1.bf16.msra.mxu0 0
    %2563 = vmatprep.subr.bf16.mxu0 0
    %2564 = vmatpush1.bf16.msra.mxu0 0
    %2565 = vmatprep.subr.bf16.mxu0 0
    %2566 = vmatpush1.bf16.msra.mxu0 0
    %2567 = vmatprep.subr.bf16.mxu0 0
    %2568 = vmatpush1.bf16.msra.mxu0 0
    %2569 = vmatprep.subr.bf16.mxu0 0
    %2570 = vmatpush1.bf16.msra.mxu0 0
    %2571 = vmatprep.subr.bf16.mxu0 0
    %2572 = vmatpush1.bf16.msra.mxu0 0
    %2573 = vmatprep.subr.bf16.mxu0 0
    %2574 = vmatpush1.bf16.msra.mxu0 0
    %2575 = vmatprep.subr.bf16.mxu0 0
    %2576 = vmatpush1.bf16.msra.mxu0 0
    %2577 = vmatprep.subr.bf16.mxu0 0
    %2578 = vmatpush1.bf16.msra.mxu0 0
    %2579 = vmatprep.subr.bf16.mxu0 0
    %2580 = vmatpush1.bf16.msra.mxu0 0
    %2581 = vmatprep.subr.bf16.mxu0 0
    %2582 = vmatpush1.bf16.msra.mxu0 0
    %2583 = vmatprep.subr.bf16.mxu0 0
    %2584 = vmatpush1.bf16.msra.mxu0 0
    %2585 = vmatprep.subr.bf16.mxu0 0
    %2586 = vmatpush1.bf16.msra.mxu0 0
    %2587 = vmatprep.subr.bf16.mxu0 0
    %2588 = vmatpush1.bf16.msra.mxu0 0
    %2589 = vmatprep.subr.bf16.mxu0 0
    %2590 = vmatpush1.bf16.msra.mxu0 0
    %2591 = vmatprep.mubr.bf16.mxu0 0
    %2592 = vmatmul.mubr.bf16.gmra.mrb[0].mxu0 %v2428
    %v2593 = vpop.f32.mrb[0].mxu0
    %v2594 = vadd.f32 0.0, %v2593
    %v2595 = vpop.f32.mrb[0].mxu0
    %v2596 = vadd.f32 0.0, %v2595
    %v2597 = vpop.f32.mrb[0].mxu0
    %v2598 = vadd.f32 0.0, %v2597
    %v2599 = vpop.f32.mrb[0].mxu0
    %v2600 = vadd.f32 0.0, %v2599
    %2601 = vmatprep.mubr.bf16.mxu0 0
    %2602 = vmatmul.mubr.bf16.gmra.mrb[0].mxu0 %v2431
    %v2603 = vpop.f32.mrb[0].mxu0
    %v2604 = vadd.f32 0.0, %v2603
    %v2605 = vpop.f32.mrb[0].mxu0
    %v2606 = vadd.f32 0.0, %v2605
    %v2607 = vpop.f32.mrb[0].mxu0
    %v2608 = vpop.f32.mrb[0].mxu0
    %2609 = vdwg.mxu0
    %2610 = vmatprep.subr.bf16.mxu0 %v2455
    %2611 = vmatpush1.bf16.msra.mxu0 %v2452
    %2612 = vmatprep.subr.bf16.mxu0 0
    %2613 = vmatpush1.bf16.msra.mxu0 0
    %2614 = vmatprep.subr.bf16.mxu0 0
    %2615 = vmatpush1.bf16.msra.mxu0 0
    %2616 = vmatprep.subr.bf16.mxu0 0
    %2617 = vmatpush1.bf16.msra.mxu0 0
    %2618 = vmatprep.subr.bf16.mxu0 0
    %2619 = vmatpush1.bf16.msra.mxu0 0
    %2620 = vmatprep.subr.bf16.mxu0 0
    %2621 = vmatpush1.bf16.msra.mxu0 0
    %2622 = vmatprep.subr.bf16.mxu0 0
    %2623 = vmatpush1.bf16.msra.mxu0 0
    %2624 = vmatprep.subr.bf16.mxu0 0
    %2625 = vmatpush1.bf16.msra.mxu0 0
    %2626 = vmatprep.subr.bf16.mxu0 0
    %2627 = vmatpush1.bf16.msra.mxu0 0
    %2628 = vmatprep.subr.bf16.mxu0 0
    %2629 = vmatpush1.bf16.msra.mxu0 0
    %2630 = vmatprep.subr.bf16.mxu0 0
    %2631 = vmatpush1.bf16.msra.mxu0 0
    %2632 = vmatprep.subr.bf16.mxu0 0
    %2633 = vmatpush1.bf16.msra.mxu0 0
    %2634 = vmatprep.subr.bf16.mxu0 0
    %2635 = vmatpush1.bf16.msra.mxu0 0
    %2636 = vmatprep.subr.bf16.mxu0 0
    %2637 = vmatpush1.bf16.msra.mxu0 0
    %2638 = vmatprep.subr.bf16.mxu0 0
    %2639 = vmatpush1.bf16.msra.mxu0 0
    %2640 = vmatprep.subr.bf16.mxu0 0
    %2641 = vmatpush1.bf16.msra.mxu0 0
    %2642 = vmatprep.mubr.bf16.mxu0 0
    %2643 = vmatmul.mubr.bf16.gmra.mrb[0].mxu0 %v2428
    %v2644 = vpop.f32.mrb[0].mxu0
    %v2645 = vadd.f32 0.0, %v2644
    %v2646 = vpop.f32.mrb[0].mxu0
    %v2647 = vadd.f32 0.0, %v2646
    %v2648 = vpop.f32.mrb[0].mxu0
    %v2649 = vadd.f32 0.0, %v2648
    %v2650 = vpop.f32.mrb[0].mxu0
    %v2651 = vadd.f32 0.0, %v2650
    %2652 = vmatprep.mubr.bf16.mxu0 0
    %2653 = vmatmul.mubr.bf16.gmra.mrb[0].mxu0 %v2431
    %v2654 = vpop.f32.mrb[0].mxu0
    %v2655 = vadd.f32 0.0, %v2654
    %v2656 = vpop.f32.mrb[0].mxu0
    %v2657 = vadd.f32 0.0, %v2656
    %v2658 = vpop.f32.mrb[0].mxu0
    %v2659 = vpop.f32.mrb[0].mxu0
    %2660 = vdwg.mxu0
    %v2661 = vadd.f32 %v2391, %v2492
    %v2662 = vadd.f32 %v2392, %v2494
    %v2663 = vadd.f32 %v2393, %v2543
    %v2664 = vadd.f32 %v2394, %v2545
    %v2665 = vadd.f32 %v2395, %v2594
    %v2666 = vadd.f32 %v2396, %v2596
    %v2667 = vadd.f32 %v2397, %v2645
    %v2668 = vadd.f32 %v2398, %v2647
    %v2669 = vadd.f32 %v2399, %v2496
    %v2670 = vadd.f32 %v2400, %v2498
    %v2671 = vadd.f32 %v2401, %v2547
    %v2672 = vadd.f32 %v2402, %v2549
    %v2673 = vadd.f32 %v2403, %v2598
    %v2674 = vadd.f32 %v2404, %v2600
    %v2675 = vadd.f32 %v2405, %v2649
    %v2676 = vadd.f32 %v2406, %v2651
    %v2677 = vadd.f32 %v2407, %v2502
    %v2678 = vadd.f32 %v2408, %v2504
    %v2679 = vadd.f32 %v2409, %v2553
    %v2680 = vadd.f32 %v2410, %v2555
    %v2681 = vadd.f32 %v2411, %v2604
    %v2682 = vadd.f32 %v2412, %v2606
    %v2683 = vadd.f32 %v2413, %v2655
    %v2684 = vadd.f32 %v2414, %v2657
    %v2685 = vpack.c.bf16 %v1154, %v1154
    %v2686 = vpack.c.bf16 %v1155, %v1155
    %v2687 = vpack.c.bf16 %v1156, %v1156
    %v2688 = vpack.c.bf16 %v1157, %v1157
    %v2689 = vpack.c.bf16 %v1158, %v1158
    %v2690 = vpack.c.bf16 %v1159, %v1159
    %v2691 = vpack.c.bf16 %v1160, %v1160
    %v2692 = vpack.c.bf16 %v1161, %v1161
    %2693 = vrot.lane.b32.xlu0 %v1670, 112
    %v2694 = vpop.permute.xlu0 %2693
    %2695 = vrot.lane.b32.xlu0 %v1671, 112
    %v2696 = vpop.permute.xlu0 %2695
    %v2698 = vsel %vm854, %v2694, 0
    %v2701 = vsel %vm854, %v2696, 0
    %v2704 = vsel %vm1682, %v2685, 0
    %v2707 = vsel %vm1682, %v2686, 0
    %v2710 = vsel %vm1682, %v2687, 0
    %v2713 = vsel %vm1682, %v2688, 0
    %v2716 = vsel %vm1682, %v2689, 0
    %v2719 = vsel %vm1682, %v2690, 0
    %v2722 = vsel %vm1682, %v2691, 0
    %v2725 = vsel %vm1682, %v2692, 0
    %2727 = vmatprep.subr.bf16.mxu0 %v2707
    %2728 = vmatpush1.bf16.msra.mxu0 %v2704
    %2729 = vmatprep.subr.bf16.mxu0 0
    %2730 = vmatpush1.bf16.msra.mxu0 0
    %2731 = vmatprep.subr.bf16.mxu0 0
    %2732 = vmatpush1.bf16.msra.mxu0 0
    %2733 = vmatprep.subr.bf16.mxu0 0
    %2734 = vmatpush1.bf16.msra.mxu0 0
    %2735 = vmatprep.subr.bf16.mxu0 0
    %2736 = vmatpush1.bf16.msra.mxu0 0
    %2737 = vmatprep.subr.bf16.mxu0 0
    %2738 = vmatpush1.bf16.msra.mxu0 0
    %2739 = vmatprep.subr.bf16.mxu0 0
    %2740 = vmatpush1.bf16.msra.mxu0 0
    %2741 = vmatprep.subr.bf16.mxu0 0
    %2742 = vmatpush1.bf16.msra.mxu0 0
    %2743 = vmatprep.subr.bf16.mxu0 0
    %2744 = vmatpush1.bf16.msra.mxu0 0
    %2745 = vmatprep.subr.bf16.mxu0 0
    %2746 = vmatpush1.bf16.msra.mxu0 0
    %2747 = vmatprep.subr.bf16.mxu0 0
    %2748 = vmatpush1.bf16.msra.mxu0 0
    %2749 = vmatprep.subr.bf16.mxu0 0
    %2750 = vmatpush1.bf16.msra.mxu0 0
    %2751 = vmatprep.subr.bf16.mxu0 0
    %2752 = vmatpush1.bf16.msra.mxu0 0
    %2753 = vmatprep.subr.bf16.mxu0 0
    %2754 = vmatpush1.bf16.msra.mxu0 0
    %2755 = vmatprep.subr.bf16.mxu0 0
    %2756 = vmatpush1.bf16.msra.mxu0 0
    %2757 = vmatprep.subr.bf16.mxu0 0
    %2758 = vmatpush1.bf16.msra.mxu0 0
    %2759 = vmatprep.mubr.bf16.mxu0 0
    %2760 = vmatmul.mubr.bf16.gmra.mrb[0].mxu0 %v2698
    %v2761 = vpop.f32.mrb[0].mxu0
    %v2762 = vadd.f32 0.0, %v2761
    %v2763 = vpop.f32.mrb[0].mxu0
    %v2764 = vadd.f32 0.0, %v2763
    %v2765 = vpop.f32.mrb[0].mxu0
    %v2766 = vadd.f32 0.0, %v2765
    %v2767 = vpop.f32.mrb[0].mxu0
    %v2768 = vadd.f32 0.0, %v2767
    %2769 = vmatprep.mubr.bf16.mxu0 0
    %2770 = vmatmul.mubr.bf16.gmra.mrb[0].mxu0 %v2701
    %v2771 = vpop.f32.mrb[0].mxu0
    %v2772 = vadd.f32 0.0, %v2771
    %v2773 = vpop.f32.mrb[0].mxu0
    %v2774 = vadd.f32 0.0, %v2773
    %v2775 = vpop.f32.mrb[0].mxu0
    %v2776 = vpop.f32.mrb[0].mxu0
    %2777 = vdwg.mxu0
    %2778 = vmatprep.subr.bf16.mxu0 %v2713
    %2779 = vmatpush1.bf16.msra.mxu0 %v2710
    %2780 = vmatprep.subr.bf16.mxu0 0
    %2781 = vmatpush1.bf16.msra.mxu0 0
    %2782 = vmatprep.subr.bf16.mxu0 0
    %2783 = vmatpush1.bf16.msra.mxu0 0
    %2784 = vmatprep.subr.bf16.mxu0 0
    %2785 = vmatpush1.bf16.msra.mxu0 0
    %2786 = vmatprep.subr.bf16.mxu0 0
    %2787 = vmatpush1.bf16.msra.mxu0 0
    %2788 = vmatprep.subr.bf16.mxu0 0
    %2789 = vmatpush1.bf16.msra.mxu0 0
    %2790 = vmatprep.subr.bf16.mxu0 0
    %2791 = vmatpush1.bf16.msra.mxu0 0
    %2792 = vmatprep.subr.bf16.mxu0 0
    %2793 = vmatpush1.bf16.msra.mxu0 0
    %2794 = vmatprep.subr.bf16.mxu0 0
    %2795 = vmatpush1.bf16.msra.mxu0 0
    %2796 = vmatprep.subr.bf16.mxu0 0
    %2797 = vmatpush1.bf16.msra.mxu0 0
    %2798 = vmatprep.subr.bf16.mxu0 0
    %2799 = vmatpush1.bf16.msra.mxu0 0
    %2800 = vmatprep.subr.bf16.mxu0 0
    %2801 = vmatpush1.bf16.msra.mxu0 0
    %2802 = vmatprep.subr.bf16.mxu0 0
    %2803 = vmatpush1.bf16.msra.mxu0 0
    %2804 = vmatprep.subr.bf16.mxu0 0
    %2805 = vmatpush1.bf16.msra.mxu0 0
    %2806 = vmatprep.subr.bf16.mxu0 0
    %2807 = vmatpush1.bf16.msra.mxu0 0
    %2808 = vmatprep.subr.bf16.mxu0 0
    %2809 = vmatpush1.bf16.msra.mxu0 0
    %2810 = vmatprep.mubr.bf16.mxu0 0
    %2811 = vmatmul.mubr.bf16.gmra.mrb[0].mxu0 %v2698
    %v2812 = vpop.f32.mrb[0].mxu0
    %v2813 = vadd.f32 0.0, %v2812
    %v2814 = vpop.f32.mrb[0].mxu0
    %v2815 = vadd.f32 0.0, %v2814
    %v2816 = vpop.f32.mrb[0].mxu0
    %v2817 = vadd.f32 0.0, %v2816
    %v2818 = vpop.f32.mrb[0].mxu0
    %v2819 = vadd.f32 0.0, %v2818
    %2820 = vmatprep.mubr.bf16.mxu0 0
    %2821 = vmatmul.mubr.bf16.gmra.mrb[0].mxu0 %v2701
    %v2822 = vpop.f32.mrb[0].mxu0
    %v2823 = vadd.f32 0.0, %v2822
    %v2824 = vpop.f32.mrb[0].mxu0
    %v2825 = vadd.f32 0.0, %v2824
    %v2826 = vpop.f32.mrb[0].mxu0
    %v2827 = vpop.f32.mrb[0].mxu0
    %2828 = vdwg.mxu0
    %2829 = vmatprep.subr.bf16.mxu0 %v2719
    %2830 = vmatpush1.bf16.msra.mxu0 %v2716
    %2831 = vmatprep.subr.bf16.mxu0 0
    %2832 = vmatpush1.bf16.msra.mxu0 0
    %2833 = vmatprep.subr.bf16.mxu0 0
    %2834 = vmatpush1.bf16.msra.mxu0 0
    %2835 = vmatprep.subr.bf16.mxu0 0
    %2836 = vmatpush1.bf16.msra.mxu0 0
    %2837 = vmatprep.subr.bf16.mxu0 0
    %2838 = vmatpush1.bf16.msra.mxu0 0
    %2839 = vmatprep.subr.bf16.mxu0 0
    %2840 = vmatpush1.bf16.msra.mxu0 0
    %2841 = vmatprep.subr.bf16.mxu0 0
    %2842 = vmatpush1.bf16.msra.mxu0 0
    %2843 = vmatprep.subr.bf16.mxu0 0
    %2844 = vmatpush1.bf16.msra.mxu0 0
    %2845 = vmatprep.subr.bf16.mxu0 0
    %2846 = vmatpush1.bf16.msra.mxu0 0
    %2847 = vmatprep.subr.bf16.mxu0 0
    %2848 = vmatpush1.bf16.msra.mxu0 0
    %2849 = vmatprep.subr.bf16.mxu0 0
    %2850 = vmatpush1.bf16.msra.mxu0 0
    %2851 = vmatprep.subr.bf16.mxu0 0
    %2852 = vmatpush1.bf16.msra.mxu0 0
    %2853 = vmatprep.subr.bf16.mxu0 0
    %2854 = vmatpush1.bf16.msra.mxu0 0
    %2855 = vmatprep.subr.bf16.mxu0 0
    %2856 = vmatpush1.bf16.msra.mxu0 0
    %2857 = vmatprep.subr.bf16.mxu0 0
    %2858 = vmatpush1.bf16.msra.mxu0 0
    %2859 = vmatprep.subr.bf16.mxu0 0
    %2860 = vmatpush1.bf16.msra.mxu0 0
    %2861 = vmatprep.mubr.bf16.mxu0 0
    %2862 = vmatmul.mubr.bf16.gmra.mrb[0].mxu0 %v2698
    %v2863 = vpop.f32.mrb[0].mxu0
    %v2864 = vadd.f32 0.0, %v2863
    %v2865 = vpop.f32.mrb[0].mxu0
    %v2866 = vadd.f32 0.0, %v2865
    %v2867 = vpop.f32.mrb[0].mxu0
    %v2868 = vadd.f32 0.0, %v2867
    %v2869 = vpop.f32.mrb[0].mxu0
    %v2870 = vadd.f32 0.0, %v2869
    %2871 = vmatprep.mubr.bf16.mxu0 0
    %2872 = vmatmul.mubr.bf16.gmra.mrb[0].mxu0 %v2701
    %v2873 = vpop.f32.mrb[0].mxu0
    %v2874 = vadd.f32 0.0, %v2873
    %v2875 = vpop.f32.mrb[0].mxu0
    %v2876 = vadd.f32 0.0, %v2875
    %v2877 = vpop.f32.mrb[0].mxu0
    %v2878 = vpop.f32.mrb[0].mxu0
    %2879 = vdwg.mxu0
    %2880 = vmatprep.subr.bf16.mxu0 %v2725
    %2881 = vmatpush1.bf16.msra.mxu0 %v2722
    %2882 = vmatprep.subr.bf16.mxu0 0
    %2883 = vmatpush1.bf16.msra.mxu0 0
    %2884 = vmatprep.subr.bf16.mxu0 0
    %2885 = vmatpush1.bf16.msra.mxu0 0
    %2886 = vmatprep.subr.bf16.mxu0 0
    %2887 = vmatpush1.bf16.msra.mxu0 0
    %2888 = vmatprep.subr.bf16.mxu0 0
    %2889 = vmatpush1.bf16.msra.mxu0 0
    %2890 = vmatprep.subr.bf16.mxu0 0
    %2891 = vmatpush1.bf16.msra.mxu0 0
    %2892 = vmatprep.subr.bf16.mxu0 0
    %2893 = vmatpush1.bf16.msra.mxu0 0
    %2894 = vmatprep.subr.bf16.mxu0 0
    %2895 = vmatpush1.bf16.msra.mxu0 0
    %2896 = vmatprep.subr.bf16.mxu0 0
    %2897 = vmatpush1.bf16.msra.mxu0 0
    %2898 = vmatprep.subr.bf16.mxu0 0
    %2899 = vmatpush1.bf16.msra.mxu0 0
    %2900 = vmatprep.subr.bf16.mxu0 0
    %2901 = vmatpush1.bf16.msra.mxu0 0
    %2902 = vmatprep.subr.bf16.mxu0 0
    %2903 = vmatpush1.bf16.msra.mxu0 0
    %2904 = vmatprep.subr.bf16.mxu0 0
    %2905 = vmatpush1.bf16.msra.mxu0 0
    %2906 = vmatprep.subr.bf16.mxu0 0
    %2907 = vmatpush1.bf16.msra.mxu0 0
    %2908 = vmatprep.subr.bf16.mxu0 0
    %2909 = vmatpush1.bf16.msra.mxu0 0
    %2910 = vmatprep.subr.bf16.mxu0 0
    %2911 = vmatpush1.bf16.msra.mxu0 0
    %2912 = vmatprep.mubr.bf16.mxu0 0
    %2913 = vmatmul.mubr.bf16.gmra.mrb[0].mxu0 %v2698
    %v2914 = vpop.f32.mrb[0].mxu0
    %v2915 = vadd.f32 0.0, %v2914
    %v2916 = vpop.f32.mrb[0].mxu0
    %v2917 = vadd.f32 0.0, %v2916
    %v2918 = vpop.f32.mrb[0].mxu0
    %v2919 = vadd.f32 0.0, %v2918
    %v2920 = vpop.f32.mrb[0].mxu0
    %v2921 = vadd.f32 0.0, %v2920
    %2922 = vmatprep.mubr.bf16.mxu0 0
    %2923 = vmatmul.mubr.bf16.gmra.mrb[0].mxu0 %v2701
    %v2924 = vpop.f32.mrb[0].mxu0
    %v2925 = vadd.f32 0.0, %v2924
    %v2926 = vpop.f32.mrb[0].mxu0
    %v2927 = vadd.f32 0.0, %v2926
    %v2928 = vpop.f32.mrb[0].mxu0
    %v2929 = vpop.f32.mrb[0].mxu0
    %2930 = vdwg.mxu0
    %v2931 = vadd.f32 %v2661, %v2762
    %v2932 = vadd.f32 %v2662, %v2764
    %v2933 = vadd.f32 %v2663, %v2813
    %v2934 = vadd.f32 %v2664, %v2815
    %v2935 = vadd.f32 %v2665, %v2864
    %v2936 = vadd.f32 %v2666, %v2866
    %v2937 = vadd.f32 %v2667, %v2915
    %v2938 = vadd.f32 %v2668, %v2917
    %v2939 = vadd.f32 %v2669, %v2766
    %v2940 = vadd.f32 %v2670, %v2768
    %v2941 = vadd.f32 %v2671, %v2817
    %v2942 = vadd.f32 %v2672, %v2819
    %v2943 = vadd.f32 %v2673, %v2868
    %v2944 = vadd.f32 %v2674, %v2870
    %v2945 = vadd.f32 %v2675, %v2919
    %v2946 = vadd.f32 %v2676, %v2921
    %v2947 = vadd.f32 %v2677, %v2772
    %v2948 = vadd.f32 %v2678, %v2774
    %v2949 = vadd.f32 %v2679, %v2823
    %v2950 = vadd.f32 %v2680, %v2825
    %v2951 = vadd.f32 %v2681, %v2874
    %v2952 = vadd.f32 %v2682, %v2876
    %v2953 = vadd.f32 %v2683, %v2925
    %v2954 = vadd.f32 %v2684, %v2927
    %v2955 = vpack.c.bf16 %v736, %v736
    %v2956 = vpack.c.bf16 %v737, %v737
    %v2957 = vpack.c.bf16 %v738, %v738
    %v2958 = vpack.c.bf16 %v739, %v739
    %v2959 = vpack.c.bf16 %v740, %v740
    %v2960 = vpack.c.bf16 %v741, %v741
    %v2961 = vpack.c.bf16 %v742, %v742
    %v2962 = vpack.c.bf16 %v743, %v743
    %2963 = vrot.lane.b32.xlu0 %v1670, 108
    %v2964 = vpop.permute.xlu0 %2963
    %2965 = vrot.lane.b32.xlu0 %v1671, 108
    %v2966 = vpop.permute.xlu0 %2965
    %v2968 = vsel %vm854, %v2964, 0
    %v2971 = vsel %vm854, %v2966, 0
    %v2974 = vsel %vm1682, %v2955, 0
    %v2977 = vsel %vm1682, %v2956, 0
    %v2980 = vsel %vm1682, %v2957, 0
    %v2983 = vsel %vm1682, %v2958, 0
    %v2986 = vsel %vm1682, %v2959, 0
    %v2989 = vsel %vm1682, %v2960, 0
    %v2992 = vsel %vm1682, %v2961, 0
    %v2995 = vsel %vm1682, %v2962, 0
    %2997 = vmatprep.subr.bf16.mxu0 %v2977
    %2998 = vmatpush1.bf16.msra.mxu0 %v2974
    %2999 = vmatprep.subr.bf16.mxu0 0
    %3000 = vmatpush1.bf16.msra.mxu0 0
    %3001 = vmatprep.subr.bf16.mxu0 0
    %3002 = vmatpush1.bf16.msra.mxu0 0
    %3003 = vmatprep.subr.bf16.mxu0 0
    %3004 = vmatpush1.bf16.msra.mxu0 0
    %3005 = vmatprep.subr.bf16.mxu0 0
    %3006 = vmatpush1.bf16.msra.mxu0 0
    %3007 = vmatprep.subr.bf16.mxu0 0
    %3008 = vmatpush1.bf16.msra.mxu0 0
    %3009 = vmatprep.subr.bf16.mxu0 0
    %3010 = vmatpush1.bf16.msra.mxu0 0
    %3011 = vmatprep.subr.bf16.mxu0 0
    %3012 = vmatpush1.bf16.msra.mxu0 0
    %3013 = vmatprep.subr.bf16.mxu0 0
    %3014 = vmatpush1.bf16.msra.mxu0 0
    %3015 = vmatprep.subr.bf16.mxu0 0
    %3016 = vmatpush1.bf16.msra.mxu0 0
    %3017 = vmatprep.subr.bf16.mxu0 0
    %3018 = vmatpush1.bf16.msra.mxu0 0
    %3019 = vmatprep.subr.bf16.mxu0 0
    %3020 = vmatpush1.bf16.msra.mxu0 0
    %3021 = vmatprep.subr.bf16.mxu0 0
    %3022 = vmatpush1.bf16.msra.mxu0 0
    %3023 = vmatprep.subr.bf16.mxu0 0
    %3024 = vmatpush1.bf16.msra.mxu0 0
    %3025 = vmatprep.subr.bf16.mxu0 0
    %3026 = vmatpush1.bf16.msra.mxu0 0
    %3027 = vmatprep.subr.bf16.mxu0 0
    %3028 = vmatpush1.bf16.msra.mxu0 0
    %3029 = vmatprep.mubr.bf16.mxu0 0
    %3030 = vmatmul.mubr.bf16.gmra.mrb[0].mxu0 %v2968
    %v3031 = vpop.f32.mrb[0].mxu0
    %v3032 = vadd.f32 0.0, %v3031
    %v3033 = vpop.f32.mrb[0].mxu0
    %v3034 = vadd.f32 0.0, %v3033
    %v3035 = vpop.f32.mrb[0].mxu0
    %v3036 = vadd.f32 0.0, %v3035
    %v3037 = vpop.f32.mrb[0].mxu0
    %v3038 = vadd.f32 0.0, %v3037
    %3039 = vmatprep.mubr.bf16.mxu0 0
    %3040 = vmatmul.mubr.bf16.gmra.mrb[0].mxu0 %v2971
    %v3041 = vpop.f32.mrb[0].mxu0
    %v3042 = vadd.f32 0.0, %v3041
    %v3043 = vpop.f32.mrb[0].mxu0
    %v3044 = vadd.f32 0.0, %v3043
    %v3045 = vpop.f32.mrb[0].mxu0
    %v3046 = vpop.f32.mrb[0].mxu0
    %3047 = vdwg.mxu0
    %3048 = vmatprep.subr.bf16.mxu0 %v2983
    %3049 = vmatpush1.bf16.msra.mxu0 %v2980
    %3050 = vmatprep.subr.bf16.mxu0 0
    %3051 = vmatpush1.bf16.msra.mxu0 0
    %3052 = vmatprep.subr.bf16.mxu0 0
    %3053 = vmatpush1.bf16.msra.mxu0 0
    %3054 = vmatprep.subr.bf16.mxu0 0
    %3055 = vmatpush1.bf16.msra.mxu0 0
    %3056 = vmatprep.subr.bf16.mxu0 0
    %3057 = vmatpush1.bf16.msra.mxu0 0
    %3058 = vmatprep.subr.bf16.mxu0 0
    %3059 = vmatpush1.bf16.msra.mxu0 0
    %3060 = vmatprep.subr.bf16.mxu0 0
    %3061 = vmatpush1.bf16.msra.mxu0 0
    %3062 = vmatprep.subr.bf16.mxu0 0
    %3063 = vmatpush1.bf16.msra.mxu0 0
    %3064 = vmatprep.subr.bf16.mxu0 0
    %3065 = vmatpush1.bf16.msra.mxu0 0
    %3066 = vmatprep.subr.bf16.mxu0 0
    %3067 = vmatpush1.bf16.msra.mxu0 0
    %3068 = vmatprep.subr.bf16.mxu0 0
    %3069 = vmatpush1.bf16.msra.mxu0 0
    %3070 = vmatprep.subr.bf16.mxu0 0
    %3071 = vmatpush1.bf16.msra.mxu0 0
    %3072 = vmatprep.subr.bf16.mxu0 0
    %3073 = vmatpush1.bf16.msra.mxu0 0
    %3074 = vmatprep.subr.bf16.mxu0 0
    %3075 = vmatpush1.bf16.msra.mxu0 0
    %3076 = vmatprep.subr.bf16.mxu0 0
    %3077 = vmatpush1.bf16.msra.mxu0 0
    %3078 = vmatprep.subr.bf16.mxu0 0
    %3079 = vmatpush1.bf16.msra.mxu0 0
    %3080 = vmatprep.mubr.bf16.mxu0 0
    %3081 = vmatmul.mubr.bf16.gmra.mrb[0].mxu0 %v2968
    %v3082 = vpop.f32.mrb[0].mxu0
    %v3083 = vadd.f32 0.0, %v3082
    %v3084 = vpop.f32.mrb[0].mxu0
    %v3085 = vadd.f32 0.0, %v3084
    %v3086 = vpop.f32.mrb[0].mxu0
    %v3087 = vadd.f32 0.0, %v3086
    %v3088 = vpop.f32.mrb[0].mxu0
    %v3089 = vadd.f32 0.0, %v3088
    %3090 = vmatprep.mubr.bf16.mxu0 0
    %3091 = vmatmul.mubr.bf16.gmra.mrb[0].mxu0 %v2971
    %v3092 = vpop.f32.mrb[0].mxu0
    %v3093 = vadd.f32 0.0, %v3092
    %v3094 = vpop.f32.mrb[0].mxu0
    %v3095 = vadd.f32 0.0, %v3094
    %v3096 = vpop.f32.mrb[0].mxu0
    %v3097 = vpop.f32.mrb[0].mxu0
    %3098 = vdwg.mxu0
    %3099 = vmatprep.subr.bf16.mxu0 %v2989
    %3100 = vmatpush1.bf16.msra.mxu0 %v2986
    %3101 = vmatprep.subr.bf16.mxu0 0
    %3102 = vmatpush1.bf16.msra.mxu0 0
    %3103 = vmatprep.subr.bf16.mxu0 0
    %3104 = vmatpush1.bf16.msra.mxu0 0
    %3105 = vmatprep.subr.bf16.mxu0 0
    %3106 = vmatpush1.bf16.msra.mxu0 0
    %3107 = vmatprep.subr.bf16.mxu0 0
    %3108 = vmatpush1.bf16.msra.mxu0 0
    %3109 = vmatprep.subr.bf16.mxu0 0
    %3110 = vmatpush1.bf16.msra.mxu0 0
    %3111 = vmatprep.subr.bf16.mxu0 0
    %3112 = vmatpush1.bf16.msra.mxu0 0
    %3113 = vmatprep.subr.bf16.mxu0 0
    %3114 = vmatpush1.bf16.msra.mxu0 0
    %3115 = vmatprep.subr.bf16.mxu0 0
    %3116 = vmatpush1.bf16.msra.mxu0 0
    %3117 = vmatprep.subr.bf16.mxu0 0
    %3118 = vmatpush1.bf16.msra.mxu0 0
    %3119 = vmatprep.subr.bf16.mxu0 0
    %3120 = vmatpush1.bf16.msra.mxu0 0
    %3121 = vmatprep.subr.bf16.mxu0 0
    %3122 = vmatpush1.bf16.msra.mxu0 0
    %3123 = vmatprep.subr.bf16.mxu0 0
    %3124 = vmatpush1.bf16.msra.mxu0 0
    %3125 = vmatprep.subr.bf16.mxu0 0
    %3126 = vmatpush1.bf16.msra.mxu0 0
    %3127 = vmatprep.subr.bf16.mxu0 0
    %3128 = vmatpush1.bf16.msra.mxu0 0
    %3129 = vmatprep.subr.bf16.mxu0 0
    %3130 = vmatpush1.bf16.msra.mxu0 0
    %3131 = vmatprep.mubr.bf16.mxu0 0
    %3132 = vmatmul.mubr.bf16.gmra.mrb[0].mxu0 %v2968
    %v3133 = vpop.f32.mrb[0].mxu0
    %v3134 = vadd.f32 0.0, %v3133
    %v3135 = vpop.f32.mrb[0].mxu0
    %v3136 = vadd.f32 0.0, %v3135
    %v3137 = vpop.f32.mrb[0].mxu0
    %v3138 = vadd.f32 0.0, %v3137
    %v3139 = vpop.f32.mrb[0].mxu0
    %v3140 = vadd.f32 0.0, %v3139
    %3141 = vmatprep.mubr.bf16.mxu0 0
    %3142 = vmatmul.mubr.bf16.gmra.mrb[0].mxu0 %v2971
    %v3143 = vpop.f32.mrb[0].mxu0
    %v3144 = vadd.f32 0.0, %v3143
    %v3145 = vpop.f32.mrb[0].mxu0
    %v3146 = vadd.f32 0.0, %v3145
    %v3147 = vpop.f32.mrb[0].mxu0
    %v3148 = vpop.f32.mrb[0].mxu0
    %3149 = vdwg.mxu0
    %3150 = vmatprep.subr.bf16.mxu0 %v2995
    %3151 = vmatpush1.bf16.msra.mxu0 %v2992
    %3152 = vmatprep.subr.bf16.mxu0 0
    %3153 = vmatpush1.bf16.msra.mxu0 0
    %3154 = vmatprep.subr.bf16.mxu0 0
    %3155 = vmatpush1.bf16.msra.mxu0 0
    %3156 = vmatprep.subr.bf16.mxu0 0
    %3157 = vmatpush1.bf16.msra.mxu0 0
    %3158 = vmatprep.subr.bf16.mxu0 0
    %3159 = vmatpush1.bf16.msra.mxu0 0
    %3160 = vmatprep.subr.bf16.mxu0 0
    %3161 = vmatpush1.bf16.msra.mxu0 0
    %3162 = vmatprep.subr.bf16.mxu0 0
    %3163 = vmatpush1.bf16.msra.mxu0 0
    %3164 = vmatprep.subr.bf16.mxu0 0
    %3165 = vmatpush1.bf16.msra.mxu0 0
    %3166 = vmatprep.subr.bf16.mxu0 0
    %3167 = vmatpush1.bf16.msra.mxu0 0
    %3168 = vmatprep.subr.bf16.mxu0 0
    %3169 = vmatpush1.bf16.msra.mxu0 0
    %3170 = vmatprep.subr.bf16.mxu0 0
    %3171 = vmatpush1.bf16.msra.mxu0 0
    %3172 = vmatprep.subr.bf16.mxu0 0
    %3173 = vmatpush1.bf16.msra.mxu0 0
    %3174 = vmatprep.subr.bf16.mxu0 0
    %3175 = vmatpush1.bf16.msra.mxu0 0
    %3176 = vmatprep.subr.bf16.mxu0 0
    %3177 = vmatpush1.bf16.msra.mxu0 0
    %3178 = vmatprep.subr.bf16.mxu0 0
    %3179 = vmatpush1.bf16.msra.mxu0 0
    %3180 = vmatprep.subr.bf16.mxu0 0
    %3181 = vmatpush1.bf16.msra.mxu0 0
    %3182 = vmatprep.mubr.bf16.mxu0 0
    %3183 = vmatmul.mubr.bf16.gmra.mrb[0].mxu0 %v2968
    %v3184 = vpop.f32.mrb[0].mxu0
    %v3185 = vadd.f32 0.0, %v3184
    %v3186 = vpop.f32.mrb[0].mxu0
    %v3187 = vadd.f32 0.0, %v3186
    %v3188 = vpop.f32.mrb[0].mxu0
    %v3189 = vadd.f32 0.0, %v3188
    %v3190 = vpop.f32.mrb[0].mxu0
    %v3191 = vadd.f32 0.0, %v3190
    %3192 = vmatprep.mubr.bf16.mxu0 0
    %3193 = vmatmul.mubr.bf16.gmra.mrb[0].mxu0 %v2971
    %v3194 = vpop.f32.mrb[0].mxu0
    %v3195 = vadd.f32 0.0, %v3194
    %v3196 = vpop.f32.mrb[0].mxu0
    %v3197 = vadd.f32 0.0, %v3196
    %v3198 = vpop.f32.mrb[0].mxu0
    %v3199 = vpop.f32.mrb[0].mxu0
    %3200 = vdwg.mxu0
    %v3201 = vadd.f32 %v2931, %v3032
    %v3202 = vadd.f32 %v2932, %v3034
    %v3203 = vadd.f32 %v2933, %v3083
    %v3204 = vadd.f32 %v2934, %v3085
    %v3205 = vadd.f32 %v2935, %v3134
    %v3206 = vadd.f32 %v2936, %v3136
    %v3207 = vadd.f32 %v2937, %v3185
    %v3208 = vadd.f32 %v2938, %v3187
    %v3209 = vadd.f32 %v2939, %v3036
    %v3210 = vadd.f32 %v2940, %v3038
    %v3211 = vadd.f32 %v2941, %v3087
    %v3212 = vadd.f32 %v2942, %v3089
    %v3213 = vadd.f32 %v2943, %v3138
    %v3214 = vadd.f32 %v2944, %v3140
    %v3215 = vadd.f32 %v2945, %v3189
    %v3216 = vadd.f32 %v2946, %v3191
    %v3217 = vadd.f32 %v2947, %v3042
    %v3218 = vadd.f32 %v2948, %v3044
    %v3219 = vadd.f32 %v2949, %v3093
    %v3220 = vadd.f32 %v2950, %v3095
    %v3221 = vadd.f32 %v2951, %v3144
    %v3222 = vadd.f32 %v2952, %v3146
    %v3223 = vadd.f32 %v2953, %v3195
    %v3224 = vadd.f32 %v2954, %v3197
    %v3225 = vpack.c.bf16 %v1235, %v1235
    %v3226 = vpack.c.bf16 %v1236, %v1236
    %v3227 = vpack.c.bf16 %v1237, %v1237
    %v3228 = vpack.c.bf16 %v1238, %v1238
    %v3229 = vpack.c.bf16 %v1239, %v1239
    %v3230 = vpack.c.bf16 %v1240, %v1240
    %v3231 = vpack.c.bf16 %v1241, %v1241
    %v3232 = vpack.c.bf16 %v1242, %v1242
    %3233 = vrot.lane.b32.xlu0 %v1670, 104
    %v3234 = vpop.permute.xlu0 %3233
    %3235 = vrot.lane.b32.xlu0 %v1671, 104
    %v3236 = vpop.permute.xlu0 %3235
    %v3238 = vsel %vm854, %v3234, 0
    %v3241 = vsel %vm854, %v3236, 0
    %v3244 = vsel %vm1682, %v3225, 0
    %v3247 = vsel %vm1682, %v3226, 0
    %v3250 = vsel %vm1682, %v3227, 0
    %v3253 = vsel %vm1682, %v3228, 0
    %v3256 = vsel %vm1682, %v3229, 0
    %v3259 = vsel %vm1682, %v3230, 0
    %v3262 = vsel %vm1682, %v3231, 0
    %v3265 = vsel %vm1682, %v3232, 0
    %3267 = vmatprep.subr.bf16.mxu0 %v3247
    %3268 = vmatpush1.bf16.msra.mxu0 %v3244
    %3269 = vmatprep.subr.bf16.mxu0 0
    %3270 = vmatpush1.bf16.msra.mxu0 0
    %3271 = vmatprep.subr.bf16.mxu0 0
    %3272 = vmatpush1.bf16.msra.mxu0 0
    %3273 = vmatprep.subr.bf16.mxu0 0
    %3274 = vmatpush1.bf16.msra.mxu0 0
    %3275 = vmatprep.subr.bf16.mxu0 0
    %3276 = vmatpush1.bf16.msra.mxu0 0
    %3277 = vmatprep.subr.bf16.mxu0 0
    %3278 = vmatpush1.bf16.msra.mxu0 0
    %3279 = vmatprep.subr.bf16.mxu0 0
    %3280 = vmatpush1.bf16.msra.mxu0 0
    %3281 = vmatprep.subr.bf16.mxu0 0
    %3282 = vmatpush1.bf16.msra.mxu0 0
    %3283 = vmatprep.subr.bf16.mxu0 0
    %3284 = vmatpush1.bf16.msra.mxu0 0
    %3285 = vmatprep.subr.bf16.mxu0 0
    %3286 = vmatpush1.bf16.msra.mxu0 0
    %3287 = vmatprep.subr.bf16.mxu0 0
    %3288 = vmatpush1.bf16.msra.mxu0 0
    %3289 = vmatprep.subr.bf16.mxu0 0
    %3290 = vmatpush1.bf16.msra.mxu0 0
    %3291 = vmatprep.subr.bf16.mxu0 0
    %3292 = vmatpush1.bf16.msra.mxu0 0
    %3293 = vmatprep.subr.bf16.mxu0 0
    %3294 = vmatpush1.bf16.msra.mxu0 0
    %3295 = vmatprep.subr.bf16.mxu0 0
    %3296 = vmatpush1.bf16.msra.mxu0 0
    %3297 = vmatprep.subr.bf16.mxu0 0
    %3298 = vmatpush1.bf16.msra.mxu0 0
    %3299 = vmatprep.mubr.bf16.mxu0 0
    %3300 = vmatmul.mubr.bf16.gmra.mrb[0].mxu0 %v3238
    %v3301 = vpop.f32.mrb[0].mxu0
    %v3302 = vadd.f32 0.0, %v3301
    %v3303 = vpop.f32.mrb[0].mxu0
    %v3304 = vadd.f32 0.0, %v3303
    %v3305 = vpop.f32.mrb[0].mxu0
    %v3306 = vadd.f32 0.0, %v3305
    %v3307 = vpop.f32.mrb[0].mxu0
    %v3308 = vadd.f32 0.0, %v3307
    %3309 = vmatprep.mubr.bf16.mxu0 0
    %3310 = vmatmul.mubr.bf16.gmra.mrb[0].mxu0 %v3241
    %v3311 = vpop.f32.mrb[0].mxu0
    %v3312 = vadd.f32 0.0, %v3311
    %v3313 = vpop.f32.mrb[0].mxu0
    %v3314 = vadd.f32 0.0, %v3313
    %v3315 = vpop.f32.mrb[0].mxu0
    %v3316 = vpop.f32.mrb[0].mxu0
    %3317 = vdwg.mxu0
    %3318 = vmatprep.subr.bf16.mxu0 %v3253
    %3319 = vmatpush1.bf16.msra.mxu0 %v3250
    %3320 = vmatprep.subr.bf16.mxu0 0
    %3321 = vmatpush1.bf16.msra.mxu0 0
    %3322 = vmatprep.subr.bf16.mxu0 0
    %3323 = vmatpush1.bf16.msra.mxu0 0
    %3324 = vmatprep.subr.bf16.mxu0 0
    %3325 = vmatpush1.bf16.msra.mxu0 0
    %3326 = vmatprep.subr.bf16.mxu0 0
    %3327 = vmatpush1.bf16.msra.mxu0 0
    %3328 = vmatprep.subr.bf16.mxu0 0
    %3329 = vmatpush1.bf16.msra.mxu0 0
    %3330 = vmatprep.subr.bf16.mxu0 0
    %3331 = vmatpush1.bf16.msra.mxu0 0
    %3332 = vmatprep.subr.bf16.mxu0 0
    %3333 = vmatpush1.bf16.msra.mxu0 0
    %3334 = vmatprep.subr.bf16.mxu0 0
    %3335 = vmatpush1.bf16.msra.mxu0 0
    %3336 = vmatprep.subr.bf16.mxu0 0
    %3337 = vmatpush1.bf16.msra.mxu0 0
    %3338 = vmatprep.subr.bf16.mxu0 0
    %3339 = vmatpush1.bf16.msra.mxu0 0
    %3340 = vmatprep.subr.bf16.mxu0 0
    %3341 = vmatpush1.bf16.msra.mxu0 0
    %3342 = vmatprep.subr.bf16.mxu0 0
    %3343 = vmatpush1.bf16.msra.mxu0 0
    %3344 = vmatprep.subr.bf16.mxu0 0
    %3345 = vmatpush1.bf16.msra.mxu0 0
    %3346 = vmatprep.subr.bf16.mxu0 0
    %3347 = vmatpush1.bf16.msra.mxu0 0
    %3348 = vmatprep.subr.bf16.mxu0 0
    %3349 = vmatpush1.bf16.msra.mxu0 0
    %3350 = vmatprep.mubr.bf16.mxu0 0
    %3351 = vmatmul.mubr.bf16.gmra.mrb[0].mxu0 %v3238
    %v3352 = vpop.f32.mrb[0].mxu0
    %v3353 = vadd.f32 0.0, %v3352
    %v3354 = vpop.f32.mrb[0].mxu0
    %v3355 = vadd.f32 0.0, %v3354
    %v3356 = vpop.f32.mrb[0].mxu0
    %v3357 = vadd.f32 0.0, %v3356
    %v3358 = vpop.f32.mrb[0].mxu0
    %v3359 = vadd.f32 0.0, %v3358
    %3360 = vmatprep.mubr.bf16.mxu0 0
    %3361 = vmatmul.mubr.bf16.gmra.mrb[0].mxu0 %v3241
    %v3362 = vpop.f32.mrb[0].mxu0
    %v3363 = vadd.f32 0.0, %v3362
    %v3364 = vpop.f32.mrb[0].mxu0
    %v3365 = vadd.f32 0.0, %v3364
    %v3366 = vpop.f32.mrb[0].mxu0
    %v3367 = vpop.f32.mrb[0].mxu0
    %3368 = vdwg.mxu0
    %3369 = vmatprep.subr.bf16.mxu0 %v3259
    %3370 = vmatpush1.bf16.msra.mxu0 %v3256
    %3371 = vmatprep.subr.bf16.mxu0 0
    %3372 = vmatpush1.bf16.msra.mxu0 0
    %3373 = vmatprep.subr.bf16.mxu0 0
    %3374 = vmatpush1.bf16.msra.mxu0 0
    %3375 = vmatprep.subr.bf16.mxu0 0
    %3376 = vmatpush1.bf16.msra.mxu0 0
    %3377 = vmatprep.subr.bf16.mxu0 0
    %3378 = vmatpush1.bf16.msra.mxu0 0
    %3379 = vmatprep.subr.bf16.mxu0 0
    %3380 = vmatpush1.bf16.msra.mxu0 0
    %3381 = vmatprep.subr.bf16.mxu0 0
    %3382 = vmatpush1.bf16.msra.mxu0 0
    %3383 = vmatprep.subr.bf16.mxu0 0
    %3384 = vmatpush1.bf16.msra.mxu0 0
    %3385 = vmatprep.subr.bf16.mxu0 0
    %3386 = vmatpush1.bf16.msra.mxu0 0
    %3387 = vmatprep.subr.bf16.mxu0 0
    %3388 = vmatpush1.bf16.msra.mxu0 0
    %3389 = vmatprep.subr.bf16.mxu0 0
    %3390 = vmatpush1.bf16.msra.mxu0 0
    %3391 = vmatprep.subr.bf16.mxu0 0
    %3392 = vmatpush1.bf16.msra.mxu0 0
    %3393 = vmatprep.subr.bf16.mxu0 0
    %3394 = vmatpush1.bf16.msra.mxu0 0
    %3395 = vmatprep.subr.bf16.mxu0 0
    %3396 = vmatpush1.bf16.msra.mxu0 0
    %3397 = vmatprep.subr.bf16.mxu0 0
    %3398 = vmatpush1.bf16.msra.mxu0 0
    %3399 = vmatprep.subr.bf16.mxu0 0
    %3400 = vmatpush1.bf16.msra.mxu0 0
    %3401 = vmatprep.mubr.bf16.mxu0 0
    %3402 = vmatmul.mubr.bf16.gmra.mrb[0].mxu0 %v3238
    %v3403 = vpop.f32.mrb[0].mxu0
    %v3404 = vadd.f32 0.0, %v3403
    %v3405 = vpop.f32.mrb[0].mxu0
    %v3406 = vadd.f32 0.0, %v3405
    %v3407 = vpop.f32.mrb[0].mxu0
    %v3408 = vadd.f32 0.0, %v3407
    %v3409 = vpop.f32.mrb[0].mxu0
    %v3410 = vadd.f32 0.0, %v3409
    %3411 = vmatprep.mubr.bf16.mxu0 0
    %3412 = vmatmul.mubr.bf16.gmra.mrb[0].mxu0 %v3241
    %v3413 = vpop.f32.mrb[0].mxu0
    %v3414 = vadd.f32 0.0, %v3413
    %v3415 = vpop.f32.mrb[0].mxu0
    %v3416 = vadd.f32 0.0, %v3415
    %v3417 = vpop.f32.mrb[0].mxu0
    %v3418 = vpop.f32.mrb[0].mxu0
    %3419 = vdwg.mxu0
    %3420 = vmatprep.subr.bf16.mxu0 %v3265
    %3421 = vmatpush1.bf16.msra.mxu0 %v3262
    %3422 = vmatprep.subr.bf16.mxu0 0
    %3423 = vmatpush1.bf16.msra.mxu0 0
    %3424 = vmatprep.subr.bf16.mxu0 0
    %3425 = vmatpush1.bf16.msra.mxu0 0
    %3426 = vmatprep.subr.bf16.mxu0 0
    %3427 = vmatpush1.bf16.msra.mxu0 0
    %3428 = vmatprep.subr.bf16.mxu0 0
    %3429 = vmatpush1.bf16.msra.mxu0 0
    %3430 = vmatprep.subr.bf16.mxu0 0
    %3431 = vmatpush1.bf16.msra.mxu0 0
    %3432 = vmatprep.subr.bf16.mxu0 0
    %3433 = vmatpush1.bf16.msra.mxu0 0
    %3434 = vmatprep.subr.bf16.mxu0 0
    %3435 = vmatpush1.bf16.msra.mxu0 0
    %3436 = vmatprep.subr.bf16.mxu0 0
    %3437 = vmatpush1.bf16.msra.mxu0 0
    %3438 = vmatprep.subr.bf16.mxu0 0
    %3439 = vmatpush1.bf16.msra.mxu0 0
    %3440 = vmatprep.subr.bf16.mxu0 0
    %3441 = vmatpush1.bf16.msra.mxu0 0
    %3442 = vmatprep.subr.bf16.mxu0 0
    %3443 = vmatpush1.bf16.msra.mxu0 0
    %3444 = vmatprep.subr.bf16.mxu0 0
    %3445 = vmatpush1.bf16.msra.mxu0 0
    %3446 = vmatprep.subr.bf16.mxu0 0
    %3447 = vmatpush1.bf16.msra.mxu0 0
    %3448 = vmatprep.subr.bf16.mxu0 0
    %3449 = vmatpush1.bf16.msra.mxu0 0
    %3450 = vmatprep.subr.bf16.mxu0 0
    %3451 = vmatpush1.bf16.msra.mxu0 0
    %3452 = vmatprep.mubr.bf16.mxu0 0
    %3453 = vmatmul.mubr.bf16.gmra.mrb[0].mxu0 %v3238
    %v3454 = vpop.f32.mrb[0].mxu0
    %v3455 = vadd.f32 0.0, %v3454
    %v3456 = vpop.f32.mrb[0].mxu0
    %v3457 = vadd.f32 0.0, %v3456
    %v3458 = vpop.f32.mrb[0].mxu0
    %v3459 = vadd.f32 0.0, %v3458
    %v3460 = vpop.f32.mrb[0].mxu0
    %v3461 = vadd.f32 0.0, %v3460
    %3462 = vmatprep.mubr.bf16.mxu0 0
    %3463 = vmatmul.mubr.bf16.gmra.mrb[0].mxu0 %v3241
    %v3464 = vpop.f32.mrb[0].mxu0
    %v3465 = vadd.f32 0.0, %v3464
    %v3466 = vpop.f32.mrb[0].mxu0
    %v3467 = vadd.f32 0.0, %v3466
    %v3468 = vpop.f32.mrb[0].mxu0
    %v3469 = vpop.f32.mrb[0].mxu0
    %3470 = vdwg.mxu0
    %v3471 = vadd.f32 %v3201, %v3302
    %v3472 = vadd.f32 %v3202, %v3304
    %v3473 = vadd.f32 %v3203, %v3353
    %v3474 = vadd.f32 %v3204, %v3355
    %v3475 = vadd.f32 %v3205, %v3404
    %v3476 = vadd.f32 %v3206, %v3406
    %v3477 = vadd.f32 %v3207, %v3455
    %v3478 = vadd.f32 %v3208, %v3457
    %v3479 = vadd.f32 %v3209, %v3306
    %v3480 = vadd.f32 %v3210, %v3308
    %v3481 = vadd.f32 %v3211, %v3357
    %v3482 = vadd.f32 %v3212, %v3359
    %v3483 = vadd.f32 %v3213, %v3408
    %v3484 = vadd.f32 %v3214, %v3410
    %v3485 = vadd.f32 %v3215, %v3459
    %v3486 = vadd.f32 %v3216, %v3461
    %v3487 = vadd.f32 %v3217, %v3312
    %v3488 = vadd.f32 %v3218, %v3314
    %v3489 = vadd.f32 %v3219, %v3363
    %v3490 = vadd.f32 %v3220, %v3365
    %v3491 = vadd.f32 %v3221, %v3414
    %v3492 = vadd.f32 %v3222, %v3416
    %v3493 = vadd.f32 %v3223, %v3465
    %v3494 = vadd.f32 %v3224, %v3467
    %v3495 = vpack.c.bf16 %v1316, %v1316
    %v3496 = vpack.c.bf16 %v1317, %v1317
    %v3497 = vpack.c.bf16 %v1318, %v1318
    %v3498 = vpack.c.bf16 %v1319, %v1319
    %v3499 = vpack.c.bf16 %v1320, %v1320
    %v3500 = vpack.c.bf16 %v1321, %v1321
    %v3501 = vpack.c.bf16 %v1322, %v1322
    %v3502 = vpack.c.bf16 %v1323, %v1323
    %3503 = vrot.lane.b32.xlu0 %v1670, 100
    %v3504 = vpop.permute.xlu0 %3503
    %3505 = vrot.lane.b32.xlu0 %v1671, 100
    %v3506 = vpop.permute.xlu0 %3505
    %v3508 = vsel %vm854, %v3504, 0
    %v3511 = vsel %vm854, %v3506, 0
    %v3514 = vsel %vm1682, %v3495, 0
    %v3517 = vsel %vm1682, %v3496, 0
    %v3520 = vsel %vm1682, %v3497, 0
    %v3523 = vsel %vm1682, %v3498, 0
    %v3526 = vsel %vm1682, %v3499, 0
    %v3529 = vsel %vm1682, %v3500, 0
    %v3532 = vsel %vm1682, %v3501, 0
    %v3535 = vsel %vm1682, %v3502, 0
    %3537 = vmatprep.subr.bf16.mxu0 %v3517
    %3538 = vmatpush1.bf16.msra.mxu0 %v3514
    %3539 = vmatprep.subr.bf16.mxu0 0
    %3540 = vmatpush1.bf16.msra.mxu0 0
    %3541 = vmatprep.subr.bf16.mxu0 0
    %3542 = vmatpush1.bf16.msra.mxu0 0
    %3543 = vmatprep.subr.bf16.mxu0 0
    %3544 = vmatpush1.bf16.msra.mxu0 0
    %3545 = vmatprep.subr.bf16.mxu0 0
    %3546 = vmatpush1.bf16.msra.mxu0 0
    %3547 = vmatprep.subr.bf16.mxu0 0
    %3548 = vmatpush1.bf16.msra.mxu0 0
    %3549 = vmatprep.subr.bf16.mxu0 0
    %3550 = vmatpush1.bf16.msra.mxu0 0
    %3551 = vmatprep.subr.bf16.mxu0 0
    %3552 = vmatpush1.bf16.msra.mxu0 0
    %3553 = vmatprep.subr.bf16.mxu0 0
    %3554 = vmatpush1.bf16.msra.mxu0 0
    %3555 = vmatprep.subr.bf16.mxu0 0
    %3556 = vmatpush1.bf16.msra.mxu0 0
    %3557 = vmatprep.subr.bf16.mxu0 0
    %3558 = vmatpush1.bf16.msra.mxu0 0
    %3559 = vmatprep.subr.bf16.mxu0 0
    %3560 = vmatpush1.bf16.msra.mxu0 0
    %3561 = vmatprep.subr.bf16.mxu0 0
    %3562 = vmatpush1.bf16.msra.mxu0 0
    %3563 = vmatprep.subr.bf16.mxu0 0
    %3564 = vmatpush1.bf16.msra.mxu0 0
    %3565 = vmatprep.subr.bf16.mxu0 0
    %3566 = vmatpush1.bf16.msra.mxu0 0
    %3567 = vmatprep.subr.bf16.mxu0 0
    %3568 = vmatpush1.bf16.msra.mxu0 0
    %3569 = vmatprep.mubr.bf16.mxu0 0
    %3570 = vmatmul.mubr.bf16.gmra.mrb[0].mxu0 %v3508
    %v3571 = vpop.f32.mrb[0].mxu0
    %v3572 = vadd.f32 0.0, %v3571
    %v3573 = vpop.f32.mrb[0].mxu0
    %v3574 = vadd.f32 0.0, %v3573
    %v3575 = vpop.f32.mrb[0].mxu0
    %v3576 = vadd.f32 0.0, %v3575
    %v3577 = vpop.f32.mrb[0].mxu0
    %v3578 = vadd.f32 0.0, %v3577
    %3579 = vmatprep.mubr.bf16.mxu0 0
    %3580 = vmatmul.mubr.bf16.gmra.mrb[0].mxu0 %v3511
    %v3581 = vpop.f32.mrb[0].mxu0
    %v3582 = vadd.f32 0.0, %v3581
    %v3583 = vpop.f32.mrb[0].mxu0
    %v3584 = vadd.f32 0.0, %v3583
    %v3585 = vpop.f32.mrb[0].mxu0
    %v3586 = vpop.f32.mrb[0].mxu0
    %3587 = vdwg.mxu0
    %3588 = vmatprep.subr.bf16.mxu0 %v3523
    %3589 = vmatpush1.bf16.msra.mxu0 %v3520
    %3590 = vmatprep.subr.bf16.mxu0 0
    %3591 = vmatpush1.bf16.msra.mxu0 0
    %3592 = vmatprep.subr.bf16.mxu0 0
    %3593 = vmatpush1.bf16.msra.mxu0 0
    %3594 = vmatprep.subr.bf16.mxu0 0
    %3595 = vmatpush1.bf16.msra.mxu0 0
    %3596 = vmatprep.subr.bf16.mxu0 0
    %3597 = vmatpush1.bf16.msra.mxu0 0
    %3598 = vmatprep.subr.bf16.mxu0 0
    %3599 = vmatpush1.bf16.msra.mxu0 0
    %3600 = vmatprep.subr.bf16.mxu0 0
    %3601 = vmatpush1.bf16.msra.mxu0 0
    %3602 = vmatprep.subr.bf16.mxu0 0
    %3603 = vmatpush1.bf16.msra.mxu0 0
    %3604 = vmatprep.subr.bf16.mxu0 0
    %3605 = vmatpush1.bf16.msra.mxu0 0
    %3606 = vmatprep.subr.bf16.mxu0 0
    %3607 = vmatpush1.bf16.msra.mxu0 0
    %3608 = vmatprep.subr.bf16.mxu0 0
    %3609 = vmatpush1.bf16.msra.mxu0 0
    %3610 = vmatprep.subr.bf16.mxu0 0
    %3611 = vmatpush1.bf16.msra.mxu0 0
    %3612 = vmatprep.subr.bf16.mxu0 0
    %3613 = vmatpush1.bf16.msra.mxu0 0
    %3614 = vmatprep.subr.bf16.mxu0 0
    %3615 = vmatpush1.bf16.msra.mxu0 0
    %3616 = vmatprep.subr.bf16.mxu0 0
    %3617 = vmatpush1.bf16.msra.mxu0 0
    %3618 = vmatprep.subr.bf16.mxu0 0
    %3619 = vmatpush1.bf16.msra.mxu0 0
    %3620 = vmatprep.mubr.bf16.mxu0 0
    %3621 = vmatmul.mubr.bf16.gmra.mrb[0].mxu0 %v3508
    %v3622 = vpop.f32.mrb[0].mxu0
    %v3623 = vadd.f32 0.0, %v3622
    %v3624 = vpop.f32.mrb[0].mxu0
    %v3625 = vadd.f32 0.0, %v3624
    %v3626 = vpop.f32.mrb[0].mxu0
    %v3627 = vadd.f32 0.0, %v3626
    %v3628 = vpop.f32.mrb[0].mxu0
    %v3629 = vadd.f32 0.0, %v3628
    %3630 = vmatprep.mubr.bf16.mxu0 0
    %3631 = vmatmul.mubr.bf16.gmra.mrb[0].mxu0 %v3511
    %v3632 = vpop.f32.mrb[0].mxu0
    %v3633 = vadd.f32 0.0, %v3632
    %v3634 = vpop.f32.mrb[0].mxu0
    %v3635 = vadd.f32 0.0, %v3634
    %v3636 = vpop.f32.mrb[0].mxu0
    %v3637 = vpop.f32.mrb[0].mxu0
    %3638 = vdwg.mxu0
    %3639 = vmatprep.subr.bf16.mxu0 %v3529
    %3640 = vmatpush1.bf16.msra.mxu0 %v3526
    %3641 = vmatprep.subr.bf16.mxu0 0
    %3642 = vmatpush1.bf16.msra.mxu0 0
    %3643 = vmatprep.subr.bf16.mxu0 0
    %3644 = vmatpush1.bf16.msra.mxu0 0
    %3645 = vmatprep.subr.bf16.mxu0 0
    %3646 = vmatpush1.bf16.msra.mxu0 0
    %3647 = vmatprep.subr.bf16.mxu0 0
    %3648 = vmatpush1.bf16.msra.mxu0 0
    %3649 = vmatprep.subr.bf16.mxu0 0
    %3650 = vmatpush1.bf16.msra.mxu0 0
    %3651 = vmatprep.subr.bf16.mxu0 0
    %3652 = vmatpush1.bf16.msra.mxu0 0
    %3653 = vmatprep.subr.bf16.mxu0 0
    %3654 = vmatpush1.bf16.msra.mxu0 0
    %3655 = vmatprep.subr.bf16.mxu0 0
    %3656 = vmatpush1.bf16.msra.mxu0 0
    %3657 = vmatprep.subr.bf16.mxu0 0
    %3658 = vmatpush1.bf16.msra.mxu0 0
    %3659 = vmatprep.subr.bf16.mxu0 0
    %3660 = vmatpush1.bf16.msra.mxu0 0
    %3661 = vmatprep.subr.bf16.mxu0 0
    %3662 = vmatpush1.bf16.msra.mxu0 0
    %3663 = vmatprep.subr.bf16.mxu0 0
    %3664 = vmatpush1.bf16.msra.mxu0 0
    %3665 = vmatprep.subr.bf16.mxu0 0
    %3666 = vmatpush1.bf16.msra.mxu0 0
    %3667 = vmatprep.subr.bf16.mxu0 0
    %3668 = vmatpush1.bf16.msra.mxu0 0
    %3669 = vmatprep.subr.bf16.mxu0 0
    %3670 = vmatpush1.bf16.msra.mxu0 0
    %3671 = vmatprep.mubr.bf16.mxu0 0
    %3672 = vmatmul.mubr.bf16.gmra.mrb[0].mxu0 %v3508
    %v3673 = vpop.f32.mrb[0].mxu0
    %v3674 = vadd.f32 0.0, %v3673
    %v3675 = vpop.f32.mrb[0].mxu0
    %v3676 = vadd.f32 0.0, %v3675
    %v3677 = vpop.f32.mrb[0].mxu0
    %v3678 = vadd.f32 0.0, %v3677
    %v3679 = vpop.f32.mrb[0].mxu0
    %v3680 = vadd.f32 0.0, %v3679
    %3681 = vmatprep.mubr.bf16.mxu0 0
    %3682 = vmatmul.mubr.bf16.gmra.mrb[0].mxu0 %v3511
    %v3683 = vpop.f32.mrb[0].mxu0
    %v3684 = vadd.f32 0.0, %v3683
    %v3685 = vpop.f32.mrb[0].mxu0
    %v3686 = vadd.f32 0.0, %v3685
    %v3687 = vpop.f32.mrb[0].mxu0
    %v3688 = vpop.f32.mrb[0].mxu0
    %3689 = vdwg.mxu0
    %3690 = vmatprep.subr.bf16.mxu0 %v3535
    %3691 = vmatpush1.bf16.msra.mxu0 %v3532
    %3692 = vmatprep.subr.bf16.mxu0 0
    %3693 = vmatpush1.bf16.msra.mxu0 0
    %3694 = vmatprep.subr.bf16.mxu0 0
    %3695 = vmatpush1.bf16.msra.mxu0 0
    %3696 = vmatprep.subr.bf16.mxu0 0
    %3697 = vmatpush1.bf16.msra.mxu0 0
    %3698 = vmatprep.subr.bf16.mxu0 0
    %3699 = vmatpush1.bf16.msra.mxu0 0
    %3700 = vmatprep.subr.bf16.mxu0 0
    %3701 = vmatpush1.bf16.msra.mxu0 0
    %3702 = vmatprep.subr.bf16.mxu0 0
    %3703 = vmatpush1.bf16.msra.mxu0 0
    %3704 = vmatprep.subr.bf16.mxu0 0
    %3705 = vmatpush1.bf16.msra.mxu0 0
    %3706 = vmatprep.subr.bf16.mxu0 0
    %3707 = vmatpush1.bf16.msra.mxu0 0
    %3708 = vmatprep.subr.bf16.mxu0 0
    %3709 = vmatpush1.bf16.msra.mxu0 0
    %3710 = vmatprep.subr.bf16.mxu0 0
    %3711 = vmatpush1.bf16.msra.mxu0 0
    %3712 = vmatprep.subr.bf16.mxu0 0
    %3713 = vmatpush1.bf16.msra.mxu0 0
    %3714 = vmatprep.subr.bf16.mxu0 0
    %3715 = vmatpush1.bf16.msra.mxu0 0
    %3716 = vmatprep.subr.bf16.mxu0 0
    %3717 = vmatpush1.bf16.msra.mxu0 0
    %3718 = vmatprep.subr.bf16.mxu0 0
    %3719 = vmatpush1.bf16.msra.mxu0 0
    %3720 = vmatprep.subr.bf16.mxu0 0
    %3721 = vmatpush1.bf16.msra.mxu0 0
    %3722 = vmatprep.mubr.bf16.mxu0 0
    %3723 = vmatmul.mubr.bf16.gmra.mrb[0].mxu0 %v3508
    %v3724 = vpop.f32.mrb[0].mxu0
    %v3725 = vadd.f32 0.0, %v3724
    %v3726 = vpop.f32.mrb[0].mxu0
    %v3727 = vadd.f32 0.0, %v3726
    %v3728 = vpop.f32.mrb[0].mxu0
    %v3729 = vadd.f32 0.0, %v3728
    %v3730 = vpop.f32.mrb[0].mxu0
    %v3731 = vadd.f32 0.0, %v3730
    %3732 = vmatprep.mubr.bf16.mxu0 0
    %3733 = vmatmul.mubr.bf16.gmra.mrb[0].mxu0 %v3511
    %v3734 = vpop.f32.mrb[0].mxu0
    %v3735 = vadd.f32 0.0, %v3734
    %v3736 = vpop.f32.mrb[0].mxu0
    %v3737 = vadd.f32 0.0, %v3736
    %v3738 = vpop.f32.mrb[0].mxu0
    %v3739 = vpop.f32.mrb[0].mxu0
    %3740 = vdwg.mxu0
    %v3741 = vadd.f32 %v3471, %v3572
    %v3742 = vadd.f32 %v3472, %v3574
    %v3743 = vadd.f32 %v3473, %v3623
    %v3744 = vadd.f32 %v3474, %v3625
    %v3745 = vadd.f32 %v3475, %v3674
    %v3746 = vadd.f32 %v3476, %v3676
    %v3747 = vadd.f32 %v3477, %v3725
    %v3748 = vadd.f32 %v3478, %v3727
    %v3749 = vadd.f32 %v3479, %v3576
    %v3750 = vadd.f32 %v3480, %v3578
    %v3751 = vadd.f32 %v3481, %v3627
    %v3752 = vadd.f32 %v3482, %v3629
    %v3753 = vadd.f32 %v3483, %v3678
    %v3754 = vadd.f32 %v3484, %v3680
    %v3755 = vadd.f32 %v3485, %v3729
    %v3756 = vadd.f32 %v3486, %v3731
    %v3757 = vadd.f32 %v3487, %v3582
    %v3758 = vadd.f32 %v3488, %v3584
    %v3759 = vadd.f32 %v3489, %v3633
    %v3760 = vadd.f32 %v3490, %v3635
    %v3761 = vadd.f32 %v3491, %v3684
    %v3762 = vadd.f32 %v3492, %v3686
    %v3763 = vadd.f32 %v3493, %v3735
    %v3764 = vadd.f32 %v3494, %v3737
    %v3765 = vpack.c.bf16 %v1397, %v1397
    %v3766 = vpack.c.bf16 %v1398, %v1398
    %v3767 = vpack.c.bf16 %v1399, %v1399
    %v3768 = vpack.c.bf16 %v1400, %v1400
    %v3769 = vpack.c.bf16 %v1401, %v1401
    %v3770 = vpack.c.bf16 %v1402, %v1402
    %v3771 = vpack.c.bf16 %v1403, %v1403
    %v3772 = vpack.c.bf16 %v1404, %v1404
    %3773 = vrot.lane.b32.xlu0 %v1670, 96
    %v3774 = vpop.permute.xlu0 %3773
    %3775 = vrot.lane.b32.xlu0 %v1671, 96
    %v3776 = vpop.permute.xlu0 %3775
    %v3778 = vsel %vm854, %v3774, 0
    %v3781 = vsel %vm854, %v3776, 0
    %v3784 = vsel %vm1682, %v3765, 0
    %v3787 = vsel %vm1682, %v3766, 0
    %v3790 = vsel %vm1682, %v3767, 0
    %v3793 = vsel %vm1682, %v3768, 0
    %v3796 = vsel %vm1682, %v3769, 0
    %v3799 = vsel %vm1682, %v3770, 0
    %v3802 = vsel %vm1682, %v3771, 0
    %v3805 = vsel %vm1682, %v3772, 0
    %3807 = vmatprep.subr.bf16.mxu0 %v3787
    %3808 = vmatpush1.bf16.msra.mxu0 %v3784
    %3809 = vmatprep.subr.bf16.mxu0 0
    %3810 = vmatpush1.bf16.msra.mxu0 0
    %3811 = vmatprep.subr.bf16.mxu0 0
    %3812 = vmatpush1.bf16.msra.mxu0 0
    %3813 = vmatprep.subr.bf16.mxu0 0
    %3814 = vmatpush1.bf16.msra.mxu0 0
    %3815 = vmatprep.subr.bf16.mxu0 0
    %3816 = vmatpush1.bf16.msra.mxu0 0
    %3817 = vmatprep.subr.bf16.mxu0 0
    %3818 = vmatpush1.bf16.msra.mxu0 0
    %3819 = vmatprep.subr.bf16.mxu0 0
    %3820 = vmatpush1.bf16.msra.mxu0 0
    %3821 = vmatprep.subr.bf16.mxu0 0
    %3822 = vmatpush1.bf16.msra.mxu0 0
    %3823 = vmatprep.subr.bf16.mxu0 0
    %3824 = vmatpush1.bf16.msra.mxu0 0
    %3825 = vmatprep.subr.bf16.mxu0 0
    %3826 = vmatpush1.bf16.msra.mxu0 0
    %3827 = vmatprep.subr.bf16.mxu0 0
    %3828 = vmatpush1.bf16.msra.mxu0 0
    %3829 = vmatprep.subr.bf16.mxu0 0
    %3830 = vmatpush1.bf16.msra.mxu0 0
    %3831 = vmatprep.subr.bf16.mxu0 0
    %3832 = vmatpush1.bf16.msra.mxu0 0
    %3833 = vmatprep.subr.bf16.mxu0 0
    %3834 = vmatpush1.bf16.msra.mxu0 0
    %3835 = vmatprep.subr.bf16.mxu0 0
    %3836 = vmatpush1.bf16.msra.mxu0 0
    %3837 = vmatprep.subr.bf16.mxu0 0
    %3838 = vmatpush1.bf16.msra.mxu0 0
    %3839 = vmatprep.mubr.bf16.mxu0 0
    %3840 = vmatmul.mubr.bf16.gmra.mrb[0].mxu0 %v3778
    %v3841 = vpop.f32.mrb[0].mxu0
    %v3842 = vadd.f32 0.0, %v3841
    %v3843 = vpop.f32.mrb[0].mxu0
    %v3844 = vadd.f32 0.0, %v3843
    %v3845 = vpop.f32.mrb[0].mxu0
    %v3846 = vadd.f32 0.0, %v3845
    %v3847 = vpop.f32.mrb[0].mxu0
    %v3848 = vadd.f32 0.0, %v3847
    %3849 = vmatprep.mubr.bf16.mxu0 0
    %3850 = vmatmul.mubr.bf16.gmra.mrb[0].mxu0 %v3781
    %v3851 = vpop.f32.mrb[0].mxu0
    %v3852 = vadd.f32 0.0, %v3851
    %v3853 = vpop.f32.mrb[0].mxu0
    %v3854 = vadd.f32 0.0, %v3853
    %v3855 = vpop.f32.mrb[0].mxu0
    %v3856 = vpop.f32.mrb[0].mxu0
    %3857 = vdwg.mxu0
    %3858 = vmatprep.subr.bf16.mxu0 %v3793
    %3859 = vmatpush1.bf16.msra.mxu0 %v3790
    %3860 = vmatprep.subr.bf16.mxu0 0
    %3861 = vmatpush1.bf16.msra.mxu0 0
    %3862 = vmatprep.subr.bf16.mxu0 0
    %3863 = vmatpush1.bf16.msra.mxu0 0
    %3864 = vmatprep.subr.bf16.mxu0 0
    %3865 = vmatpush1.bf16.msra.mxu0 0
    %3866 = vmatprep.subr.bf16.mxu0 0
    %3867 = vmatpush1.bf16.msra.mxu0 0
    %3868 = vmatprep.subr.bf16.mxu0 0
    %3869 = vmatpush1.bf16.msra.mxu0 0
    %3870 = vmatprep.subr.bf16.mxu0 0
    %3871 = vmatpush1.bf16.msra.mxu0 0
    %3872 = vmatprep.subr.bf16.mxu0 0
    %3873 = vmatpush1.bf16.msra.mxu0 0
    %3874 = vmatprep.subr.bf16.mxu0 0
    %3875 = vmatpush1.bf16.msra.mxu0 0
    %3876 = vmatprep.subr.bf16.mxu0 0
    %3877 = vmatpush1.bf16.msra.mxu0 0
    %3878 = vmatprep.subr.bf16.mxu0 0
    %3879 = vmatpush1.bf16.msra.mxu0 0
    %3880 = vmatprep.subr.bf16.mxu0 0
    %3881 = vmatpush1.bf16.msra.mxu0 0
    %3882 = vmatprep.subr.bf16.mxu0 0
    %3883 = vmatpush1.bf16.msra.mxu0 0
    %3884 = vmatprep.subr.bf16.mxu0 0
    %3885 = vmatpush1.bf16.msra.mxu0 0
    %3886 = vmatprep.subr.bf16.mxu0 0
    %3887 = vmatpush1.bf16.msra.mxu0 0
    %3888 = vmatprep.subr.bf16.mxu0 0
    %3889 = vmatpush1.bf16.msra.mxu0 0
    %3890 = vmatprep.mubr.bf16.mxu0 0
    %3891 = vmatmul.mubr.bf16.gmra.mrb[0].mxu0 %v3778
    %v3892 = vpop.f32.mrb[0].mxu0
    %v3893 = vadd.f32 0.0, %v3892
    %v3894 = vpop.f32.mrb[0].mxu0
    %v3895 = vadd.f32 0.0, %v3894
    %v3896 = vpop.f32.mrb[0].mxu0
    %v3897 = vadd.f32 0.0, %v3896
    %v3898 = vpop.f32.mrb[0].mxu0
    %v3899 = vadd.f32 0.0, %v3898
    %3900 = vmatprep.mubr.bf16.mxu0 0
    %3901 = vmatmul.mubr.bf16.gmra.mrb[0].mxu0 %v3781
    %v3902 = vpop.f32.mrb[0].mxu0
    %v3903 = vadd.f32 0.0, %v3902
    %v3904 = vpop.f32.mrb[0].mxu0
    %v3905 = vadd.f32 0.0, %v3904
    %v3906 = vpop.f32.mrb[0].mxu0
    %v3907 = vpop.f32.mrb[0].mxu0
    %3908 = vdwg.mxu0
    %3909 = vmatprep.subr.bf16.mxu0 %v3799
    %3910 = vmatpush1.bf16.msra.mxu0 %v3796
    %3911 = vmatprep.subr.bf16.mxu0 0
    %3912 = vmatpush1.bf16.msra.mxu0 0
    %3913 = vmatprep.subr.bf16.mxu0 0
    %3914 = vmatpush1.bf16.msra.mxu0 0
    %3915 = vmatprep.subr.bf16.mxu0 0
    %3916 = vmatpush1.bf16.msra.mxu0 0
    %3917 = vmatprep.subr.bf16.mxu0 0
    %3918 = vmatpush1.bf16.msra.mxu0 0
    %3919 = vmatprep.subr.bf16.mxu0 0
    %3920 = vmatpush1.bf16.msra.mxu0 0
    %3921 = vmatprep.subr.bf16.mxu0 0
    %3922 = vmatpush1.bf16.msra.mxu0 0
    %3923 = vmatprep.subr.bf16.mxu0 0
    %3924 = vmatpush1.bf16.msra.mxu0 0
    %3925 = vmatprep.subr.bf16.mxu0 0
    %3926 = vmatpush1.bf16.msra.mxu0 0
    %3927 = vmatprep.subr.bf16.mxu0 0
    %3928 = vmatpush1.bf16.msra.mxu0 0
    %3929 = vmatprep.subr.bf16.mxu0 0
    %3930 = vmatpush1.bf16.msra.mxu0 0
    %3931 = vmatprep.subr.bf16.mxu0 0
    %3932 = vmatpush1.bf16.msra.mxu0 0
    %3933 = vmatprep.subr.bf16.mxu0 0
    %3934 = vmatpush1.bf16.msra.mxu0 0
    %3935 = vmatprep.subr.bf16.mxu0 0
    %3936 = vmatpush1.bf16.msra.mxu0 0
    %3937 = vmatprep.subr.bf16.mxu0 0
    %3938 = vmatpush1.bf16.msra.mxu0 0
    %3939 = vmatprep.subr.bf16.mxu0 0
    %3940 = vmatpush1.bf16.msra.mxu0 0
    %3941 = vmatprep.mubr.bf16.mxu0 0
    %3942 = vmatmul.mubr.bf16.gmra.mrb[0].mxu0 %v3778
    %v3943 = vpop.f32.mrb[0].mxu0
    %v3944 = vadd.f32 0.0, %v3943
    %v3945 = vpop.f32.mrb[0].mxu0
    %v3946 = vadd.f32 0.0, %v3945
    %v3947 = vpop.f32.mrb[0].mxu0
    %v3948 = vadd.f32 0.0, %v3947
    %v3949 = vpop.f32.mrb[0].mxu0
    %v3950 = vadd.f32 0.0, %v3949
    %3951 = vmatprep.mubr.bf16.mxu0 0
    %3952 = vmatmul.mubr.bf16.gmra.mrb[0].mxu0 %v3781
    %v3953 = vpop.f32.mrb[0].mxu0
    %v3954 = vadd.f32 0.0, %v3953
    %v3955 = vpop.f32.mrb[0].mxu0
    %v3956 = vadd.f32 0.0, %v3955
    %v3957 = vpop.f32.mrb[0].mxu0
    %v3958 = vpop.f32.mrb[0].mxu0
    %3959 = vdwg.mxu0
    %3960 = vmatprep.subr.bf16.mxu0 %v3805
    %3961 = vmatpush1.bf16.msra.mxu0 %v3802
    %3962 = vmatprep.subr.bf16.mxu0 0
    %3963 = vmatpush1.bf16.msra.mxu0 0
    %3964 = vmatprep.subr.bf16.mxu0 0
    %3965 = vmatpush1.bf16.msra.mxu0 0
    %3966 = vmatprep.subr.bf16.mxu0 0
    %3967 = vmatpush1.bf16.msra.mxu0 0
    %3968 = vmatprep.subr.bf16.mxu0 0
    %3969 = vmatpush1.bf16.msra.mxu0 0
    %3970 = vmatprep.subr.bf16.mxu0 0
    %3971 = vmatpush1.bf16.msra.mxu0 0
    %3972 = vmatprep.subr.bf16.mxu0 0
    %3973 = vmatpush1.bf16.msra.mxu0 0
    %3974 = vmatprep.subr.bf16.mxu0 0
    %3975 = vmatpush1.bf16.msra.mxu0 0
    %3976 = vmatprep.subr.bf16.mxu0 0
    %3977 = vmatpush1.bf16.msra.mxu0 0
    %3978 = vmatprep.subr.bf16.mxu0 0
    %3979 = vmatpush1.bf16.msra.mxu0 0
    %3980 = vmatprep.subr.bf16.mxu0 0
    %3981 = vmatpush1.bf16.msra.mxu0 0
    %3982 = vmatprep.subr.bf16.mxu0 0
    %3983 = vmatpush1.bf16.msra.mxu0 0
    %3984 = vmatprep.subr.bf16.mxu0 0
    %3985 = vmatpush1.bf16.msra.mxu0 0
    %3986 = vmatprep.subr.bf16.mxu0 0
    %3987 = vmatpush1.bf16.msra.mxu0 0
    %3988 = vmatprep.subr.bf16.mxu0 0
    %3989 = vmatpush1.bf16.msra.mxu0 0
    %3990 = vmatprep.subr.bf16.mxu0 0
    %3991 = vmatpush1.bf16.msra.mxu0 0
    %3992 = vmatprep.mubr.bf16.mxu0 0
    %3993 = vmatmul.mubr.bf16.gmra.mrb[0].mxu0 %v3778
    %v3994 = vpop.f32.mrb[0].mxu0
    %v3995 = vadd.f32 0.0, %v3994
    %v3996 = vpop.f32.mrb[0].mxu0
    %v3997 = vadd.f32 0.0, %v3996
    %v3998 = vpop.f32.mrb[0].mxu0
    %v3999 = vadd.f32 0.0, %v3998
    %v4000 = vpop.f32.mrb[0].mxu0
    %v4001 = vadd.f32 0.0, %v4000
    %4002 = vmatprep.mubr.bf16.mxu0 0
    %4003 = vmatmul.mubr.bf16.gmra.mrb[0].mxu0 %v3781
    %v4004 = vpop.f32.mrb[0].mxu0
    %v4005 = vadd.f32 0.0, %v4004
    %v4006 = vpop.f32.mrb[0].mxu0
    %v4007 = vadd.f32 0.0, %v4006
    %v4008 = vpop.f32.mrb[0].mxu0
    %v4009 = vpop.f32.mrb[0].mxu0
    %4010 = vdwg.mxu0
    %v4011 = vadd.f32 %v3741, %v3842
    %v4012 = vadd.f32 %v3742, %v3844
    %v4013 = vadd.f32 %v3743, %v3893
    %v4014 = vadd.f32 %v3744, %v3895
    %v4015 = vadd.f32 %v3745, %v3944
    %v4016 = vadd.f32 %v3746, %v3946
    %v4017 = vadd.f32 %v3747, %v3995
    %v4018 = vadd.f32 %v3748, %v3997
    %v4019 = vadd.f32 %v3749, %v3846
    %v4020 = vadd.f32 %v3750, %v3848
    %v4021 = vadd.f32 %v3751, %v3897
    %v4022 = vadd.f32 %v3752, %v3899
    %v4023 = vadd.f32 %v3753, %v3948
    %v4024 = vadd.f32 %v3754, %v3950
    %v4025 = vadd.f32 %v3755, %v3999
    %v4026 = vadd.f32 %v3756, %v4001
    %v4027 = vadd.f32 %v3757, %v3852
    %v4028 = vadd.f32 %v3758, %v3854
    %v4029 = vadd.f32 %v3759, %v3903
    %v4030 = vadd.f32 %v3760, %v3905
    %v4031 = vadd.f32 %v3761, %v3954
    %v4032 = vadd.f32 %v3762, %v3956
    %v4033 = vadd.f32 %v3763, %v4005
    %v4034 = vadd.f32 %v3764, %v4007
    %v4035 = vpack.c.bf16 %v1478, %v1478
    %v4036 = vpack.c.bf16 %v1479, %v1479
    %v4037 = vpack.c.bf16 %v1480, %v1480
    %v4038 = vpack.c.bf16 %v1481, %v1481
    %v4039 = vpack.c.bf16 %v1482, %v1482
    %v4040 = vpack.c.bf16 %v1483, %v1483
    %v4041 = vpack.c.bf16 %v1484, %v1484
    %v4042 = vpack.c.bf16 %v1485, %v1485
    %4043 = vrot.lane.b32.xlu0 %v1670, 92
    %v4044 = vpop.permute.xlu0 %4043
    %4045 = vrot.lane.b32.xlu0 %v1671, 92
    %v4046 = vpop.permute.xlu0 %4045
    %v4048 = vsel %vm854, %v4044, 0
    %v4051 = vsel %vm854, %v4046, 0
    %v4054 = vsel %vm1682, %v4035, 0
    %v4057 = vsel %vm1682, %v4036, 0
    %v4060 = vsel %vm1682, %v4037, 0
    %v4063 = vsel %vm1682, %v4038, 0
    %v4066 = vsel %vm1682, %v4039, 0
    %v4069 = vsel %vm1682, %v4040, 0
    %v4072 = vsel %vm1682, %v4041, 0
    %v4075 = vsel %vm1682, %v4042, 0
    %4077 = vmatprep.subr.bf16.mxu0 %v4057
    %4078 = vmatpush1.bf16.msra.mxu0 %v4054
    %4079 = vmatprep.subr.bf16.mxu0 0
    %4080 = vmatpush1.bf16.msra.mxu0 0
    %4081 = vmatprep.subr.bf16.mxu0 0
    %4082 = vmatpush1.bf16.msra.mxu0 0
    %4083 = vmatprep.subr.bf16.mxu0 0
    %4084 = vmatpush1.bf16.msra.mxu0 0
    %4085 = vmatprep.subr.bf16.mxu0 0
    %4086 = vmatpush1.bf16.msra.mxu0 0
    %4087 = vmatprep.subr.bf16.mxu0 0
    %4088 = vmatpush1.bf16.msra.mxu0 0
    %4089 = vmatprep.subr.bf16.mxu0 0
    %4090 = vmatpush1.bf16.msra.mxu0 0
    %4091 = vmatprep.subr.bf16.mxu0 0
    %4092 = vmatpush1.bf16.msra.mxu0 0
    %4093 = vmatprep.subr.bf16.mxu0 0
    %4094 = vmatpush1.bf16.msra.mxu0 0
    %4095 = vmatprep.subr.bf16.mxu0 0
    %4096 = vmatpush1.bf16.msra.mxu0 0
    %4097 = vmatprep.subr.bf16.mxu0 0
    %4098 = vmatpush1.bf16.msra.mxu0 0
    %4099 = vmatprep.subr.bf16.mxu0 0
    %4100 = vmatpush1.bf16.msra.mxu0 0
    %4101 = vmatprep.subr.bf16.mxu0 0
    %4102 = vmatpush1.bf16.msra.mxu0 0
    %4103 = vmatprep.subr.bf16.mxu0 0
    %4104 = vmatpush1.bf16.msra.mxu0 0
    %4105 = vmatprep.subr.bf16.mxu0 0
    %4106 = vmatpush1.bf16.msra.mxu0 0
    %4107 = vmatprep.subr.bf16.mxu0 0
    %4108 = vmatpush1.bf16.msra.mxu0 0
    %4109 = vmatprep.mubr.bf16.mxu0 0
    %4110 = vmatmul.mubr.bf16.gmra.mrb[0].mxu0 %v4048
    %v4111 = vpop.f32.mrb[0].mxu0
    %v4112 = vadd.f32 0.0, %v4111
    %v4113 = vpop.f32.mrb[0].mxu0
    %v4114 = vadd.f32 0.0, %v4113
    %v4115 = vpop.f32.mrb[0].mxu0
    %v4116 = vadd.f32 0.0, %v4115
    %v4117 = vpop.f32.mrb[0].mxu0
    %v4118 = vadd.f32 0.0, %v4117
    %4119 = vmatprep.mubr.bf16.mxu0 0
    %4120 = vmatmul.mubr.bf16.gmra.mrb[0].mxu0 %v4051
    %v4121 = vpop.f32.mrb[0].mxu0
    %v4122 = vadd.f32 0.0, %v4121
    %v4123 = vpop.f32.mrb[0].mxu0
    %v4124 = vadd.f32 0.0, %v4123
    %v4125 = vpop.f32.mrb[0].mxu0
    %v4126 = vpop.f32.mrb[0].mxu0
    %4127 = vdwg.mxu0
    %4128 = vmatprep.subr.bf16.mxu0 %v4063
    %4129 = vmatpush1.bf16.msra.mxu0 %v4060
    %4130 = vmatprep.subr.bf16.mxu0 0
    %4131 = vmatpush1.bf16.msra.mxu0 0
    %4132 = vmatprep.subr.bf16.mxu0 0
    %4133 = vmatpush1.bf16.msra.mxu0 0
    %4134 = vmatprep.subr.bf16.mxu0 0
    %4135 = vmatpush1.bf16.msra.mxu0 0
    %4136 = vmatprep.subr.bf16.mxu0 0
    %4137 = vmatpush1.bf16.msra.mxu0 0
    %4138 = vmatprep.subr.bf16.mxu0 0
    %4139 = vmatpush1.bf16.msra.mxu0 0
    %4140 = vmatprep.subr.bf16.mxu0 0
    %4141 = vmatpush1.bf16.msra.mxu0 0
    %4142 = vmatprep.subr.bf16.mxu0 0
    %4143 = vmatpush1.bf16.msra.mxu0 0
    %4144 = vmatprep.subr.bf16.mxu0 0
    %4145 = vmatpush1.bf16.msra.mxu0 0
    %4146 = vmatprep.subr.bf16.mxu0 0
    %4147 = vmatpush1.bf16.msra.mxu0 0
    %4148 = vmatprep.subr.bf16.mxu0 0
    %4149 = vmatpush1.bf16.msra.mxu0 0
    %4150 = vmatprep.subr.bf16.mxu0 0
    %4151 = vmatpush1.bf16.msra.mxu0 0
    %4152 = vmatprep.subr.bf16.mxu0 0
    %4153 = vmatpush1.bf16.msra.mxu0 0
    %4154 = vmatprep.subr.bf16.mxu0 0
    %4155 = vmatpush1.bf16.msra.mxu0 0
    %4156 = vmatprep.subr.bf16.mxu0 0
    %4157 = vmatpush1.bf16.msra.mxu0 0
    %4158 = vmatprep.subr.bf16.mxu0 0
    %4159 = vmatpush1.bf16.msra.mxu0 0
    %4160 = vmatprep.mubr.bf16.mxu0 0
    %4161 = vmatmul.mubr.bf16.gmra.mrb[0].mxu0 %v4048
    %v4162 = vpop.f32.mrb[0].mxu0
    %v4163 = vadd.f32 0.0, %v4162
    %v4164 = vpop.f32.mrb[0].mxu0
    %v4165 = vadd.f32 0.0, %v4164
    %v4166 = vpop.f32.mrb[0].mxu0
    %v4167 = vadd.f32 0.0, %v4166
    %v4168 = vpop.f32.mrb[0].mxu0
    %v4169 = vadd.f32 0.0, %v4168
    %4170 = vmatprep.mubr.bf16.mxu0 0
    %4171 = vmatmul.mubr.bf16.gmra.mrb[0].mxu0 %v4051
    %v4172 = vpop.f32.mrb[0].mxu0
    %v4173 = vadd.f32 0.0, %v4172
    %v4174 = vpop.f32.mrb[0].mxu0
    %v4175 = vadd.f32 0.0, %v4174
    %v4176 = vpop.f32.mrb[0].mxu0
    %v4177 = vpop.f32.mrb[0].mxu0
    %4178 = vdwg.mxu0
    %4179 = vmatprep.subr.bf16.mxu0 %v4069
    %4180 = vmatpush1.bf16.msra.mxu0 %v4066
    %4181 = vmatprep.subr.bf16.mxu0 0
    %4182 = vmatpush1.bf16.msra.mxu0 0
    %4183 = vmatprep.subr.bf16.mxu0 0
    %4184 = vmatpush1.bf16.msra.mxu0 0
    %4185 = vmatprep.subr.bf16.mxu0 0
    %4186 = vmatpush1.bf16.msra.mxu0 0
    %4187 = vmatprep.subr.bf16.mxu0 0
    %4188 = vmatpush1.bf16.msra.mxu0 0
    %4189 = vmatprep.subr.bf16.mxu0 0
    %4190 = vmatpush1.bf16.msra.mxu0 0
    %4191 = vmatprep.subr.bf16.mxu0 0
    %4192 = vmatpush1.bf16.msra.mxu0 0
    %4193 = vmatprep.subr.bf16.mxu0 0
    %4194 = vmatpush1.bf16.msra.mxu0 0
    %4195 = vmatprep.subr.bf16.mxu0 0
    %4196 = vmatpush1.bf16.msra.mxu0 0
    %4197 = vmatprep.subr.bf16.mxu0 0
    %4198 = vmatpush1.bf16.msra.mxu0 0
    %4199 = vmatprep.subr.bf16.mxu0 0
    %4200 = vmatpush1.bf16.msra.mxu0 0
    %4201 = vmatprep.subr.bf16.mxu0 0
    %4202 = vmatpush1.bf16.msra.mxu0 0
    %4203 = vmatprep.subr.bf16.mxu0 0
    %4204 = vmatpush1.bf16.msra.mxu0 0
    %4205 = vmatprep.subr.bf16.mxu0 0
    %4206 = vmatpush1.bf16.msra.mxu0 0
    %4207 = vmatprep.subr.bf16.mxu0 0
    %4208 = vmatpush1.bf16.msra.mxu0 0
    %4209 = vmatprep.subr.bf16.mxu0 0
    %4210 = vmatpush1.bf16.msra.mxu0 0
    %4211 = vmatprep.mubr.bf16.mxu0 0
    %4212 = vmatmul.mubr.bf16.gmra.mrb[0].mxu0 %v4048
    %v4213 = vpop.f32.mrb[0].mxu0
    %v4214 = vadd.f32 0.0, %v4213
    %v4215 = vpop.f32.mrb[0].mxu0
    %v4216 = vadd.f32 0.0, %v4215
    %v4217 = vpop.f32.mrb[0].mxu0
    %v4218 = vadd.f32 0.0, %v4217
    %v4219 = vpop.f32.mrb[0].mxu0
    %v4220 = vadd.f32 0.0, %v4219
    %4221 = vmatprep.mubr.bf16.mxu0 0
    %4222 = vmatmul.mubr.bf16.gmra.mrb[0].mxu0 %v4051
    %v4223 = vpop.f32.mrb[0].mxu0
    %v4224 = vadd.f32 0.0, %v4223
    %v4225 = vpop.f32.mrb[0].mxu0
    %v4226 = vadd.f32 0.0, %v4225
    %v4227 = vpop.f32.mrb[0].mxu0
    %v4228 = vpop.f32.mrb[0].mxu0
    %4229 = vdwg.mxu0
    %4230 = vmatprep.subr.bf16.mxu0 %v4075
    %4231 = vmatpush1.bf16.msra.mxu0 %v4072
    %4232 = vmatprep.subr.bf16.mxu0 0
    %4233 = vmatpush1.bf16.msra.mxu0 0
    %4234 = vmatprep.subr.bf16.mxu0 0
    %4235 = vmatpush1.bf16.msra.mxu0 0
    %4236 = vmatprep.subr.bf16.mxu0 0
    %4237 = vmatpush1.bf16.msra.mxu0 0
    %4238 = vmatprep.subr.bf16.mxu0 0
    %4239 = vmatpush1.bf16.msra.mxu0 0
    %4240 = vmatprep.subr.bf16.mxu0 0
    %4241 = vmatpush1.bf16.msra.mxu0 0
    %4242 = vmatprep.subr.bf16.mxu0 0
    %4243 = vmatpush1.bf16.msra.mxu0 0
    %4244 = vmatprep.subr.bf16.mxu0 0
    %4245 = vmatpush1.bf16.msra.mxu0 0
    %4246 = vmatprep.subr.bf16.mxu0 0
    %4247 = vmatpush1.bf16.msra.mxu0 0
    %4248 = vmatprep.subr.bf16.mxu0 0
    %4249 = vmatpush1.bf16.msra.mxu0 0
    %4250 = vmatprep.subr.bf16.mxu0 0
    %4251 = vmatpush1.bf16.msra.mxu0 0
    %4252 = vmatprep.subr.bf16.mxu0 0
    %4253 = vmatpush1.bf16.msra.mxu0 0
    %4254 = vmatprep.subr.bf16.mxu0 0
    %4255 = vmatpush1.bf16.msra.mxu0 0
    %4256 = vmatprep.subr.bf16.mxu0 0
    %4257 = vmatpush1.bf16.msra.mxu0 0
    %4258 = vmatprep.subr.bf16.mxu0 0
    %4259 = vmatpush1.bf16.msra.mxu0 0
    %4260 = vmatprep.subr.bf16.mxu0 0
    %4261 = vmatpush1.bf16.msra.mxu0 0
    %4262 = vmatprep.mubr.bf16.mxu0 0
    %4263 = vmatmul.mubr.bf16.gmra.mrb[0].mxu0 %v4048
    %v4264 = vpop.f32.mrb[0].mxu0
    %v4265 = vadd.f32 0.0, %v4264
    %v4266 = vpop.f32.mrb[0].mxu0
    %v4267 = vadd.f32 0.0, %v4266
    %v4268 = vpop.f32.mrb[0].mxu0
    %v4269 = vadd.f32 0.0, %v4268
    %v4270 = vpop.f32.mrb[0].mxu0
    %v4271 = vadd.f32 0.0, %v4270
    %4272 = vmatprep.mubr.bf16.mxu0 0
    %4273 = vmatmul.mubr.bf16.gmra.mrb[0].mxu0 %v4051
    %v4274 = vpop.f32.mrb[0].mxu0
    %v4275 = vadd.f32 0.0, %v4274
    %v4276 = vpop.f32.mrb[0].mxu0
    %v4277 = vadd.f32 0.0, %v4276
    %v4278 = vpop.f32.mrb[0].mxu0
    %v4279 = vpop.f32.mrb[0].mxu0
    %4280 = vdwg.mxu0
    %v4281 = vadd.f32 %v4011, %v4112
    %v4282 = vadd.f32 %v4012, %v4114
    %v4283 = vadd.f32 %v4013, %v4163
    %v4284 = vadd.f32 %v4014, %v4165
    %v4285 = vadd.f32 %v4015, %v4214
    %v4286 = vadd.f32 %v4016, %v4216
    %v4287 = vadd.f32 %v4017, %v4265
    %v4288 = vadd.f32 %v4018, %v4267
    %v4289 = vadd.f32 %v4019, %v4116
    %v4290 = vadd.f32 %v4020, %v4118
    %v4291 = vadd.f32 %v4021, %v4167
    %v4292 = vadd.f32 %v4022, %v4169
    %v4293 = vadd.f32 %v4023, %v4218
    %v4294 = vadd.f32 %v4024, %v4220
    %v4295 = vadd.f32 %v4025, %v4269
    %v4296 = vadd.f32 %v4026, %v4271
    %v4297 = vadd.f32 %v4027, %v4122
    %v4298 = vadd.f32 %v4028, %v4124
    %v4299 = vadd.f32 %v4029, %v4173
    %v4300 = vadd.f32 %v4030, %v4175
    %v4301 = vadd.f32 %v4031, %v4224
    %v4302 = vadd.f32 %v4032, %v4226
    %v4303 = vadd.f32 %v4033, %v4275
    %v4304 = vadd.f32 %v4034, %v4277
    %v4305 = vpack.c.bf16 %v1559, %v1559
    %v4306 = vpack.c.bf16 %v1560, %v1560
    %v4307 = vpack.c.bf16 %v1561, %v1561
    %v4308 = vpack.c.bf16 %v1562, %v1562
    %v4309 = vpack.c.bf16 %v1563, %v1563
    %v4310 = vpack.c.bf16 %v1564, %v1564
    %v4311 = vpack.c.bf16 %v1565, %v1565
    %v4312 = vpack.c.bf16 %v1566, %v1566
    %4313 = vrot.lane.b32.xlu0 %v1670, 88
    %v4314 = vpop.permute.xlu0 %4313
    %4315 = vrot.lane.b32.xlu0 %v1671, 88
    %v4316 = vpop.permute.xlu0 %4315
    %v4318 = vsel %vm854, %v4314, 0
    %v4321 = vsel %vm854, %v4316, 0
    %v4324 = vsel %vm1682, %v4305, 0
    %v4327 = vsel %vm1682, %v4306, 0
    %v4330 = vsel %vm1682, %v4307, 0
    %v4333 = vsel %vm1682, %v4308, 0
    %v4336 = vsel %vm1682, %v4309, 0
    %v4339 = vsel %vm1682, %v4310, 0
    %v4342 = vsel %vm1682, %v4311, 0
    %v4345 = vsel %vm1682, %v4312, 0
    %4347 = vmatprep.subr.bf16.mxu0 %v4327
    %4348 = vmatpush1.bf16.msra.mxu0 %v4324
    %4349 = vmatprep.subr.bf16.mxu0 0
    %4350 = vmatpush1.bf16.msra.mxu0 0
    %4351 = vmatprep.subr.bf16.mxu0 0
    %4352 = vmatpush1.bf16.msra.mxu0 0
    %4353 = vmatprep.subr.bf16.mxu0 0
    %4354 = vmatpush1.bf16.msra.mxu0 0
    %4355 = vmatprep.subr.bf16.mxu0 0
    %4356 = vmatpush1.bf16.msra.mxu0 0
    %4357 = vmatprep.subr.bf16.mxu0 0
    %4358 = vmatpush1.bf16.msra.mxu0 0
    %4359 = vmatprep.subr.bf16.mxu0 0
    %4360 = vmatpush1.bf16.msra.mxu0 0
    %4361 = vmatprep.subr.bf16.mxu0 0
    %4362 = vmatpush1.bf16.msra.mxu0 0
    %4363 = vmatprep.subr.bf16.mxu0 0
    %4364 = vmatpush1.bf16.msra.mxu0 0
    %4365 = vmatprep.subr.bf16.mxu0 0
    %4366 = vmatpush1.bf16.msra.mxu0 0
    %4367 = vmatprep.subr.bf16.mxu0 0
    %4368 = vmatpush1.bf16.msra.mxu0 0
    %4369 = vmatprep.subr.bf16.mxu0 0
    %4370 = vmatpush1.bf16.msra.mxu0 0
    %4371 = vmatprep.subr.bf16.mxu0 0
    %4372 = vmatpush1.bf16.msra.mxu0 0
    %4373 = vmatprep.subr.bf16.mxu0 0
    %4374 = vmatpush1.bf16.msra.mxu0 0
    %4375 = vmatprep.subr.bf16.mxu0 0
    %4376 = vmatpush1.bf16.msra.mxu0 0
    %4377 = vmatprep.subr.bf16.mxu0 0
    %4378 = vmatpush1.bf16.msra.mxu0 0
    %4379 = vmatprep.mubr.bf16.mxu0 0
    %4380 = vmatmul.mubr.bf16.gmra.mrb[0].mxu0 %v4318
    %v4381 = vpop.f32.mrb[0].mxu0
    %v4382 = vadd.f32 0.0, %v4381
    %v4383 = vpop.f32.mrb[0].mxu0
    %v4384 = vadd.f32 0.0, %v4383
    %v4385 = vpop.f32.mrb[0].mxu0
    %v4386 = vadd.f32 0.0, %v4385
    %v4387 = vpop.f32.mrb[0].mxu0
    %v4388 = vadd.f32 0.0, %v4387
    %4389 = vmatprep.mubr.bf16.mxu0 0
    %4390 = vmatmul.mubr.bf16.gmra.mrb[0].mxu0 %v4321
    %v4391 = vpop.f32.mrb[0].mxu0
    %v4392 = vadd.f32 0.0, %v4391
    %v4393 = vpop.f32.mrb[0].mxu0
    %v4394 = vadd.f32 0.0, %v4393
    %v4395 = vpop.f32.mrb[0].mxu0
    %v4396 = vpop.f32.mrb[0].mxu0
    %4397 = vdwg.mxu0
    %4398 = vmatprep.subr.bf16.mxu0 %v4333
    %4399 = vmatpush1.bf16.msra.mxu0 %v4330
    %4400 = vmatprep.subr.bf16.mxu0 0
    %4401 = vmatpush1.bf16.msra.mxu0 0
    %4402 = vmatprep.subr.bf16.mxu0 0
    %4403 = vmatpush1.bf16.msra.mxu0 0
    %4404 = vmatprep.subr.bf16.mxu0 0
    %4405 = vmatpush1.bf16.msra.mxu0 0
    %4406 = vmatprep.subr.bf16.mxu0 0
    %4407 = vmatpush1.bf16.msra.mxu0 0
    %4408 = vmatprep.subr.bf16.mxu0 0
    %4409 = vmatpush1.bf16.msra.mxu0 0
    %4410 = vmatprep.subr.bf16.mxu0 0
    %4411 = vmatpush1.bf16.msra.mxu0 0
    %4412 = vmatprep.subr.bf16.mxu0 0
    %4413 = vmatpush1.bf16.msra.mxu0 0
    %4414 = vmatprep.subr.bf16.mxu0 0
    %4415 = vmatpush1.bf16.msra.mxu0 0
    %4416 = vmatprep.subr.bf16.mxu0 0
    %4417 = vmatpush1.bf16.msra.mxu0 0
    %4418 = vmatprep.subr.bf16.mxu0 0
    %4419 = vmatpush1.bf16.msra.mxu0 0
    %4420 = vmatprep.subr.bf16.mxu0 0
    %4421 = vmatpush1.bf16.msra.mxu0 0
    %4422 = vmatprep.subr.bf16.mxu0 0
    %4423 = vmatpush1.bf16.msra.mxu0 0
    %4424 = vmatprep.subr.bf16.mxu0 0
    %4425 = vmatpush1.bf16.msra.mxu0 0
    %4426 = vmatprep.subr.bf16.mxu0 0
    %4427 = vmatpush1.bf16.msra.mxu0 0
    %4428 = vmatprep.subr.bf16.mxu0 0
    %4429 = vmatpush1.bf16.msra.mxu0 0
    %4430 = vmatprep.mubr.bf16.mxu0 0
    %4431 = vmatmul.mubr.bf16.gmra.mrb[0].mxu0 %v4318
    %v4432 = vpop.f32.mrb[0].mxu0
    %v4433 = vadd.f32 0.0, %v4432
    %v4434 = vpop.f32.mrb[0].mxu0
    %v4435 = vadd.f32 0.0, %v4434
    %v4436 = vpop.f32.mrb[0].mxu0
    %v4437 = vadd.f32 0.0, %v4436
    %v4438 = vpop.f32.mrb[0].mxu0
    %v4439 = vadd.f32 0.0, %v4438
    %4440 = vmatprep.mubr.bf16.mxu0 0
    %4441 = vmatmul.mubr.bf16.gmra.mrb[0].mxu0 %v4321
    %v4442 = vpop.f32.mrb[0].mxu0
    %v4443 = vadd.f32 0.0, %v4442
    %v4444 = vpop.f32.mrb[0].mxu0
    %v4445 = vadd.f32 0.0, %v4444
    %v4446 = vpop.f32.mrb[0].mxu0
    %v4447 = vpop.f32.mrb[0].mxu0
    %4448 = vdwg.mxu0
    %4449 = vmatprep.subr.bf16.mxu0 %v4339
    %4450 = vmatpush1.bf16.msra.mxu0 %v4336
    %4451 = vmatprep.subr.bf16.mxu0 0
    %4452 = vmatpush1.bf16.msra.mxu0 0
    %4453 = vmatprep.subr.bf16.mxu0 0
    %4454 = vmatpush1.bf16.msra.mxu0 0
    %4455 = vmatprep.subr.bf16.mxu0 0
    %4456 = vmatpush1.bf16.msra.mxu0 0
    %4457 = vmatprep.subr.bf16.mxu0 0
    %4458 = vmatpush1.bf16.msra.mxu0 0
    %4459 = vmatprep.subr.bf16.mxu0 0
    %4460 = vmatpush1.bf16.msra.mxu0 0
    %4461 = vmatprep.subr.bf16.mxu0 0
    %4462 = vmatpush1.bf16.msra.mxu0 0
    %4463 = vmatprep.subr.bf16.mxu0 0
    %4464 = vmatpush1.bf16.msra.mxu0 0
    %4465 = vmatprep.subr.bf16.mxu0 0
    %4466 = vmatpush1.bf16.msra.mxu0 0
    %4467 = vmatprep.subr.bf16.mxu0 0
    %4468 = vmatpush1.bf16.msra.mxu0 0
    %4469 = vmatprep.subr.bf16.mxu0 0
    %4470 = vmatpush1.bf16.msra.mxu0 0
    %4471 = vmatprep.subr.bf16.mxu0 0
    %4472 = vmatpush1.bf16.msra.mxu0 0
    %4473 = vmatprep.subr.bf16.mxu0 0
    %4474 = vmatpush1.bf16.msra.mxu0 0
    %4475 = vmatprep.subr.bf16.mxu0 0
    %4476 = vmatpush1.bf16.msra.mxu0 0
    %4477 = vmatprep.subr.bf16.mxu0 0
    %4478 = vmatpush1.bf16.msra.mxu0 0
    %4479 = vmatprep.subr.bf16.mxu0 0
    %4480 = vmatpush1.bf16.msra.mxu0 0
    %4481 = vmatprep.mubr.bf16.mxu0 0
    %4482 = vmatmul.mubr.bf16.gmra.mrb[0].mxu0 %v4318
    %v4483 = vpop.f32.mrb[0].mxu0
    %v4484 = vadd.f32 0.0, %v4483
    %v4485 = vpop.f32.mrb[0].mxu0
    %v4486 = vadd.f32 0.0, %v4485
    %v4487 = vpop.f32.mrb[0].mxu0
    %v4488 = vadd.f32 0.0, %v4487
    %v4489 = vpop.f32.mrb[0].mxu0
    %v4490 = vadd.f32 0.0, %v4489
    %4491 = vmatprep.mubr.bf16.mxu0 0
    %4492 = vmatmul.mubr.bf16.gmra.mrb[0].mxu0 %v4321
    %v4493 = vpop.f32.mrb[0].mxu0
    %v4494 = vadd.f32 0.0, %v4493
    %v4495 = vpop.f32.mrb[0].mxu0
    %v4496 = vadd.f32 0.0, %v4495
    %v4497 = vpop.f32.mrb[0].mxu0
    %v4498 = vpop.f32.mrb[0].mxu0
    %4499 = vdwg.mxu0
    %4500 = vmatprep.subr.bf16.mxu0 %v4345
    %4501 = vmatpush1.bf16.msra.mxu0 %v4342
    %4502 = vmatprep.subr.bf16.mxu0 0
    %4503 = vmatpush1.bf16.msra.mxu0 0
    %4504 = vmatprep.subr.bf16.mxu0 0
    %4505 = vmatpush1.bf16.msra.mxu0 0
    %4506 = vmatprep.subr.bf16.mxu0 0
    %4507 = vmatpush1.bf16.msra.mxu0 0
    %4508 = vmatprep.subr.bf16.mxu0 0
    %4509 = vmatpush1.bf16.msra.mxu0 0
    %4510 = vmatprep.subr.bf16.mxu0 0
    %4511 = vmatpush1.bf16.msra.mxu0 0
    %4512 = vmatprep.subr.bf16.mxu0 0
    %4513 = vmatpush1.bf16.msra.mxu0 0
    %4514 = vmatprep.subr.bf16.mxu0 0
    %4515 = vmatpush1.bf16.msra.mxu0 0
    %4516 = vmatprep.subr.bf16.mxu0 0
    %4517 = vmatpush1.bf16.msra.mxu0 0
    %4518 = vmatprep.subr.bf16.mxu0 0
    %4519 = vmatpush1.bf16.msra.mxu0 0
    %4520 = vmatprep.subr.bf16.mxu0 0
    %4521 = vmatpush1.bf16.msra.mxu0 0
    %4522 = vmatprep.subr.bf16.mxu0 0
    %4523 = vmatpush1.bf16.msra.mxu0 0
    %4524 = vmatprep.subr.bf16.mxu0 0
    %4525 = vmatpush1.bf16.msra.mxu0 0
    %4526 = vmatprep.subr.bf16.mxu0 0
    %4527 = vmatpush1.bf16.msra.mxu0 0
    %4528 = vmatprep.subr.bf16.mxu0 0
    %4529 = vmatpush1.bf16.msra.mxu0 0
    %4530 = vmatprep.subr.bf16.mxu0 0
    %4531 = vmatpush1.bf16.msra.mxu0 0
    %4532 = vmatprep.mubr.bf16.mxu0 0
    %4533 = vmatmul.mubr.bf16.gmra.mrb[0].mxu0 %v4318
    %v4534 = vpop.f32.mrb[0].mxu0
    %v4535 = vadd.f32 0.0, %v4534
    %v4536 = vpop.f32.mrb[0].mxu0
    %v4537 = vadd.f32 0.0, %v4536
    %v4538 = vpop.f32.mrb[0].mxu0
    %v4539 = vadd.f32 0.0, %v4538
    %v4540 = vpop.f32.mrb[0].mxu0
    %v4541 = vadd.f32 0.0, %v4540
    %4542 = vmatprep.mubr.bf16.mxu0 0
    %4543 = vmatmul.mubr.bf16.gmra.mrb[0].mxu0 %v4321
    %v4544 = vpop.f32.mrb[0].mxu0
    %v4545 = vadd.f32 0.0, %v4544
    %v4546 = vpop.f32.mrb[0].mxu0
    %v4547 = vadd.f32 0.0, %v4546
    %v4548 = vpop.f32.mrb[0].mxu0
    %v4549 = vpop.f32.mrb[0].mxu0
    %4550 = vdwg.mxu0
    %v4551 = vadd.f32 %v4281, %v4382
    %v4552 = vadd.f32 %v4282, %v4384
    %v4553 = vadd.f32 %v4283, %v4433
    %v4554 = vadd.f32 %v4284, %v4435
    %v4555 = vadd.f32 %v4285, %v4484
    %v4556 = vadd.f32 %v4286, %v4486
    %v4557 = vadd.f32 %v4287, %v4535
    %v4558 = vadd.f32 %v4288, %v4537
    %v4559 = vadd.f32 %v4289, %v4386
    %v4560 = vadd.f32 %v4290, %v4388
    %v4561 = vadd.f32 %v4291, %v4437
    %v4562 = vadd.f32 %v4292, %v4439
    %v4563 = vadd.f32 %v4293, %v4488
    %v4564 = vadd.f32 %v4294, %v4490
    %v4565 = vadd.f32 %v4295, %v4539
    %v4566 = vadd.f32 %v4296, %v4541
    %v4567 = vadd.f32 %v4297, %v4392
    %v4568 = vadd.f32 %v4298, %v4394
    %v4569 = vadd.f32 %v4299, %v4443
    %v4570 = vadd.f32 %v4300, %v4445
    %v4571 = vadd.f32 %v4301, %v4494
    %v4572 = vadd.f32 %v4302, %v4496
    %v4573 = vadd.f32 %v4303, %v4545
    %v4574 = vadd.f32 %v4304, %v4547
    %v4575 = vpack.c.bf16 %v1640, %v1640
    %v4576 = vpack.c.bf16 %v1641, %v1641
    %v4577 = vpack.c.bf16 %v1642, %v1642
    %v4578 = vpack.c.bf16 %v1643, %v1643
    %v4579 = vpack.c.bf16 %v1644, %v1644
    %v4580 = vpack.c.bf16 %v1645, %v1645
    %v4581 = vpack.c.bf16 %v1646, %v1646
    %v4582 = vpack.c.bf16 %v1647, %v1647
    %4583 = vrot.lane.b32.xlu0 %v1670, 84
    %v4584 = vpop.permute.xlu0 %4583
    %4585 = vrot.lane.b32.xlu0 %v1671, 84
    %v4586 = vpop.permute.xlu0 %4585
    %v4588 = vsel %vm854, %v4584, 0
    %v4591 = vsel %vm854, %v4586, 0
    %v4594 = vsel %vm1682, %v4575, 0
    %v4597 = vsel %vm1682, %v4576, 0
    %v4600 = vsel %vm1682, %v4577, 0
    %v4603 = vsel %vm1682, %v4578, 0
    %v4606 = vsel %vm1682, %v4579, 0
    %v4609 = vsel %vm1682, %v4580, 0
    %v4612 = vsel %vm1682, %v4581, 0
    %v4615 = vsel %vm1682, %v4582, 0
    %4617 = vmatprep.subr.bf16.mxu0 %v4597
    %4618 = vmatpush1.bf16.msra.mxu0 %v4594
    %4619 = vmatprep.subr.bf16.mxu0 0
    %4620 = vmatpush1.bf16.msra.mxu0 0
    %4621 = vmatprep.subr.bf16.mxu0 0
    %4622 = vmatpush1.bf16.msra.mxu0 0
    %4623 = vmatprep.subr.bf16.mxu0 0
    %4624 = vmatpush1.bf16.msra.mxu0 0
    %4625 = vmatprep.subr.bf16.mxu0 0
    %4626 = vmatpush1.bf16.msra.mxu0 0
    %4627 = vmatprep.subr.bf16.mxu0 0
    %4628 = vmatpush1.bf16.msra.mxu0 0
    %4629 = vmatprep.subr.bf16.mxu0 0
    %4630 = vmatpush1.bf16.msra.mxu0 0
    %4631 = vmatprep.subr.bf16.mxu0 0
    %4632 = vmatpush1.bf16.msra.mxu0 0
    %4633 = vmatprep.subr.bf16.mxu0 0
    %4634 = vmatpush1.bf16.msra.mxu0 0
    %4635 = vmatprep.subr.bf16.mxu0 0
    %4636 = vmatpush1.bf16.msra.mxu0 0
    %4637 = vmatprep.subr.bf16.mxu0 0
    %4638 = vmatpush1.bf16.msra.mxu0 0
    %4639 = vmatprep.subr.bf16.mxu0 0
    %4640 = vmatpush1.bf16.msra.mxu0 0
    %4641 = vmatprep.subr.bf16.mxu0 0
    %4642 = vmatpush1.bf16.msra.mxu0 0
    %4643 = vmatprep.subr.bf16.mxu0 0
    %4644 = vmatpush1.bf16.msra.mxu0 0
    %4645 = vmatprep.subr.bf16.mxu0 0
    %4646 = vmatpush1.bf16.msra.mxu0 0
    %4647 = vmatprep.subr.bf16.mxu0 0
    %4648 = vmatpush1.bf16.msra.mxu0 0
    %4649 = vmatprep.mubr.bf16.mxu0 0
    %4650 = vmatmul.mubr.bf16.gmra.mrb[0].mxu0 %v4588
    %v4651 = vpop.f32.mrb[0].mxu0
    %v4652 = vadd.f32 0.0, %v4651
    %v4653 = vpop.f32.mrb[0].mxu0
    %v4654 = vadd.f32 0.0, %v4653
    %v4655 = vpop.f32.mrb[0].mxu0
    %v4656 = vadd.f32 0.0, %v4655
    %v4657 = vpop.f32.mrb[0].mxu0
    %v4658 = vadd.f32 0.0, %v4657
    %4659 = vmatprep.mubr.bf16.mxu0 0
    %4660 = vmatmul.mubr.bf16.gmra.mrb[0].mxu0 %v4591
    %v4661 = vpop.f32.mrb[0].mxu0
    %v4662 = vadd.f32 0.0, %v4661
    %v4663 = vpop.f32.mrb[0].mxu0
    %v4664 = vadd.f32 0.0, %v4663
    %v4665 = vpop.f32.mrb[0].mxu0
    %v4666 = vpop.f32.mrb[0].mxu0
    %4667 = vdwg.mxu0
    %4668 = vmatprep.subr.bf16.mxu0 %v4603
    %4669 = vmatpush1.bf16.msra.mxu0 %v4600
    %4670 = vmatprep.subr.bf16.mxu0 0
    %4671 = vmatpush1.bf16.msra.mxu0 0
    %4672 = vmatprep.subr.bf16.mxu0 0
    %4673 = vmatpush1.bf16.msra.mxu0 0
    %4674 = vmatprep.subr.bf16.mxu0 0
    %4675 = vmatpush1.bf16.msra.mxu0 0
    %4676 = vmatprep.subr.bf16.mxu0 0
    %4677 = vmatpush1.bf16.msra.mxu0 0
    %4678 = vmatprep.subr.bf16.mxu0 0
    %4679 = vmatpush1.bf16.msra.mxu0 0
    %4680 = vmatprep.subr.bf16.mxu0 0
    %4681 = vmatpush1.bf16.msra.mxu0 0
    %4682 = vmatprep.subr.bf16.mxu0 0
    %4683 = vmatpush1.bf16.msra.mxu0 0
    %4684 = vmatprep.subr.bf16.mxu0 0
    %4685 = vmatpush1.bf16.msra.mxu0 0
    %4686 = vmatprep.subr.bf16.mxu0 0
    %4687 = vmatpush1.bf16.msra.mxu0 0
    %4688 = vmatprep.subr.bf16.mxu0 0
    %4689 = vmatpush1.bf16.msra.mxu0 0
    %4690 = vmatprep.subr.bf16.mxu0 0
    %4691 = vmatpush1.bf16.msra.mxu0 0
    %4692 = vmatprep.subr.bf16.mxu0 0
    %4693 = vmatpush1.bf16.msra.mxu0 0
    %4694 = vmatprep.subr.bf16.mxu0 0
    %4695 = vmatpush1.bf16.msra.mxu0 0
    %4696 = vmatprep.subr.bf16.mxu0 0
    %4697 = vmatpush1.bf16.msra.mxu0 0
    %4698 = vmatprep.subr.bf16.mxu0 0
    %4699 = vmatpush1.bf16.msra.mxu0 0
    %4700 = vmatprep.mubr.bf16.mxu0 0
    %4701 = vmatmul.mubr.bf16.gmra.mrb[0].mxu0 %v4588
    %v4702 = vpop.f32.mrb[0].mxu0
    %v4703 = vadd.f32 0.0, %v4702
    %v4704 = vpop.f32.mrb[0].mxu0
    %v4705 = vadd.f32 0.0, %v4704
    %v4706 = vpop.f32.mrb[0].mxu0
    %v4707 = vadd.f32 0.0, %v4706
    %v4708 = vpop.f32.mrb[0].mxu0
    %v4709 = vadd.f32 0.0, %v4708
    %4710 = vmatprep.mubr.bf16.mxu0 0
    %4711 = vmatmul.mubr.bf16.gmra.mrb[0].mxu0 %v4591
    %v4712 = vpop.f32.mrb[0].mxu0
    %v4713 = vadd.f32 0.0, %v4712
    %v4714 = vpop.f32.mrb[0].mxu0
    %v4715 = vadd.f32 0.0, %v4714
    %v4716 = vpop.f32.mrb[0].mxu0
    %v4717 = vpop.f32.mrb[0].mxu0
    %4718 = vdwg.mxu0
    %4719 = vmatprep.subr.bf16.mxu0 %v4609
    %4720 = vmatpush1.bf16.msra.mxu0 %v4606
    %4721 = vmatprep.subr.bf16.mxu0 0
    %4722 = vmatpush1.bf16.msra.mxu0 0
    %4723 = vmatprep.subr.bf16.mxu0 0
    %4724 = vmatpush1.bf16.msra.mxu0 0
    %4725 = vmatprep.subr.bf16.mxu0 0
    %4726 = vmatpush1.bf16.msra.mxu0 0
    %4727 = vmatprep.subr.bf16.mxu0 0
    %4728 = vmatpush1.bf16.msra.mxu0 0
    %4729 = vmatprep.subr.bf16.mxu0 0
    %4730 = vmatpush1.bf16.msra.mxu0 0
    %4731 = vmatprep.subr.bf16.mxu0 0
    %4732 = vmatpush1.bf16.msra.mxu0 0
    %4733 = vmatprep.subr.bf16.mxu0 0
    %4734 = vmatpush1.bf16.msra.mxu0 0
    %4735 = vmatprep.subr.bf16.mxu0 0
    %4736 = vmatpush1.bf16.msra.mxu0 0
    %4737 = vmatprep.subr.bf16.mxu0 0
    %4738 = vmatpush1.bf16.msra.mxu0 0
    %4739 = vmatprep.subr.bf16.mxu0 0
    %4740 = vmatpush1.bf16.msra.mxu0 0
    %4741 = vmatprep.subr.bf16.mxu0 0
    %4742 = vmatpush1.bf16.msra.mxu0 0
    %4743 = vmatprep.subr.bf16.mxu0 0
    %4744 = vmatpush1.bf16.msra.mxu0 0
    %4745 = vmatprep.subr.bf16.mxu0 0
    %4746 = vmatpush1.bf16.msra.mxu0 0
    %4747 = vmatprep.subr.bf16.mxu0 0
    %4748 = vmatpush1.bf16.msra.mxu0 0
    %4749 = vmatprep.subr.bf16.mxu0 0
    %4750 = vmatpush1.bf16.msra.mxu0 0
    %4751 = vmatprep.mubr.bf16.mxu0 0
    %4752 = vmatmul.mubr.bf16.gmra.mrb[0].mxu0 %v4588
    %v4753 = vpop.f32.mrb[0].mxu0
    %v4754 = vadd.f32 0.0, %v4753
    %v4755 = vpop.f32.mrb[0].mxu0
    %v4756 = vadd.f32 0.0, %v4755
    %v4757 = vpop.f32.mrb[0].mxu0
    %v4758 = vadd.f32 0.0, %v4757
    %v4759 = vpop.f32.mrb[0].mxu0
    %v4760 = vadd.f32 0.0, %v4759
    %4761 = vmatprep.mubr.bf16.mxu0 0
    %4762 = vmatmul.mubr.bf16.gmra.mrb[0].mxu0 %v4591
    %v4763 = vpop.f32.mrb[0].mxu0
    %v4764 = vadd.f32 0.0, %v4763
    %v4765 = vpop.f32.mrb[0].mxu0
    %v4766 = vadd.f32 0.0, %v4765
    %v4767 = vpop.f32.mrb[0].mxu0
    %v4768 = vpop.f32.mrb[0].mxu0
    %4769 = vdwg.mxu0
    %4770 = vmatprep.subr.bf16.mxu0 %v4615
    %4771 = vmatpush1.bf16.msra.mxu0 %v4612
    %4772 = vmatprep.subr.bf16.mxu0 0
    %4773 = vmatpush1.bf16.msra.mxu0 0
    %4774 = vmatprep.subr.bf16.mxu0 0
    %4775 = vmatpush1.bf16.msra.mxu0 0
    %4776 = vmatprep.subr.bf16.mxu0 0
    %4777 = vmatpush1.bf16.msra.mxu0 0
    %4778 = vmatprep.subr.bf16.mxu0 0
    %4779 = vmatpush1.bf16.msra.mxu0 0
    %4780 = vmatprep.subr.bf16.mxu0 0
    %4781 = vmatpush1.bf16.msra.mxu0 0
    %4782 = vmatprep.subr.bf16.mxu0 0
    %4783 = vmatpush1.bf16.msra.mxu0 0
    %4784 = vmatprep.subr.bf16.mxu0 0
    %4785 = vmatpush1.bf16.msra.mxu0 0
    %4786 = vmatprep.subr.bf16.mxu0 0
    %4787 = vmatpush1.bf16.msra.mxu0 0
    %4788 = vmatprep.subr.bf16.mxu0 0
    %4789 = vmatpush1.bf16.msra.mxu0 0
    %4790 = vmatprep.subr.bf16.mxu0 0
    %4791 = vmatpush1.bf16.msra.mxu0 0
    %4792 = vmatprep.subr.bf16.mxu0 0
    %4793 = vmatpush1.bf16.msra.mxu0 0
    %4794 = vmatprep.subr.bf16.mxu0 0
    %4795 = vmatpush1.bf16.msra.mxu0 0
    %4796 = vmatprep.subr.bf16.mxu0 0
    %4797 = vmatpush1.bf16.msra.mxu0 0
    %4798 = vmatprep.subr.bf16.mxu0 0
    %4799 = vmatpush1.bf16.msra.mxu0 0
    %4800 = vmatprep.subr.bf16.mxu0 0
    %4801 = vmatpush1.bf16.msra.mxu0 0
    %4802 = vmatprep.mubr.bf16.mxu0 0
    %4803 = vmatmul.mubr.bf16.gmra.mrb[0].mxu0 %v4588
    %v4804 = vpop.f32.mrb[0].mxu0
    %v4805 = vadd.f32 0.0, %v4804
    %v4806 = vpop.f32.mrb[0].mxu0
    %v4807 = vadd.f32 0.0, %v4806
    %v4808 = vpop.f32.mrb[0].mxu0
    %v4809 = vadd.f32 0.0, %v4808
    %v4810 = vpop.f32.mrb[0].mxu0
    %v4811 = vadd.f32 0.0, %v4810
    %4812 = vmatprep.mubr.bf16.mxu0 0
    %4813 = vmatmul.mubr.bf16.gmra.mrb[0].mxu0 %v4591
    %v4814 = vpop.f32.mrb[0].mxu0
    %v4815 = vadd.f32 0.0, %v4814
    %v4816 = vpop.f32.mrb[0].mxu0
    %v4817 = vadd.f32 0.0, %v4816
    %v4818 = vpop.f32.mrb[0].mxu0
    %v4819 = vpop.f32.mrb[0].mxu0
    %4820 = vdwg.mxu0
    %v4821 = vadd.f32 %v4551, %v4652
    %v4822 = vadd.f32 %v4552, %v4654
    %v4823 = vadd.f32 %v4553, %v4703
    %v4824 = vadd.f32 %v4554, %v4705
    %v4825 = vadd.f32 %v4555, %v4754
    %v4826 = vadd.f32 %v4556, %v4756
    %v4827 = vadd.f32 %v4557, %v4805
    %v4828 = vadd.f32 %v4558, %v4807
    %v4829 = vadd.f32 %v4559, %v4656
    %v4830 = vadd.f32 %v4560, %v4658
    %v4831 = vadd.f32 %v4561, %v4707
    %v4832 = vadd.f32 %v4562, %v4709
    %v4833 = vadd.f32 %v4563, %v4758
    %v4834 = vadd.f32 %v4564, %v4760
    %v4835 = vadd.f32 %v4565, %v4809
    %v4836 = vadd.f32 %v4566, %v4811
    %v4837 = vadd.f32 %v4567, %v4662
    %v4838 = vadd.f32 %v4568, %v4664
    %v4839 = vadd.f32 %v4569, %v4713
    %v4840 = vadd.f32 %v4570, %v4715
    %v4841 = vadd.f32 %v4571, %v4764
    %v4842 = vadd.f32 %v4572, %v4766
    %v4843 = vadd.f32 %v4573, %v4815
    %v4844 = vadd.f32 %v4574, %v4817
    %4846 = vset.pattern.permute.xlu0 0
    %4847 = vperm.xlu0 %4846, %v357
    %v4848 = vpop.permute.xlu0 %4847
    %4851 = vset.pattern.permute.xlu0 0
    %4852 = vperm.xlu0 %4851, %v358
    %v4853 = vpop.permute.xlu0 %4852
    %4856 = vset.pattern.permute.xlu0 0
    %4857 = vperm.xlu0 %4856, %v359
    %v4858 = vpop.permute.xlu0 %4857
    %v4860 = vadd.f32 %v4821, %v4848
    %v4861 = vadd.f32 %v4822, %v4848
    %v4862 = vadd.f32 %v4823, %v4848
    %v4863 = vadd.f32 %v4824, %v4848
    %v4864 = vadd.f32 %v4825, %v4848
    %v4865 = vadd.f32 %v4826, %v4848
    %v4866 = vadd.f32 %v4827, %v4848
    %v4867 = vadd.f32 %v4828, %v4848
    %v4868 = vadd.f32 %v4829, %v4853
    %v4869 = vadd.f32 %v4830, %v4853
    %v4870 = vadd.f32 %v4831, %v4853
    %v4871 = vadd.f32 %v4832, %v4853
    %v4872 = vadd.f32 %v4833, %v4853
    %v4873 = vadd.f32 %v4834, %v4853
    %v4874 = vadd.f32 %v4835, %v4853
    %v4875 = vadd.f32 %v4836, %v4853
    %v4876 = vadd.f32 %v4837, %v4858
    %v4877 = vadd.f32 %v4838, %v4858
    %v4878 = vadd.f32 %v4839, %v4858
    %v4879 = vadd.f32 %v4840, %v4858
    %v4880 = vadd.f32 %v4841, %v4858
    %v4881 = vadd.f32 %v4842, %v4858
    %v4882 = vadd.f32 %v4843, %v4858
    %v4883 = vadd.f32 %v4844, %v4858
    %4908 = vrot.lane.b32.xlu0 %v4860, 127
    %v4909 = vpop.permute.xlu0 %4908
    %4910 = vrot.lane.b32.xlu0 %v4861, 127
    %v4911 = vpop.permute.xlu0 %4910
    %4912 = vrot.lane.b32.xlu0 %v4862, 127
    %v4913 = vpop.permute.xlu0 %4912
    %4914 = vrot.lane.b32.xlu0 %v4863, 127
    %v4915 = vpop.permute.xlu0 %4914
    %4916 = vrot.lane.b32.xlu0 %v4864, 127
    %v4917 = vpop.permute.xlu0 %4916
    %4918 = vrot.lane.b32.xlu0 %v4865, 127
    %v4919 = vpop.permute.xlu0 %4918
    %4920 = vrot.lane.b32.xlu0 %v4866, 127
    %v4921 = vpop.permute.xlu0 %4920
    %4922 = vrot.lane.b32.xlu0 %v4867, 127
    %v4923 = vpop.permute.xlu0 %4922
    %4924 = vrot.lane.b32.xlu0 %v4868, 127
    %v4925 = vpop.permute.xlu0 %4924
    %4926 = vrot.lane.b32.xlu0 %v4869, 127
    %v4927 = vpop.permute.xlu0 %4926
    %4928 = vrot.lane.b32.xlu0 %v4870, 127
    %v4929 = vpop.permute.xlu0 %4928
    %4930 = vrot.lane.b32.xlu0 %v4871, 127
    %v4931 = vpop.permute.xlu0 %4930
    %4932 = vrot.lane.b32.xlu0 %v4872, 127
    %v4933 = vpop.permute.xlu0 %4932
    %4934 = vrot.lane.b32.xlu0 %v4873, 127
    %v4935 = vpop.permute.xlu0 %4934
    %4936 = vrot.lane.b32.xlu0 %v4874, 127
    %v4937 = vpop.permute.xlu0 %4936
    %4938 = vrot.lane.b32.xlu0 %v4875, 127
    %v4939 = vpop.permute.xlu0 %4938
    %4940 = vrot.lane.b32.xlu0 %v4876, 127
    %v4941 = vpop.permute.xlu0 %4940
    %4942 = vrot.lane.b32.xlu0 %v4877, 127
    %v4943 = vpop.permute.xlu0 %4942
    %4944 = vrot.lane.b32.xlu0 %v4878, 127
    %v4945 = vpop.permute.xlu0 %4944
    %4946 = vrot.lane.b32.xlu0 %v4879, 127
    %v4947 = vpop.permute.xlu0 %4946
    %4948 = vrot.lane.b32.xlu0 %v4880, 127
    %v4949 = vpop.permute.xlu0 %4948
    %4950 = vrot.lane.b32.xlu0 %v4881, 127
    %v4951 = vpop.permute.xlu0 %4950
    %4952 = vrot.lane.b32.xlu0 %v4882, 127
    %v4953 = vpop.permute.xlu0 %4952
    %4954 = vrot.lane.b32.xlu0 %v4883, 127
    %v4955 = vpop.permute.xlu0 %4954
    %v4956 = vsel %vm1178, %v4909, %v4911
    %v4957 = vsel %vm1178, %v4911, %v4913
    %v4958 = vsel %vm1178, %v4913, %v4915
    %v4959 = vsel %vm1178, %v4915, %v4917
    %v4960 = vsel %vm1178, %v4917, %v4919
    %v4961 = vsel %vm1178, %v4919, %v4921
    %v4962 = vsel %vm1178, %v4921, %v4923
    %v4963 = vsel %vm1178, %v4925, %v4927
    %v4964 = vsel %vm1178, %v4927, %v4929
    %v4965 = vsel %vm1178, %v4929, %v4931
    %v4966 = vsel %vm1178, %v4931, %v4933
    %v4967 = vsel %vm1178, %v4933, %v4935
    %v4968 = vsel %vm1178, %v4935, %v4937
    %v4969 = vsel %vm1178, %v4937, %v4939
    %v4970 = vsel %vm1178, %v4941, %v4943
    %v4971 = vsel %vm1178, %v4943, %v4945
    %v4972 = vsel %vm1178, %v4945, %v4947
    %v4973 = vsel %vm1178, %v4947, %v4949
    %v4974 = vsel %vm1178, %v4949, %v4951
    %v4975 = vsel %vm1178, %v4951, %v4953
    %v4976 = vsel %vm1178, %v4953, %v4955
    %v5001 = vsel %vm1178, %v4923, 0.0
    %v5002 = vsel %vm1178, %v4939, 0.0
    %v5003 = vsel %vm1178, %v4955, 0.0
    %v5004 = vmax.f32 %v4860, %v4956
    %v5005 = vmax.f32 %v4861, %v4957
    %v5006 = vmax.f32 %v4862, %v4958
    %v5007 = vmax.f32 %v4863, %v4959
    %v5008 = vmax.f32 %v4864, %v4960
    %v5009 = vmax.f32 %v4865, %v4961
    %v5010 = vmax.f32 %v4866, %v4962
    %v5011 = vmax.f32 %v4867, %v5001
    %v5012 = vmax.f32 %v4868, %v4963
    %v5013 = vmax.f32 %v4869, %v4964
    %v5014 = vmax.f32 %v4870, %v4965
    %v5015 = vmax.f32 %v4871, %v4966
    %v5016 = vmax.f32 %v4872, %v4967
    %v5017 = vmax.f32 %v4873, %v4968
    %v5018 = vmax.f32 %v4874, %v4969
    %v5019 = vmax.f32 %v4875, %v5002
    %v5020 = vmax.f32 %v4876, %v4970
    %v5021 = vmax.f32 %v4877, %v4971
    %v5022 = vmax.f32 %v4878, %v4972
    %v5023 = vmax.f32 %v4879, %v4973
    %v5024 = vmax.f32 %v4880, %v4974
    %v5025 = vmax.f32 %v4881, %v4975
    %v5026 = vmax.f32 %v4882, %v4976
    %v5027 = vmax.f32 %v4883, %v5003
    %5028 = vrot.lane.b32.xlu0 %v4860, 126
    %v5029 = vpop.permute.xlu0 %5028
    %5030 = vrot.lane.b32.xlu0 %v4861, 126
    %v5031 = vpop.permute.xlu0 %5030
    %5032 = vrot.lane.b32.xlu0 %v4862, 126
    %v5033 = vpop.permute.xlu0 %5032
    %5034 = vrot.lane.b32.xlu0 %v4863, 126
    %v5035 = vpop.permute.xlu0 %5034
    %5036 = vrot.lane.b32.xlu0 %v4864, 126
    %v5037 = vpop.permute.xlu0 %5036
    %5038 = vrot.lane.b32.xlu0 %v4865, 126
    %v5039 = vpop.permute.xlu0 %5038
    %5040 = vrot.lane.b32.xlu0 %v4866, 126
    %v5041 = vpop.permute.xlu0 %5040
    %5042 = vrot.lane.b32.xlu0 %v4867, 126
    %v5043 = vpop.permute.xlu0 %5042
    %5044 = vrot.lane.b32.xlu0 %v4868, 126
    %v5045 = vpop.permute.xlu0 %5044
    %5046 = vrot.lane.b32.xlu0 %v4869, 126
    %v5047 = vpop.permute.xlu0 %5046
    %5048 = vrot.lane.b32.xlu0 %v4870, 126
    %v5049 = vpop.permute.xlu0 %5048
    %5050 = vrot.lane.b32.xlu0 %v4871, 126
    %v5051 = vpop.permute.xlu0 %5050
    %5052 = vrot.lane.b32.xlu0 %v4872, 126
    %v5053 = vpop.permute.xlu0 %5052
    %5054 = vrot.lane.b32.xlu0 %v4873, 126
    %v5055 = vpop.permute.xlu0 %5054
    %5056 = vrot.lane.b32.xlu0 %v4874, 126
    %v5057 = vpop.permute.xlu0 %5056
    %5058 = vrot.lane.b32.xlu0 %v4875, 126
    %v5059 = vpop.permute.xlu0 %5058
    %5060 = vrot.lane.b32.xlu0 %v4876, 126
    %v5061 = vpop.permute.xlu0 %5060
    %5062 = vrot.lane.b32.xlu0 %v4877, 126
    %v5063 = vpop.permute.xlu0 %5062
    %5064 = vrot.lane.b32.xlu0 %v4878, 126
    %v5065 = vpop.permute.xlu0 %5064
    %5066 = vrot.lane.b32.xlu0 %v4879, 126
    %v5067 = vpop.permute.xlu0 %5066
    %5068 = vrot.lane.b32.xlu0 %v4880, 126
    %v5069 = vpop.permute.xlu0 %5068
    %5070 = vrot.lane.b32.xlu0 %v4881, 126
    %v5071 = vpop.permute.xlu0 %5070
    %5072 = vrot.lane.b32.xlu0 %v4882, 126
    %v5073 = vpop.permute.xlu0 %5072
    %5074 = vrot.lane.b32.xlu0 %v4883, 126
    %v5075 = vpop.permute.xlu0 %5074
    %v5076 = vsel %vm1259, %v5029, %v5031
    %v5077 = vsel %vm1259, %v5031, %v5033
    %v5078 = vsel %vm1259, %v5033, %v5035
    %v5079 = vsel %vm1259, %v5035, %v5037
    %v5080 = vsel %vm1259, %v5037, %v5039
    %v5081 = vsel %vm1259, %v5039, %v5041
    %v5082 = vsel %vm1259, %v5041, %v5043
    %v5083 = vsel %vm1259, %v5045, %v5047
    %v5084 = vsel %vm1259, %v5047, %v5049
    %v5085 = vsel %vm1259, %v5049, %v5051
    %v5086 = vsel %vm1259, %v5051, %v5053
    %v5087 = vsel %vm1259, %v5053, %v5055
    %v5088 = vsel %vm1259, %v5055, %v5057
    %v5089 = vsel %vm1259, %v5057, %v5059
    %v5090 = vsel %vm1259, %v5061, %v5063
    %v5091 = vsel %vm1259, %v5063, %v5065
    %v5092 = vsel %vm1259, %v5065, %v5067
    %v5093 = vsel %vm1259, %v5067, %v5069
    %v5094 = vsel %vm1259, %v5069, %v5071
    %v5095 = vsel %vm1259, %v5071, %v5073
    %v5096 = vsel %vm1259, %v5073, %v5075
    %v5121 = vsel %vm1259, %v5043, 0.0
    %v5122 = vsel %vm1259, %v5059, 0.0
    %v5123 = vsel %vm1259, %v5075, 0.0
    %v5124 = vmax.f32 %v5004, %v5076
    %v5125 = vmax.f32 %v5005, %v5077
    %v5126 = vmax.f32 %v5006, %v5078
    %v5127 = vmax.f32 %v5007, %v5079
    %v5128 = vmax.f32 %v5008, %v5080
    %v5129 = vmax.f32 %v5009, %v5081
    %v5130 = vmax.f32 %v5010, %v5082
    %v5131 = vmax.f32 %v5011, %v5121
    %v5132 = vmax.f32 %v5012, %v5083
    %v5133 = vmax.f32 %v5013, %v5084
    %v5134 = vmax.f32 %v5014, %v5085
    %v5135 = vmax.f32 %v5015, %v5086
    %v5136 = vmax.f32 %v5016, %v5087
    %v5137 = vmax.f32 %v5017, %v5088
    %v5138 = vmax.f32 %v5018, %v5089
    %v5139 = vmax.f32 %v5019, %v5122
    %v5140 = vmax.f32 %v5020, %v5090
    %v5141 = vmax.f32 %v5021, %v5091
    %v5142 = vmax.f32 %v5022, %v5092
    %v5143 = vmax.f32 %v5023, %v5093
    %v5144 = vmax.f32 %v5024, %v5094
    %v5145 = vmax.f32 %v5025, %v5095
    %v5146 = vmax.f32 %v5026, %v5096
    %v5147 = vmax.f32 %v5027, %v5123
    %5148 = vrot.lane.b32.xlu0 %v4860, 125
    %v5149 = vpop.permute.xlu0 %5148
    %5150 = vrot.lane.b32.xlu0 %v4861, 125
    %v5151 = vpop.permute.xlu0 %5150
    %5152 = vrot.lane.b32.xlu0 %v4862, 125
    %v5153 = vpop.permute.xlu0 %5152
    %5154 = vrot.lane.b32.xlu0 %v4863, 125
    %v5155 = vpop.permute.xlu0 %5154
    %5156 = vrot.lane.b32.xlu0 %v4864, 125
    %v5157 = vpop.permute.xlu0 %5156
    %5158 = vrot.lane.b32.xlu0 %v4865, 125
    %v5159 = vpop.permute.xlu0 %5158
    %5160 = vrot.lane.b32.xlu0 %v4866, 125
    %v5161 = vpop.permute.xlu0 %5160
    %5162 = vrot.lane.b32.xlu0 %v4867, 125
    %v5163 = vpop.permute.xlu0 %5162
    %5164 = vrot.lane.b32.xlu0 %v4868, 125
    %v5165 = vpop.permute.xlu0 %5164
    %5166 = vrot.lane.b32.xlu0 %v4869, 125
    %v5167 = vpop.permute.xlu0 %5166
    %5168 = vrot.lane.b32.xlu0 %v4870, 125
    %v5169 = vpop.permute.xlu0 %5168
    %5170 = vrot.lane.b32.xlu0 %v4871, 125
    %v5171 = vpop.permute.xlu0 %5170
    %5172 = vrot.lane.b32.xlu0 %v4872, 125
    %v5173 = vpop.permute.xlu0 %5172
    %5174 = vrot.lane.b32.xlu0 %v4873, 125
    %v5175 = vpop.permute.xlu0 %5174
    %5176 = vrot.lane.b32.xlu0 %v4874, 125
    %v5177 = vpop.permute.xlu0 %5176
    %5178 = vrot.lane.b32.xlu0 %v4875, 125
    %v5179 = vpop.permute.xlu0 %5178
    %5180 = vrot.lane.b32.xlu0 %v4876, 125
    %v5181 = vpop.permute.xlu0 %5180
    %5182 = vrot.lane.b32.xlu0 %v4877, 125
    %v5183 = vpop.permute.xlu0 %5182
    %5184 = vrot.lane.b32.xlu0 %v4878, 125
    %v5185 = vpop.permute.xlu0 %5184
    %5186 = vrot.lane.b32.xlu0 %v4879, 125
    %v5187 = vpop.permute.xlu0 %5186
    %5188 = vrot.lane.b32.xlu0 %v4880, 125
    %v5189 = vpop.permute.xlu0 %5188
    %5190 = vrot.lane.b32.xlu0 %v4881, 125
    %v5191 = vpop.permute.xlu0 %5190
    %5192 = vrot.lane.b32.xlu0 %v4882, 125
    %v5193 = vpop.permute.xlu0 %5192
    %5194 = vrot.lane.b32.xlu0 %v4883, 125
    %v5195 = vpop.permute.xlu0 %5194
    %v5196 = vsel %vm1340, %v5149, %v5151
    %v5197 = vsel %vm1340, %v5151, %v5153
    %v5198 = vsel %vm1340, %v5153, %v5155
    %v5199 = vsel %vm1340, %v5155, %v5157
    %v5200 = vsel %vm1340, %v5157, %v5159
    %v5201 = vsel %vm1340, %v5159, %v5161
    %v5202 = vsel %vm1340, %v5161, %v5163
    %v5203 = vsel %vm1340, %v5165, %v5167
    %v5204 = vsel %vm1340, %v5167, %v5169
    %v5205 = vsel %vm1340, %v5169, %v5171
    %v5206 = vsel %vm1340, %v5171, %v5173
    %v5207 = vsel %vm1340, %v5173, %v5175
    %v5208 = vsel %vm1340, %v5175, %v5177
    %v5209 = vsel %vm1340, %v5177, %v5179
    %v5210 = vsel %vm1340, %v5181, %v5183
    %v5211 = vsel %vm1340, %v5183, %v5185
    %v5212 = vsel %vm1340, %v5185, %v5187
    %v5213 = vsel %vm1340, %v5187, %v5189
    %v5214 = vsel %vm1340, %v5189, %v5191
    %v5215 = vsel %vm1340, %v5191, %v5193
    %v5216 = vsel %vm1340, %v5193, %v5195
    %v5241 = vsel %vm1340, %v5163, 0.0
    %v5242 = vsel %vm1340, %v5179, 0.0
    %v5243 = vsel %vm1340, %v5195, 0.0
    %v5244 = vmax.f32 %v5124, %v5196
    %v5245 = vmax.f32 %v5125, %v5197
    %v5246 = vmax.f32 %v5126, %v5198
    %v5247 = vmax.f32 %v5127, %v5199
    %v5248 = vmax.f32 %v5128, %v5200
    %v5249 = vmax.f32 %v5129, %v5201
    %v5250 = vmax.f32 %v5130, %v5202
    %v5251 = vmax.f32 %v5131, %v5241
    %v5252 = vmax.f32 %v5132, %v5203
    %v5253 = vmax.f32 %v5133, %v5204
    %v5254 = vmax.f32 %v5134, %v5205
    %v5255 = vmax.f32 %v5135, %v5206
    %v5256 = vmax.f32 %v5136, %v5207
    %v5257 = vmax.f32 %v5137, %v5208
    %v5258 = vmax.f32 %v5138, %v5209
    %v5259 = vmax.f32 %v5139, %v5242
    %v5260 = vmax.f32 %v5140, %v5210
    %v5261 = vmax.f32 %v5141, %v5211
    %v5262 = vmax.f32 %v5142, %v5212
    %v5263 = vmax.f32 %v5143, %v5213
    %v5264 = vmax.f32 %v5144, %v5214
    %v5265 = vmax.f32 %v5145, %v5215
    %v5266 = vmax.f32 %v5146, %v5216
    %v5267 = vmax.f32 %v5147, %v5243
    %v5268 = vpack.c.bf16 %v5252, %v5244
    %v5269 = vpack.c.bf16 %v5253, %v5245
    %v5270 = vpack.c.bf16 %v5254, %v5246
    %v5271 = vpack.c.bf16 %v5255, %v5247
    %v5272 = vpack.c.bf16 %v5256, %v5248
    %v5273 = vpack.c.bf16 %v5257, %v5249
    %v5274 = vpack.c.bf16 %v5258, %v5250
    %v5275 = vpack.c.bf16 %v5259, %v5251
    %v5276 = vpack.c.bf16 %v5260, %v5260
    %v5277 = vpack.c.bf16 %v5261, %v5261
    %v5278 = vpack.c.bf16 %v5262, %v5262
    %v5279 = vpack.c.bf16 %v5263, %v5263
    %v5280 = vpack.c.bf16 %v5264, %v5264
    %v5281 = vpack.c.bf16 %v5265, %v5265
    %v5282 = vpack.c.bf16 %v5266, %v5266
    %v5283 = vpack.c.bf16 %v5267, %v5267
    %v5412 = vunpack.c.l.b16 %v178
    %v5413 = vunpack.c.h.b16 %v178
    %v5414 = vunpack.c.l.b16 %v179
    %v5415 = vunpack.c.h.b16 %v179
    %v5416 = vunpack.c.l.b16 %v180
    %v5417 = vunpack.c.h.b16 %v180
    %v5418 = vunpack.c.l.b16 %v181
    %v5419 = vunpack.c.h.b16 %v181
    %v5420 = vunpack.c.l.b16 %v182
    %v5421 = vunpack.c.h.b16 %v182
    %v5422 = vunpack.c.l.b16 %v183
    %v5423 = vunpack.c.h.b16 %v183
    %v5424 = vunpack.c.l.b16 %v184
    %v5425 = vunpack.c.h.b16 %v184
    %v5426 = vunpack.c.l.b16 %v185
    %v5427 = vunpack.c.h.b16 %v185
    %v5428 = vunpack.c.l.b16 %v186
    %v5429 = vunpack.c.h.b16 %v186
    %v5430 = vunpack.c.l.b16 %v187
    %v5431 = vunpack.c.h.b16 %v187
    %v5432 = vunpack.c.l.b16 %v188
    %v5433 = vunpack.c.h.b16 %v188
    %v5434 = vunpack.c.l.b16 %v189
    %v5435 = vunpack.c.h.b16 %v189
    %v5436 = vunpack.c.l.b16 %v190
    %v5437 = vunpack.c.h.b16 %v190
    %v5438 = vunpack.c.l.b16 %v191
    %v5439 = vunpack.c.h.b16 %v191
    %v5440 = vunpack.c.l.b16 %v192
    %v5441 = vunpack.c.h.b16 %v192
    %v5442 = vunpack.c.l.b16 %v193
    %v5443 = vunpack.c.h.b16 %v193
    %v5444 = vunpack.c.l.b16 %v194
    %v5445 = vunpack.c.h.b16 %v194
    %v5446 = vunpack.c.l.b16 %v195
    %v5447 = vunpack.c.h.b16 %v195
    %v5448 = vunpack.c.l.b16 %v196
    %v5449 = vunpack.c.h.b16 %v196
    %v5450 = vunpack.c.l.b16 %v197
    %v5451 = vunpack.c.h.b16 %v197
    %v5452 = vunpack.c.l.b16 %v198
    %v5453 = vunpack.c.h.b16 %v198
    %v5454 = vunpack.c.l.b16 %v199
    %v5455 = vunpack.c.h.b16 %v199
    %v5456 = vunpack.c.l.b16 %v200
    %v5457 = vunpack.c.h.b16 %v200
    %v5458 = vunpack.c.l.b16 %v201
    %v5459 = vunpack.c.h.b16 %v201
    %v5460 = vunpack.c.l.b16 %v202
    %v5461 = vunpack.c.h.b16 %v202
    %v5462 = vunpack.c.l.b16 %v203
    %v5463 = vunpack.c.h.b16 %v203
    %v5464 = vunpack.c.l.b16 %v204
    %v5465 = vunpack.c.h.b16 %v204
    %v5466 = vunpack.c.l.b16 %v205
    %v5467 = vunpack.c.h.b16 %v205
    %v5468 = vunpack.c.l.b16 %v206
    %v5469 = vunpack.c.h.b16 %v206
    %v5470 = vunpack.c.l.b16 %v207
    %v5471 = vunpack.c.h.b16 %v207
    %v5472 = vunpack.c.l.b16 %v208
    %v5473 = vunpack.c.h.b16 %v208
    %v5474 = vunpack.c.l.b16 %v209
    %v5475 = vunpack.c.h.b16 %v209
    %v5476 = vunpack.c.l.b16 %v210
    %v5477 = vunpack.c.h.b16 %v210
    %v5478 = vunpack.c.l.b16 %v211
    %v5479 = vunpack.c.h.b16 %v211
    %v5480 = vunpack.c.l.b16 %v212
    %v5481 = vunpack.c.h.b16 %v212
    %v5482 = vunpack.c.l.b16 %v213
    %v5483 = vunpack.c.h.b16 %v213
    %v5484 = vunpack.c.l.b16 %v214
    %v5485 = vunpack.c.h.b16 %v214
    %v5486 = vunpack.c.l.b16 %v215
    %v5487 = vunpack.c.h.b16 %v215
    %v5488 = vunpack.c.l.b16 %v216
    %v5489 = vunpack.c.h.b16 %v216
    %v5490 = vunpack.c.l.b16 %v217
    %v5491 = vunpack.c.h.b16 %v217
    %v5492 = vunpack.c.l.b16 %v218
    %v5493 = vunpack.c.h.b16 %v218
    %v5494 = vunpack.c.l.b16 %v219
    %v5495 = vunpack.c.h.b16 %v219
    %v5496 = vunpack.c.l.b16 %v220
    %v5497 = vunpack.c.h.b16 %v220
    %v5498 = vunpack.c.l.b16 %v221
    %v5499 = vunpack.c.h.b16 %v221
    %v5500 = vunpack.c.l.b16 %v222
    %v5501 = vunpack.c.h.b16 %v222
    %v5502 = vunpack.c.l.b16 %v223
    %v5503 = vunpack.c.h.b16 %v223
    %v5504 = vunpack.c.l.b16 %v224
    %v5505 = vunpack.c.h.b16 %v224
    %v5506 = vunpack.c.l.b16 %v225
    %v5507 = vunpack.c.h.b16 %v225
    %v5508 = vunpack.c.l.b16 %v226
    %v5509 = vunpack.c.h.b16 %v226
    %v5510 = vunpack.c.l.b16 %v227
    %v5511 = vunpack.c.h.b16 %v227
    %v5512 = vunpack.c.l.b16 %v228
    %v5513 = vunpack.c.h.b16 %v228
    %v5514 = vunpack.c.l.b16 %v229
    %v5515 = vunpack.c.h.b16 %v229
    %v5516 = vunpack.c.l.b16 %v230
    %v5517 = vunpack.c.h.b16 %v230
    %v5518 = vunpack.c.l.b16 %v231
    %v5519 = vunpack.c.h.b16 %v231
    %v5520 = vunpack.c.l.b16 %v232
    %v5521 = vunpack.c.h.b16 %v232
    %v5522 = vunpack.c.l.b16 %v233
    %v5523 = vunpack.c.h.b16 %v233
    %v5524 = vunpack.c.l.b16 %v234
    %v5525 = vunpack.c.h.b16 %v234
    %v5526 = vunpack.c.l.b16 %v235
    %v5527 = vunpack.c.h.b16 %v235
    %v5528 = vunpack.c.l.b16 %v236
    %v5529 = vunpack.c.h.b16 %v236
    %v5530 = vunpack.c.l.b16 %v237
    %v5531 = vunpack.c.h.b16 %v237
    %v5532 = vunpack.c.l.b16 %v238
    %v5533 = vunpack.c.h.b16 %v238
    %v5534 = vunpack.c.l.b16 %v239
    %v5535 = vunpack.c.h.b16 %v239
    %v5536 = vunpack.c.l.b16 %v240
    %v5537 = vunpack.c.h.b16 %v240
    %v5538 = vunpack.c.l.b16 %v241
    %v5539 = vunpack.c.h.b16 %v241
    %v5540 = vunpack.c.l.b16 %v242
    %v5541 = vunpack.c.h.b16 %v242
    %v5542 = vunpack.c.l.b16 %v243
    %v5543 = vunpack.c.h.b16 %v243
    %v5544 = vunpack.c.l.b16 %v244
    %v5545 = vunpack.c.h.b16 %v244
    %v5546 = vunpack.c.l.b16 %v245
    %v5547 = vunpack.c.h.b16 %v245
    %v5548 = vunpack.c.l.b16 %v246
    %v5549 = vunpack.c.h.b16 %v246
    %v5550 = vunpack.c.l.b16 %v247
    %v5551 = vunpack.c.h.b16 %v247
    %v5552 = vunpack.c.l.b16 %v248
    %v5553 = vunpack.c.h.b16 %v248
    %v5554 = vunpack.c.l.b16 %v249
    %v5555 = vunpack.c.h.b16 %v249
    %v5556 = vunpack.c.l.b16 %v250
    %v5557 = vunpack.c.h.b16 %v250
    %v5558 = vunpack.c.l.b16 %v251
    %v5559 = vunpack.c.h.b16 %v251
    %v5560 = vunpack.c.l.b16 %v252
    %v5561 = vunpack.c.h.b16 %v252
    %v5562 = vunpack.c.l.b16 %v253
    %v5563 = vunpack.c.h.b16 %v253
    %v5564 = vunpack.c.l.b16 %v254
    %v5565 = vunpack.c.h.b16 %v254
    %v5566 = vunpack.c.l.b16 %v255
    %v5567 = vunpack.c.h.b16 %v255
    %v5568 = vunpack.c.l.b16 %v256
    %v5569 = vunpack.c.h.b16 %v256
    %v5570 = vunpack.c.l.b16 %v257
    %v5571 = vunpack.c.h.b16 %v257
    %v5572 = vunpack.c.l.b16 %v258
    %v5573 = vunpack.c.h.b16 %v258
    %v5574 = vunpack.c.l.b16 %v259
    %v5575 = vunpack.c.h.b16 %v259
    %v5576 = vunpack.c.l.b16 %v260
    %v5577 = vunpack.c.h.b16 %v260
    %v5578 = vunpack.c.l.b16 %v261
    %v5579 = vunpack.c.h.b16 %v261
    %v5580 = vunpack.c.l.b16 %v262
    %v5581 = vunpack.c.h.b16 %v262
    %v5582 = vunpack.c.l.b16 %v263
    %v5583 = vunpack.c.h.b16 %v263
    %v5584 = vunpack.c.l.b16 %v264
    %v5585 = vunpack.c.h.b16 %v264
    %v5586 = vunpack.c.l.b16 %v265
    %v5587 = vunpack.c.h.b16 %v265
    %v5588 = vunpack.c.l.b16 %v266
    %v5589 = vunpack.c.h.b16 %v266
    %v5590 = vunpack.c.l.b16 %v267
    %v5591 = vunpack.c.h.b16 %v267
    %v5592 = vunpack.c.l.b16 %v268
    %v5593 = vunpack.c.h.b16 %v268
    %v5594 = vunpack.c.l.b16 %v269
    %v5595 = vunpack.c.h.b16 %v269
    %v5596 = vunpack.c.l.b16 %v270
    %v5597 = vunpack.c.h.b16 %v270
    %v5598 = vunpack.c.l.b16 %v271
    %v5599 = vunpack.c.h.b16 %v271
    %v5600 = vunpack.c.l.b16 %v272
    %v5601 = vunpack.c.h.b16 %v272
    %v5602 = vunpack.c.l.b16 %v273
    %v5603 = vunpack.c.h.b16 %v273
    %v5604 = vunpack.c.l.b16 %v274
    %v5605 = vunpack.c.h.b16 %v274
    %v5606 = vunpack.c.l.b16 %v275
    %v5607 = vunpack.c.h.b16 %v275
    %v5608 = vunpack.c.l.b16 %v276
    %v5609 = vunpack.c.h.b16 %v276
    %v5610 = vunpack.c.l.b16 %v277
    %v5611 = vunpack.c.h.b16 %v277
    %v5612 = vunpack.c.l.b16 %v278
    %v5613 = vunpack.c.h.b16 %v278
    %v5614 = vunpack.c.l.b16 %v279
    %v5615 = vunpack.c.h.b16 %v279
    %v5616 = vunpack.c.l.b16 %v280
    %v5617 = vunpack.c.h.b16 %v280
    %v5618 = vunpack.c.l.b16 %v281
    %v5619 = vunpack.c.h.b16 %v281
    %v5620 = vunpack.c.l.b16 %v282
    %v5621 = vunpack.c.h.b16 %v282
    %v5622 = vunpack.c.l.b16 %v283
    %v5623 = vunpack.c.h.b16 %v283
    %v5624 = vunpack.c.l.b16 %v284
    %v5625 = vunpack.c.h.b16 %v284
    %v5626 = vunpack.c.l.b16 %v285
    %v5627 = vunpack.c.h.b16 %v285
    %v5628 = vunpack.c.l.b16 %v286
    %v5629 = vunpack.c.h.b16 %v286
    %v5630 = vunpack.c.l.b16 %v287
    %v5631 = vunpack.c.h.b16 %v287
    %v5632 = vunpack.c.l.b16 %v288
    %v5633 = vunpack.c.h.b16 %v288
    %v5634 = vunpack.c.l.b16 %v289
    %v5635 = vunpack.c.h.b16 %v289
    %v5636 = vunpack.c.l.b16 %v290
    %v5637 = vunpack.c.h.b16 %v290
    %v5638 = vunpack.c.l.b16 %v291
    %v5639 = vunpack.c.h.b16 %v291
    %v5640 = vunpack.c.l.b16 %v292
    %v5641 = vunpack.c.h.b16 %v292
    %v5642 = vunpack.c.l.b16 %v293
    %v5643 = vunpack.c.h.b16 %v293
    %v5644 = vunpack.c.l.b16 %v294
    %v5645 = vunpack.c.h.b16 %v294
    %v5646 = vunpack.c.l.b16 %v295
    %v5647 = vunpack.c.h.b16 %v295
    %v5648 = vunpack.c.l.b16 %v296
    %v5649 = vunpack.c.h.b16 %v296
    %v5650 = vunpack.c.l.b16 %v297
    %v5651 = vunpack.c.h.b16 %v297
    %v5652 = vunpack.c.l.b16 %v298
    %v5653 = vunpack.c.h.b16 %v298
    %v5654 = vunpack.c.l.b16 %v299
    %v5655 = vunpack.c.h.b16 %v299
    %v5656 = vunpack.c.l.b16 %v300
    %v5657 = vunpack.c.h.b16 %v300
    %v5658 = vunpack.c.l.b16 %v301
    %v5659 = vunpack.c.h.b16 %v301
    %v5660 = vunpack.c.l.b16 %v302
    %v5661 = vunpack.c.h.b16 %v302
    %v5662 = vunpack.c.l.b16 %v303
    %v5663 = vunpack.c.h.b16 %v303
    %v5664 = vunpack.c.l.b16 %v304
    %v5665 = vunpack.c.h.b16 %v304
    %v5666 = vunpack.c.l.b16 %v305
    %v5667 = vunpack.c.h.b16 %v305
    %v5668 = vpack.c.b16 %v5414, %v5412
    %v5669 = vpack.c.b16 %v5415, %v5413
    %v5670 = vpack.c.b16 %v5418, %v5416
    %v5671 = vpack.c.b16 %v5419, %v5417
    %v5672 = vpack.c.b16 %v5422, %v5420
    %v5673 = vpack.c.b16 %v5423, %v5421
    %v5674 = vpack.c.b16 %v5426, %v5424
    %v5675 = vpack.c.b16 %v5427, %v5425
    %v5676 = vpack.c.b16 %v5430, %v5428
    %v5677 = vpack.c.b16 %v5431, %v5429
    %v5678 = vpack.c.b16 %v5434, %v5432
    %v5679 = vpack.c.b16 %v5435, %v5433
    %v5680 = vpack.c.b16 %v5438, %v5436
    %v5681 = vpack.c.b16 %v5439, %v5437
    %v5682 = vpack.c.b16 %v5442, %v5440
    %v5683 = vpack.c.b16 %v5443, %v5441
    %v5684 = vpack.c.b16 %v5446, %v5444
    %v5685 = vpack.c.b16 %v5447, %v5445
    %v5686 = vpack.c.b16 %v5450, %v5448
    %v5687 = vpack.c.b16 %v5451, %v5449
    %v5688 = vpack.c.b16 %v5454, %v5452
    %v5689 = vpack.c.b16 %v5455, %v5453
    %v5690 = vpack.c.b16 %v5458, %v5456
    %v5691 = vpack.c.b16 %v5459, %v5457
    %v5692 = vpack.c.b16 %v5462, %v5460
    %v5693 = vpack.c.b16 %v5463, %v5461
    %v5694 = vpack.c.b16 %v5466, %v5464
    %v5695 = vpack.c.b16 %v5467, %v5465
    %v5696 = vpack.c.b16 %v5470, %v5468
    %v5697 = vpack.c.b16 %v5471, %v5469
    %v5698 = vpack.c.b16 %v5474, %v5472
    %v5699 = vpack.c.b16 %v5475, %v5473
    %v5700 = vpack.c.b16 %v5478, %v5476
    %v5701 = vpack.c.b16 %v5479, %v5477
    %v5702 = vpack.c.b16 %v5482, %v5480
    %v5703 = vpack.c.b16 %v5483, %v5481
    %v5704 = vpack.c.b16 %v5486, %v5484
    %v5705 = vpack.c.b16 %v5487, %v5485
    %v5706 = vpack.c.b16 %v5490, %v5488
    %v5707 = vpack.c.b16 %v5491, %v5489
    %v5708 = vpack.c.b16 %v5494, %v5492
    %v5709 = vpack.c.b16 %v5495, %v5493
    %v5710 = vpack.c.b16 %v5498, %v5496
    %v5711 = vpack.c.b16 %v5499, %v5497
    %v5712 = vpack.c.b16 %v5502, %v5500
    %v5713 = vpack.c.b16 %v5503, %v5501
    %v5714 = vpack.c.b16 %v5506, %v5504
    %v5715 = vpack.c.b16 %v5507, %v5505
    %v5716 = vpack.c.b16 %v5510, %v5508
    %v5717 = vpack.c.b16 %v5511, %v5509
    %v5718 = vpack.c.b16 %v5514, %v5512
    %v5719 = vpack.c.b16 %v5515, %v5513
    %v5720 = vpack.c.b16 %v5518, %v5516
    %v5721 = vpack.c.b16 %v5519, %v5517
    %v5722 = vpack.c.b16 %v5522, %v5520
    %v5723 = vpack.c.b16 %v5523, %v5521
    %v5724 = vpack.c.b16 %v5526, %v5524
    %v5725 = vpack.c.b16 %v5527, %v5525
    %v5726 = vpack.c.b16 %v5530, %v5528
    %v5727 = vpack.c.b16 %v5531, %v5529
    %v5728 = vpack.c.b16 %v5534, %v5532
    %v5729 = vpack.c.b16 %v5535, %v5533
    %v5730 = vpack.c.b16 %v5538, %v5536
    %v5731 = vpack.c.b16 %v5539, %v5537
    %v5732 = vpack.c.b16 %v5542, %v5540
    %v5733 = vpack.c.b16 %v5543, %v5541
    %v5734 = vpack.c.b16 %v5546, %v5544
    %v5735 = vpack.c.b16 %v5547, %v5545
    %v5736 = vpack.c.b16 %v5550, %v5548
    %v5737 = vpack.c.b16 %v5551, %v5549
    %v5738 = vpack.c.b16 %v5554, %v5552
    %v5739 = vpack.c.b16 %v5555, %v5553
    %v5740 = vpack.c.b16 %v5558, %v5556
    %v5741 = vpack.c.b16 %v5559, %v5557
    %v5742 = vpack.c.b16 %v5562, %v5560
    %v5743 = vpack.c.b16 %v5563, %v5561
    %v5744 = vpack.c.b16 %v5566, %v5564
    %v5745 = vpack.c.b16 %v5567, %v5565
    %v5746 = vpack.c.b16 %v5570, %v5568
    %v5747 = vpack.c.b16 %v5571, %v5569
    %v5748 = vpack.c.b16 %v5574, %v5572
    %v5749 = vpack.c.b16 %v5575, %v5573
    %v5750 = vpack.c.b16 %v5578, %v5576
    %v5751 = vpack.c.b16 %v5579, %v5577
    %v5752 = vpack.c.b16 %v5582, %v5580
    %v5753 = vpack.c.b16 %v5583, %v5581
    %v5754 = vpack.c.b16 %v5586, %v5584
    %v5755 = vpack.c.b16 %v5587, %v5585
    %v5756 = vpack.c.b16 %v5590, %v5588
    %v5757 = vpack.c.b16 %v5591, %v5589
    %v5758 = vpack.c.b16 %v5594, %v5592
    %v5759 = vpack.c.b16 %v5595, %v5593
    %v5760 = vpack.c.b16 %v5598, %v5596
    %v5761 = vpack.c.b16 %v5599, %v5597
    %v5762 = vpack.c.b16 %v5602, %v5600
    %v5763 = vpack.c.b16 %v5603, %v5601
    %v5764 = vpack.c.b16 %v5606, %v5604
    %v5765 = vpack.c.b16 %v5607, %v5605
    %v5766 = vpack.c.b16 %v5610, %v5608
    %v5767 = vpack.c.b16 %v5611, %v5609
    %v5768 = vpack.c.b16 %v5614, %v5612
    %v5769 = vpack.c.b16 %v5615, %v5613
    %v5770 = vpack.c.b16 %v5618, %v5616
    %v5771 = vpack.c.b16 %v5619, %v5617
    %v5772 = vpack.c.b16 %v5622, %v5620
    %v5773 = vpack.c.b16 %v5623, %v5621
    %v5774 = vpack.c.b16 %v5626, %v5624
    %v5775 = vpack.c.b16 %v5627, %v5625
    %v5776 = vpack.c.b16 %v5630, %v5628
    %v5777 = vpack.c.b16 %v5631, %v5629
    %v5778 = vpack.c.b16 %v5634, %v5632
    %v5779 = vpack.c.b16 %v5635, %v5633
    %v5780 = vpack.c.b16 %v5638, %v5636
    %v5781 = vpack.c.b16 %v5639, %v5637
    %v5782 = vpack.c.b16 %v5642, %v5640
    %v5783 = vpack.c.b16 %v5643, %v5641
    %v5784 = vpack.c.b16 %v5646, %v5644
    %v5785 = vpack.c.b16 %v5647, %v5645
    %v5786 = vpack.c.b16 %v5650, %v5648
    %v5787 = vpack.c.b16 %v5651, %v5649
    %v5788 = vpack.c.b16 %v5654, %v5652
    %v5789 = vpack.c.b16 %v5655, %v5653
    %v5790 = vpack.c.b16 %v5658, %v5656
    %v5791 = vpack.c.b16 %v5659, %v5657
    %v5792 = vpack.c.b16 %v5662, %v5660
    %v5793 = vpack.c.b16 %v5663, %v5661
    %v5794 = vpack.c.b16 %v5666, %v5664
    %v5795 = vpack.c.b16 %v5667, %v5665
    %5924 = vmatprep.subr.bf16.mxu0 %v5669
    %5925 = vmatpush1.bf16.msra.mxu0 %v5668
    %5926 = vmatprep.subr.bf16.mxu0 %v5671
    %5927 = vmatpush1.bf16.msra.mxu0 %v5670
    %5928 = vmatprep.subr.bf16.mxu0 %v5673
    %5929 = vmatpush1.bf16.msra.mxu0 %v5672
    %5930 = vmatprep.subr.bf16.mxu0 %v5675
    %5931 = vmatpush1.bf16.msra.mxu0 %v5674
    %5932 = vmatprep.subr.bf16.mxu0 %v5677
    %5933 = vmatpush1.bf16.msra.mxu0 %v5676
    %5934 = vmatprep.subr.bf16.mxu0 %v5679
    %5935 = vmatpush1.bf16.msra.mxu0 %v5678
    %5936 = vmatprep.subr.bf16.mxu0 %v5681
    %5937 = vmatpush1.bf16.msra.mxu0 %v5680
    %5938 = vmatprep.subr.bf16.mxu0 %v5683
    %5939 = vmatpush1.bf16.msra.mxu0 %v5682
    %5940 = vmatprep.subr.bf16.mxu0 %v5685
    %5941 = vmatpush1.bf16.msra.mxu0 %v5684
    %5942 = vmatprep.subr.bf16.mxu0 %v5687
    %5943 = vmatpush1.bf16.msra.mxu0 %v5686
    %5944 = vmatprep.subr.bf16.mxu0 %v5689
    %5945 = vmatpush1.bf16.msra.mxu0 %v5688
    %5946 = vmatprep.subr.bf16.mxu0 %v5691
    %5947 = vmatpush1.bf16.msra.mxu0 %v5690
    %5948 = vmatprep.subr.bf16.mxu0 %v5693
    %5949 = vmatpush1.bf16.msra.mxu0 %v5692
    %5950 = vmatprep.subr.bf16.mxu0 %v5695
    %5951 = vmatpush1.bf16.msra.mxu0 %v5694
    %5952 = vmatprep.subr.bf16.mxu0 %v5697
    %5953 = vmatpush1.bf16.msra.mxu0 %v5696
    %5954 = vmatprep.subr.bf16.mxu0 %v5699
    %5955 = vmatpush1.bf16.msra.mxu0 %v5698
    %5956 = vmatprep.mubr.bf16.mxu0 %v5269
    %5957 = vmatmul.mubr.bf16.gmra.mrb[0].mxu0 %v5268
    %v5958 = vpop.f32.mrb[0].mxu0
    %v5959 = vadd.f32 0.0, %v5958
    %v5960 = vpop.f32.mrb[0].mxu0
    %v5961 = vadd.f32 0.0, %v5960
    %v5962 = vpop.f32.mrb[0].mxu0
    %v5963 = vadd.f32 0.0, %v5962
    %v5964 = vpop.f32.mrb[0].mxu0
    %v5965 = vadd.f32 0.0, %v5964
    %5966 = vmatprep.mubr.bf16.mxu0 %v5277
    %5967 = vmatmul.mubr.bf16.gmra.mrb[0].mxu0 %v5276
    %v5968 = vpop.f32.mrb[0].mxu0
    %v5969 = vadd.f32 0.0, %v5968
    %v5970 = vpop.f32.mrb[0].mxu0
    %v5971 = vadd.f32 0.0, %v5970
    %v5972 = vpop.f32.mrb[0].mxu0
    %v5973 = vpop.f32.mrb[0].mxu0
    %5974 = vdwg.mxu0
    %5975 = vmatprep.subr.bf16.mxu0 %v5701
    %5976 = vmatpush1.bf16.msra.mxu0 %v5700
    %5977 = vmatprep.subr.bf16.mxu0 %v5703
    %5978 = vmatpush1.bf16.msra.mxu0 %v5702
    %5979 = vmatprep.subr.bf16.mxu0 %v5705
    %5980 = vmatpush1.bf16.msra.mxu0 %v5704
    %5981 = vmatprep.subr.bf16.mxu0 %v5707
    %5982 = vmatpush1.bf16.msra.mxu0 %v5706
    %5983 = vmatprep.subr.bf16.mxu0 %v5709
    %5984 = vmatpush1.bf16.msra.mxu0 %v5708
    %5985 = vmatprep.subr.bf16.mxu0 %v5711
    %5986 = vmatpush1.bf16.msra.mxu0 %v5710
    %5987 = vmatprep.subr.bf16.mxu0 %v5713
    %5988 = vmatpush1.bf16.msra.mxu0 %v5712
    %5989 = vmatprep.subr.bf16.mxu0 %v5715
    %5990 = vmatpush1.bf16.msra.mxu0 %v5714
    %5991 = vmatprep.subr.bf16.mxu0 %v5717
    %5992 = vmatpush1.bf16.msra.mxu0 %v5716
    %5993 = vmatprep.subr.bf16.mxu0 %v5719
    %5994 = vmatpush1.bf16.msra.mxu0 %v5718
    %5995 = vmatprep.subr.bf16.mxu0 %v5721
    %5996 = vmatpush1.bf16.msra.mxu0 %v5720
    %5997 = vmatprep.subr.bf16.mxu0 %v5723
    %5998 = vmatpush1.bf16.msra.mxu0 %v5722
    %5999 = vmatprep.subr.bf16.mxu0 %v5725
    %6000 = vmatpush1.bf16.msra.mxu0 %v5724
    %6001 = vmatprep.subr.bf16.mxu0 %v5727
    %6002 = vmatpush1.bf16.msra.mxu0 %v5726
    %6003 = vmatprep.subr.bf16.mxu0 %v5729
    %6004 = vmatpush1.bf16.msra.mxu0 %v5728
    %6005 = vmatprep.subr.bf16.mxu0 %v5731
    %6006 = vmatpush1.bf16.msra.mxu0 %v5730
    %6007 = vmatprep.mubr.bf16.mxu0 %v5271
    %6008 = vmatmul.mubr.bf16.gmra.mrb[0].mxu0 %v5270
    %v6009 = vpop.f32.mrb[0].mxu0
    %v6010 = vadd.f32 %v5959, %v6009
    %v6011 = vpop.f32.mrb[0].mxu0
    %v6012 = vadd.f32 %v5961, %v6011
    %v6013 = vpop.f32.mrb[0].mxu0
    %v6014 = vadd.f32 %v5963, %v6013
    %v6015 = vpop.f32.mrb[0].mxu0
    %v6016 = vadd.f32 %v5965, %v6015
    %6017 = vmatprep.mubr.bf16.mxu0 %v5279
    %6018 = vmatmul.mubr.bf16.gmra.mrb[0].mxu0 %v5278
    %v6019 = vpop.f32.mrb[0].mxu0
    %v6020 = vadd.f32 %v5969, %v6019
    %v6021 = vpop.f32.mrb[0].mxu0
    %v6022 = vadd.f32 %v5971, %v6021
    %v6023 = vpop.f32.mrb[0].mxu0
    %v6024 = vpop.f32.mrb[0].mxu0
    %6025 = vdwg.mxu0
    %6026 = vmatprep.subr.bf16.mxu0 %v5733
    %6027 = vmatpush1.bf16.msra.mxu0 %v5732
    %6028 = vmatprep.subr.bf16.mxu0 %v5735
    %6029 = vmatpush1.bf16.msra.mxu0 %v5734
    %6030 = vmatprep.subr.bf16.mxu0 %v5737
    %6031 = vmatpush1.bf16.msra.mxu0 %v5736
    %6032 = vmatprep.subr.bf16.mxu0 %v5739
    %6033 = vmatpush1.bf16.msra.mxu0 %v5738
    %6034 = vmatprep.subr.bf16.mxu0 %v5741
    %6035 = vmatpush1.bf16.msra.mxu0 %v5740
    %6036 = vmatprep.subr.bf16.mxu0 %v5743
    %6037 = vmatpush1.bf16.msra.mxu0 %v5742
    %6038 = vmatprep.subr.bf16.mxu0 %v5745
    %6039 = vmatpush1.bf16.msra.mxu0 %v5744
    %6040 = vmatprep.subr.bf16.mxu0 %v5747
    %6041 = vmatpush1.bf16.msra.mxu0 %v5746
    %6042 = vmatprep.subr.bf16.mxu0 %v5749
    %6043 = vmatpush1.bf16.msra.mxu0 %v5748
    %6044 = vmatprep.subr.bf16.mxu0 %v5751
    %6045 = vmatpush1.bf16.msra.mxu0 %v5750
    %6046 = vmatprep.subr.bf16.mxu0 %v5753
    %6047 = vmatpush1.bf16.msra.mxu0 %v5752
    %6048 = vmatprep.subr.bf16.mxu0 %v5755
    %6049 = vmatpush1.bf16.msra.mxu0 %v5754
    %6050 = vmatprep.subr.bf16.mxu0 %v5757
    %6051 = vmatpush1.bf16.msra.mxu0 %v5756
    %6052 = vmatprep.subr.bf16.mxu0 %v5759
    %6053 = vmatpush1.bf16.msra.mxu0 %v5758
    %6054 = vmatprep.subr.bf16.mxu0 %v5761
    %6055 = vmatpush1.bf16.msra.mxu0 %v5760
    %6056 = vmatprep.subr.bf16.mxu0 %v5763
    %6057 = vmatpush1.bf16.msra.mxu0 %v5762
    %6058 = vmatprep.mubr.bf16.mxu0 %v5273
    %6059 = vmatmul.mubr.bf16.gmra.mrb[0].mxu0 %v5272
    %v6060 = vpop.f32.mrb[0].mxu0
    %v6061 = vadd.f32 %v6010, %v6060
    %v6062 = vpop.f32.mrb[0].mxu0
    %v6063 = vadd.f32 %v6012, %v6062
    %v6064 = vpop.f32.mrb[0].mxu0
    %v6065 = vadd.f32 %v6014, %v6064
    %v6066 = vpop.f32.mrb[0].mxu0
    %v6067 = vadd.f32 %v6016, %v6066
    %6068 = vmatprep.mubr.bf16.mxu0 %v5281
    %6069 = vmatmul.mubr.bf16.gmra.mrb[0].mxu0 %v5280
    %v6070 = vpop.f32.mrb[0].mxu0
    %v6071 = vadd.f32 %v6020, %v6070
    %v6072 = vpop.f32.mrb[0].mxu0
    %v6073 = vadd.f32 %v6022, %v6072
    %v6074 = vpop.f32.mrb[0].mxu0
    %v6075 = vpop.f32.mrb[0].mxu0
    %6076 = vdwg.mxu0
    %6077 = vmatprep.subr.bf16.mxu0 %v5765
    %6078 = vmatpush1.bf16.msra.mxu0 %v5764
    %6079 = vmatprep.subr.bf16.mxu0 %v5767
    %6080 = vmatpush1.bf16.msra.mxu0 %v5766
    %6081 = vmatprep.subr.bf16.mxu0 %v5769
    %6082 = vmatpush1.bf16.msra.mxu0 %v5768
    %6083 = vmatprep.subr.bf16.mxu0 %v5771
    %6084 = vmatpush1.bf16.msra.mxu0 %v5770
    %6085 = vmatprep.subr.bf16.mxu0 %v5773
    %6086 = vmatpush1.bf16.msra.mxu0 %v5772
    %6087 = vmatprep.subr.bf16.mxu0 %v5775
    %6088 = vmatpush1.bf16.msra.mxu0 %v5774
    %6089 = vmatprep.subr.bf16.mxu0 %v5777
    %6090 = vmatpush1.bf16.msra.mxu0 %v5776
    %6091 = vmatprep.subr.bf16.mxu0 %v5779
    %6092 = vmatpush1.bf16.msra.mxu0 %v5778
    %6093 = vmatprep.subr.bf16.mxu0 %v5781
    %6094 = vmatpush1.bf16.msra.mxu0 %v5780
    %6095 = vmatprep.subr.bf16.mxu0 %v5783
    %6096 = vmatpush1.bf16.msra.mxu0 %v5782
    %6097 = vmatprep.subr.bf16.mxu0 %v5785
    %6098 = vmatpush1.bf16.msra.mxu0 %v5784
    %6099 = vmatprep.subr.bf16.mxu0 %v5787
    %6100 = vmatpush1.bf16.msra.mxu0 %v5786
    %6101 = vmatprep.subr.bf16.mxu0 %v5789
    %6102 = vmatpush1.bf16.msra.mxu0 %v5788
    %6103 = vmatprep.subr.bf16.mxu0 %v5791
    %6104 = vmatpush1.bf16.msra.mxu0 %v5790
    %6105 = vmatprep.subr.bf16.mxu0 %v5793
    %6106 = vmatpush1.bf16.msra.mxu0 %v5792
    %6107 = vmatprep.subr.bf16.mxu0 %v5795
    %6108 = vmatpush1.bf16.msra.mxu0 %v5794
    %6109 = vmatprep.mubr.bf16.mxu0 %v5275
    %6110 = vmatmul.mubr.bf16.gmra.mrb[0].mxu0 %v5274
    %v6111 = vpop.f32.mrb[0].mxu0
    %v6112 = vadd.f32 %v6061, %v6111
    %v6113 = vpop.f32.mrb[0].mxu0
    %v6114 = vadd.f32 %v6063, %v6113
    %v6115 = vpop.f32.mrb[0].mxu0
    %v6116 = vadd.f32 %v6065, %v6115
    %v6117 = vpop.f32.mrb[0].mxu0
    %v6118 = vadd.f32 %v6067, %v6117
    %6119 = vmatprep.mubr.bf16.mxu0 %v5283
    %6120 = vmatmul.mubr.bf16.gmra.mrb[0].mxu0 %v5282
    %v6121 = vpop.f32.mrb[0].mxu0
    %v6122 = vadd.f32 %v6071, %v6121
    %v6123 = vpop.f32.mrb[0].mxu0
    %v6124 = vadd.f32 %v6073, %v6123
    %v6125 = vpop.f32.mrb[0].mxu0
    %v6126 = vpop.f32.mrb[0].mxu0
    %6127 = vdwg.mxu0
    %v6128 = vmul.f32 %v6112, 0.5
    %v6129 = vmul.f32 %v6114, 0.5
    %v6130 = vmul.f32 %v6116, 0.5
    %v6131 = vmul.f32 %v6118, 0.5
    %v6132 = vmul.f32 %v6122, 0.5
    %v6133 = vmul.f32 %v6124, 0.5
    %v6134 = vmul.f32 %v6112, 0.70710677
    %v6135 = vmul.f32 %v6114, 0.70710677
    %v6136 = vmul.f32 %v6116, 0.70710677
    %v6137 = vmul.f32 %v6118, 0.70710677
    %v6138 = vmul.f32 %v6122, 0.70710677
    %v6139 = vmul.f32 %v6124, 0.70710677
    %v6140 = vand.u32 2147483647, %v6134
    %v6141 = vand.u32 2147483647, %v6135
    %v6142 = vand.u32 2147483647, %v6136
    %v6143 = vand.u32 2147483647, %v6137
    %v6144 = vand.u32 2147483647, %v6138
    %v6145 = vand.u32 2147483647, %v6139
    %v6146 = vmul.f32 %v6140, 0.3275911
    %v6147 = vmul.f32 %v6141, 0.3275911
    %v6148 = vmul.f32 %v6142, 0.3275911
    %v6149 = vmul.f32 %v6143, 0.3275911
    %v6150 = vmul.f32 %v6144, 0.3275911
    %v6151 = vmul.f32 %v6145, 0.3275911
    %v6152 = vadd.f32 %v6146, 1.0
    %v6153 = vadd.f32 %v6147, 1.0
    %v6154 = vadd.f32 %v6148, 1.0
    %v6155 = vadd.f32 %v6149, 1.0
    %v6156 = vadd.f32 %v6150, 1.0
    %v6157 = vadd.f32 %v6151, 1.0
    %v6158 = vrcp.pop %v6152
    %v6159 = vmul.f32 1.0, %v6158
    %v6160 = vrcp.pop %v6153
    %v6161 = vmul.f32 1.0, %v6160
    %v6162 = vrcp.pop %v6154
    %v6163 = vmul.f32 1.0, %v6162
    %v6164 = vrcp.pop %v6155
    %v6165 = vmul.f32 1.0, %v6164
    %v6166 = vrcp.pop %v6156
    %v6167 = vmul.f32 1.0, %v6166
    %v6168 = vrcp.pop %v6157
    %v6169 = vmul.f32 1.0, %v6168
    %v6170 = vmul.f32 %v6159, 1.0614054
    %v6171 = vmul.f32 %v6161, 1.0614054
    %v6172 = vmul.f32 %v6163, 1.0614054
    %v6173 = vmul.f32 %v6165, 1.0614054
    %v6174 = vmul.f32 %v6167, 1.0614054
    %v6175 = vmul.f32 %v6169, 1.0614054
    %v6176 = vadd.f32 %v6170, -1.4531521
    %v6177 = vadd.f32 %v6171, -1.4531521
    %v6178 = vadd.f32 %v6172, -1.4531521
    %v6179 = vadd.f32 %v6173, -1.4531521
    %v6180 = vadd.f32 %v6174, -1.4531521
    %v6181 = vadd.f32 %v6175, -1.4531521
    %v6182 = vmul.f32 %v6176, %v6159
    %v6183 = vmul.f32 %v6177, %v6161
    %v6184 = vmul.f32 %v6178, %v6163
    %v6185 = vmul.f32 %v6179, %v6165
    %v6186 = vmul.f32 %v6180, %v6167
    %v6187 = vmul.f32 %v6181, %v6169
    %v6188 = vadd.f32 %v6182, 1.4214138
    %v6189 = vadd.f32 %v6183, 1.4214138
    %v6190 = vadd.f32 %v6184, 1.4214138
    %v6191 = vadd.f32 %v6185, 1.4214138
    %v6192 = vadd.f32 %v6186, 1.4214138
    %v6193 = vadd.f32 %v6187, 1.4214138
    %v6194 = vmul.f32 %v6188, %v6159
    %v6195 = vmul.f32 %v6189, %v6161
    %v6196 = vmul.f32 %v6190, %v6163
    %v6197 = vmul.f32 %v6191, %v6165
    %v6198 = vmul.f32 %v6192, %v6167
    %v6199 = vmul.f32 %v6193, %v6169
    %v6200 = vadd.f32 %v6194, -0.28449672
    %v6201 = vadd.f32 %v6195, -0.28449672
    %v6202 = vadd.f32 %v6196, -0.28449672
    %v6203 = vadd.f32 %v6197, -0.28449672
    %v6204 = vadd.f32 %v6198, -0.28449672
    %v6205 = vadd.f32 %v6199, -0.28449672
    %v6206 = vmul.f32 %v6200, %v6159
    %v6207 = vmul.f32 %v6201, %v6161
    %v6208 = vmul.f32 %v6202, %v6163
    %v6209 = vmul.f32 %v6203, %v6165
    %v6210 = vmul.f32 %v6204, %v6167
    %v6211 = vmul.f32 %v6205, %v6169
    %v6212 = vadd.f32 %v6206, 0.2548296
    %v6213 = vadd.f32 %v6207, 0.2548296
    %v6214 = vadd.f32 %v6208, 0.2548296
    %v6215 = vadd.f32 %v6209, 0.2548296
    %v6216 = vadd.f32 %v6210, 0.2548296
    %v6217 = vadd.f32 %v6211, 0.2548296
    %v6218 = vmul.f32 %v6212, %v6159
    %v6219 = vmul.f32 %v6213, %v6161
    %v6220 = vmul.f32 %v6214, %v6163
    %v6221 = vmul.f32 %v6215, %v6165
    %v6222 = vmul.f32 %v6216, %v6167
    %v6223 = vmul.f32 %v6217, %v6169
    %v6224 = vsub.f32 0.0, %v6140
    %v6225 = vsub.f32 0.0, %v6141
    %v6226 = vsub.f32 0.0, %v6142
    %v6227 = vsub.f32 0.0, %v6143
    %v6228 = vsub.f32 0.0, %v6144
    %v6229 = vsub.f32 0.0, %v6145
    %v6230 = vmul.f32 %v6224, %v6140
    %v6231 = vmul.f32 %v6225, %v6141
    %v6232 = vmul.f32 %v6226, %v6142
    %v6233 = vmul.f32 %v6227, %v6143
    %v6234 = vmul.f32 %v6228, %v6144
    %v6235 = vmul.f32 %v6229, %v6145
    %v6236 = vmul.f32 %v6230, 1.442695
    %v6237 = vpow.pop %v6236
    %v6238 = vmul.f32 %v6231, 1.442695
    %v6239 = vpow.pop %v6238
    %v6240 = vmul.f32 %v6232, 1.442695
    %v6241 = vpow.pop %v6240
    %v6242 = vmul.f32 %v6233, 1.442695
    %v6243 = vpow.pop %v6242
    %v6244 = vmul.f32 %v6234, 1.442695
    %v6245 = vpow.pop %v6244
    %v6246 = vmul.f32 %v6235, 1.442695
    %v6247 = vpow.pop %v6246
    %v6248 = vmul.f32 %v6218, %v6237
    %v6249 = vmul.f32 %v6219, %v6239
    %v6250 = vmul.f32 %v6220, %v6241
    %v6251 = vmul.f32 %v6221, %v6243
    %v6252 = vmul.f32 %v6222, %v6245
    %v6253 = vmul.f32 %v6223, %v6247
    %v6254 = vsub.f32 1.0, %v6248
    %v6255 = vsub.f32 1.0, %v6249
    %v6256 = vsub.f32 1.0, %v6250
    %v6257 = vsub.f32 1.0, %v6251
    %v6258 = vsub.f32 1.0, %v6252
    %v6259 = vsub.f32 1.0, %v6253
    %vm6260 = vcmp.ge.f32.partialorder %v6134, 0.0
    %vm6261 = vcmp.ge.f32.partialorder %v6135, 0.0
    %vm6262 = vcmp.ge.f32.partialorder %v6136, 0.0
    %vm6263 = vcmp.ge.f32.partialorder %v6137, 0.0
    %vm6264 = vcmp.ge.f32.partialorder %v6138, 0.0
    %vm6265 = vcmp.ge.f32.partialorder %v6139, 0.0
    %v6266 = vsub.f32 0.0, %v6254
    %v6267 = vsub.f32 0.0, %v6255
    %v6268 = vsub.f32 0.0, %v6256
    %v6269 = vsub.f32 0.0, %v6257
    %v6270 = vsub.f32 0.0, %v6258
    %v6271 = vsub.f32 0.0, %v6259
    %v6272 = vsel %vm6260, %v6254, %v6266
    %v6273 = vsel %vm6261, %v6255, %v6267
    %v6274 = vsel %vm6262, %v6256, %v6268
    %v6275 = vsel %vm6263, %v6257, %v6269
    %v6276 = vsel %vm6264, %v6258, %v6270
    %v6277 = vsel %vm6265, %v6259, %v6271
    %v6278 = vadd.f32 %v6272, 1.0
    %v6279 = vadd.f32 %v6273, 1.0
    %v6280 = vadd.f32 %v6274, 1.0
    %v6281 = vadd.f32 %v6275, 1.0
    %v6282 = vadd.f32 %v6276, 1.0
    %v6283 = vadd.f32 %v6277, 1.0
    %v6284 = vmul.f32 %v6128, %v6278
    %v6285 = vmul.f32 %v6129, %v6279
    %v6286 = vmul.f32 %v6130, %v6280
    %v6287 = vmul.f32 %v6131, %v6281
    %v6288 = vmul.f32 %v6132, %v6282
    %v6289 = vmul.f32 %v6133, %v6283
    %6291 = vset.pattern.permute.xlu0 0
    %6292 = vperm.xlu0 %6291, %v369
    %v6293 = vpop.permute.xlu0 %6292
    %6296 = vset.pattern.permute.xlu0 0
    %6297 = vperm.xlu0 %6296, %v370
    %v6298 = vpop.permute.xlu0 %6297
    %6301 = vset.pattern.permute.xlu0 0
    %6302 = vperm.xlu0 %6301, %v371
    %v6303 = vpop.permute.xlu0 %6302
    %v6305 = vadd.f32 %v6284, %v6293
    %v6306 = vadd.f32 %v6285, %v6293
    %v6307 = vadd.f32 %v6286, %v6298
    %v6308 = vadd.f32 %v6287, %v6298
    %v6309 = vadd.f32 %v6288, %v6303
    %v6310 = vadd.f32 %v6289, %v6303
    %6317 = vrot.lane.b32.xlu0 %v6305, 2
    %v6318 = vpop.permute.xlu0 %6317
    %6319 = vrot.lane.b32.xlu0 %v6306, 2
    %v6320 = vpop.permute.xlu0 %6319
    %6321 = vrot.lane.b32.xlu0 %v6307, 2
    %v6322 = vpop.permute.xlu0 %6321
    %6323 = vrot.lane.b32.xlu0 %v6308, 2
    %v6324 = vpop.permute.xlu0 %6323
    %6325 = vrot.lane.b32.xlu0 %v6309, 2
    %v6326 = vpop.permute.xlu0 %6325
    %6327 = vrot.lane.b32.xlu0 %v6310, 2
    %v6328 = vpop.permute.xlu0 %6327
    %v6329 = vsel %vm1016, %v6318, %v6320
    %v6330 = vsel %vm1016, %v6322, %v6324
    %v6331 = vsel %vm1016, %v6326, %v6328
    %v6338 = vsel %vm1016, 0.0, %v6318
    %v6339 = vsel %vm1016, 0.0, %v6322
    %v6340 = vsel %vm1016, 0.0, %v6326
    %vm6341 = vcmp.lt.s32.totalorder %v1033, 128
    %vm6342 = vmand %vm1037, %vm6341
    %v6343 = vsel %vm6342, 1, 0
    %v6344 = vlaneseq
    %v6345 = vshrl.u32 %v6344, 7
    %v6346 = vsub.s32 0, %v6345
    %v6347 = vrot.slane %v6343, %v6346
    %vm6348 = vcmp.eq.s32.totalorder %v6347, 1
    %v6349 = vsel %vm6348, %v6338, 0.0
    %v6350 = vsel %vm6348, %v6329, 0.0
    %v6351 = vsel %vm6348, %v6339, 0.0
    %v6352 = vsel %vm6348, %v6330, 0.0
    %v6353 = vsel %vm6348, %v6340, 0.0
    %v6354 = vsel %vm6348, %v6331, 0.0
    %6355 = vrot.lane.b32.xlu0 %v6305, 1
    %v6356 = vpop.permute.xlu0 %6355
    %6357 = vrot.lane.b32.xlu0 %v6306, 1
    %v6358 = vpop.permute.xlu0 %6357
    %6359 = vrot.lane.b32.xlu0 %v6307, 1
    %v6360 = vpop.permute.xlu0 %6359
    %6361 = vrot.lane.b32.xlu0 %v6308, 1
    %v6362 = vpop.permute.xlu0 %6361
    %6363 = vrot.lane.b32.xlu0 %v6309, 1
    %v6364 = vpop.permute.xlu0 %6363
    %6365 = vrot.lane.b32.xlu0 %v6310, 1
    %v6366 = vpop.permute.xlu0 %6365
    %v6367 = vsel %vm1097, %v6356, %v6358
    %v6368 = vsel %vm1097, %v6360, %v6362
    %v6369 = vsel %vm1097, %v6364, %v6366
    %v6376 = vsel %vm1097, 0.0, %v6356
    %v6377 = vsel %vm1097, 0.0, %v6360
    %v6378 = vsel %vm1097, 0.0, %v6364
    %vm6379 = vcmp.lt.s32.totalorder %v1114, 128
    %vm6380 = vmand %vm1118, %vm6379
    %v6381 = vsel %vm6380, 1, 0
    %v6382 = vlaneseq
    %v6383 = vshrl.u32 %v6382, 7
    %v6384 = vsub.s32 0, %v6383
    %v6385 = vrot.slane %v6381, %v6384
    %vm6386 = vcmp.eq.s32.totalorder %v6385, 1
    %v6387 = vsel %vm6386, %v6376, 0.0
    %v6388 = vsel %vm6386, %v6367, 0.0
    %v6389 = vsel %vm6386, %v6377, 0.0
    %v6390 = vsel %vm6386, %v6368, 0.0
    %v6391 = vsel %vm6386, %v6378, 0.0
    %v6392 = vsel %vm6386, %v6369, 0.0
    %6393 = vrot.lane.b32.xlu0 %v6305, 127
    %v6394 = vpop.permute.xlu0 %6393
    %6395 = vrot.lane.b32.xlu0 %v6306, 127
    %v6396 = vpop.permute.xlu0 %6395
    %6397 = vrot.lane.b32.xlu0 %v6307, 127
    %v6398 = vpop.permute.xlu0 %6397
    %6399 = vrot.lane.b32.xlu0 %v6308, 127
    %v6400 = vpop.permute.xlu0 %6399
    %6401 = vrot.lane.b32.xlu0 %v6309, 127
    %v6402 = vpop.permute.xlu0 %6401
    %6403 = vrot.lane.b32.xlu0 %v6310, 127
    %v6404 = vpop.permute.xlu0 %6403
    %v6405 = vsel %vm1178, %v6394, %v6396
    %v6406 = vsel %vm1178, %v6398, %v6400
    %v6407 = vsel %vm1178, %v6402, %v6404
    %v6414 = vsel %vm1178, %v6396, 0.0
    %v6415 = vsel %vm1178, %v6400, 0.0
    %v6416 = vsel %vm1178, %v6404, 0.0
    %vm6417 = vcmp.lt.s32.totalorder %v1195, 128
    %vm6418 = vmand %vm1199, %vm6417
    %v6419 = vsel %vm6418, 1, 0
    %v6420 = vlaneseq
    %v6421 = vshrl.u32 %v6420, 7
    %v6422 = vsub.s32 0, %v6421
    %v6423 = vrot.slane %v6419, %v6422
    %vm6424 = vcmp.eq.s32.totalorder %v6423, 1
    %v6425 = vsel %vm6424, %v6405, 0.0
    %v6426 = vsel %vm6424, %v6414, 0.0
    %v6427 = vsel %vm6424, %v6406, 0.0
    %v6428 = vsel %vm6424, %v6415, 0.0
    %v6429 = vsel %vm6424, %v6407, 0.0
    %v6430 = vsel %vm6424, %v6416, 0.0
    %6431 = vrot.lane.b32.xlu0 %v6305, 126
    %v6432 = vpop.permute.xlu0 %6431
    %6433 = vrot.lane.b32.xlu0 %v6306, 126
    %v6434 = vpop.permute.xlu0 %6433
    %6435 = vrot.lane.b32.xlu0 %v6307, 126
    %v6436 = vpop.permute.xlu0 %6435
    %6437 = vrot.lane.b32.xlu0 %v6308, 126
    %v6438 = vpop.permute.xlu0 %6437
    %6439 = vrot.lane.b32.xlu0 %v6309, 126
    %v6440 = vpop.permute.xlu0 %6439
    %6441 = vrot.lane.b32.xlu0 %v6310, 126
    %v6442 = vpop.permute.xlu0 %6441
    %v6443 = vsel %vm1259, %v6432, %v6434
    %v6444 = vsel %vm1259, %v6436, %v6438
    %v6445 = vsel %vm1259, %v6440, %v6442
    %v6452 = vsel %vm1259, %v6434, 0.0
    %v6453 = vsel %vm1259, %v6438, 0.0
    %v6454 = vsel %vm1259, %v6442, 0.0
    %vm6455 = vcmp.lt.s32.totalorder %v1276, 128
    %vm6456 = vmand %vm1280, %vm6455
    %v6457 = vsel %vm6456, 1, 0
    %v6458 = vlaneseq
    %v6459 = vshrl.u32 %v6458, 7
    %v6460 = vsub.s32 0, %v6459
    %v6461 = vrot.slane %v6457, %v6460
    %vm6462 = vcmp.eq.s32.totalorder %v6461, 1
    %v6463 = vsel %vm6462, %v6443, 0.0
    %v6464 = vsel %vm6462, %v6452, 0.0
    %v6465 = vsel %vm6462, %v6444, 0.0
    %v6466 = vsel %vm6462, %v6453, 0.0
    %v6467 = vsel %vm6462, %v6445, 0.0
    %v6468 = vsel %vm6462, %v6454, 0.0
    %v6469 = vpack.c.bf16 %v6351, %v6349
    %v6470 = vpack.c.bf16 %v6352, %v6350
    %v6471 = vpack.c.bf16 %v6387, %v6353
    %v6472 = vpack.c.bf16 %v6388, %v6354
    %v6473 = vpack.c.bf16 %v6391, %v6389
    %v6474 = vpack.c.bf16 %v6392, %v6390
    %v6475 = vpack.c.bf16 %v6307, %v6305
    %v6476 = vpack.c.bf16 %v6308, %v6306
    %v6477 = vpack.c.bf16 %v6425, %v6309
    %v6478 = vpack.c.bf16 %v6426, %v6310
    %v6479 = vpack.c.bf16 %v6429, %v6427
    %v6480 = vpack.c.bf16 %v6430, %v6428
    %v6481 = vpack.c.bf16 %v6465, %v6463
    %v6482 = vpack.c.bf16 %v6466, %v6464
    %v6483 = vpack.c.bf16 %v6467, %v6467
    %v6484 = vpack.c.bf16 %v6468, %v6468
    %6486 = vset.pattern.permute.xlu0 0
    %6487 = vperm.xlu0 %6486, %v365
    %v6488 = vpop.permute.xlu0 %6487
    %6491 = vset.pattern.permute.xlu0 0
    %6492 = vperm.xlu0 %6491, %v366
    %v6493 = vpop.permute.xlu0 %6492
    %6496 = vset.pattern.permute.xlu0 0
    %6497 = vperm.xlu0 %6496, %v367
    %v6498 = vpop.permute.xlu0 %6497
    %6501 = vset.pattern.permute.xlu0 0
    %6502 = vperm.xlu0 %6501, %v368
    %v6503 = vpop.permute.xlu0 %6502
    %v6509 = vunpack.c.l.b16 %v361
    %v6510 = vunpack.c.l.b16 %v362
    %v6511 = vunpack.c.l.b16 %v363
    %v6512 = vunpack.c.l.b16 %v364
    %v6513 = vpack.c.b16 %v6510, %v6509
    %v6514 = vpack.c.b16 %v6512, %v6511
    %vm6515 = vcmask 982016
    %v6517 = vsel %vm6515, %v6513, 0
    %v6520 = vsel %vm6515, %v6514, 0
    %vm6522 = vcmask 1043456
    %v6524 = vsel %vm6522, %v6483, 0
    %v6527 = vsel %vm6522, %v6484, 0
    %6529 = vmatprep.subr.bf16.mxu0 %v6470
    %6530 = vmatpush1.bf16.msra.mxu0 %v6469
    %6531 = vmatprep.subr.bf16.mxu0 %v6472
    %6532 = vmatpush1.bf16.msra.mxu0 %v6471
    %6533 = vmatprep.subr.bf16.mxu0 %v6474
    %6534 = vmatpush1.bf16.msra.mxu0 %v6473
    %6535 = vmatprep.subr.bf16.mxu0 %v6476
    %6536 = vmatpush1.bf16.msra.mxu0 %v6475
    %6537 = vmatprep.subr.bf16.mxu0 %v6478
    %6538 = vmatpush1.bf16.msra.mxu0 %v6477
    %6539 = vmatprep.subr.bf16.mxu0 %v6480
    %6540 = vmatpush1.bf16.msra.mxu0 %v6479
    %6541 = vmatprep.subr.bf16.mxu0 %v6482
    %6542 = vmatpush1.bf16.msra.mxu0 %v6481
    %6543 = vmatprep.subr.bf16.mxu0 %v6527
    %6544 = vmatpush1.bf16.msra.mxu0 %v6524
    %6545 = vmatprep.subr.bf16.mxu0 0
    %6546 = vmatpush1.bf16.msra.mxu0 0
    %6547 = vmatprep.subr.bf16.mxu0 0
    %6548 = vmatpush1.bf16.msra.mxu0 0
    %6549 = vmatprep.subr.bf16.mxu0 0
    %6550 = vmatpush1.bf16.msra.mxu0 0
    %6551 = vmatprep.subr.bf16.mxu0 0
    %6552 = vmatpush1.bf16.msra.mxu0 0
    %6553 = vmatprep.subr.bf16.mxu0 0
    %6554 = vmatpush1.bf16.msra.mxu0 0
    %6555 = vmatprep.subr.bf16.mxu0 0
    %6556 = vmatpush1.bf16.msra.mxu0 0
    %6557 = vmatprep.subr.bf16.mxu0 0
    %6558 = vmatpush1.bf16.msra.mxu0 0
    %6559 = vmatprep.subr.bf16.mxu0 0
    %6560 = vmatpush1.bf16.msra.mxu0 0
    %6561 = vmatprep.mubr.bf16.mxu0 0
    %6562 = vmatmul.mubr.bf16.gmra.mrb[0].mxu0 %v6517
    %v6563 = vpop.f32.mrb[0].mxu0
    %v6564 = vadd.f32 %v6488, %v6563
    %v6565 = vpop.f32.mrb[0].mxu0
    %v6566 = vadd.f32 %v6488, %v6565
    %v6567 = vpop.f32.mrb[0].mxu0
    %v6568 = vadd.f32 %v6493, %v6567
    %v6569 = vpop.f32.mrb[0].mxu0
    %v6570 = vadd.f32 %v6493, %v6569
    %6571 = vmatprep.mubr.bf16.mxu0 0
    %6572 = vmatmul.mubr.bf16.gmra.mrb[0].mxu0 %v6520
    %v6573 = vpop.f32.mrb[0].mxu0
    %v6574 = vadd.f32 %v6498, %v6573
    %v6575 = vpop.f32.mrb[0].mxu0
    %v6576 = vadd.f32 %v6498, %v6575
    %v6577 = vpop.f32.mrb[0].mxu0
    %v6578 = vadd.f32 %v6503, %v6577
    %v6579 = vpop.f32.mrb[0].mxu0
    %v6580 = vadd.f32 %v6503, %v6579
    %6581 = vdwg.mxu0
    %6590 = vrot.lane.b32.xlu0 %v6564, 127
    %v6591 = vpop.permute.xlu0 %6590
    %6592 = vrot.lane.b32.xlu0 %v6566, 127
    %v6593 = vpop.permute.xlu0 %6592
    %6594 = vrot.lane.b32.xlu0 %v6568, 127
    %v6595 = vpop.permute.xlu0 %6594
    %6596 = vrot.lane.b32.xlu0 %v6570, 127
    %v6597 = vpop.permute.xlu0 %6596
    %6598 = vrot.lane.b32.xlu0 %v6574, 127
    %v6599 = vpop.permute.xlu0 %6598
    %6600 = vrot.lane.b32.xlu0 %v6576, 127
    %v6601 = vpop.permute.xlu0 %6600
    %6602 = vrot.lane.b32.xlu0 %v6578, 127
    %v6603 = vpop.permute.xlu0 %6602
    %6604 = vrot.lane.b32.xlu0 %v6580, 127
    %v6605 = vpop.permute.xlu0 %6604
    %v6606 = vsel %vm1178, %v6591, %v6593
    %v6607 = vsel %vm1178, %v6595, %v6597
    %v6608 = vsel %vm1178, %v6599, %v6601
    %v6609 = vsel %vm1178, %v6603, %v6605
    %v6618 = vsel %vm1178, %v6593, 0.0
    %v6619 = vsel %vm1178, %v6597, 0.0
    %v6620 = vsel %vm1178, %v6601, 0.0
    %v6621 = vsel %vm1178, %v6605, 0.0
    %v6622 = vmax.f32 %v6564, %v6606
    %v6623 = vmax.f32 %v6566, %v6618
    %v6624 = vmax.f32 %v6568, %v6607
    %v6625 = vmax.f32 %v6570, %v6619
    %v6626 = vmax.f32 %v6574, %v6608
    %v6627 = vmax.f32 %v6576, %v6620
    %v6628 = vmax.f32 %v6578, %v6609
    %v6629 = vmax.f32 %v6580, %v6621
    %v6630 = vpack.c.bf16 %v6624, %v6622
    %v6631 = vpack.c.bf16 %v6625, %v6623
    %v6632 = vpack.c.bf16 %v6628, %v6626
    %v6633 = vpack.c.bf16 %v6629, %v6627
    %v6666 = vunpack.c.l.b16 %v306
    %v6667 = vunpack.c.l.b16 %v307
    %v6668 = vunpack.c.l.b16 %v308
    %v6669 = vunpack.c.l.b16 %v309
    %v6670 = vunpack.c.l.b16 %v310
    %v6671 = vunpack.c.l.b16 %v311
    %v6672 = vunpack.c.l.b16 %v312
    %v6673 = vunpack.c.l.b16 %v313
    %v6674 = vunpack.c.l.b16 %v314
    %v6675 = vunpack.c.l.b16 %v315
    %v6676 = vunpack.c.l.b16 %v316
    %v6677 = vunpack.c.l.b16 %v317
    %v6678 = vunpack.c.l.b16 %v318
    %v6679 = vunpack.c.l.b16 %v319
    %v6680 = vunpack.c.l.b16 %v320
    %v6681 = vunpack.c.l.b16 %v321
    %v6682 = vunpack.c.l.b16 %v322
    %v6683 = vunpack.c.l.b16 %v323
    %v6684 = vunpack.c.l.b16 %v324
    %v6685 = vunpack.c.l.b16 %v325
    %v6686 = vunpack.c.l.b16 %v326
    %v6687 = vunpack.c.l.b16 %v327
    %v6688 = vunpack.c.l.b16 %v328
    %v6689 = vunpack.c.l.b16 %v329
    %v6690 = vunpack.c.l.b16 %v330
    %v6691 = vunpack.c.l.b16 %v331
    %v6692 = vunpack.c.l.b16 %v332
    %v6693 = vunpack.c.l.b16 %v333
    %v6694 = vunpack.c.l.b16 %v334
    %v6695 = vunpack.c.l.b16 %v335
    %v6696 = vunpack.c.l.b16 %v336
    %v6697 = vunpack.c.l.b16 %v337
    %v6698 = vpack.c.b16 %v6667, %v6666
    %v6699 = vpack.c.b16 %v6669, %v6668
    %v6700 = vpack.c.b16 %v6671, %v6670
    %v6701 = vpack.c.b16 %v6673, %v6672
    %v6702 = vpack.c.b16 %v6675, %v6674
    %v6703 = vpack.c.b16 %v6677, %v6676
    %v6704 = vpack.c.b16 %v6679, %v6678
    %v6705 = vpack.c.b16 %v6681, %v6680
    %v6706 = vpack.c.b16 %v6683, %v6682
    %v6707 = vpack.c.b16 %v6685, %v6684
    %v6708 = vpack.c.b16 %v6687, %v6686
    %v6709 = vpack.c.b16 %v6689, %v6688
    %v6710 = vpack.c.b16 %v6691, %v6690
    %v6711 = vpack.c.b16 %v6693, %v6692
    %v6712 = vpack.c.b16 %v6695, %v6694
    %v6713 = vpack.c.b16 %v6697, %v6696
    %6730 = vmatprep.subr.bf16.mxu0 0
    %6731 = vmatpush1.bf16.msra.mxu0 %v6698
    %6732 = vmatprep.subr.bf16.mxu0 0
    %6733 = vmatpush1.bf16.msra.mxu0 %v6699
    %6734 = vmatprep.subr.bf16.mxu0 0
    %6735 = vmatpush1.bf16.msra.mxu0 %v6700
    %6736 = vmatprep.subr.bf16.mxu0 0
    %6737 = vmatpush1.bf16.msra.mxu0 %v6701
    %6738 = vmatprep.subr.bf16.mxu0 0
    %6739 = vmatpush1.bf16.msra.mxu0 %v6702
    %6740 = vmatprep.subr.bf16.mxu0 0
    %6741 = vmatpush1.bf16.msra.mxu0 %v6703
    %6742 = vmatprep.subr.bf16.mxu0 0
    %6743 = vmatpush1.bf16.msra.mxu0 %v6704
    %6744 = vmatprep.subr.bf16.mxu0 0
    %6745 = vmatpush1.bf16.msra.mxu0 %v6705
    %6746 = vmatprep.subr.bf16.mxu0 0
    %6747 = vmatpush1.bf16.msra.mxu0 %v6706
    %6748 = vmatprep.subr.bf16.mxu0 0
    %6749 = vmatpush1.bf16.msra.mxu0 %v6707
    %6750 = vmatprep.subr.bf16.mxu0 0
    %6751 = vmatpush1.bf16.msra.mxu0 %v6708
    %6752 = vmatprep.subr.bf16.mxu0 0
    %6753 = vmatpush1.bf16.msra.mxu0 %v6709
    %6754 = vmatprep.subr.bf16.mxu0 0
    %6755 = vmatpush1.bf16.msra.mxu0 %v6710
    %6756 = vmatprep.subr.bf16.mxu0 0
    %6757 = vmatpush1.bf16.msra.mxu0 %v6711
    %6758 = vmatprep.subr.bf16.mxu0 0
    %6759 = vmatpush1.bf16.msra.mxu0 %v6712
    %6760 = vmatprep.subr.bf16.mxu0 0
    %6761 = vmatpush1.bf16.msra.mxu0 %v6713
    %6762 = vmatprep.mubr.bf16.mxu0 %v6631
    %6763 = vmatmul.mubr.bf16.gmra.mrb[0].mxu0 %v6630
    %v6764 = vpop.f32.mrb[0].mxu0
    %v6765 = vadd.f32 0.0, %v6764
    %v6766 = vpop.f32.mrb[0].mxu0
    %v6767 = vpop.f32.mrb[0].mxu0
    %v6768 = vadd.f32 0.0, %v6767
    %v6769 = vpop.f32.mrb[0].mxu0
    %6770 = vmatprep.mubr.bf16.mxu0 %v6633
    %6771 = vmatmul.mubr.bf16.gmra.mrb[0].mxu0 %v6632
    %v6772 = vpop.f32.mrb[0].mxu0
    %v6773 = vadd.f32 0.0, %v6772
    %v6774 = vpop.f32.mrb[0].mxu0
    %v6775 = vpop.f32.mrb[0].mxu0
    %v6776 = vadd.f32 0.0, %v6775
    %v6777 = vpop.f32.mrb[0].mxu0
    %6778 = vdwg.mxu0
    %v6779 = vmul.f32 %v6765, 0.5
    %v6780 = vmul.f32 %v6768, 0.5
    %v6781 = vmul.f32 %v6773, 0.5
    %v6782 = vmul.f32 %v6776, 0.5
    %v6783 = vmul.f32 %v6765, 0.70710677
    %v6784 = vmul.f32 %v6768, 0.70710677
    %v6785 = vmul.f32 %v6773, 0.70710677
    %v6786 = vmul.f32 %v6776, 0.70710677
    %v6787 = vand.u32 2147483647, %v6783
    %v6788 = vand.u32 2147483647, %v6784
    %v6789 = vand.u32 2147483647, %v6785
    %v6790 = vand.u32 2147483647, %v6786
    %v6791 = vmul.f32 %v6787, 0.3275911
    %v6792 = vmul.f32 %v6788, 0.3275911
    %v6793 = vmul.f32 %v6789, 0.3275911
    %v6794 = vmul.f32 %v6790, 0.3275911
    %v6795 = vadd.f32 %v6791, 1.0
    %v6796 = vadd.f32 %v6792, 1.0
    %v6797 = vadd.f32 %v6793, 1.0
    %v6798 = vadd.f32 %v6794, 1.0
    %v6799 = vrcp.pop %v6795
    %v6800 = vmul.f32 1.0, %v6799
    %v6801 = vrcp.pop %v6796
    %v6802 = vmul.f32 1.0, %v6801
    %v6803 = vrcp.pop %v6797
    %v6804 = vmul.f32 1.0, %v6803
    %v6805 = vrcp.pop %v6798
    %v6806 = vmul.f32 1.0, %v6805
    %v6807 = vmul.f32 %v6800, 1.0614054
    %v6808 = vmul.f32 %v6802, 1.0614054
    %v6809 = vmul.f32 %v6804, 1.0614054
    %v6810 = vmul.f32 %v6806, 1.0614054
    %v6811 = vadd.f32 %v6807, -1.4531521
    %v6812 = vadd.f32 %v6808, -1.4531521
    %v6813 = vadd.f32 %v6809, -1.4531521
    %v6814 = vadd.f32 %v6810, -1.4531521
    %v6815 = vmul.f32 %v6811, %v6800
    %v6816 = vmul.f32 %v6812, %v6802
    %v6817 = vmul.f32 %v6813, %v6804
    %v6818 = vmul.f32 %v6814, %v6806
    %v6819 = vadd.f32 %v6815, 1.4214138
    %v6820 = vadd.f32 %v6816, 1.4214138
    %v6821 = vadd.f32 %v6817, 1.4214138
    %v6822 = vadd.f32 %v6818, 1.4214138
    %v6823 = vmul.f32 %v6819, %v6800
    %v6824 = vmul.f32 %v6820, %v6802
    %v6825 = vmul.f32 %v6821, %v6804
    %v6826 = vmul.f32 %v6822, %v6806
    %v6827 = vadd.f32 %v6823, -0.28449672
    %v6828 = vadd.f32 %v6824, -0.28449672
    %v6829 = vadd.f32 %v6825, -0.28449672
    %v6830 = vadd.f32 %v6826, -0.28449672
    %v6831 = vmul.f32 %v6827, %v6800
    %v6832 = vmul.f32 %v6828, %v6802
    %v6833 = vmul.f32 %v6829, %v6804
    %v6834 = vmul.f32 %v6830, %v6806
    %v6835 = vadd.f32 %v6831, 0.2548296
    %v6836 = vadd.f32 %v6832, 0.2548296
    %v6837 = vadd.f32 %v6833, 0.2548296
    %v6838 = vadd.f32 %v6834, 0.2548296
    %v6839 = vmul.f32 %v6835, %v6800
    %v6840 = vmul.f32 %v6836, %v6802
    %v6841 = vmul.f32 %v6837, %v6804
    %v6842 = vmul.f32 %v6838, %v6806
    %v6843 = vsub.f32 0.0, %v6787
    %v6844 = vsub.f32 0.0, %v6788
    %v6845 = vsub.f32 0.0, %v6789
    %v6846 = vsub.f32 0.0, %v6790
    %v6847 = vmul.f32 %v6843, %v6787
    %v6848 = vmul.f32 %v6844, %v6788
    %v6849 = vmul.f32 %v6845, %v6789
    %v6850 = vmul.f32 %v6846, %v6790
    %v6851 = vmul.f32 %v6847, 1.442695
    %v6852 = vpow.pop %v6851
    %v6853 = vmul.f32 %v6848, 1.442695
    %v6854 = vpow.pop %v6853
    %v6855 = vmul.f32 %v6849, 1.442695
    %v6856 = vpow.pop %v6855
    %v6857 = vmul.f32 %v6850, 1.442695
    %v6858 = vpow.pop %v6857
    %v6859 = vmul.f32 %v6839, %v6852
    %v6860 = vmul.f32 %v6840, %v6854
    %v6861 = vmul.f32 %v6841, %v6856
    %v6862 = vmul.f32 %v6842, %v6858
    %v6863 = vsub.f32 1.0, %v6859
    %v6864 = vsub.f32 1.0, %v6860
    %v6865 = vsub.f32 1.0, %v6861
    %v6866 = vsub.f32 1.0, %v6862
    %vm6867 = vcmp.ge.f32.partialorder %v6783, 0.0
    %vm6868 = vcmp.ge.f32.partialorder %v6784, 0.0
    %vm6869 = vcmp.ge.f32.partialorder %v6785, 0.0
    %vm6870 = vcmp.ge.f32.partialorder %v6786, 0.0
    %v6871 = vsub.f32 0.0, %v6863
    %v6872 = vsub.f32 0.0, %v6864
    %v6873 = vsub.f32 0.0, %v6865
    %v6874 = vsub.f32 0.0, %v6866
    %v6875 = vsel %vm6867, %v6863, %v6871
    %v6876 = vsel %vm6868, %v6864, %v6872
    %v6877 = vsel %vm6869, %v6865, %v6873
    %v6878 = vsel %vm6870, %v6866, %v6874
    %v6879 = vadd.f32 %v6875, 1.0
    %v6880 = vadd.f32 %v6876, 1.0
    %v6881 = vadd.f32 %v6877, 1.0
    %v6882 = vadd.f32 %v6878, 1.0
    %v6883 = vmul.f32 %v6779, %v6879
    %v6884 = vmul.f32 %v6780, %v6880
    %v6885 = vmul.f32 %v6781, %v6881
    %v6886 = vmul.f32 %v6782, %v6882
    %6888 = vset.pattern.permute.xlu0 0
    %6889 = vperm.xlu0 %6888, %v380
    %v6890 = vpop.permute.xlu0 %6889
    %6893 = vset.pattern.permute.xlu0 0
    %6894 = vperm.xlu0 %6893, %v381
    %v6895 = vpop.permute.xlu0 %6894
    %6898 = vset.pattern.permute.xlu0 0
    %6899 = vperm.xlu0 %6898, %v382
    %v6900 = vpop.permute.xlu0 %6899
    %6903 = vset.pattern.permute.xlu0 0
    %6904 = vperm.xlu0 %6903, %v383
    %v6905 = vpop.permute.xlu0 %6904
    %v6907 = vadd.f32 %v6883, %v6890
    %v6908 = vadd.f32 %v6884, %v6895
    %v6909 = vadd.f32 %v6885, %v6900
    %v6910 = vadd.f32 %v6886, %v6905
    %6911 = vrot.lane.b32.xlu0 %v745, 64
    %v6912 = vpop.permute.xlu0 %6911
    %vm6913 = vcmask 523264
    %v6914 = vsel %vm6913, %v745, %v6912
    %6919 = vrot.lane.b32.xlu0 %v6907, 2
    %v6920 = vpop.permute.xlu0 %6919
    %6921 = vrot.lane.b32.xlu0 %v6908, 2
    %v6922 = vpop.permute.xlu0 %6921
    %6923 = vrot.lane.b32.xlu0 %v6909, 2
    %v6924 = vpop.permute.xlu0 %6923
    %6925 = vrot.lane.b32.xlu0 %v6910, 2
    %v6926 = vpop.permute.xlu0 %6925
    %v6931 = vsel %vm1016, 0.0, %v6920
    %v6932 = vsel %vm1016, 0.0, %v6922
    %v6933 = vsel %vm1016, 0.0, %v6924
    %v6934 = vsel %vm1016, 0.0, %v6926
    %v6935 = vadd.s32 %v6914, 4294967294
    %vm6936 = vcmp.ge.s32.totalorder %v6935, 0
    %vm6937 = vcmp.lt.s32.totalorder %v6935, 64
    %vm6938 = vmand %vm6936, %vm6937
    %v6939 = vsel %vm6938, 1, 0
    %v6940 = vlaneseq
    %v6941 = vshrl.u32 %v6940, 7
    %v6942 = vsub.s32 0, %v6941
    %v6943 = vrot.slane %v6939, %v6942
    %vm6944 = vcmp.eq.s32.totalorder %v6943, 1
    %v6945 = vsel %vm6944, %v6931, 0.0
    %v6946 = vsel %vm6944, %v6932, 0.0
    %v6947 = vsel %vm6944, %v6933, 0.0
    %v6948 = vsel %vm6944, %v6934, 0.0
    %6949 = vrot.lane.b32.xlu0 %v6907, 1
    %v6950 = vpop.permute.xlu0 %6949
    %6951 = vrot.lane.b32.xlu0 %v6908, 1
    %v6952 = vpop.permute.xlu0 %6951
    %6953 = vrot.lane.b32.xlu0 %v6909, 1
    %v6954 = vpop.permute.xlu0 %6953
    %6955 = vrot.lane.b32.xlu0 %v6910, 1
    %v6956 = vpop.permute.xlu0 %6955
    %v6961 = vsel %vm1097, 0.0, %v6950
    %v6962 = vsel %vm1097, 0.0, %v6952
    %v6963 = vsel %vm1097, 0.0, %v6954
    %v6964 = vsel %vm1097, 0.0, %v6956
    %v6965 = vadd.s32 %v6914, 4294967295
    %vm6966 = vcmp.ge.s32.totalorder %v6965, 0
    %vm6967 = vcmp.lt.s32.totalorder %v6965, 64
    %vm6968 = vmand %vm6966, %vm6967
    %v6969 = vsel %vm6968, 1, 0
    %v6970 = vlaneseq
    %v6971 = vshrl.u32 %v6970, 7
    %v6972 = vsub.s32 0, %v6971
    %v6973 = vrot.slane %v6969, %v6972
    %vm6974 = vcmp.eq.s32.totalorder %v6973, 1
    %v6975 = vsel %vm6974, %v6961, 0.0
    %v6976 = vsel %vm6974, %v6962, 0.0
    %v6977 = vsel %vm6974, %v6963, 0.0
    %v6978 = vsel %vm6974, %v6964, 0.0
    %6979 = vrot.lane.b32.xlu0 %v6907, 127
    %v6980 = vpop.permute.xlu0 %6979
    %6981 = vrot.lane.b32.xlu0 %v6908, 127
    %v6982 = vpop.permute.xlu0 %6981
    %6983 = vrot.lane.b32.xlu0 %v6909, 127
    %v6984 = vpop.permute.xlu0 %6983
    %6985 = vrot.lane.b32.xlu0 %v6910, 127
    %v6986 = vpop.permute.xlu0 %6985
    %v6991 = vsel %vm1178, %v6980, 0.0
    %v6992 = vsel %vm1178, %v6982, 0.0
    %v6993 = vsel %vm1178, %v6984, 0.0
    %v6994 = vsel %vm1178, %v6986, 0.0
    %v6995 = vadd.s32 %v6914, 1
    %vm6996 = vcmp.ge.s32.totalorder %v6995, 0
    %vm6997 = vcmp.lt.s32.totalorder %v6995, 64
    %vm6998 = vmand %vm6996, %vm6997
    %v6999 = vsel %vm6998, 1, 0
    %v7000 = vlaneseq
    %v7001 = vshrl.u32 %v7000, 7
    %v7002 = vsub.s32 0, %v7001
    %v7003 = vrot.slane %v6999, %v7002
    %vm7004 = vcmp.eq.s32.totalorder %v7003, 1
    %v7005 = vsel %vm7004, %v6991, 0.0
    %v7006 = vsel %vm7004, %v6992, 0.0
    %v7007 = vsel %vm7004, %v6993, 0.0
    %v7008 = vsel %vm7004, %v6994, 0.0
    %7009 = vrot.lane.b32.xlu0 %v6907, 126
    %v7010 = vpop.permute.xlu0 %7009
    %7011 = vrot.lane.b32.xlu0 %v6908, 126
    %v7012 = vpop.permute.xlu0 %7011
    %7013 = vrot.lane.b32.xlu0 %v6909, 126
    %v7014 = vpop.permute.xlu0 %7013
    %7015 = vrot.lane.b32.xlu0 %v6910, 126
    %v7016 = vpop.permute.xlu0 %7015
    %v7021 = vsel %vm1259, %v7010, 0.0
    %v7022 = vsel %vm1259, %v7012, 0.0
    %v7023 = vsel %vm1259, %v7014, 0.0
    %v7024 = vsel %vm1259, %v7016, 0.0
    %v7025 = vadd.s32 %v6914, 2
    %vm7026 = vcmp.ge.s32.totalorder %v7025, 0
    %vm7027 = vcmp.lt.s32.totalorder %v7025, 64
    %vm7028 = vmand %vm7026, %vm7027
    %v7029 = vsel %vm7028, 1, 0
    %v7030 = vlaneseq
    %v7031 = vshrl.u32 %v7030, 7
    %v7032 = vsub.s32 0, %v7031
    %v7033 = vrot.slane %v7029, %v7032
    %vm7034 = vcmp.eq.s32.totalorder %v7033, 1
    %v7035 = vsel %vm7034, %v7021, 0.0
    %v7036 = vsel %vm7034, %v7022, 0.0
    %v7037 = vsel %vm7034, %v7023, 0.0
    %v7038 = vsel %vm7034, %v7024, 0.0
    %v7039 = vpack.c.bf16 %v6946, %v6945
    %v7040 = vpack.c.bf16 %v6948, %v6947
    %v7041 = vpack.c.bf16 %v6976, %v6975
    %v7042 = vpack.c.bf16 %v6978, %v6977
    %v7043 = vpack.c.bf16 %v6908, %v6907
    %v7044 = vpack.c.bf16 %v6910, %v6909
    %v7045 = vpack.c.bf16 %v7006, %v7005
    %v7046 = vpack.c.bf16 %v7008, %v7007
    %v7047 = vpack.c.bf16 %v7036, %v7035
    %v7048 = vpack.c.bf16 %v7038, %v7037
    %7050 = vset.pattern.permute.xlu0 0
    %7051 = vperm.xlu0 %7050, %v376
    %v7052 = vpop.permute.xlu0 %7051
    %7055 = vset.pattern.permute.xlu0 0
    %7056 = vperm.xlu0 %7055, %v377
    %v7057 = vpop.permute.xlu0 %7056
    %7060 = vset.pattern.permute.xlu0 0
    %7061 = vperm.xlu0 %7060, %v378
    %v7062 = vpop.permute.xlu0 %7061
    %7065 = vset.pattern.permute.xlu0 0
    %7066 = vperm.xlu0 %7065, %v379
    %v7067 = vpop.permute.xlu0 %7066
    %v7073 = vunpack.c.l.b16 %v372
    %v7074 = vunpack.c.h.b16 %v372
    %v7075 = vunpack.c.l.b16 %v373
    %v7076 = vunpack.c.h.b16 %v373
    %v7077 = vunpack.c.l.b16 %v374
    %v7078 = vunpack.c.h.b16 %v374
    %v7079 = vunpack.c.l.b16 %v375
    %v7080 = vunpack.c.h.b16 %v375
    %v7081 = vpack.c.b16 %v7075, %v7073
    %v7082 = vpack.c.b16 %v7076, %v7074
    %v7083 = vpack.c.b16 %v7079, %v7077
    %v7084 = vpack.c.b16 %v7080, %v7078
    %vm7087 = vcmask 261120
    %v7089 = vsel %vm7087, %v7082, 0
    %v7092 = vsel %vm7087, %v7084, 0
    %7094 = vmatprep.subr.bf16.mxu0 0
    %7095 = vmatpush1.bf16.msra.mxu0 %v7039
    %7096 = vmatprep.subr.bf16.mxu0 0
    %7097 = vmatpush1.bf16.msra.mxu0 %v7040
    %7098 = vmatprep.subr.bf16.mxu0 0
    %7099 = vmatpush1.bf16.msra.mxu0 %v7041
    %7100 = vmatprep.subr.bf16.mxu0 0
    %7101 = vmatpush1.bf16.msra.mxu0 %v7042
    %7102 = vmatprep.subr.bf16.mxu0 0
    %7103 = vmatpush1.bf16.msra.mxu0 %v7043
    %7104 = vmatprep.subr.bf16.mxu0 0
    %7105 = vmatpush1.bf16.msra.mxu0 %v7044
    %7106 = vmatprep.subr.bf16.mxu0 0
    %7107 = vmatpush1.bf16.msra.mxu0 %v7045
    %7108 = vmatprep.subr.bf16.mxu0 0
    %7109 = vmatpush1.bf16.msra.mxu0 %v7046
    %7110 = vmatprep.subr.bf16.mxu0 0
    %7111 = vmatpush1.bf16.msra.mxu0 %v7047
    %7112 = vmatprep.subr.bf16.mxu0 0
    %7113 = vmatpush1.bf16.msra.mxu0 %v7048
    %7114 = vmatprep.subr.bf16.mxu0 0
    %7115 = vmatpush1.bf16.msra.mxu0 0
    %7116 = vmatprep.subr.bf16.mxu0 0
    %7117 = vmatpush1.bf16.msra.mxu0 0
    %7118 = vmatprep.subr.bf16.mxu0 0
    %7119 = vmatpush1.bf16.msra.mxu0 0
    %7120 = vmatprep.subr.bf16.mxu0 0
    %7121 = vmatpush1.bf16.msra.mxu0 0
    %7122 = vmatprep.subr.bf16.mxu0 0
    %7123 = vmatpush1.bf16.msra.mxu0 0
    %7124 = vmatprep.subr.bf16.mxu0 0
    %7125 = vmatpush1.bf16.msra.mxu0 0
    %7126 = vmatprep.mubr.bf16.mxu0 %v7089
    %7127 = vmatmul.mubr.bf16.gmra.mrb[0].mxu0 %v7081
    %v7128 = vpop.f32.mrb[0].mxu0
    %v7129 = vadd.f32 %v7052, %v7128
    %v7130 = vpop.f32.mrb[0].mxu0
    %v7131 = vpop.f32.mrb[0].mxu0
    %v7132 = vadd.f32 %v7057, %v7131
    %v7133 = vpop.f32.mrb[0].mxu0
    %7134 = vmatprep.mubr.bf16.mxu0 %v7092
    %7135 = vmatmul.mubr.bf16.gmra.mrb[0].mxu0 %v7083
    %v7136 = vpop.f32.mrb[0].mxu0
    %v7137 = vadd.f32 %v7062, %v7136
    %v7138 = vpop.f32.mrb[0].mxu0
    %v7139 = vpop.f32.mrb[0].mxu0
    %v7140 = vadd.f32 %v7067, %v7139
    %v7141 = vpop.f32.mrb[0].mxu0
    %7142 = vdwg.mxu0
    %7147 = vrot.lane.b32.xlu0 %v7129, 127
    %v7148 = vpop.permute.xlu0 %7147
    %7149 = vrot.lane.b32.xlu0 %v7132, 127
    %v7150 = vpop.permute.xlu0 %7149
    %7151 = vrot.lane.b32.xlu0 %v7137, 127
    %v7152 = vpop.permute.xlu0 %7151
    %7153 = vrot.lane.b32.xlu0 %v7140, 127
    %v7154 = vpop.permute.xlu0 %7153
    %v7159 = vsel %vm1178, %v7148, 0.0
    %v7160 = vsel %vm1178, %v7150, 0.0
    %v7161 = vsel %vm1178, %v7152, 0.0
    %v7162 = vsel %vm1178, %v7154, 0.0
    %v7163 = vmax.f32 %v7129, %v7159
    %v7164 = vmax.f32 %v7132, %v7160
    %v7165 = vmax.f32 %v7137, %v7161
    %v7166 = vmax.f32 %v7140, %v7162
    %v7167 = vpack.c.bf16 %v7164, %v7163
    %v7168 = vpack.c.bf16 %v7166, %v7165
    %v7185 = vunpack.c.l.b16 %v338
    %v7186 = vunpack.c.l.b16 %v339
    %v7187 = vunpack.c.l.b16 %v340
    %v7188 = vunpack.c.l.b16 %v341
    %v7189 = vunpack.c.l.b16 %v342
    %v7190 = vunpack.c.l.b16 %v343
    %v7191 = vunpack.c.l.b16 %v344
    %v7192 = vunpack.c.l.b16 %v345
    %v7193 = vunpack.c.l.b16 %v346
    %v7194 = vunpack.c.l.b16 %v347
    %v7195 = vunpack.c.l.b16 %v348
    %v7196 = vunpack.c.l.b16 %v349
    %v7197 = vunpack.c.l.b16 %v350
    %v7198 = vunpack.c.l.b16 %v351
    %v7199 = vunpack.c.l.b16 %v352
    %v7200 = vunpack.c.l.b16 %v353
    %v7201 = vpack.c.b16 %v7186, %v7185
    %v7202 = vpack.c.b16 %v7188, %v7187
    %v7203 = vpack.c.b16 %v7190, %v7189
    %v7204 = vpack.c.b16 %v7192, %v7191
    %v7205 = vpack.c.b16 %v7194, %v7193
    %v7206 = vpack.c.b16 %v7196, %v7195
    %v7207 = vpack.c.b16 %v7198, %v7197
    %v7208 = vpack.c.b16 %v7200, %v7199
    %7217 = vmatprep.subr.bf16.mxu0 0
    %7218 = vmatpush1.bf16.msra.mxu0 %v7201
    %7219 = vmatprep.subr.bf16.mxu0 0
    %7220 = vmatpush1.bf16.msra.mxu0 %v7202
    %7221 = vmatprep.subr.bf16.mxu0 0
    %7222 = vmatpush1.bf16.msra.mxu0 %v7203
    %7223 = vmatprep.subr.bf16.mxu0 0
    %7224 = vmatpush1.bf16.msra.mxu0 %v7204
    %7225 = vmatprep.subr.bf16.mxu0 0
    %7226 = vmatpush1.bf16.msra.mxu0 %v7205
    %7227 = vmatprep.subr.bf16.mxu0 0
    %7228 = vmatpush1.bf16.msra.mxu0 %v7206
    %7229 = vmatprep.subr.bf16.mxu0 0
    %7230 = vmatpush1.bf16.msra.mxu0 %v7207
    %7231 = vmatprep.subr.bf16.mxu0 0
    %7232 = vmatpush1.bf16.msra.mxu0 %v7208
    %7233 = vmatprep.subr.bf16.mxu0 0
    %7234 = vmatpush1.bf16.msra.mxu0 0
    %7235 = vmatprep.subr.bf16.mxu0 0
    %7236 = vmatpush1.bf16.msra.mxu0 0
    %7237 = vmatprep.subr.bf16.mxu0 0
    %7238 = vmatpush1.bf16.msra.mxu0 0
    %7239 = vmatprep.subr.bf16.mxu0 0
    %7240 = vmatpush1.bf16.msra.mxu0 0
    %7241 = vmatprep.subr.bf16.mxu0 0
    %7242 = vmatpush1.bf16.msra.mxu0 0
    %7243 = vmatprep.subr.bf16.mxu0 0
    %7244 = vmatpush1.bf16.msra.mxu0 0
    %7245 = vmatprep.subr.bf16.mxu0 0
    %7246 = vmatpush1.bf16.msra.mxu0 0
    %7247 = vmatprep.subr.bf16.mxu0 0
    %7248 = vmatpush1.bf16.msra.mxu0 0
    %7249 = vmatprep.mubr.bf16.mxu0 0
    %7250 = vmatmul.mubr.bf16.gmra.mrb[0].mxu0 %v7167
    %v7251 = vpop.f32.mrb[0].mxu0
    %v7252 = vadd.f32 0.0, %v7251
    %v7253 = vpop.f32.mrb[0].mxu0
    %v7254 = vpop.f32.mrb[0].mxu0
    %v7255 = vadd.f32 0.0, %v7254
    %v7256 = vpop.f32.mrb[0].mxu0
    %7257 = vmatprep.mubr.bf16.mxu0 0
    %7258 = vmatmul.mubr.bf16.gmra.mrb[0].mxu0 %v7168
    %v7259 = vpop.f32.mrb[0].mxu0
    %v7260 = vadd.f32 0.0, %v7259
    %v7261 = vpop.f32.mrb[0].mxu0
    %v7262 = vpop.f32.mrb[0].mxu0
    %v7263 = vadd.f32 0.0, %v7262
    %v7264 = vpop.f32.mrb[0].mxu0
    %7265 = vdwg.mxu0
    %v7266 = vmul.f32 %v7252, 0.5
    %v7267 = vmul.f32 %v7255, 0.5
    %v7268 = vmul.f32 %v7260, 0.5
    %v7269 = vmul.f32 %v7263, 0.5
    %v7270 = vmul.f32 %v7252, 0.70710677
    %v7271 = vmul.f32 %v7255, 0.70710677
    %v7272 = vmul.f32 %v7260, 0.70710677
    %v7273 = vmul.f32 %v7263, 0.70710677
    %v7274 = vand.u32 2147483647, %v7270
    %v7275 = vand.u32 2147483647, %v7271
    %v7276 = vand.u32 2147483647, %v7272
    %v7277 = vand.u32 2147483647, %v7273
    %v7278 = vmul.f32 %v7274, 0.3275911
    %v7279 = vmul.f32 %v7275, 0.3275911
    %v7280 = vmul.f32 %v7276, 0.3275911
    %v7281 = vmul.f32 %v7277, 0.3275911
    %v7282 = vadd.f32 %v7278, 1.0
    %v7283 = vadd.f32 %v7279, 1.0
    %v7284 = vadd.f32 %v7280, 1.0
    %v7285 = vadd.f32 %v7281, 1.0
    %v7286 = vrcp.pop %v7282
    %v7287 = vmul.f32 1.0, %v7286
    %v7288 = vrcp.pop %v7283
    %v7289 = vmul.f32 1.0, %v7288
    %v7290 = vrcp.pop %v7284
    %v7291 = vmul.f32 1.0, %v7290
    %v7292 = vrcp.pop %v7285
    %v7293 = vmul.f32 1.0, %v7292
    %v7294 = vmul.f32 %v7287, 1.0614054
    %v7295 = vmul.f32 %v7289, 1.0614054
    %v7296 = vmul.f32 %v7291, 1.0614054
    %v7297 = vmul.f32 %v7293, 1.0614054
    %v7298 = vadd.f32 %v7294, -1.4531521
    %v7299 = vadd.f32 %v7295, -1.4531521
    %v7300 = vadd.f32 %v7296, -1.4531521
    %v7301 = vadd.f32 %v7297, -1.4531521
    %v7302 = vmul.f32 %v7298, %v7287
    %v7303 = vmul.f32 %v7299, %v7289
    %v7304 = vmul.f32 %v7300, %v7291
    %v7305 = vmul.f32 %v7301, %v7293
    %v7306 = vadd.f32 %v7302, 1.4214138
    %v7307 = vadd.f32 %v7303, 1.4214138
    %v7308 = vadd.f32 %v7304, 1.4214138
    %v7309 = vadd.f32 %v7305, 1.4214138
    %v7310 = vmul.f32 %v7306, %v7287
    %v7311 = vmul.f32 %v7307, %v7289
    %v7312 = vmul.f32 %v7308, %v7291
    %v7313 = vmul.f32 %v7309, %v7293
    %v7314 = vadd.f32 %v7310, -0.28449672
    %v7315 = vadd.f32 %v7311, -0.28449672
    %v7316 = vadd.f32 %v7312, -0.28449672
    %v7317 = vadd.f32 %v7313, -0.28449672
    %v7318 = vmul.f32 %v7314, %v7287
    %v7319 = vmul.f32 %v7315, %v7289
    %v7320 = vmul.f32 %v7316, %v7291
    %v7321 = vmul.f32 %v7317, %v7293
    %v7322 = vadd.f32 %v7318, 0.2548296
    %v7323 = vadd.f32 %v7319, 0.2548296
    %v7324 = vadd.f32 %v7320, 0.2548296
    %v7325 = vadd.f32 %v7321, 0.2548296
    %v7326 = vmul.f32 %v7322, %v7287
    %v7327 = vmul.f32 %v7323, %v7289
    %v7328 = vmul.f32 %v7324, %v7291
    %v7329 = vmul.f32 %v7325, %v7293
    %v7330 = vsub.f32 0.0, %v7274
    %v7331 = vsub.f32 0.0, %v7275
    %v7332 = vsub.f32 0.0, %v7276
    %v7333 = vsub.f32 0.0, %v7277
    %v7334 = vmul.f32 %v7330, %v7274
    %v7335 = vmul.f32 %v7331, %v7275
    %v7336 = vmul.f32 %v7332, %v7276
    %v7337 = vmul.f32 %v7333, %v7277
    %v7338 = vmul.f32 %v7334, 1.442695
    %v7339 = vpow.pop %v7338
    %v7340 = vmul.f32 %v7335, 1.442695
    %v7341 = vpow.pop %v7340
    %v7342 = vmul.f32 %v7336, 1.442695
    %v7343 = vpow.pop %v7342
    %v7344 = vmul.f32 %v7337, 1.442695
    %v7345 = vpow.pop %v7344
    %v7346 = vmul.f32 %v7326, %v7339
    %v7347 = vmul.f32 %v7327, %v7341
    %v7348 = vmul.f32 %v7328, %v7343
    %v7349 = vmul.f32 %v7329, %v7345
    %v7350 = vsub.f32 1.0, %v7346
    %v7351 = vsub.f32 1.0, %v7347
    %v7352 = vsub.f32 1.0, %v7348
    %v7353 = vsub.f32 1.0, %v7349
    %vm7354 = vcmp.ge.f32.partialorder %v7270, 0.0
    %vm7355 = vcmp.ge.f32.partialorder %v7271, 0.0
    %vm7356 = vcmp.ge.f32.partialorder %v7272, 0.0
    %vm7357 = vcmp.ge.f32.partialorder %v7273, 0.0
    %v7358 = vsub.f32 0.0, %v7350
    %v7359 = vsub.f32 0.0, %v7351
    %v7360 = vsub.f32 0.0, %v7352
    %v7361 = vsub.f32 0.0, %v7353
    %v7362 = vsel %vm7354, %v7350, %v7358
    %v7363 = vsel %vm7355, %v7351, %v7359
    %v7364 = vsel %vm7356, %v7352, %v7360
    %v7365 = vsel %vm7357, %v7353, %v7361
    %v7366 = vadd.f32 %v7362, 1.0
    %v7367 = vadd.f32 %v7363, 1.0
    %v7368 = vadd.f32 %v7364, 1.0
    %v7369 = vadd.f32 %v7365, 1.0
    %v7370 = vmul.f32 %v7266, %v7366
    %v7371 = vmul.f32 %v7267, %v7367
    %v7372 = vmul.f32 %v7268, %v7368
    %v7373 = vmul.f32 %v7269, %v7369
    %7375 = vset.pattern.permute.xlu0 0
    %7376 = vperm.xlu0 %7375, %v392
    %v7377 = vpop.permute.xlu0 %7376
    %7380 = vset.pattern.permute.xlu0 0
    %7381 = vperm.xlu0 %7380, %v393
    %v7382 = vpop.permute.xlu0 %7381
    %7385 = vset.pattern.permute.xlu0 0
    %7386 = vperm.xlu0 %7385, %v394
    %v7387 = vpop.permute.xlu0 %7386
    %7390 = vset.pattern.permute.xlu0 0
    %7391 = vperm.xlu0 %7390, %v395
    %v7392 = vpop.permute.xlu0 %7391
    %v7394 = vadd.f32 %v7370, %v7377
    %v7395 = vadd.f32 %v7371, %v7382
    %v7396 = vadd.f32 %v7372, %v7387
    %v7397 = vadd.f32 %v7373, %v7392
    %7398 = vrot.lane.b32.xlu0 %v745, 32
    %v7399 = vpop.permute.xlu0 %7398
    %v7400 = vsel %vm7087, %v745, %v7399
    %7405 = vrot.lane.b32.xlu0 %v7394, 2
    %v7406 = vpop.permute.xlu0 %7405
    %7407 = vrot.lane.b32.xlu0 %v7395, 2
    %v7408 = vpop.permute.xlu0 %7407
    %7409 = vrot.lane.b32.xlu0 %v7396, 2
    %v7410 = vpop.permute.xlu0 %7409
    %7411 = vrot.lane.b32.xlu0 %v7397, 2
    %v7412 = vpop.permute.xlu0 %7411
    %v7417 = vsel %vm1016, 0.0, %v7406
    %v7418 = vsel %vm1016, 0.0, %v7408
    %v7419 = vsel %vm1016, 0.0, %v7410
    %v7420 = vsel %vm1016, 0.0, %v7412
    %v7421 = vadd.s32 %v7400, 4294967294
    %vm7422 = vcmp.ge.s32.totalorder %v7421, 0
    %vm7423 = vcmp.lt.s32.totalorder %v7421, 32
    %vm7424 = vmand %vm7422, %vm7423
    %v7425 = vsel %vm7424, 1, 0
    %v7426 = vlaneseq
    %v7427 = vshrl.u32 %v7426, 7
    %v7428 = vsub.s32 0, %v7427
    %v7429 = vrot.slane %v7425, %v7428
    %vm7430 = vcmp.eq.s32.totalorder %v7429, 1
    %v7431 = vsel %vm7430, %v7417, 0.0
    %v7432 = vsel %vm7430, %v7418, 0.0
    %v7433 = vsel %vm7430, %v7419, 0.0
    %v7434 = vsel %vm7430, %v7420, 0.0
    %7435 = vrot.lane.b32.xlu0 %v7394, 1
    %v7436 = vpop.permute.xlu0 %7435
    %7437 = vrot.lane.b32.xlu0 %v7395, 1
    %v7438 = vpop.permute.xlu0 %7437
    %7439 = vrot.lane.b32.xlu0 %v7396, 1
    %v7440 = vpop.permute.xlu0 %7439
    %7441 = vrot.lane.b32.xlu0 %v7397, 1
    %v7442 = vpop.permute.xlu0 %7441
    %v7447 = vsel %vm1097, 0.0, %v7436
    %v7448 = vsel %vm1097, 0.0, %v7438
    %v7449 = vsel %vm1097, 0.0, %v7440
    %v7450 = vsel %vm1097, 0.0, %v7442
    %v7451 = vadd.s32 %v7400, 4294967295
    %vm7452 = vcmp.ge.s32.totalorder %v7451, 0
    %vm7453 = vcmp.lt.s32.totalorder %v7451, 32
    %vm7454 = vmand %vm7452, %vm7453
    %v7455 = vsel %vm7454, 1, 0
    %v7456 = vlaneseq
    %v7457 = vshrl.u32 %v7456, 7
    %v7458 = vsub.s32 0, %v7457
    %v7459 = vrot.slane %v7455, %v7458
    %vm7460 = vcmp.eq.s32.totalorder %v7459, 1
    %v7461 = vsel %vm7460, %v7447, 0.0
    %v7462 = vsel %vm7460, %v7448, 0.0
    %v7463 = vsel %vm7460, %v7449, 0.0
    %v7464 = vsel %vm7460, %v7450, 0.0
    %7465 = vrot.lane.b32.xlu0 %v7394, 127
    %v7466 = vpop.permute.xlu0 %7465
    %7467 = vrot.lane.b32.xlu0 %v7395, 127
    %v7468 = vpop.permute.xlu0 %7467
    %7469 = vrot.lane.b32.xlu0 %v7396, 127
    %v7470 = vpop.permute.xlu0 %7469
    %7471 = vrot.lane.b32.xlu0 %v7397, 127
    %v7472 = vpop.permute.xlu0 %7471
    %vm7477 = vcmask 515072
    %v7478 = vsel %vm7477, %v7466, 0.0
    %v7479 = vsel %vm7477, %v7468, 0.0
    %v7480 = vsel %vm7477, %v7470, 0.0
    %v7481 = vsel %vm7477, %v7472, 0.0
    %v7482 = vadd.s32 %v7400, 1
    %vm7483 = vcmp.ge.s32.totalorder %v7482, 0
    %vm7484 = vcmp.lt.s32.totalorder %v7482, 32
    %vm7485 = vmand %vm7483, %vm7484
    %v7486 = vsel %vm7485, 1, 0
    %v7487 = vlaneseq
    %v7488 = vshrl.u32 %v7487, 7
    %v7489 = vsub.s32 0, %v7488
    %v7490 = vrot.slane %v7486, %v7489
    %vm7491 = vcmp.eq.s32.totalorder %v7490, 1
    %v7492 = vsel %vm7491, %v7478, 0.0
    %v7493 = vsel %vm7491, %v7479, 0.0
    %v7494 = vsel %vm7491, %v7480, 0.0
    %v7495 = vsel %vm7491, %v7481, 0.0
    %7496 = vrot.lane.b32.xlu0 %v7394, 126
    %v7497 = vpop.permute.xlu0 %7496
    %7498 = vrot.lane.b32.xlu0 %v7395, 126
    %v7499 = vpop.permute.xlu0 %7498
    %7500 = vrot.lane.b32.xlu0 %v7396, 126
    %v7501 = vpop.permute.xlu0 %7500
    %7502 = vrot.lane.b32.xlu0 %v7397, 126
    %v7503 = vpop.permute.xlu0 %7502
    %vm7508 = vcmask 506880
    %v7509 = vsel %vm7508, %v7497, 0.0
    %v7510 = vsel %vm7508, %v7499, 0.0
    %v7511 = vsel %vm7508, %v7501, 0.0
    %v7512 = vsel %vm7508, %v7503, 0.0
    %v7513 = vadd.s32 %v7400, 2
    %vm7514 = vcmp.ge.s32.totalorder %v7513, 0
    %vm7515 = vcmp.lt.s32.totalorder %v7513, 32
    %vm7516 = vmand %vm7514, %vm7515
    %v7517 = vsel %vm7516, 1, 0
    %v7518 = vlaneseq
    %v7519 = vshrl.u32 %v7518, 7
    %v7520 = vsub.s32 0, %v7519
    %v7521 = vrot.slane %v7517, %v7520
    %vm7522 = vcmp.eq.s32.totalorder %v7521, 1
    %v7523 = vsel %vm7522, %v7509, 0.0
    %v7524 = vsel %vm7522, %v7510, 0.0
    %v7525 = vsel %vm7522, %v7511, 0.0
    %v7526 = vsel %vm7522, %v7512, 0.0
    %v7527 = vpack.c.bf16 %v7432, %v7431
    %v7528 = vpack.c.bf16 %v7434, %v7433
    %v7529 = vpack.c.bf16 %v7462, %v7461
    %v7530 = vpack.c.bf16 %v7464, %v7463
    %v7531 = vpack.c.bf16 %v7395, %v7394
    %v7532 = vpack.c.bf16 %v7397, %v7396
    %v7533 = vpack.c.bf16 %v7493, %v7492
    %v7534 = vpack.c.bf16 %v7495, %v7494
    %v7535 = vpack.c.bf16 %v7524, %v7523
    %v7536 = vpack.c.bf16 %v7526, %v7525
    %7538 = vset.pattern.permute.xlu0 0
    %7539 = vperm.xlu0 %7538, %v388
    %v7540 = vpop.permute.xlu0 %7539
    %7543 = vset.pattern.permute.xlu0 0
    %7544 = vperm.xlu0 %7543, %v389
    %v7545 = vpop.permute.xlu0 %7544
    %7548 = vset.pattern.permute.xlu0 0
    %7549 = vperm.xlu0 %7548, %v390
    %v7550 = vpop.permute.xlu0 %7549
    %7553 = vset.pattern.permute.xlu0 0
    %7554 = vperm.xlu0 %7553, %v391
    %v7555 = vpop.permute.xlu0 %7554
    %v7561 = vunpack.c.l.b16 %v384
    %v7562 = vunpack.c.h.b16 %v384
    %v7563 = vunpack.c.l.b16 %v385
    %v7564 = vunpack.c.h.b16 %v385
    %v7565 = vunpack.c.l.b16 %v386
    %v7566 = vunpack.c.h.b16 %v386
    %v7567 = vunpack.c.l.b16 %v387
    %v7568 = vunpack.c.h.b16 %v387
    %v7569 = vpack.c.b16 %v7563, %v7561
    %v7570 = vpack.c.b16 %v7564, %v7562
    %v7571 = vpack.c.b16 %v7567, %v7565
    %v7572 = vpack.c.b16 %v7568, %v7566
    %v7576 = vsel %vm7087, %v7570, 0
    %v7579 = vsel %vm7087, %v7572, 0
    %7581 = vmatprep.subr.bf16.mxu0 0
    %7582 = vmatpush1.bf16.msra.mxu0 %v7527
    %7583 = vmatprep.subr.bf16.mxu0 0
    %7584 = vmatpush1.bf16.msra.mxu0 %v7528
    %7585 = vmatprep.subr.bf16.mxu0 0
    %7586 = vmatpush1.bf16.msra.mxu0 %v7529
    %7587 = vmatprep.subr.bf16.mxu0 0
    %7588 = vmatpush1.bf16.msra.mxu0 %v7530
    %7589 = vmatprep.subr.bf16.mxu0 0
    %7590 = vmatpush1.bf16.msra.mxu0 %v7531
    %7591 = vmatprep.subr.bf16.mxu0 0
    %7592 = vmatpush1.bf16.msra.mxu0 %v7532
    %7593 = vmatprep.subr.bf16.mxu0 0
    %7594 = vmatpush1.bf16.msra.mxu0 %v7533
    %7595 = vmatprep.subr.bf16.mxu0 0
    %7596 = vmatpush1.bf16.msra.mxu0 %v7534
    %7597 = vmatprep.subr.bf16.mxu0 0
    %7598 = vmatpush1.bf16.msra.mxu0 %v7535
    %7599 = vmatprep.subr.bf16.mxu0 0
    %7600 = vmatpush1.bf16.msra.mxu0 %v7536
    %7601 = vmatprep.subr.bf16.mxu0 0
    %7602 = vmatpush1.bf16.msra.mxu0 0
    %7603 = vmatprep.subr.bf16.mxu0 0
    %7604 = vmatpush1.bf16.msra.mxu0 0
    %7605 = vmatprep.subr.bf16.mxu0 0
    %7606 = vmatpush1.bf16.msra.mxu0 0
    %7607 = vmatprep.subr.bf16.mxu0 0
    %7608 = vmatpush1.bf16.msra.mxu0 0
    %7609 = vmatprep.subr.bf16.mxu0 0
    %7610 = vmatpush1.bf16.msra.mxu0 0
    %7611 = vmatprep.subr.bf16.mxu0 0
    %7612 = vmatpush1.bf16.msra.mxu0 0
    %7613 = vmatprep.mubr.bf16.mxu0 %v7576
    %7614 = vmatmul.mubr.bf16.gmra.mrb[0].mxu0 %v7569
    %v7615 = vpop.f32.mrb[0].mxu0
    %v7616 = vadd.f32 %v7540, %v7615
    %v7617 = vpop.f32.mrb[0].mxu0
    %v7618 = vpop.f32.mrb[0].mxu0
    %v7619 = vadd.f32 %v7545, %v7618
    %v7620 = vpop.f32.mrb[0].mxu0
    %7621 = vmatprep.mubr.bf16.mxu0 %v7579
    %7622 = vmatmul.mubr.bf16.gmra.mrb[0].mxu0 %v7571
    %v7623 = vpop.f32.mrb[0].mxu0
    %v7624 = vadd.f32 %v7550, %v7623
    %v7625 = vpop.f32.mrb[0].mxu0
    %v7626 = vpop.f32.mrb[0].mxu0
    %v7627 = vadd.f32 %v7555, %v7626
    %v7628 = vpop.f32.mrb[0].mxu0
    %7629 = vdwg.mxu0
    %v7630 = vmul.f32 %v7616, 0.5
    %v7631 = vmul.f32 %v7619, 0.5
    %v7632 = vmul.f32 %v7624, 0.5
    %v7633 = vmul.f32 %v7627, 0.5
    %v7634 = vmul.f32 %v7616, 0.70710677
    %v7635 = vmul.f32 %v7619, 0.70710677
    %v7636 = vmul.f32 %v7624, 0.70710677
    %v7637 = vmul.f32 %v7627, 0.70710677
    %v7638 = vand.u32 2147483647, %v7634
    %v7639 = vand.u32 2147483647, %v7635
    %v7640 = vand.u32 2147483647, %v7636
    %v7641 = vand.u32 2147483647, %v7637
    %v7642 = vmul.f32 %v7638, 0.3275911
    %v7643 = vmul.f32 %v7639, 0.3275911
    %v7644 = vmul.f32 %v7640, 0.3275911
    %v7645 = vmul.f32 %v7641, 0.3275911
    %v7646 = vadd.f32 %v7642, 1.0
    %v7647 = vadd.f32 %v7643, 1.0
    %v7648 = vadd.f32 %v7644, 1.0
    %v7649 = vadd.f32 %v7645, 1.0
    %v7650 = vrcp.pop %v7646
    %v7651 = vmul.f32 1.0, %v7650
    %v7652 = vrcp.pop %v7647
    %v7653 = vmul.f32 1.0, %v7652
    %v7654 = vrcp.pop %v7648
    %v7655 = vmul.f32 1.0, %v7654
    %v7656 = vrcp.pop %v7649
    %v7657 = vmul.f32 1.0, %v7656
    %v7658 = vmul.f32 %v7651, 1.0614054
    %v7659 = vmul.f32 %v7653, 1.0614054
    %v7660 = vmul.f32 %v7655, 1.0614054
    %v7661 = vmul.f32 %v7657, 1.0614054
    %v7662 = vadd.f32 %v7658, -1.4531521
    %v7663 = vadd.f32 %v7659, -1.4531521
    %v7664 = vadd.f32 %v7660, -1.4531521
    %v7665 = vadd.f32 %v7661, -1.4531521
    %v7666 = vmul.f32 %v7662, %v7651
    %v7667 = vmul.f32 %v7663, %v7653
    %v7668 = vmul.f32 %v7664, %v7655
    %v7669 = vmul.f32 %v7665, %v7657
    %v7670 = vadd.f32 %v7666, 1.4214138
    %v7671 = vadd.f32 %v7667, 1.4214138
    %v7672 = vadd.f32 %v7668, 1.4214138
    %v7673 = vadd.f32 %v7669, 1.4214138
    %v7674 = vmul.f32 %v7670, %v7651
    %v7675 = vmul.f32 %v7671, %v7653
    %v7676 = vmul.f32 %v7672, %v7655
    %v7677 = vmul.f32 %v7673, %v7657
    %v7678 = vadd.f32 %v7674, -0.28449672
    %v7679 = vadd.f32 %v7675, -0.28449672
    %v7680 = vadd.f32 %v7676, -0.28449672
    %v7681 = vadd.f32 %v7677, -0.28449672
    %v7682 = vmul.f32 %v7678, %v7651
    %v7683 = vmul.f32 %v7679, %v7653
    %v7684 = vmul.f32 %v7680, %v7655
    %v7685 = vmul.f32 %v7681, %v7657
    %v7686 = vadd.f32 %v7682, 0.2548296
    %v7687 = vadd.f32 %v7683, 0.2548296
    %v7688 = vadd.f32 %v7684, 0.2548296
    %v7689 = vadd.f32 %v7685, 0.2548296
    %v7690 = vmul.f32 %v7686, %v7651
    %v7691 = vmul.f32 %v7687, %v7653
    %v7692 = vmul.f32 %v7688, %v7655
    %v7693 = vmul.f32 %v7689, %v7657
    %v7694 = vsub.f32 0.0, %v7638
    %v7695 = vsub.f32 0.0, %v7639
    %v7696 = vsub.f32 0.0, %v7640
    %v7697 = vsub.f32 0.0, %v7641
    %v7698 = vmul.f32 %v7694, %v7638
    %v7699 = vmul.f32 %v7695, %v7639
    %v7700 = vmul.f32 %v7696, %v7640
    %v7701 = vmul.f32 %v7697, %v7641
    %v7702 = vmul.f32 %v7698, 1.442695
    %v7703 = vpow.pop %v7702
    %v7704 = vmul.f32 %v7699, 1.442695
    %v7705 = vpow.pop %v7704
    %v7706 = vmul.f32 %v7700, 1.442695
    %v7707 = vpow.pop %v7706
    %v7708 = vmul.f32 %v7701, 1.442695
    %v7709 = vpow.pop %v7708
    %v7710 = vmul.f32 %v7690, %v7703
    %v7711 = vmul.f32 %v7691, %v7705
    %v7712 = vmul.f32 %v7692, %v7707
    %v7713 = vmul.f32 %v7693, %v7709
    %v7714 = vsub.f32 1.0, %v7710
    %v7715 = vsub.f32 1.0, %v7711
    %v7716 = vsub.f32 1.0, %v7712
    %v7717 = vsub.f32 1.0, %v7713
    %vm7718 = vcmp.ge.f32.partialorder %v7634, 0.0
    %vm7719 = vcmp.ge.f32.partialorder %v7635, 0.0
    %vm7720 = vcmp.ge.f32.partialorder %v7636, 0.0
    %vm7721 = vcmp.ge.f32.partialorder %v7637, 0.0
    %v7722 = vsub.f32 0.0, %v7714
    %v7723 = vsub.f32 0.0, %v7715
    %v7724 = vsub.f32 0.0, %v7716
    %v7725 = vsub.f32 0.0, %v7717
    %v7726 = vsel %vm7718, %v7714, %v7722
    %v7727 = vsel %vm7719, %v7715, %v7723
    %v7728 = vsel %vm7720, %v7716, %v7724
    %v7729 = vsel %vm7721, %v7717, %v7725
    %v7730 = vadd.f32 %v7726, 1.0
    %v7731 = vadd.f32 %v7727, 1.0
    %v7732 = vadd.f32 %v7728, 1.0
    %v7733 = vadd.f32 %v7729, 1.0
    %v7734 = vmul.f32 %v7630, %v7730
    %v7735 = vmul.f32 %v7631, %v7731
    %v7736 = vmul.f32 %v7632, %v7732
    %v7737 = vmul.f32 %v7633, %v7733
    %7739 = vset.pattern.permute.xlu0 0
    %7740 = vperm.xlu0 %7739, %v400
    %v7741 = vpop.permute.xlu0 %7740
    %7744 = vset.pattern.permute.xlu0 0
    %7745 = vperm.xlu0 %7744, %v401
    %v7746 = vpop.permute.xlu0 %7745
    %7749 = vset.pattern.permute.xlu0 0
    %7750 = vperm.xlu0 %7749, %v402
    %v7751 = vpop.permute.xlu0 %7750
    %7754 = vset.pattern.permute.xlu0 0
    %7755 = vperm.xlu0 %7754, %v403
    %v7756 = vpop.permute.xlu0 %7755
    %v7758 = vadd.f32 %v7734, %v7741
    %v7759 = vadd.f32 %v7735, %v7746
    %v7760 = vadd.f32 %v7736, %v7751
    %v7761 = vadd.f32 %v7737, %v7756
    %7766 = vrot.lane.b32.xlu0 %v7758, 4
    %v7767 = vpop.permute.xlu0 %7766
    %7768 = vrot.lane.b32.xlu0 %v7759, 4
    %v7769 = vpop.permute.xlu0 %7768
    %7770 = vrot.lane.b32.xlu0 %v7760, 4
    %v7771 = vpop.permute.xlu0 %7770
    %7772 = vrot.lane.b32.xlu0 %v7761, 4
    %v7773 = vpop.permute.xlu0 %7772
    %v7778 = vsel %vm854, 0.0, %v7767
    %v7779 = vsel %vm854, 0.0, %v7769
    %v7780 = vsel %vm854, 0.0, %v7771
    %v7781 = vsel %vm854, 0.0, %v7773
    %v7782 = vadd.s32 %v7400, 4294967292
    %vm7783 = vcmp.ge.s32.totalorder %v7782, 0
    %vm7784 = vcmp.lt.s32.totalorder %v7782, 32
    %vm7785 = vmand %vm7783, %vm7784
    %v7786 = vsel %vm7785, 1, 0
    %v7787 = vlaneseq
    %v7788 = vshrl.u32 %v7787, 7
    %v7789 = vsub.s32 0, %v7788
    %v7790 = vrot.slane %v7786, %v7789
    %vm7791 = vcmp.eq.s32.totalorder %v7790, 1
    %v7792 = vsel %vm7791, %v7778, 0.0
    %v7793 = vsel %vm7791, %v7779, 0.0
    %v7794 = vsel %vm7791, %v7780, 0.0
    %v7795 = vsel %vm7791, %v7781, 0.0
    %7796 = vrot.lane.b32.xlu0 %v7758, 124
    %v7797 = vpop.permute.xlu0 %7796
    %7798 = vrot.lane.b32.xlu0 %v7759, 124
    %v7799 = vpop.permute.xlu0 %7798
    %7800 = vrot.lane.b32.xlu0 %v7760, 124
    %v7801 = vpop.permute.xlu0 %7800
    %7802 = vrot.lane.b32.xlu0 %v7761, 124
    %v7803 = vpop.permute.xlu0 %7802
    %vm7808 = vcmask 490496
    %v7809 = vsel %vm7808, %v7797, 0.0
    %v7810 = vsel %vm7808, %v7799, 0.0
    %v7811 = vsel %vm7808, %v7801, 0.0
    %v7812 = vsel %vm7808, %v7803, 0.0
    %v7813 = vadd.s32 %v7400, 4
    %vm7814 = vcmp.ge.s32.totalorder %v7813, 0
    %vm7815 = vcmp.lt.s32.totalorder %v7813, 32
    %vm7816 = vmand %vm7814, %vm7815
    %v7817 = vsel %vm7816, 1, 0
    %v7818 = vlaneseq
    %v7819 = vshrl.u32 %v7818, 7
    %v7820 = vsub.s32 0, %v7819
    %v7821 = vrot.slane %v7817, %v7820
    %vm7822 = vcmp.eq.s32.totalorder %v7821, 1
    %v7823 = vsel %vm7822, %v7809, 0.0
    %v7824 = vsel %vm7822, %v7810, 0.0
    %v7825 = vsel %vm7822, %v7811, 0.0
    %v7826 = vsel %vm7822, %v7812, 0.0
    %v7827 = vpack.c.bf16 %v7793, %v7792
    %v7828 = vpack.c.bf16 %v7795, %v7794
    %v7829 = vpack.c.bf16 %v7759, %v7758
    %v7830 = vpack.c.bf16 %v7761, %v7760
    %v7831 = vpack.c.bf16 %v7824, %v7823
    %v7832 = vpack.c.bf16 %v7826, %v7825
    %7834 = vset.pattern.permute.xlu0 0
    %7835 = vperm.xlu0 %7834, %v398
    %v7836 = vpop.permute.xlu0 %7835
    %7839 = vset.pattern.permute.xlu0 0
    %7840 = vperm.xlu0 %7839, %v399
    %v7841 = vpop.permute.xlu0 %7840
    %v7845 = vunpack.c.l.b16 %v396
    %v7846 = vunpack.c.l.b16 %v397
    %v7847 = vpack.c.b16 %v7846, %v7845
    %vm7848 = vcmask 785408
    %v7850 = vsel %vm7848, %v7847, 0
    %7852 = vmatprep.subr.bf16.mxu0 0
    %7853 = vmatpush1.bf16.msra.mxu0 %v7827
    %7854 = vmatprep.subr.bf16.mxu0 0
    %7855 = vmatpush1.bf16.msra.mxu0 %v7828
    %7856 = vmatprep.subr.bf16.mxu0 0
    %7857 = vmatpush1.bf16.msra.mxu0 %v7829
    %7858 = vmatprep.subr.bf16.mxu0 0
    %7859 = vmatpush1.bf16.msra.mxu0 %v7830
    %7860 = vmatprep.subr.bf16.mxu0 0
    %7861 = vmatpush1.bf16.msra.mxu0 %v7831
    %7862 = vmatprep.subr.bf16.mxu0 0
    %7863 = vmatpush1.bf16.msra.mxu0 %v7832
    %7864 = vmatprep.subr.bf16.mxu0 0
    %7865 = vmatpush1.bf16.msra.mxu0 0
    %7866 = vmatprep.subr.bf16.mxu0 0
    %7867 = vmatpush1.bf16.msra.mxu0 0
    %7868 = vmatprep.subr.bf16.mxu0 0
    %7869 = vmatpush1.bf16.msra.mxu0 0
    %7870 = vmatprep.subr.bf16.mxu0 0
    %7871 = vmatpush1.bf16.msra.mxu0 0
    %7872 = vmatprep.subr.bf16.mxu0 0
    %7873 = vmatpush1.bf16.msra.mxu0 0
    %7874 = vmatprep.subr.bf16.mxu0 0
    %7875 = vmatpush1.bf16.msra.mxu0 0
    %7876 = vmatprep.subr.bf16.mxu0 0
    %7877 = vmatpush1.bf16.msra.mxu0 0
    %7878 = vmatprep.subr.bf16.mxu0 0
    %7879 = vmatpush1.bf16.msra.mxu0 0
    %7880 = vmatprep.subr.bf16.mxu0 0
    %7881 = vmatpush1.bf16.msra.mxu0 0
    %7882 = vmatprep.subr.bf16.mxu0 0
    %7883 = vmatpush1.bf16.msra.mxu0 0
    %7884 = vmatprep.mubr.bf16.mxu0 0
    %7885 = vmatmul.mubr.bf16.gmra.mrb[0].mxu0 %v7850
    %v7886 = vpop.f32.mrb[0].mxu0
    %v7887 = vadd.f32 %v7836, %v7886
    %v7888 = vpop.f32.mrb[0].mxu0
    %v7889 = vpop.f32.mrb[0].mxu0
    %v7890 = vadd.f32 %v7841, %v7889
    %v7891 = vpop.f32.mrb[0].mxu0
    %7892 = vdwg.mxu0
    %v7893 = vmul.f32 %v7887, 0.5
    %v7894 = vmul.f32 %v7890, 0.5
    %v7895 = vmul.f32 %v7887, 0.70710677
    %v7896 = vmul.f32 %v7890, 0.70710677
    %v7897 = vand.u32 2147483647, %v7895
    %v7898 = vand.u32 2147483647, %v7896
    %v7899 = vmul.f32 %v7897, 0.3275911
    %v7900 = vmul.f32 %v7898, 0.3275911
    %v7901 = vadd.f32 %v7899, 1.0
    %v7902 = vadd.f32 %v7900, 1.0
    %v7903 = vrcp.pop %v7901
    %v7904 = vmul.f32 1.0, %v7903
    %v7905 = vrcp.pop %v7902
    %v7906 = vmul.f32 1.0, %v7905
    %v7907 = vmul.f32 %v7904, 1.0614054
    %v7908 = vmul.f32 %v7906, 1.0614054
    %v7909 = vadd.f32 %v7907, -1.4531521
    %v7910 = vadd.f32 %v7908, -1.4531521
    %v7911 = vmul.f32 %v7909, %v7904
    %v7912 = vmul.f32 %v7910, %v7906
    %v7913 = vadd.f32 %v7911, 1.4214138
    %v7914 = vadd.f32 %v7912, 1.4214138
    %v7915 = vmul.f32 %v7913, %v7904
    %v7916 = vmul.f32 %v7914, %v7906
    %v7917 = vadd.f32 %v7915, -0.28449672
    %v7918 = vadd.f32 %v7916, -0.28449672
    %v7919 = vmul.f32 %v7917, %v7904
    %v7920 = vmul.f32 %v7918, %v7906
    %v7921 = vadd.f32 %v7919, 0.2548296
    %v7922 = vadd.f32 %v7920, 0.2548296
    %v7923 = vmul.f32 %v7921, %v7904
    %v7924 = vmul.f32 %v7922, %v7906
    %v7925 = vsub.f32 0.0, %v7897
    %v7926 = vsub.f32 0.0, %v7898
    %v7927 = vmul.f32 %v7925, %v7897
    %v7928 = vmul.f32 %v7926, %v7898
    %v7929 = vmul.f32 %v7927, 1.442695
    %v7930 = vpow.pop %v7929
    %v7931 = vmul.f32 %v7928, 1.442695
    %v7932 = vpow.pop %v7931
    %v7933 = vmul.f32 %v7923, %v7930
    %v7934 = vmul.f32 %v7924, %v7932
    %v7935 = vsub.f32 1.0, %v7933
    %v7936 = vsub.f32 1.0, %v7934
    %vm7937 = vcmp.ge.f32.partialorder %v7895, 0.0
    %vm7938 = vcmp.ge.f32.partialorder %v7896, 0.0
    %v7939 = vsub.f32 0.0, %v7935
    %v7940 = vsub.f32 0.0, %v7936
    %v7941 = vsel %vm7937, %v7935, %v7939
    %v7942 = vsel %vm7938, %v7936, %v7940
    %v7943 = vadd.f32 %v7941, 1.0
    %v7944 = vadd.f32 %v7942, 1.0
    %v7945 = vmul.f32 %v7893, %v7943
    %v7946 = vmul.f32 %v7894, %v7944
    %7948 = vset.pattern.permute.xlu0 0
    %7949 = vperm.xlu0 %7948, %v412
    %v7950 = vpop.permute.xlu0 %7949
    %7953 = vset.pattern.permute.xlu0 0
    %7954 = vperm.xlu0 %7953, %v413
    %v7955 = vpop.permute.xlu0 %7954
    %v7957 = vadd.f32 %v7945, %v7950
    %v7958 = vadd.f32 %v7946, %v7955
    %v7959 = vpack.c.bf16 %v7958, %v7957
    %7961 = vset.pattern.permute.xlu0 0
    %7962 = vperm.xlu0 %7961, %v408
    %v7963 = vpop.permute.xlu0 %7962
    %7966 = vset.pattern.permute.xlu0 0
    %7967 = vperm.xlu0 %7966, %v409
    %v7968 = vpop.permute.xlu0 %7967
    %7971 = vset.pattern.permute.xlu0 0
    %7972 = vperm.xlu0 %7971, %v410
    %v7973 = vpop.permute.xlu0 %7972
    %7976 = vset.pattern.permute.xlu0 0
    %7977 = vperm.xlu0 %7976, %v411
    %v7978 = vpop.permute.xlu0 %7977
    %v7984 = vunpack.c.l.b16 %v404
    %v7985 = vunpack.c.l.b16 %v405
    %v7986 = vunpack.c.l.b16 %v406
    %v7987 = vunpack.c.l.b16 %v407
    %v7988 = vpack.c.b16 %v7985, %v7984
    %v7989 = vpack.c.b16 %v7987, %v7986
    %vm7990 = vcmask 130048
    %v7992 = vsel %vm7990, %v7988, 0
    %v7995 = vsel %vm7990, %v7989, 0
    %7997 = vmatprep.subr.bf16.mxu0 0
    %7998 = vmatpush1.bf16.msra.mxu0 %v7959
    %7999 = vmatprep.subr.bf16.mxu0 0
    %8000 = vmatpush1.bf16.msra.mxu0 0
    %8001 = vmatprep.subr.bf16.mxu0 0
    %8002 = vmatpush1.bf16.msra.mxu0 0
    %8003 = vmatprep.subr.bf16.mxu0 0
    %8004 = vmatpush1.bf16.msra.mxu0 0
    %8005 = vmatprep.subr.bf16.mxu0 0
    %8006 = vmatpush1.bf16.msra.mxu0 0
    %8007 = vmatprep.subr.bf16.mxu0 0
    %8008 = vmatpush1.bf16.msra.mxu0 0
    %8009 = vmatprep.subr.bf16.mxu0 0
    %8010 = vmatpush1.bf16.msra.mxu0 0
    %8011 = vmatprep.subr.bf16.mxu0 0
    %8012 = vmatpush1.bf16.msra.mxu0 0
    %8013 = vmatprep.subr.bf16.mxu0 0
    %8014 = vmatpush1.bf16.msra.mxu0 0
    %8015 = vmatprep.subr.bf16.mxu0 0
    %8016 = vmatpush1.bf16.msra.mxu0 0
    %8017 = vmatprep.subr.bf16.mxu0 0
    %8018 = vmatpush1.bf16.msra.mxu0 0
    %8019 = vmatprep.subr.bf16.mxu0 0
    %8020 = vmatpush1.bf16.msra.mxu0 0
    %8021 = vmatprep.subr.bf16.mxu0 0
    %8022 = vmatpush1.bf16.msra.mxu0 0
    %8023 = vmatprep.subr.bf16.mxu0 0
    %8024 = vmatpush1.bf16.msra.mxu0 0
    %8025 = vmatprep.subr.bf16.mxu0 0
    %8026 = vmatpush1.bf16.msra.mxu0 0
    %8027 = vmatprep.subr.bf16.mxu0 0
    %8028 = vmatpush1.bf16.msra.mxu0 0
    %8029 = vmatprep.mubr.bf16.mxu0 0
    %8030 = vmatmul.mubr.bf16.gmra.mrb[0].mxu0 %v7992
    %v8031 = vpop.f32.mrb[0].mxu0
    %v8032 = vadd.f32 %v7963, %v8031
    %v8033 = vpop.f32.mrb[0].mxu0
    %v8034 = vpop.f32.mrb[0].mxu0
    %v8035 = vadd.f32 %v7968, %v8034
    %v8036 = vpop.f32.mrb[0].mxu0
    %8037 = vmatprep.mubr.bf16.mxu0 0
    %8038 = vmatmul.mubr.bf16.gmra.mrb[0].mxu0 %v7995
    %v8039 = vpop.f32.mrb[0].mxu0
    %v8040 = vadd.f32 %v7973, %v8039
    %v8041 = vpop.f32.mrb[0].mxu0
    %v8042 = vpop.f32.mrb[0].mxu0
    %v8043 = vadd.f32 %v7978, %v8042
    %v8044 = vpop.f32.mrb[0].mxu0
    %8045 = vdwg.mxu0
    %v8046 = vmul.f32 %v8032, 0.5
    %v8047 = vmul.f32 %v8035, 0.5
    %v8048 = vmul.f32 %v8040, 0.5
    %v8049 = vmul.f32 %v8043, 0.5
    %v8050 = vmul.f32 %v8032, 0.70710677
    %v8051 = vmul.f32 %v8035, 0.70710677
    %v8052 = vmul.f32 %v8040, 0.70710677
    %v8053 = vmul.f32 %v8043, 0.70710677
    %v8054 = vand.u32 2147483647, %v8050
    %v8055 = vand.u32 2147483647, %v8051
    %v8056 = vand.u32 2147483647, %v8052
    %v8057 = vand.u32 2147483647, %v8053
    %v8058 = vmul.f32 %v8054, 0.3275911
    %v8059 = vmul.f32 %v8055, 0.3275911
    %v8060 = vmul.f32 %v8056, 0.3275911
    %v8061 = vmul.f32 %v8057, 0.3275911
    %v8062 = vadd.f32 %v8058, 1.0
    %v8063 = vadd.f32 %v8059, 1.0
    %v8064 = vadd.f32 %v8060, 1.0
    %v8065 = vadd.f32 %v8061, 1.0
    %v8066 = vrcp.pop %v8062
    %v8067 = vmul.f32 1.0, %v8066
    %v8068 = vrcp.pop %v8063
    %v8069 = vmul.f32 1.0, %v8068
    %v8070 = vrcp.pop %v8064
    %v8071 = vmul.f32 1.0, %v8070
    %v8072 = vrcp.pop %v8065
    %v8073 = vmul.f32 1.0, %v8072
    %v8074 = vmul.f32 %v8067, 1.0614054
    %v8075 = vmul.f32 %v8069, 1.0614054
    %v8076 = vmul.f32 %v8071, 1.0614054
    %v8077 = vmul.f32 %v8073, 1.0614054
    %v8078 = vadd.f32 %v8074, -1.4531521
    %v8079 = vadd.f32 %v8075, -1.4531521
    %v8080 = vadd.f32 %v8076, -1.4531521
    %v8081 = vadd.f32 %v8077, -1.4531521
    %v8082 = vmul.f32 %v8078, %v8067
    %v8083 = vmul.f32 %v8079, %v8069
    %v8084 = vmul.f32 %v8080, %v8071
    %v8085 = vmul.f32 %v8081, %v8073
    %v8086 = vadd.f32 %v8082, 1.4214138
    %v8087 = vadd.f32 %v8083, 1.4214138
    %v8088 = vadd.f32 %v8084, 1.4214138
    %v8089 = vadd.f32 %v8085, 1.4214138
    %v8090 = vmul.f32 %v8086, %v8067
    %v8091 = vmul.f32 %v8087, %v8069
    %v8092 = vmul.f32 %v8088, %v8071
    %v8093 = vmul.f32 %v8089, %v8073
    %v8094 = vadd.f32 %v8090, -0.28449672
    %v8095 = vadd.f32 %v8091, -0.28449672
    %v8096 = vadd.f32 %v8092, -0.28449672
    %v8097 = vadd.f32 %v8093, -0.28449672
    %v8098 = vmul.f32 %v8094, %v8067
    %v8099 = vmul.f32 %v8095, %v8069
    %v8100 = vmul.f32 %v8096, %v8071
    %v8101 = vmul.f32 %v8097, %v8073
    %v8102 = vadd.f32 %v8098, 0.2548296
    %v8103 = vadd.f32 %v8099, 0.2548296
    %v8104 = vadd.f32 %v8100, 0.2548296
    %v8105 = vadd.f32 %v8101, 0.2548296
    %v8106 = vmul.f32 %v8102, %v8067
    %v8107 = vmul.f32 %v8103, %v8069
    %v8108 = vmul.f32 %v8104, %v8071
    %v8109 = vmul.f32 %v8105, %v8073
    %v8110 = vsub.f32 0.0, %v8054
    %v8111 = vsub.f32 0.0, %v8055
    %v8112 = vsub.f32 0.0, %v8056
    %v8113 = vsub.f32 0.0, %v8057
    %v8114 = vmul.f32 %v8110, %v8054
    %v8115 = vmul.f32 %v8111, %v8055
    %v8116 = vmul.f32 %v8112, %v8056
    %v8117 = vmul.f32 %v8113, %v8057
    %v8118 = vmul.f32 %v8114, 1.442695
    %v8119 = vpow.pop %v8118
    %v8120 = vmul.f32 %v8115, 1.442695
    %v8121 = vpow.pop %v8120
    %v8122 = vmul.f32 %v8116, 1.442695
    %v8123 = vpow.pop %v8122
    %v8124 = vmul.f32 %v8117, 1.442695
    %v8125 = vpow.pop %v8124
    %v8126 = vmul.f32 %v8106, %v8119
    %v8127 = vmul.f32 %v8107, %v8121
    %v8128 = vmul.f32 %v8108, %v8123
    %v8129 = vmul.f32 %v8109, %v8125
    %v8130 = vsub.f32 1.0, %v8126
    %v8131 = vsub.f32 1.0, %v8127
    %v8132 = vsub.f32 1.0, %v8128
    %v8133 = vsub.f32 1.0, %v8129
    %vm8134 = vcmp.ge.f32.partialorder %v8050, 0.0
    %vm8135 = vcmp.ge.f32.partialorder %v8051, 0.0
    %vm8136 = vcmp.ge.f32.partialorder %v8052, 0.0
    %vm8137 = vcmp.ge.f32.partialorder %v8053, 0.0
    %v8138 = vsub.f32 0.0, %v8130
    %v8139 = vsub.f32 0.0, %v8131
    %v8140 = vsub.f32 0.0, %v8132
    %v8141 = vsub.f32 0.0, %v8133
    %v8142 = vsel %vm8134, %v8130, %v8138
    %v8143 = vsel %vm8135, %v8131, %v8139
    %v8144 = vsel %vm8136, %v8132, %v8140
    %v8145 = vsel %vm8137, %v8133, %v8141
    %v8146 = vadd.f32 %v8142, 1.0
    %v8147 = vadd.f32 %v8143, 1.0
    %v8148 = vadd.f32 %v8144, 1.0
    %v8149 = vadd.f32 %v8145, 1.0
    %v8150 = vmul.f32 %v8046, %v8146
    %v8151 = vmul.f32 %v8047, %v8147
    %v8152 = vmul.f32 %v8048, %v8148
    %v8153 = vmul.f32 %v8049, %v8149
    %8155 = vset.pattern.permute.xlu0 0
    %8156 = vperm.xlu0 %8155, %v418
    %v8157 = vpop.permute.xlu0 %8156
    %8160 = vset.pattern.permute.xlu0 0
    %8161 = vperm.xlu0 %8160, %v419
    %v8162 = vpop.permute.xlu0 %8161
    %8165 = vset.pattern.permute.xlu0 0
    %8166 = vperm.xlu0 %8165, %v420
    %v8167 = vpop.permute.xlu0 %8166
    %8170 = vset.pattern.permute.xlu0 0
    %8171 = vperm.xlu0 %8170, %v421
    %v8172 = vpop.permute.xlu0 %8171
    %8175 = vset.pattern.permute.xlu0 0
    %8176 = vperm.xlu0 %8175, %v422
    %v8177 = vpop.permute.xlu0 %8176
    %8180 = vset.pattern.permute.xlu0 0
    %8181 = vperm.xlu0 %8180, %v423
    %v8182 = vpop.permute.xlu0 %8181
    %8185 = vset.pattern.permute.xlu0 0
    %8186 = vperm.xlu0 %8185, %v424
    %v8187 = vpop.permute.xlu0 %8186
    %8190 = vset.pattern.permute.xlu0 0
    %8191 = vperm.xlu0 %8190, %v425
    %v8192 = vpop.permute.xlu0 %8191
    %v8194 = vadd.f32 %v7734, %v8157
    %v8195 = vadd.f32 %v7735, %v8162
    %v8196 = vadd.f32 %v7736, %v8167
    %v8197 = vadd.f32 %v7737, %v8172
    %v8198 = vadd.f32 %v8150, %v8177
    %v8199 = vadd.f32 %v8151, %v8182
    %v8200 = vadd.f32 %v8152, %v8187
    %v8201 = vadd.f32 %v8153, %v8192
    %8210 = vrot.lane.b32.xlu0 %v8194, 8
    %v8211 = vpop.permute.xlu0 %8210
    %8212 = vrot.lane.b32.xlu0 %v8195, 8
    %v8213 = vpop.permute.xlu0 %8212
    %8214 = vrot.lane.b32.xlu0 %v8196, 8
    %v8215 = vpop.permute.xlu0 %8214
    %8216 = vrot.lane.b32.xlu0 %v8197, 8
    %v8217 = vpop.permute.xlu0 %8216
    %8218 = vrot.lane.b32.xlu0 %v8198, 8
    %v8219 = vpop.permute.xlu0 %8218
    %8220 = vrot.lane.b32.xlu0 %v8199, 8
    %v8221 = vpop.permute.xlu0 %8220
    %8222 = vrot.lane.b32.xlu0 %v8200, 8
    %v8223 = vpop.permute.xlu0 %8222
    %8224 = vrot.lane.b32.xlu0 %v8201, 8
    %v8225 = vpop.permute.xlu0 %8224
    %vm8234 = vcmask 64512
    %v8235 = vsel %vm8234, 0.0, %v8211
    %v8236 = vsel %vm8234, 0.0, %v8213
    %v8237 = vsel %vm8234, 0.0, %v8215
    %v8238 = vsel %vm8234, 0.0, %v8217
    %v8239 = vsel %vm8234, 0.0, %v8219
    %v8240 = vsel %vm8234, 0.0, %v8221
    %v8241 = vsel %vm8234, 0.0, %v8223
    %v8242 = vsel %vm8234, 0.0, %v8225
    %v8243 = vadd.s32 %v7400, 4294967288
    %vm8244 = vcmp.ge.s32.totalorder %v8243, 0
    %vm8245 = vcmp.lt.s32.totalorder %v8243, 32
    %vm8246 = vmand %vm8244, %vm8245
    %v8247 = vsel %vm8246, 1, 0
    %v8248 = vlaneseq
    %v8249 = vshrl.u32 %v8248, 7
    %v8250 = vsub.s32 0, %v8249
    %v8251 = vrot.slane %v8247, %v8250
    %vm8252 = vcmp.eq.s32.totalorder %v8251, 1
    %v8253 = vsel %vm8252, %v8235, 0.0
    %v8254 = vsel %vm8252, %v8236, 0.0
    %v8255 = vsel %vm8252, %v8237, 0.0
    %v8256 = vsel %vm8252, %v8238, 0.0
    %v8257 = vsel %vm8252, %v8239, 0.0
    %v8258 = vsel %vm8252, %v8240, 0.0
    %v8259 = vsel %vm8252, %v8241, 0.0
    %v8260 = vsel %vm8252, %v8242, 0.0
    %8261 = vrot.lane.b32.xlu0 %v8194, 120
    %v8262 = vpop.permute.xlu0 %8261
    %8263 = vrot.lane.b32.xlu0 %v8195, 120
    %v8264 = vpop.permute.xlu0 %8263
    %8265 = vrot.lane.b32.xlu0 %v8196, 120
    %v8266 = vpop.permute.xlu0 %8265
    %8267 = vrot.lane.b32.xlu0 %v8197, 120
    %v8268 = vpop.permute.xlu0 %8267
    %8269 = vrot.lane.b32.xlu0 %v8198, 120
    %v8270 = vpop.permute.xlu0 %8269
    %8271 = vrot.lane.b32.xlu0 %v8199, 120
    %v8272 = vpop.permute.xlu0 %8271
    %8273 = vrot.lane.b32.xlu0 %v8200, 120
    %v8274 = vpop.permute.xlu0 %8273
    %8275 = vrot.lane.b32.xlu0 %v8201, 120
    %v8276 = vpop.permute.xlu0 %8275
    %vm8285 = vcmask 457728
    %v8286 = vsel %vm8285, %v8262, 0.0
    %v8287 = vsel %vm8285, %v8264, 0.0
    %v8288 = vsel %vm8285, %v8266, 0.0
    %v8289 = vsel %vm8285, %v8268, 0.0
    %v8290 = vsel %vm8285, %v8270, 0.0
    %v8291 = vsel %vm8285, %v8272, 0.0
    %v8292 = vsel %vm8285, %v8274, 0.0
    %v8293 = vsel %vm8285, %v8276, 0.0
    %v8294 = vadd.s32 %v7400, 8
    %vm8295 = vcmp.ge.s32.totalorder %v8294, 0
    %vm8296 = vcmp.lt.s32.totalorder %v8294, 32
    %vm8297 = vmand %vm8295, %vm8296
    %v8298 = vsel %vm8297, 1, 0
    %v8299 = vlaneseq
    %v8300 = vshrl.u32 %v8299, 7
    %v8301 = vsub.s32 0, %v8300
    %v8302 = vrot.slane %v8298, %v8301
    %vm8303 = vcmp.eq.s32.totalorder %v8302, 1
    %v8304 = vsel %vm8303, %v8286, 0.0
    %v8305 = vsel %vm8303, %v8287, 0.0
    %v8306 = vsel %vm8303, %v8288, 0.0
    %v8307 = vsel %vm8303, %v8289, 0.0
    %v8308 = vsel %vm8303, %v8290, 0.0
    %v8309 = vsel %vm8303, %v8291, 0.0
    %v8310 = vsel %vm8303, %v8292, 0.0
    %v8311 = vsel %vm8303, %v8293, 0.0
    %v8312 = vpack.c.bf16 %v8254, %v8253
    %v8313 = vpack.c.bf16 %v8256, %v8255
    %v8314 = vpack.c.bf16 %v8258, %v8257
    %v8315 = vpack.c.bf16 %v8260, %v8259
    %v8316 = vpack.c.bf16 %v8195, %v8194
    %v8317 = vpack.c.bf16 %v8197, %v8196
    %v8318 = vpack.c.bf16 %v8199, %v8198
    %v8319 = vpack.c.bf16 %v8201, %v8200
    %v8320 = vpack.c.bf16 %v8305, %v8304
    %v8321 = vpack.c.bf16 %v8307, %v8306
    %v8322 = vpack.c.bf16 %v8309, %v8308
    %v8323 = vpack.c.bf16 %v8311, %v8310
    %8325 = vset.pattern.permute.xlu0 0
    %8326 = vperm.xlu0 %8325, %v416
    %v8327 = vpop.permute.xlu0 %8326
    %8330 = vset.pattern.permute.xlu0 0
    %8331 = vperm.xlu0 %8330, %v417
    %v8332 = vpop.permute.xlu0 %8331
    %v8336 = vunpack.c.l.b16 %v414
    %v8337 = vunpack.c.h.b16 %v414
    %v8338 = vunpack.c.l.b16 %v415
    %v8339 = vunpack.c.h.b16 %v415
    %v8340 = vpack.c.b16 %v8338, %v8336
    %v8341 = vpack.c.b16 %v8339, %v8337
    %v8344 = vsel %vm6913, %v8341, 0
    %8346 = vmatprep.subr.bf16.mxu0 0
    %8347 = vmatpush1.bf16.msra.mxu0 %v8312
    %8348 = vmatprep.subr.bf16.mxu0 0
    %8349 = vmatpush1.bf16.msra.mxu0 %v8313
    %8350 = vmatprep.subr.bf16.mxu0 0
    %8351 = vmatpush1.bf16.msra.mxu0 %v8314
    %8352 = vmatprep.subr.bf16.mxu0 0
    %8353 = vmatpush1.bf16.msra.mxu0 %v8315
    %8354 = vmatprep.subr.bf16.mxu0 0
    %8355 = vmatpush1.bf16.msra.mxu0 %v8316
    %8356 = vmatprep.subr.bf16.mxu0 0
    %8357 = vmatpush1.bf16.msra.mxu0 %v8317
    %8358 = vmatprep.subr.bf16.mxu0 0
    %8359 = vmatpush1.bf16.msra.mxu0 %v8318
    %8360 = vmatprep.subr.bf16.mxu0 0
    %8361 = vmatpush1.bf16.msra.mxu0 %v8319
    %8362 = vmatprep.subr.bf16.mxu0 0
    %8363 = vmatpush1.bf16.msra.mxu0 %v8320
    %8364 = vmatprep.subr.bf16.mxu0 0
    %8365 = vmatpush1.bf16.msra.mxu0 %v8321
    %8366 = vmatprep.subr.bf16.mxu0 0
    %8367 = vmatpush1.bf16.msra.mxu0 %v8322
    %8368 = vmatprep.subr.bf16.mxu0 0
    %8369 = vmatpush1.bf16.msra.mxu0 %v8323
    %8370 = vmatprep.subr.bf16.mxu0 0
    %8371 = vmatpush1.bf16.msra.mxu0 0
    %8372 = vmatprep.subr.bf16.mxu0 0
    %8373 = vmatpush1.bf16.msra.mxu0 0
    %8374 = vmatprep.subr.bf16.mxu0 0
    %8375 = vmatpush1.bf16.msra.mxu0 0
    %8376 = vmatprep.subr.bf16.mxu0 0
    %8377 = vmatpush1.bf16.msra.mxu0 0
    %8378 = vmatprep.mubr.bf16.mxu0 %v8344
    %8379 = vmatmul.mubr.bf16.gmra.mrb[0].mxu0 %v8340
    %v8380 = vpop.f32.mrb[0].mxu0
    %v8381 = vadd.f32 %v8327, %v8380
    %v8382 = vpop.f32.mrb[0].mxu0
    %v8383 = vpop.f32.mrb[0].mxu0
    %v8384 = vadd.f32 %v8332, %v8383
    %v8385 = vpop.f32.mrb[0].mxu0
    %8386 = vdwg.mxu0
    %v8387 = vmul.f32 %v8381, 0.5
    %v8388 = vmul.f32 %v8384, 0.5
    %v8389 = vmul.f32 %v8381, 0.70710677
    %v8390 = vmul.f32 %v8384, 0.70710677
    %v8391 = vand.u32 2147483647, %v8389
    %v8392 = vand.u32 2147483647, %v8390
    %v8393 = vmul.f32 %v8391, 0.3275911
    %v8394 = vmul.f32 %v8392, 0.3275911
    %v8395 = vadd.f32 %v8393, 1.0
    %v8396 = vadd.f32 %v8394, 1.0
    %v8397 = vrcp.pop %v8395
    %v8398 = vmul.f32 1.0, %v8397
    %v8399 = vrcp.pop %v8396
    %v8400 = vmul.f32 1.0, %v8399
    %v8401 = vmul.f32 %v8398, 1.0614054
    %v8402 = vmul.f32 %v8400, 1.0614054
    %v8403 = vadd.f32 %v8401, -1.4531521
    %v8404 = vadd.f32 %v8402, -1.4531521
    %v8405 = vmul.f32 %v8403, %v8398
    %v8406 = vmul.f32 %v8404, %v8400
    %v8407 = vadd.f32 %v8405, 1.4214138
    %v8408 = vadd.f32 %v8406, 1.4214138
    %v8409 = vmul.f32 %v8407, %v8398
    %v8410 = vmul.f32 %v8408, %v8400
    %v8411 = vadd.f32 %v8409, -0.28449672
    %v8412 = vadd.f32 %v8410, -0.28449672
    %v8413 = vmul.f32 %v8411, %v8398
    %v8414 = vmul.f32 %v8412, %v8400
    %v8415 = vadd.f32 %v8413, 0.2548296
    %v8416 = vadd.f32 %v8414, 0.2548296
    %v8417 = vmul.f32 %v8415, %v8398
    %v8418 = vmul.f32 %v8416, %v8400
    %v8419 = vsub.f32 0.0, %v8391
    %v8420 = vsub.f32 0.0, %v8392
    %v8421 = vmul.f32 %v8419, %v8391
    %v8422 = vmul.f32 %v8420, %v8392
    %v8423 = vmul.f32 %v8421, 1.442695
    %v8424 = vpow.pop %v8423
    %v8425 = vmul.f32 %v8422, 1.442695
    %v8426 = vpow.pop %v8425
    %v8427 = vmul.f32 %v8417, %v8424
    %v8428 = vmul.f32 %v8418, %v8426
    %v8429 = vsub.f32 1.0, %v8427
    %v8430 = vsub.f32 1.0, %v8428
    %vm8431 = vcmp.ge.f32.partialorder %v8389, 0.0
    %vm8432 = vcmp.ge.f32.partialorder %v8390, 0.0
    %v8433 = vsub.f32 0.0, %v8429
    %v8434 = vsub.f32 0.0, %v8430
    %v8435 = vsel %vm8431, %v8429, %v8433
    %v8436 = vsel %vm8432, %v8430, %v8434
    %v8437 = vadd.f32 %v8435, 1.0
    %v8438 = vadd.f32 %v8436, 1.0
    %v8439 = vmul.f32 %v8387, %v8437
    %v8440 = vmul.f32 %v8388, %v8438
    %8442 = vset.pattern.permute.xlu0 0
    %8443 = vperm.xlu0 %8442, %v434
    %v8444 = vpop.permute.xlu0 %8443
    %8447 = vset.pattern.permute.xlu0 0
    %8448 = vperm.xlu0 %8447, %v435
    %v8449 = vpop.permute.xlu0 %8448
    %v8451 = vadd.f32 %v8439, %v8444
    %v8452 = vadd.f32 %v8440, %v8449
    %v8453 = vpack.c.bf16 %v8452, %v8451
    %8455 = vset.pattern.permute.xlu0 0
    %8456 = vperm.xlu0 %8455, %v430
    %v8457 = vpop.permute.xlu0 %8456
    %8460 = vset.pattern.permute.xlu0 0
    %8461 = vperm.xlu0 %8460, %v431
    %v8462 = vpop.permute.xlu0 %8461
    %8465 = vset.pattern.permute.xlu0 0
    %8466 = vperm.xlu0 %8465, %v432
    %v8467 = vpop.permute.xlu0 %8466
    %8470 = vset.pattern.permute.xlu0 0
    %8471 = vperm.xlu0 %8470, %v433
    %v8472 = vpop.permute.xlu0 %8471
    %v8478 = vunpack.c.l.b16 %v426
    %v8479 = vunpack.c.l.b16 %v427
    %v8480 = vunpack.c.l.b16 %v428
    %v8481 = vunpack.c.l.b16 %v429
    %v8482 = vpack.c.b16 %v8479, %v8478
    %v8483 = vpack.c.b16 %v8481, %v8480
    %v8485 = vsel %vm7990, %v8482, 0
    %v8488 = vsel %vm7990, %v8483, 0
    %8490 = vmatprep.subr.bf16.mxu0 0
    %8491 = vmatpush1.bf16.msra.mxu0 %v8453
    %8492 = vmatprep.subr.bf16.mxu0 0
    %8493 = vmatpush1.bf16.msra.mxu0 0
    %8494 = vmatprep.subr.bf16.mxu0 0
    %8495 = vmatpush1.bf16.msra.mxu0 0
    %8496 = vmatprep.subr.bf16.mxu0 0
    %8497 = vmatpush1.bf16.msra.mxu0 0
    %8498 = vmatprep.subr.bf16.mxu0 0
    %8499 = vmatpush1.bf16.msra.mxu0 0
    %8500 = vmatprep.subr.bf16.mxu0 0
    %8501 = vmatpush1.bf16.msra.mxu0 0
    %8502 = vmatprep.subr.bf16.mxu0 0
    %8503 = vmatpush1.bf16.msra.mxu0 0
    %8504 = vmatprep.subr.bf16.mxu0 0
    %8505 = vmatpush1.bf16.msra.mxu0 0
    %8506 = vmatprep.subr.bf16.mxu0 0
    %8507 = vmatpush1.bf16.msra.mxu0 0
    %8508 = vmatprep.subr.bf16.mxu0 0
    %8509 = vmatpush1.bf16.msra.mxu0 0
    %8510 = vmatprep.subr.bf16.mxu0 0
    %8511 = vmatpush1.bf16.msra.mxu0 0
    %8512 = vmatprep.subr.bf16.mxu0 0
    %8513 = vmatpush1.bf16.msra.mxu0 0
    %8514 = vmatprep.subr.bf16.mxu0 0
    %8515 = vmatpush1.bf16.msra.mxu0 0
    %8516 = vmatprep.subr.bf16.mxu0 0
    %8517 = vmatpush1.bf16.msra.mxu0 0
    %8518 = vmatprep.subr.bf16.mxu0 0
    %8519 = vmatpush1.bf16.msra.mxu0 0
    %8520 = vmatprep.subr.bf16.mxu0 0
    %8521 = vmatpush1.bf16.msra.mxu0 0
    %8522 = vmatprep.mubr.bf16.mxu0 0
    %8523 = vmatmul.mubr.bf16.gmra.mrb[0].mxu0 %v8485
    %v8524 = vpop.f32.mrb[0].mxu0
    %v8525 = vadd.f32 %v8457, %v8524
    %v8526 = vpop.f32.mrb[0].mxu0
    %v8527 = vpop.f32.mrb[0].mxu0
    %v8528 = vadd.f32 %v8462, %v8527
    %v8529 = vpop.f32.mrb[0].mxu0
    %8530 = vmatprep.mubr.bf16.mxu0 0
    %8531 = vmatmul.mubr.bf16.gmra.mrb[0].mxu0 %v8488
    %v8532 = vpop.f32.mrb[0].mxu0
    %v8533 = vadd.f32 %v8467, %v8532
    %v8534 = vpop.f32.mrb[0].mxu0
    %v8535 = vpop.f32.mrb[0].mxu0
    %v8536 = vadd.f32 %v8472, %v8535
    %v8537 = vpop.f32.mrb[0].mxu0
    %8538 = vdwg.mxu0
    %v8539 = vmul.f32 %v8525, 0.5
    %v8540 = vmul.f32 %v8528, 0.5
    %v8541 = vmul.f32 %v8533, 0.5
    %v8542 = vmul.f32 %v8536, 0.5
    %v8543 = vmul.f32 %v8525, 0.70710677
    %v8544 = vmul.f32 %v8528, 0.70710677
    %v8545 = vmul.f32 %v8533, 0.70710677
    %v8546 = vmul.f32 %v8536, 0.70710677
    %v8547 = vand.u32 2147483647, %v8543
    %v8548 = vand.u32 2147483647, %v8544
    %v8549 = vand.u32 2147483647, %v8545
    %v8550 = vand.u32 2147483647, %v8546
    %v8551 = vmul.f32 %v8547, 0.3275911
    %v8552 = vmul.f32 %v8548, 0.3275911
    %v8553 = vmul.f32 %v8549, 0.3275911
    %v8554 = vmul.f32 %v8550, 0.3275911
    %v8555 = vadd.f32 %v8551, 1.0
    %v8556 = vadd.f32 %v8552, 1.0
    %v8557 = vadd.f32 %v8553, 1.0
    %v8558 = vadd.f32 %v8554, 1.0
    %v8559 = vrcp.pop %v8555
    %v8560 = vmul.f32 1.0, %v8559
    %v8561 = vrcp.pop %v8556
    %v8562 = vmul.f32 1.0, %v8561
    %v8563 = vrcp.pop %v8557
    %v8564 = vmul.f32 1.0, %v8563
    %v8565 = vrcp.pop %v8558
    %v8566 = vmul.f32 1.0, %v8565
    %v8567 = vmul.f32 %v8560, 1.0614054
    %v8568 = vmul.f32 %v8562, 1.0614054
    %v8569 = vmul.f32 %v8564, 1.0614054
    %v8570 = vmul.f32 %v8566, 1.0614054
    %v8571 = vadd.f32 %v8567, -1.4531521
    %v8572 = vadd.f32 %v8568, -1.4531521
    %v8573 = vadd.f32 %v8569, -1.4531521
    %v8574 = vadd.f32 %v8570, -1.4531521
    %v8575 = vmul.f32 %v8571, %v8560
    %v8576 = vmul.f32 %v8572, %v8562
    %v8577 = vmul.f32 %v8573, %v8564
    %v8578 = vmul.f32 %v8574, %v8566
    %v8579 = vadd.f32 %v8575, 1.4214138
    %v8580 = vadd.f32 %v8576, 1.4214138
    %v8581 = vadd.f32 %v8577, 1.4214138
    %v8582 = vadd.f32 %v8578, 1.4214138
    %v8583 = vmul.f32 %v8579, %v8560
    %v8584 = vmul.f32 %v8580, %v8562
    %v8585 = vmul.f32 %v8581, %v8564
    %v8586 = vmul.f32 %v8582, %v8566
    %v8587 = vadd.f32 %v8583, -0.28449672
    %v8588 = vadd.f32 %v8584, -0.28449672
    %v8589 = vadd.f32 %v8585, -0.28449672
    %v8590 = vadd.f32 %v8586, -0.28449672
    %v8591 = vmul.f32 %v8587, %v8560
    %v8592 = vmul.f32 %v8588, %v8562
    %v8593 = vmul.f32 %v8589, %v8564
    %v8594 = vmul.f32 %v8590, %v8566
    %v8595 = vadd.f32 %v8591, 0.2548296
    %v8596 = vadd.f32 %v8592, 0.2548296
    %v8597 = vadd.f32 %v8593, 0.2548296
    %v8598 = vadd.f32 %v8594, 0.2548296
    %v8599 = vmul.f32 %v8595, %v8560
    %v8600 = vmul.f32 %v8596, %v8562
    %v8601 = vmul.f32 %v8597, %v8564
    %v8602 = vmul.f32 %v8598, %v8566
    %v8603 = vsub.f32 0.0, %v8547
    %v8604 = vsub.f32 0.0, %v8548
    %v8605 = vsub.f32 0.0, %v8549
    %v8606 = vsub.f32 0.0, %v8550
    %v8607 = vmul.f32 %v8603, %v8547
    %v8608 = vmul.f32 %v8604, %v8548
    %v8609 = vmul.f32 %v8605, %v8549
    %v8610 = vmul.f32 %v8606, %v8550
    %v8611 = vmul.f32 %v8607, 1.442695
    %v8612 = vpow.pop %v8611
    %v8613 = vmul.f32 %v8608, 1.442695
    %v8614 = vpow.pop %v8613
    %v8615 = vmul.f32 %v8609, 1.442695
    %v8616 = vpow.pop %v8615
    %v8617 = vmul.f32 %v8610, 1.442695
    %v8618 = vpow.pop %v8617
    %v8619 = vmul.f32 %v8599, %v8612
    %v8620 = vmul.f32 %v8600, %v8614
    %v8621 = vmul.f32 %v8601, %v8616
    %v8622 = vmul.f32 %v8602, %v8618
    %v8623 = vsub.f32 1.0, %v8619
    %v8624 = vsub.f32 1.0, %v8620
    %v8625 = vsub.f32 1.0, %v8621
    %v8626 = vsub.f32 1.0, %v8622
    %vm8627 = vcmp.ge.f32.partialorder %v8543, 0.0
    %vm8628 = vcmp.ge.f32.partialorder %v8544, 0.0
    %vm8629 = vcmp.ge.f32.partialorder %v8545, 0.0
    %vm8630 = vcmp.ge.f32.partialorder %v8546, 0.0
    %v8631 = vsub.f32 0.0, %v8623
    %v8632 = vsub.f32 0.0, %v8624
    %v8633 = vsub.f32 0.0, %v8625
    %v8634 = vsub.f32 0.0, %v8626
    %v8635 = vsel %vm8627, %v8623, %v8631
    %v8636 = vsel %vm8628, %v8624, %v8632
    %v8637 = vsel %vm8629, %v8625, %v8633
    %v8638 = vsel %vm8630, %v8626, %v8634
    %v8639 = vadd.f32 %v8635, 1.0
    %v8640 = vadd.f32 %v8636, 1.0
    %v8641 = vadd.f32 %v8637, 1.0
    %v8642 = vadd.f32 %v8638, 1.0
    %v8643 = vmul.f32 %v8539, %v8639
    %v8644 = vmul.f32 %v8540, %v8640
    %v8645 = vmul.f32 %v8541, %v8641
    %v8646 = vmul.f32 %v8542, %v8642
    %8648 = vset.pattern.permute.xlu0 0
    %8649 = vperm.xlu0 %8648, %v442
    %v8650 = vpop.permute.xlu0 %8649
    %8653 = vset.pattern.permute.xlu0 0
    %8654 = vperm.xlu0 %8653, %v443
    %v8655 = vpop.permute.xlu0 %8654
    %8658 = vset.pattern.permute.xlu0 0
    %8659 = vperm.xlu0 %8658, %v444
    %v8660 = vpop.permute.xlu0 %8659
    %8663 = vset.pattern.permute.xlu0 0
    %8664 = vperm.xlu0 %8663, %v445
    %v8665 = vpop.permute.xlu0 %8664
    %8668 = vset.pattern.permute.xlu0 0
    %8669 = vperm.xlu0 %8668, %v446
    %v8670 = vpop.permute.xlu0 %8669
    %8673 = vset.pattern.permute.xlu0 0
    %8674 = vperm.xlu0 %8673, %v447
    %v8675 = vpop.permute.xlu0 %8674
    %8678 = vset.pattern.permute.xlu0 0
    %8679 = vperm.xlu0 %8678, %v448
    %v8680 = vpop.permute.xlu0 %8679
    %8683 = vset.pattern.permute.xlu0 0
    %8684 = vperm.xlu0 %8683, %v449
    %v8685 = vpop.permute.xlu0 %8684
    %8688 = vset.pattern.permute.xlu0 0
    %8689 = vperm.xlu0 %8688, %v450
    %v8690 = vpop.permute.xlu0 %8689
    %8693 = vset.pattern.permute.xlu0 0
    %8694 = vperm.xlu0 %8693, %v451
    %v8695 = vpop.permute.xlu0 %8694
    %8698 = vset.pattern.permute.xlu0 0
    %8699 = vperm.xlu0 %8698, %v452
    %v8700 = vpop.permute.xlu0 %8699
    %8703 = vset.pattern.permute.xlu0 0
    %8704 = vperm.xlu0 %8703, %v453
    %v8705 = vpop.permute.xlu0 %8704
    %v8707 = vadd.f32 %v7734, %v8650
    %v8708 = vadd.f32 %v7735, %v8655
    %v8709 = vadd.f32 %v7736, %v8660
    %v8710 = vadd.f32 %v7737, %v8665
    %v8711 = vadd.f32 %v8150, %v8670
    %v8712 = vadd.f32 %v8151, %v8675
    %v8713 = vadd.f32 %v8152, %v8680
    %v8714 = vadd.f32 %v8153, %v8685
    %v8715 = vadd.f32 %v8643, %v8690
    %v8716 = vadd.f32 %v8644, %v8695
    %v8717 = vadd.f32 %v8645, %v8700
    %v8718 = vadd.f32 %v8646, %v8705
    %8731 = vrot.lane.b32.xlu0 %v8707, 16
    %v8732 = vpop.permute.xlu0 %8731
    %8733 = vrot.lane.b32.xlu0 %v8708, 16
    %v8734 = vpop.permute.xlu0 %8733
    %8735 = vrot.lane.b32.xlu0 %v8709, 16
    %v8736 = vpop.permute.xlu0 %8735
    %8737 = vrot.lane.b32.xlu0 %v8710, 16
    %v8738 = vpop.permute.xlu0 %8737
    %8739 = vrot.lane.b32.xlu0 %v8711, 16
    %v8740 = vpop.permute.xlu0 %8739
    %8741 = vrot.lane.b32.xlu0 %v8712, 16
    %v8742 = vpop.permute.xlu0 %8741
    %8743 = vrot.lane.b32.xlu0 %v8713, 16
    %v8744 = vpop.permute.xlu0 %8743
    %8745 = vrot.lane.b32.xlu0 %v8714, 16
    %v8746 = vpop.permute.xlu0 %8745
    %8747 = vrot.lane.b32.xlu0 %v8715, 16
    %v8748 = vpop.permute.xlu0 %8747
    %8749 = vrot.lane.b32.xlu0 %v8716, 16
    %v8750 = vpop.permute.xlu0 %8749
    %8751 = vrot.lane.b32.xlu0 %v8717, 16
    %v8752 = vpop.permute.xlu0 %8751
    %8753 = vrot.lane.b32.xlu0 %v8718, 16
    %v8754 = vpop.permute.xlu0 %8753
    %v8767 = vsel %vm7990, 0.0, %v8732
    %v8768 = vsel %vm7990, 0.0, %v8734
    %v8769 = vsel %vm7990, 0.0, %v8736
    %v8770 = vsel %vm7990, 0.0, %v8738
    %v8771 = vsel %vm7990, 0.0, %v8740
    %v8772 = vsel %vm7990, 0.0, %v8742
    %v8773 = vsel %vm7990, 0.0, %v8744
    %v8774 = vsel %vm7990, 0.0, %v8746
    %v8775 = vsel %vm7990, 0.0, %v8748
    %v8776 = vsel %vm7990, 0.0, %v8750
    %v8777 = vsel %vm7990, 0.0, %v8752
    %v8778 = vsel %vm7990, 0.0, %v8754
    %v8779 = vadd.s32 %v7400, 4294967280
    %vm8780 = vcmp.ge.s32.totalorder %v8779, 0
    %vm8781 = vcmp.lt.s32.totalorder %v8779, 32
    %vm8782 = vmand %vm8780, %vm8781
    %v8783 = vsel %vm8782, 1, 0
    %v8784 = vlaneseq
    %v8785 = vshrl.u32 %v8784, 7
    %v8786 = vsub.s32 0, %v8785
    %v8787 = vrot.slane %v8783, %v8786
    %vm8788 = vcmp.eq.s32.totalorder %v8787, 1
    %v8789 = vsel %vm8788, %v8767, 0.0
    %v8790 = vsel %vm8788, %v8768, 0.0
    %v8791 = vsel %vm8788, %v8769, 0.0
    %v8792 = vsel %vm8788, %v8770, 0.0
    %v8793 = vsel %vm8788, %v8771, 0.0
    %v8794 = vsel %vm8788, %v8772, 0.0
    %v8795 = vsel %vm8788, %v8773, 0.0
    %v8796 = vsel %vm8788, %v8774, 0.0
    %v8797 = vsel %vm8788, %v8775, 0.0
    %v8798 = vsel %vm8788, %v8776, 0.0
    %v8799 = vsel %vm8788, %v8777, 0.0
    %v8800 = vsel %vm8788, %v8778, 0.0
    %8801 = vrot.lane.b32.xlu0 %v8707, 112
    %v8802 = vpop.permute.xlu0 %8801
    %8803 = vrot.lane.b32.xlu0 %v8708, 112
    %v8804 = vpop.permute.xlu0 %8803
    %8805 = vrot.lane.b32.xlu0 %v8709, 112
    %v8806 = vpop.permute.xlu0 %8805
    %8807 = vrot.lane.b32.xlu0 %v8710, 112
    %v8808 = vpop.permute.xlu0 %8807
    %8809 = vrot.lane.b32.xlu0 %v8711, 112
    %v8810 = vpop.permute.xlu0 %8809
    %8811 = vrot.lane.b32.xlu0 %v8712, 112
    %v8812 = vpop.permute.xlu0 %8811
    %8813 = vrot.lane.b32.xlu0 %v8713, 112
    %v8814 = vpop.permute.xlu0 %8813
    %8815 = vrot.lane.b32.xlu0 %v8714, 112
    %v8816 = vpop.permute.xlu0 %8815
    %8817 = vrot.lane.b32.xlu0 %v8715, 112
    %v8818 = vpop.permute.xlu0 %8817
    %8819 = vrot.lane.b32.xlu0 %v8716, 112
    %v8820 = vpop.permute.xlu0 %8819
    %8821 = vrot.lane.b32.xlu0 %v8717, 112
    %v8822 = vpop.permute.xlu0 %8821
    %8823 = vrot.lane.b32.xlu0 %v8718, 112
    %v8824 = vpop.permute.xlu0 %8823
    %vm8837 = vcmask 392192
    %v8838 = vsel %vm8837, %v8802, 0.0
    %v8839 = vsel %vm8837, %v8804, 0.0
    %v8840 = vsel %vm8837, %v8806, 0.0
    %v8841 = vsel %vm8837, %v8808, 0.0
    %v8842 = vsel %vm8837, %v8810, 0.0
    %v8843 = vsel %vm8837, %v8812, 0.0
    %v8844 = vsel %vm8837, %v8814, 0.0
    %v8845 = vsel %vm8837, %v8816, 0.0
    %v8846 = vsel %vm8837, %v8818, 0.0
    %v8847 = vsel %vm8837, %v8820, 0.0
    %v8848 = vsel %vm8837, %v8822, 0.0
    %v8849 = vsel %vm8837, %v8824, 0.0
    %v8850 = vadd.s32 %v7400, 16
    %vm8851 = vcmp.ge.s32.totalorder %v8850, 0
    %vm8852 = vcmp.lt.s32.totalorder %v8850, 32
    %vm8853 = vmand %vm8851, %vm8852
    %v8854 = vsel %vm8853, 1, 0
    %v8855 = vlaneseq
    %v8856 = vshrl.u32 %v8855, 7
    %v8857 = vsub.s32 0, %v8856
    %v8858 = vrot.slane %v8854, %v8857
    %vm8859 = vcmp.eq.s32.totalorder %v8858, 1
    %v8860 = vsel %vm8859, %v8838, 0.0
    %v8861 = vsel %vm8859, %v8839, 0.0
    %v8862 = vsel %vm8859, %v8840, 0.0
    %v8863 = vsel %vm8859, %v8841, 0.0
    %v8864 = vsel %vm8859, %v8842, 0.0
    %v8865 = vsel %vm8859, %v8843, 0.0
    %v8866 = vsel %vm8859, %v8844, 0.0
    %v8867 = vsel %vm8859, %v8845, 0.0
    %v8868 = vsel %vm8859, %v8846, 0.0
    %v8869 = vsel %vm8859, %v8847, 0.0
    %v8870 = vsel %vm8859, %v8848, 0.0
    %v8871 = vsel %vm8859, %v8849, 0.0
    %v8872 = vpack.c.bf16 %v8790, %v8789
    %v8873 = vpack.c.bf16 %v8792, %v8791
    %v8874 = vpack.c.bf16 %v8794, %v8793
    %v8875 = vpack.c.bf16 %v8796, %v8795
    %v8876 = vpack.c.bf16 %v8798, %v8797
    %v8877 = vpack.c.bf16 %v8800, %v8799
    %v8878 = vpack.c.bf16 %v8708, %v8707
    %v8879 = vpack.c.bf16 %v8710, %v8709
    %v8880 = vpack.c.bf16 %v8712, %v8711
    %v8881 = vpack.c.bf16 %v8714, %v8713
    %v8882 = vpack.c.bf16 %v8716, %v8715
    %v8883 = vpack.c.bf16 %v8718, %v8717
    %v8884 = vpack.c.bf16 %v8861, %v8860
    %v8885 = vpack.c.bf16 %v8863, %v8862
    %v8886 = vpack.c.bf16 %v8865, %v8864
    %v8887 = vpack.c.bf16 %v8867, %v8866
    %v8888 = vpack.c.bf16 %v8869, %v8868
    %v8889 = vpack.c.bf16 %v8871, %v8870
    %8891 = vset.pattern.permute.xlu0 0
    %8892 = vperm.xlu0 %8891, %v440
    %v8893 = vpop.permute.xlu0 %8892
    %8896 = vset.pattern.permute.xlu0 0
    %8897 = vperm.xlu0 %8896, %v441
    %v8898 = vpop.permute.xlu0 %8897
    %v8904 = vunpack.c.l.b16 %v436
    %v8905 = vunpack.c.h.b16 %v436
    %v8906 = vunpack.c.l.b16 %v437
    %v8907 = vunpack.c.l.b16 %v438
    %v8908 = vunpack.c.h.b16 %v438
    %v8909 = vunpack.c.l.b16 %v439
    %v8910 = vpack.c.b16 %v8907, %v8904
    %v8911 = vpack.c.b16 %v8908, %v8905
    %v8912 = vpack.c.b16 %v8909, %v8906
    %v8916 = vsel %vm7087, %v8912, 0
    %8918 = vmatprep.subr.bf16.mxu0 0
    %8919 = vmatpush1.bf16.msra.mxu0 %v8872
    %8920 = vmatprep.subr.bf16.mxu0 0
    %8921 = vmatpush1.bf16.msra.mxu0 %v8873
    %8922 = vmatprep.subr.bf16.mxu0 0
    %8923 = vmatpush1.bf16.msra.mxu0 %v8874
    %8924 = vmatprep.subr.bf16.mxu0 0
    %8925 = vmatpush1.bf16.msra.mxu0 %v8875
    %8926 = vmatprep.subr.bf16.mxu0 0
    %8927 = vmatpush1.bf16.msra.mxu0 %v8876
    %8928 = vmatprep.subr.bf16.mxu0 0
    %8929 = vmatpush1.bf16.msra.mxu0 %v8877
    %8930 = vmatprep.subr.bf16.mxu0 0
    %8931 = vmatpush1.bf16.msra.mxu0 %v8878
    %8932 = vmatprep.subr.bf16.mxu0 0
    %8933 = vmatpush1.bf16.msra.mxu0 %v8879
    %8934 = vmatprep.subr.bf16.mxu0 0
    %8935 = vmatpush1.bf16.msra.mxu0 %v8880
    %8936 = vmatprep.subr.bf16.mxu0 0
    %8937 = vmatpush1.bf16.msra.mxu0 %v8881
    %8938 = vmatprep.subr.bf16.mxu0 0
    %8939 = vmatpush1.bf16.msra.mxu0 %v8882
    %8940 = vmatprep.subr.bf16.mxu0 0
    %8941 = vmatpush1.bf16.msra.mxu0 %v8883
    %8942 = vmatprep.subr.bf16.mxu0 0
    %8943 = vmatpush1.bf16.msra.mxu0 %v8884
    %8944 = vmatprep.subr.bf16.mxu0 0
    %8945 = vmatpush1.bf16.msra.mxu0 %v8885
    %8946 = vmatprep.subr.bf16.mxu0 0
    %8947 = vmatpush1.bf16.msra.mxu0 %v8886
    %8948 = vmatprep.subr.bf16.mxu0 0
    %8949 = vmatpush1.bf16.msra.mxu0 %v8887
    %8950 = vmatprep.mubr.bf16.mxu0 %v8911
    %8951 = vmatmul.mubr.bf16.gmra.mrb[0].mxu0 %v8910
    %v8952 = vpop.f32.mrb[0].mxu0
    %v8953 = vadd.f32 %v8893, %v8952
    %v8954 = vpop.f32.mrb[0].mxu0
    %v8955 = vpop.f32.mrb[0].mxu0
    %v8956 = vadd.f32 %v8898, %v8955
    %v8957 = vpop.f32.mrb[0].mxu0
    %8958 = vdwg.mxu0
    %8959 = vmatprep.subr.bf16.mxu0 0
    %8960 = vmatpush1.bf16.msra.mxu0 %v8888
    %8961 = vmatprep.subr.bf16.mxu0 0
    %8962 = vmatpush1.bf16.msra.mxu0 %v8889
    %8963 = vmatprep.subr.bf16.mxu0 0
    %8964 = vmatpush1.bf16.msra.mxu0 0
    %8965 = vmatprep.subr.bf16.mxu0 0
    %8966 = vmatpush1.bf16.msra.mxu0 0
    %8967 = vmatprep.subr.bf16.mxu0 0
    %8968 = vmatpush1.bf16.msra.mxu0 0
    %8969 = vmatprep.subr.bf16.mxu0 0
    %8970 = vmatpush1.bf16.msra.mxu0 0
    %8971 = vmatprep.subr.bf16.mxu0 0
    %8972 = vmatpush1.bf16.msra.mxu0 0
    %8973 = vmatprep.subr.bf16.mxu0 0
    %8974 = vmatpush1.bf16.msra.mxu0 0
    %8975 = vmatprep.subr.bf16.mxu0 0
    %8976 = vmatpush1.bf16.msra.mxu0 0
    %8977 = vmatprep.subr.bf16.mxu0 0
    %8978 = vmatpush1.bf16.msra.mxu0 0
    %8979 = vmatprep.subr.bf16.mxu0 0
    %8980 = vmatpush1.bf16.msra.mxu0 0
    %8981 = vmatprep.subr.bf16.mxu0 0
    %8982 = vmatpush1.bf16.msra.mxu0 0
    %8983 = vmatprep.subr.bf16.mxu0 0
    %8984 = vmatpush1.bf16.msra.mxu0 0
    %8985 = vmatprep.subr.bf16.mxu0 0
    %8986 = vmatpush1.bf16.msra.mxu0 0
    %8987 = vmatprep.subr.bf16.mxu0 0
    %8988 = vmatpush1.bf16.msra.mxu0 0
    %8989 = vmatprep.subr.bf16.mxu0 0
    %8990 = vmatpush1.bf16.msra.mxu0 0
    %8991 = vmatprep.mubr.bf16.mxu0 0
    %8992 = vmatmul.mubr.bf16.gmra.mrb[0].mxu0 %v8916
    %v8993 = vpop.f32.mrb[0].mxu0
    %v8994 = vadd.f32 %v8953, %v8993
    %v8995 = vpop.f32.mrb[0].mxu0
    %v8996 = vpop.f32.mrb[0].mxu0
    %v8997 = vadd.f32 %v8956, %v8996
    %v8998 = vpop.f32.mrb[0].mxu0
    %8999 = vdwg.mxu0
    %v9000 = vmul.f32 %v8994, 0.5
    %v9001 = vmul.f32 %v8997, 0.5
    %v9002 = vmul.f32 %v8994, 0.70710677
    %v9003 = vmul.f32 %v8997, 0.70710677
    %v9004 = vand.u32 2147483647, %v9002
    %v9005 = vand.u32 2147483647, %v9003
    %v9006 = vmul.f32 %v9004, 0.3275911
    %v9007 = vmul.f32 %v9005, 0.3275911
    %v9008 = vadd.f32 %v9006, 1.0
    %v9009 = vadd.f32 %v9007, 1.0
    %v9010 = vrcp.pop %v9008
    %v9011 = vmul.f32 1.0, %v9010
    %v9012 = vrcp.pop %v9009
    %v9013 = vmul.f32 1.0, %v9012
    %v9014 = vmul.f32 %v9011, 1.0614054
    %v9015 = vmul.f32 %v9013, 1.0614054
    %v9016 = vadd.f32 %v9014, -1.4531521
    %v9017 = vadd.f32 %v9015, -1.4531521
    %v9018 = vmul.f32 %v9016, %v9011
    %v9019 = vmul.f32 %v9017, %v9013
    %v9020 = vadd.f32 %v9018, 1.4214138
    %v9021 = vadd.f32 %v9019, 1.4214138
    %v9022 = vmul.f32 %v9020, %v9011
    %v9023 = vmul.f32 %v9021, %v9013
    %v9024 = vadd.f32 %v9022, -0.28449672
    %v9025 = vadd.f32 %v9023, -0.28449672
    %v9026 = vmul.f32 %v9024, %v9011
    %v9027 = vmul.f32 %v9025, %v9013
    %v9028 = vadd.f32 %v9026, 0.2548296
    %v9029 = vadd.f32 %v9027, 0.2548296
    %v9030 = vmul.f32 %v9028, %v9011
    %v9031 = vmul.f32 %v9029, %v9013
    %v9032 = vsub.f32 0.0, %v9004
    %v9033 = vsub.f32 0.0, %v9005
    %v9034 = vmul.f32 %v9032, %v9004
    %v9035 = vmul.f32 %v9033, %v9005
    %v9036 = vmul.f32 %v9034, 1.442695
    %v9037 = vpow.pop %v9036
    %v9038 = vmul.f32 %v9035, 1.442695
    %v9039 = vpow.pop %v9038
    %v9040 = vmul.f32 %v9030, %v9037
    %v9041 = vmul.f32 %v9031, %v9039
    %v9042 = vsub.f32 1.0, %v9040
    %v9043 = vsub.f32 1.0, %v9041
    %vm9044 = vcmp.ge.f32.partialorder %v9002, 0.0
    %vm9045 = vcmp.ge.f32.partialorder %v9003, 0.0
    %v9046 = vsub.f32 0.0, %v9042
    %v9047 = vsub.f32 0.0, %v9043
    %v9048 = vsel %vm9044, %v9042, %v9046
    %v9049 = vsel %vm9045, %v9043, %v9047
    %v9050 = vadd.f32 %v9048, 1.0
    %v9051 = vadd.f32 %v9049, 1.0
    %v9052 = vmul.f32 %v9000, %v9050
    %v9053 = vmul.f32 %v9001, %v9051
    %9055 = vset.pattern.permute.xlu0 0
    %9056 = vperm.xlu0 %9055, %v462
    %v9057 = vpop.permute.xlu0 %9056
    %9060 = vset.pattern.permute.xlu0 0
    %9061 = vperm.xlu0 %9060, %v463
    %v9062 = vpop.permute.xlu0 %9061
    %v9064 = vadd.f32 %v9052, %v9057
    %v9065 = vadd.f32 %v9053, %v9062
    %v9066 = vpack.c.bf16 %v9065, %v9064
    %9068 = vset.pattern.permute.xlu0 0
    %9069 = vperm.xlu0 %9068, %v458
    %v9070 = vpop.permute.xlu0 %9069
    %9073 = vset.pattern.permute.xlu0 0
    %9074 = vperm.xlu0 %9073, %v459
    %v9075 = vpop.permute.xlu0 %9074
    %9078 = vset.pattern.permute.xlu0 0
    %9079 = vperm.xlu0 %9078, %v460
    %v9080 = vpop.permute.xlu0 %9079
    %9083 = vset.pattern.permute.xlu0 0
    %9084 = vperm.xlu0 %9083, %v461
    %v9085 = vpop.permute.xlu0 %9084
    %v9091 = vunpack.c.l.b16 %v454
    %v9092 = vunpack.c.l.b16 %v455
    %v9093 = vunpack.c.l.b16 %v456
    %v9094 = vunpack.c.l.b16 %v457
    %v9095 = vpack.c.b16 %v9092, %v9091
    %v9096 = vpack.c.b16 %v9094, %v9093
    %v9098 = vsel %vm7990, %v9095, 0
    %v9101 = vsel %vm7990, %v9096, 0
    %9103 = vmatprep.subr.bf16.mxu0 0
    %9104 = vmatpush1.bf16.msra.mxu0 %v9066
    %9105 = vmatprep.subr.bf16.mxu0 0
    %9106 = vmatpush1.bf16.msra.mxu0 0
    %9107 = vmatprep.subr.bf16.mxu0 0
    %9108 = vmatpush1.bf16.msra.mxu0 0
    %9109 = vmatprep.subr.bf16.mxu0 0
    %9110 = vmatpush1.bf16.msra.mxu0 0
    %9111 = vmatprep.subr.bf16.mxu0 0
    %9112 = vmatpush1.bf16.msra.mxu0 0
    %9113 = vmatprep.subr.bf16.mxu0 0
    %9114 = vmatpush1.bf16.msra.mxu0 0
    %9115 = vmatprep.subr.bf16.mxu0 0
    %9116 = vmatpush1.bf16.msra.mxu0 0
    %9117 = vmatprep.subr.bf16.mxu0 0
    %9118 = vmatpush1.bf16.msra.mxu0 0
    %9119 = vmatprep.subr.bf16.mxu0 0
    %9120 = vmatpush1.bf16.msra.mxu0 0
    %9121 = vmatprep.subr.bf16.mxu0 0
    %9122 = vmatpush1.bf16.msra.mxu0 0
    %9123 = vmatprep.subr.bf16.mxu0 0
    %9124 = vmatpush1.bf16.msra.mxu0 0
    %9125 = vmatprep.subr.bf16.mxu0 0
    %9126 = vmatpush1.bf16.msra.mxu0 0
    %9127 = vmatprep.subr.bf16.mxu0 0
    %9128 = vmatpush1.bf16.msra.mxu0 0
    %9129 = vmatprep.subr.bf16.mxu0 0
    %9130 = vmatpush1.bf16.msra.mxu0 0
    %9131 = vmatprep.subr.bf16.mxu0 0
    %9132 = vmatpush1.bf16.msra.mxu0 0
    %9133 = vmatprep.subr.bf16.mxu0 0
    %9134 = vmatpush1.bf16.msra.mxu0 0
    %9135 = vmatprep.mubr.bf16.mxu0 0
    %9136 = vmatmul.mubr.bf16.gmra.mrb[0].mxu0 %v9098
    %v9137 = vpop.f32.mrb[0].mxu0
    %v9138 = vadd.f32 %v9070, %v9137
    %v9139 = vpop.f32.mrb[0].mxu0
    %v9140 = vpop.f32.mrb[0].mxu0
    %v9141 = vadd.f32 %v9075, %v9140
    %v9142 = vpop.f32.mrb[0].mxu0
    %9143 = vmatprep.mubr.bf16.mxu0 0
    %9144 = vmatmul.mubr.bf16.gmra.mrb[0].mxu0 %v9101
    %v9145 = vpop.f32.mrb[0].mxu0
    %v9146 = vadd.f32 %v9080, %v9145
    %v9147 = vpop.f32.mrb[0].mxu0
    %v9148 = vpop.f32.mrb[0].mxu0
    %v9149 = vadd.f32 %v9085, %v9148
    %v9150 = vpop.f32.mrb[0].mxu0
    %9151 = vdwg.mxu0
    %9168 = vrot.lane.b32.xlu0 %v7616, 120
    %v9169 = vpop.permute.xlu0 %9168
    %9170 = vrot.lane.b32.xlu0 %v7619, 120
    %v9171 = vpop.permute.xlu0 %9170
    %9172 = vrot.lane.b32.xlu0 %v7624, 120
    %v9173 = vpop.permute.xlu0 %9172
    %9174 = vrot.lane.b32.xlu0 %v7627, 120
    %v9175 = vpop.permute.xlu0 %9174
    %9176 = vrot.lane.b32.xlu0 %v8032, 120
    %v9177 = vpop.permute.xlu0 %9176
    %9178 = vrot.lane.b32.xlu0 %v8035, 120
    %v9179 = vpop.permute.xlu0 %9178
    %9180 = vrot.lane.b32.xlu0 %v8040, 120
    %v9181 = vpop.permute.xlu0 %9180
    %9182 = vrot.lane.b32.xlu0 %v8043, 120
    %v9183 = vpop.permute.xlu0 %9182
    %9184 = vrot.lane.b32.xlu0 %v8525, 120
    %v9185 = vpop.permute.xlu0 %9184
    %9186 = vrot.lane.b32.xlu0 %v8528, 120
    %v9187 = vpop.permute.xlu0 %9186
    %9188 = vrot.lane.b32.xlu0 %v8533, 120
    %v9189 = vpop.permute.xlu0 %9188
    %9190 = vrot.lane.b32.xlu0 %v8536, 120
    %v9191 = vpop.permute.xlu0 %9190
    %9192 = vrot.lane.b32.xlu0 %v9138, 120
    %v9193 = vpop.permute.xlu0 %9192
    %9194 = vrot.lane.b32.xlu0 %v9141, 120
    %v9195 = vpop.permute.xlu0 %9194
    %9196 = vrot.lane.b32.xlu0 %v9146, 120
    %v9197 = vpop.permute.xlu0 %9196
    %9198 = vrot.lane.b32.xlu0 %v9149, 120
    %v9199 = vpop.permute.xlu0 %9198
    %9216 = vrot.lane.b32.xlu0 %v7616, 104
    %v9217 = vpop.permute.xlu0 %9216
    %9218 = vrot.lane.b32.xlu0 %v7619, 104
    %v9219 = vpop.permute.xlu0 %9218
    %9220 = vrot.lane.b32.xlu0 %v7624, 104
    %v9221 = vpop.permute.xlu0 %9220
    %9222 = vrot.lane.b32.xlu0 %v7627, 104
    %v9223 = vpop.permute.xlu0 %9222
    %9224 = vrot.lane.b32.xlu0 %v8032, 104
    %v9225 = vpop.permute.xlu0 %9224
    %9226 = vrot.lane.b32.xlu0 %v8035, 104
    %v9227 = vpop.permute.xlu0 %9226
    %9228 = vrot.lane.b32.xlu0 %v8040, 104
    %v9229 = vpop.permute.xlu0 %9228
    %9230 = vrot.lane.b32.xlu0 %v8043, 104
    %v9231 = vpop.permute.xlu0 %9230
    %9232 = vrot.lane.b32.xlu0 %v8525, 104
    %v9233 = vpop.permute.xlu0 %9232
    %9234 = vrot.lane.b32.xlu0 %v8528, 104
    %v9235 = vpop.permute.xlu0 %9234
    %9236 = vrot.lane.b32.xlu0 %v8533, 104
    %v9237 = vpop.permute.xlu0 %9236
    %9238 = vrot.lane.b32.xlu0 %v8536, 104
    %v9239 = vpop.permute.xlu0 %9238
    %9240 = vrot.lane.b32.xlu0 %v9138, 104
    %v9241 = vpop.permute.xlu0 %9240
    %9242 = vrot.lane.b32.xlu0 %v9141, 104
    %v9243 = vpop.permute.xlu0 %9242
    %9244 = vrot.lane.b32.xlu0 %v9146, 104
    %v9245 = vpop.permute.xlu0 %9244
    %9246 = vrot.lane.b32.xlu0 %v9149, 104
    %v9247 = vpop.permute.xlu0 %9246
    %v9264 = vsel %vm7990, %v9169, %v9217
    %v9265 = vsel %vm7990, %v9171, %v9219
    %v9266 = vsel %vm7990, %v9173, %v9221
    %v9267 = vsel %vm7990, %v9175, %v9223
    %v9268 = vsel %vm7990, %v9177, %v9225
    %v9269 = vsel %vm7990, %v9179, %v9227
    %v9270 = vsel %vm7990, %v9181, %v9229
    %v9271 = vsel %vm7990, %v9183, %v9231
    %v9272 = vsel %vm7990, %v9185, %v9233
    %v9273 = vsel %vm7990, %v9187, %v9235
    %v9274 = vsel %vm7990, %v9189, %v9237
    %v9275 = vsel %vm7990, %v9191, %v9239
    %v9276 = vsel %vm7990, %v9193, %v9241
    %v9277 = vsel %vm7990, %v9195, %v9243
    %v9278 = vsel %vm7990, %v9197, %v9245
    %v9279 = vsel %vm7990, %v9199, %v9247
    %v9280 = vmul.f32 %v9264, 0.5
    %v9281 = vmul.f32 %v9265, 0.5
    %v9282 = vmul.f32 %v9266, 0.5
    %v9283 = vmul.f32 %v9267, 0.5
    %v9284 = vmul.f32 %v9268, 0.5
    %v9285 = vmul.f32 %v9269, 0.5
    %v9286 = vmul.f32 %v9270, 0.5
    %v9287 = vmul.f32 %v9271, 0.5
    %v9288 = vmul.f32 %v9272, 0.5
    %v9289 = vmul.f32 %v9273, 0.5
    %v9290 = vmul.f32 %v9274, 0.5
    %v9291 = vmul.f32 %v9275, 0.5
    %v9292 = vmul.f32 %v9276, 0.5
    %v9293 = vmul.f32 %v9277, 0.5
    %v9294 = vmul.f32 %v9278, 0.5
    %v9295 = vmul.f32 %v9279, 0.5
    %v9296 = vmul.f32 %v9264, 0.70710677
    %v9297 = vmul.f32 %v9265, 0.70710677
    %v9298 = vmul.f32 %v9266, 0.70710677
    %v9299 = vmul.f32 %v9267, 0.70710677
    %v9300 = vmul.f32 %v9268, 0.70710677
    %v9301 = vmul.f32 %v9269, 0.70710677
    %v9302 = vmul.f32 %v9270, 0.70710677
    %v9303 = vmul.f32 %v9271, 0.70710677
    %v9304 = vmul.f32 %v9272, 0.70710677
    %v9305 = vmul.f32 %v9273, 0.70710677
    %v9306 = vmul.f32 %v9274, 0.70710677
    %v9307 = vmul.f32 %v9275, 0.70710677
    %v9308 = vmul.f32 %v9276, 0.70710677
    %v9309 = vmul.f32 %v9277, 0.70710677
    %v9310 = vmul.f32 %v9278, 0.70710677
    %v9311 = vmul.f32 %v9279, 0.70710677
    %v9312 = vand.u32 2147483647, %v9296
    %v9313 = vand.u32 2147483647, %v9297
    %v9314 = vand.u32 2147483647, %v9298
    %v9315 = vand.u32 2147483647, %v9299
    %v9316 = vand.u32 2147483647, %v9300
    %v9317 = vand.u32 2147483647, %v9301
    %v9318 = vand.u32 2147483647, %v9302
    %v9319 = vand.u32 2147483647, %v9303
    %v9320 = vand.u32 2147483647, %v9304
    %v9321 = vand.u32 2147483647, %v9305
    %v9322 = vand.u32 2147483647, %v9306
    %v9323 = vand.u32 2147483647, %v9307
    %v9324 = vand.u32 2147483647, %v9308
    %v9325 = vand.u32 2147483647, %v9309
    %v9326 = vand.u32 2147483647, %v9310
    %v9327 = vand.u32 2147483647, %v9311
    %v9328 = vmul.f32 %v9312, 0.3275911
    %v9329 = vmul.f32 %v9313, 0.3275911
    %v9330 = vmul.f32 %v9314, 0.3275911
    %v9331 = vmul.f32 %v9315, 0.3275911
    %v9332 = vmul.f32 %v9316, 0.3275911
    %v9333 = vmul.f32 %v9317, 0.3275911
    %v9334 = vmul.f32 %v9318, 0.3275911
    %v9335 = vmul.f32 %v9319, 0.3275911
    %v9336 = vmul.f32 %v9320, 0.3275911
    %v9337 = vmul.f32 %v9321, 0.3275911
    %v9338 = vmul.f32 %v9322, 0.3275911
    %v9339 = vmul.f32 %v9323, 0.3275911
    %v9340 = vmul.f32 %v9324, 0.3275911
    %v9341 = vmul.f32 %v9325, 0.3275911
    %v9342 = vmul.f32 %v9326, 0.3275911
    %v9343 = vmul.f32 %v9327, 0.3275911
    %v9344 = vadd.f32 %v9328, 1.0
    %v9345 = vadd.f32 %v9329, 1.0
    %v9346 = vadd.f32 %v9330, 1.0
    %v9347 = vadd.f32 %v9331, 1.0
    %v9348 = vadd.f32 %v9332, 1.0
    %v9349 = vadd.f32 %v9333, 1.0
    %v9350 = vadd.f32 %v9334, 1.0
    %v9351 = vadd.f32 %v9335, 1.0
    %v9352 = vadd.f32 %v9336, 1.0
    %v9353 = vadd.f32 %v9337, 1.0
    %v9354 = vadd.f32 %v9338, 1.0
    %v9355 = vadd.f32 %v9339, 1.0
    %v9356 = vadd.f32 %v9340, 1.0
    %v9357 = vadd.f32 %v9341, 1.0
    %v9358 = vadd.f32 %v9342, 1.0
    %v9359 = vadd.f32 %v9343, 1.0
    %v9360 = vrcp.pop %v9344
    %v9361 = vmul.f32 1.0, %v9360
    %v9362 = vrcp.pop %v9345
    %v9363 = vmul.f32 1.0, %v9362
    %v9364 = vrcp.pop %v9346
    %v9365 = vmul.f32 1.0, %v9364
    %v9366 = vrcp.pop %v9347
    %v9367 = vmul.f32 1.0, %v9366
    %v9368 = vrcp.pop %v9348
    %v9369 = vmul.f32 1.0, %v9368
    %v9370 = vrcp.pop %v9349
    %v9371 = vmul.f32 1.0, %v9370
    %v9372 = vrcp.pop %v9350
    %v9373 = vmul.f32 1.0, %v9372
    %v9374 = vrcp.pop %v9351
    %v9375 = vmul.f32 1.0, %v9374
    %v9376 = vrcp.pop %v9352
    %v9377 = vmul.f32 1.0, %v9376
    %v9378 = vrcp.pop %v9353
    %v9379 = vmul.f32 1.0, %v9378
    %v9380 = vrcp.pop %v9354
    %v9381 = vmul.f32 1.0, %v9380
    %v9382 = vrcp.pop %v9355
    %v9383 = vmul.f32 1.0, %v9382
    %v9384 = vrcp.pop %v9356
    %v9385 = vmul.f32 1.0, %v9384
    %v9386 = vrcp.pop %v9357
    %v9387 = vmul.f32 1.0, %v9386
    %v9388 = vrcp.pop %v9358
    %v9389 = vmul.f32 1.0, %v9388
    %v9390 = vrcp.pop %v9359
    %v9391 = vmul.f32 1.0, %v9390
    %v9392 = vmul.f32 %v9361, 1.0614054
    %v9393 = vmul.f32 %v9363, 1.0614054
    %v9394 = vmul.f32 %v9365, 1.0614054
    %v9395 = vmul.f32 %v9367, 1.0614054
    %v9396 = vmul.f32 %v9369, 1.0614054
    %v9397 = vmul.f32 %v9371, 1.0614054
    %v9398 = vmul.f32 %v9373, 1.0614054
    %v9399 = vmul.f32 %v9375, 1.0614054
    %v9400 = vmul.f32 %v9377, 1.0614054
    %v9401 = vmul.f32 %v9379, 1.0614054
    %v9402 = vmul.f32 %v9381, 1.0614054
    %v9403 = vmul.f32 %v9383, 1.0614054
    %v9404 = vmul.f32 %v9385, 1.0614054
    %v9405 = vmul.f32 %v9387, 1.0614054
    %v9406 = vmul.f32 %v9389, 1.0614054
    %v9407 = vmul.f32 %v9391, 1.0614054
    %v9408 = vadd.f32 %v9392, -1.4531521
    %v9409 = vadd.f32 %v9393, -1.4531521
    %v9410 = vadd.f32 %v9394, -1.4531521
    %v9411 = vadd.f32 %v9395, -1.4531521
    %v9412 = vadd.f32 %v9396, -1.4531521
    %v9413 = vadd.f32 %v9397, -1.4531521
    %v9414 = vadd.f32 %v9398, -1.4531521
    %v9415 = vadd.f32 %v9399, -1.4531521
    %v9416 = vadd.f32 %v9400, -1.4531521
    %v9417 = vadd.f32 %v9401, -1.4531521
    %v9418 = vadd.f32 %v9402, -1.4531521
    %v9419 = vadd.f32 %v9403, -1.4531521
    %v9420 = vadd.f32 %v9404, -1.4531521
    %v9421 = vadd.f32 %v9405, -1.4531521
    %v9422 = vadd.f32 %v9406, -1.4531521
    %v9423 = vadd.f32 %v9407, -1.4531521
    %v9424 = vmul.f32 %v9408, %v9361
    %v9425 = vmul.f32 %v9409, %v9363
    %v9426 = vmul.f32 %v9410, %v9365
    %v9427 = vmul.f32 %v9411, %v9367
    %v9428 = vmul.f32 %v9412, %v9369
    %v9429 = vmul.f32 %v9413, %v9371
    %v9430 = vmul.f32 %v9414, %v9373
    %v9431 = vmul.f32 %v9415, %v9375
    %v9432 = vmul.f32 %v9416, %v9377
    %v9433 = vmul.f32 %v9417, %v9379
    %v9434 = vmul.f32 %v9418, %v9381
    %v9435 = vmul.f32 %v9419, %v9383
    %v9436 = vmul.f32 %v9420, %v9385
    %v9437 = vmul.f32 %v9421, %v9387
    %v9438 = vmul.f32 %v9422, %v9389
    %v9439 = vmul.f32 %v9423, %v9391
    %v9440 = vadd.f32 %v9424, 1.4214138
    %v9441 = vadd.f32 %v9425, 1.4214138
    %v9442 = vadd.f32 %v9426, 1.4214138
    %v9443 = vadd.f32 %v9427, 1.4214138
    %v9444 = vadd.f32 %v9428, 1.4214138
    %v9445 = vadd.f32 %v9429, 1.4214138
    %v9446 = vadd.f32 %v9430, 1.4214138
    %v9447 = vadd.f32 %v9431, 1.4214138
    %v9448 = vadd.f32 %v9432, 1.4214138
    %v9449 = vadd.f32 %v9433, 1.4214138
    %v9450 = vadd.f32 %v9434, 1.4214138
    %v9451 = vadd.f32 %v9435, 1.4214138
    %v9452 = vadd.f32 %v9436, 1.4214138
    %v9453 = vadd.f32 %v9437, 1.4214138
    %v9454 = vadd.f32 %v9438, 1.4214138
    %v9455 = vadd.f32 %v9439, 1.4214138
    %v9456 = vmul.f32 %v9440, %v9361
    %v9457 = vmul.f32 %v9441, %v9363
    %v9458 = vmul.f32 %v9442, %v9365
    %v9459 = vmul.f32 %v9443, %v9367
    %v9460 = vmul.f32 %v9444, %v9369
    %v9461 = vmul.f32 %v9445, %v9371
    %v9462 = vmul.f32 %v9446, %v9373
    %v9463 = vmul.f32 %v9447, %v9375
    %v9464 = vmul.f32 %v9448, %v9377
    %v9465 = vmul.f32 %v9449, %v9379
    %v9466 = vmul.f32 %v9450, %v9381
    %v9467 = vmul.f32 %v9451, %v9383
    %v9468 = vmul.f32 %v9452, %v9385
    %v9469 = vmul.f32 %v9453, %v9387
    %v9470 = vmul.f32 %v9454, %v9389
    %v9471 = vmul.f32 %v9455, %v9391
    %v9472 = vadd.f32 %v9456, -0.28449672
    %v9473 = vadd.f32 %v9457, -0.28449672
    %v9474 = vadd.f32 %v9458, -0.28449672
    %v9475 = vadd.f32 %v9459, -0.28449672
    %v9476 = vadd.f32 %v9460, -0.28449672
    %v9477 = vadd.f32 %v9461, -0.28449672
    %v9478 = vadd.f32 %v9462, -0.28449672
    %v9479 = vadd.f32 %v9463, -0.28449672
    %v9480 = vadd.f32 %v9464, -0.28449672
    %v9481 = vadd.f32 %v9465, -0.28449672
    %v9482 = vadd.f32 %v9466, -0.28449672
    %v9483 = vadd.f32 %v9467, -0.28449672
    %v9484 = vadd.f32 %v9468, -0.28449672
    %v9485 = vadd.f32 %v9469, -0.28449672
    %v9486 = vadd.f32 %v9470, -0.28449672
    %v9487 = vadd.f32 %v9471, -0.28449672
    %v9488 = vmul.f32 %v9472, %v9361
    %v9489 = vmul.f32 %v9473, %v9363
    %v9490 = vmul.f32 %v9474, %v9365
    %v9491 = vmul.f32 %v9475, %v9367
    %v9492 = vmul.f32 %v9476, %v9369
    %v9493 = vmul.f32 %v9477, %v9371
    %v9494 = vmul.f32 %v9478, %v9373
    %v9495 = vmul.f32 %v9479, %v9375
    %v9496 = vmul.f32 %v9480, %v9377
    %v9497 = vmul.f32 %v9481, %v9379
    %v9498 = vmul.f32 %v9482, %v9381
    %v9499 = vmul.f32 %v9483, %v9383
    %v9500 = vmul.f32 %v9484, %v9385
    %v9501 = vmul.f32 %v9485, %v9387
    %v9502 = vmul.f32 %v9486, %v9389
    %v9503 = vmul.f32 %v9487, %v9391
    %v9504 = vadd.f32 %v9488, 0.2548296
    %v9505 = vadd.f32 %v9489, 0.2548296
    %v9506 = vadd.f32 %v9490, 0.2548296
    %v9507 = vadd.f32 %v9491, 0.2548296
    %v9508 = vadd.f32 %v9492, 0.2548296
    %v9509 = vadd.f32 %v9493, 0.2548296
    %v9510 = vadd.f32 %v9494, 0.2548296
    %v9511 = vadd.f32 %v9495, 0.2548296
    %v9512 = vadd.f32 %v9496, 0.2548296
    %v9513 = vadd.f32 %v9497, 0.2548296
    %v9514 = vadd.f32 %v9498, 0.2548296
    %v9515 = vadd.f32 %v9499, 0.2548296
    %v9516 = vadd.f32 %v9500, 0.2548296
    %v9517 = vadd.f32 %v9501, 0.2548296
    %v9518 = vadd.f32 %v9502, 0.2548296
    %v9519 = vadd.f32 %v9503, 0.2548296
    %v9520 = vmul.f32 %v9504, %v9361
    %v9521 = vmul.f32 %v9505, %v9363
    %v9522 = vmul.f32 %v9506, %v9365
    %v9523 = vmul.f32 %v9507, %v9367
    %v9524 = vmul.f32 %v9508, %v9369
    %v9525 = vmul.f32 %v9509, %v9371
    %v9526 = vmul.f32 %v9510, %v9373
    %v9527 = vmul.f32 %v9511, %v9375
    %v9528 = vmul.f32 %v9512, %v9377
    %v9529 = vmul.f32 %v9513, %v9379
    %v9530 = vmul.f32 %v9514, %v9381
    %v9531 = vmul.f32 %v9515, %v9383
    %v9532 = vmul.f32 %v9516, %v9385
    %v9533 = vmul.f32 %v9517, %v9387
    %v9534 = vmul.f32 %v9518, %v9389
    %v9535 = vmul.f32 %v9519, %v9391
    %v9536 = vsub.f32 0.0, %v9312
    %v9537 = vsub.f32 0.0, %v9313
    %v9538 = vsub.f32 0.0, %v9314
    %v9539 = vsub.f32 0.0, %v9315
    %v9540 = vsub.f32 0.0, %v9316
    %v9541 = vsub.f32 0.0, %v9317
    %v9542 = vsub.f32 0.0, %v9318
    %v9543 = vsub.f32 0.0, %v9319
    %v9544 = vsub.f32 0.0, %v9320
    %v9545 = vsub.f32 0.0, %v9321
    %v9546 = vsub.f32 0.0, %v9322
    %v9547 = vsub.f32 0.0, %v9323
    %v9548 = vsub.f32 0.0, %v9324
    %v9549 = vsub.f32 0.0, %v9325
    %v9550 = vsub.f32 0.0, %v9326
    %v9551 = vsub.f32 0.0, %v9327
    %v9552 = vmul.f32 %v9536, %v9312
    %v9553 = vmul.f32 %v9537, %v9313
    %v9554 = vmul.f32 %v9538, %v9314
    %v9555 = vmul.f32 %v9539, %v9315
    %v9556 = vmul.f32 %v9540, %v9316
    %v9557 = vmul.f32 %v9541, %v9317
    %v9558 = vmul.f32 %v9542, %v9318
    %v9559 = vmul.f32 %v9543, %v9319
    %v9560 = vmul.f32 %v9544, %v9320
    %v9561 = vmul.f32 %v9545, %v9321
    %v9562 = vmul.f32 %v9546, %v9322
    %v9563 = vmul.f32 %v9547, %v9323
    %v9564 = vmul.f32 %v9548, %v9324
    %v9565 = vmul.f32 %v9549, %v9325
    %v9566 = vmul.f32 %v9550, %v9326
    %v9567 = vmul.f32 %v9551, %v9327
    %v9568 = vmul.f32 %v9552, 1.442695
    %v9569 = vpow.pop %v9568
    %v9570 = vmul.f32 %v9553, 1.442695
    %v9571 = vpow.pop %v9570
    %v9572 = vmul.f32 %v9554, 1.442695
    %v9573 = vpow.pop %v9572
    %v9574 = vmul.f32 %v9555, 1.442695
    %v9575 = vpow.pop %v9574
    %v9576 = vmul.f32 %v9556, 1.442695
    %v9577 = vpow.pop %v9576
    %v9578 = vmul.f32 %v9557, 1.442695
    %v9579 = vpow.pop %v9578
    %v9580 = vmul.f32 %v9558, 1.442695
    %v9581 = vpow.pop %v9580
    %v9582 = vmul.f32 %v9559, 1.442695
    %v9583 = vpow.pop %v9582
    %v9584 = vmul.f32 %v9560, 1.442695
    %v9585 = vpow.pop %v9584
    %v9586 = vmul.f32 %v9561, 1.442695
    %v9587 = vpow.pop %v9586
    %v9588 = vmul.f32 %v9562, 1.442695
    %v9589 = vpow.pop %v9588
    %v9590 = vmul.f32 %v9563, 1.442695
    %v9591 = vpow.pop %v9590
    %v9592 = vmul.f32 %v9564, 1.442695
    %v9593 = vpow.pop %v9592
    %v9594 = vmul.f32 %v9565, 1.442695
    %v9595 = vpow.pop %v9594
    %v9596 = vmul.f32 %v9566, 1.442695
    %v9597 = vpow.pop %v9596
    %v9598 = vmul.f32 %v9567, 1.442695
    %v9599 = vpow.pop %v9598
    %v9600 = vmul.f32 %v9520, %v9569
    %v9601 = vmul.f32 %v9521, %v9571
    %v9602 = vmul.f32 %v9522, %v9573
    %v9603 = vmul.f32 %v9523, %v9575
    %v9604 = vmul.f32 %v9524, %v9577
    %v9605 = vmul.f32 %v9525, %v9579
    %v9606 = vmul.f32 %v9526, %v9581
    %v9607 = vmul.f32 %v9527, %v9583
    %v9608 = vmul.f32 %v9528, %v9585
    %v9609 = vmul.f32 %v9529, %v9587
    %v9610 = vmul.f32 %v9530, %v9589
    %v9611 = vmul.f32 %v9531, %v9591
    %v9612 = vmul.f32 %v9532, %v9593
    %v9613 = vmul.f32 %v9533, %v9595
    %v9614 = vmul.f32 %v9534, %v9597
    %v9615 = vmul.f32 %v9535, %v9599
    %v9616 = vsub.f32 1.0, %v9600
    %v9617 = vsub.f32 1.0, %v9601
    %v9618 = vsub.f32 1.0, %v9602
    %v9619 = vsub.f32 1.0, %v9603
    %v9620 = vsub.f32 1.0, %v9604
    %v9621 = vsub.f32 1.0, %v9605
    %v9622 = vsub.f32 1.0, %v9606
    %v9623 = vsub.f32 1.0, %v9607
    %v9624 = vsub.f32 1.0, %v9608
    %v9625 = vsub.f32 1.0, %v9609
    %v9626 = vsub.f32 1.0, %v9610
    %v9627 = vsub.f32 1.0, %v9611
    %v9628 = vsub.f32 1.0, %v9612
    %v9629 = vsub.f32 1.0, %v9613
    %v9630 = vsub.f32 1.0, %v9614
    %v9631 = vsub.f32 1.0, %v9615
    %vm9632 = vcmp.ge.f32.partialorder %v9296, 0.0
    %vm9633 = vcmp.ge.f32.partialorder %v9297, 0.0
    %vm9634 = vcmp.ge.f32.partialorder %v9298, 0.0
    %vm9635 = vcmp.ge.f32.partialorder %v9299, 0.0
    %vm9636 = vcmp.ge.f32.partialorder %v9300, 0.0
    %vm9637 = vcmp.ge.f32.partialorder %v9301, 0.0
    %vm9638 = vcmp.ge.f32.partialorder %v9302, 0.0
    %vm9639 = vcmp.ge.f32.partialorder %v9303, 0.0
    %vm9640 = vcmp.ge.f32.partialorder %v9304, 0.0
    %vm9641 = vcmp.ge.f32.partialorder %v9305, 0.0
    %vm9642 = vcmp.ge.f32.partialorder %v9306, 0.0
    %vm9643 = vcmp.ge.f32.partialorder %v9307, 0.0
    %vm9644 = vcmp.ge.f32.partialorder %v9308, 0.0
    %vm9645 = vcmp.ge.f32.partialorder %v9309, 0.0
    %vm9646 = vcmp.ge.f32.partialorder %v9310, 0.0
    %vm9647 = vcmp.ge.f32.partialorder %v9311, 0.0
    %v9648 = vsub.f32 0.0, %v9616
    %v9649 = vsub.f32 0.0, %v9617
    %v9650 = vsub.f32 0.0, %v9618
    %v9651 = vsub.f32 0.0, %v9619
    %v9652 = vsub.f32 0.0, %v9620
    %v9653 = vsub.f32 0.0, %v9621
    %v9654 = vsub.f32 0.0, %v9622
    %v9655 = vsub.f32 0.0, %v9623
    %v9656 = vsub.f32 0.0, %v9624
    %v9657 = vsub.f32 0.0, %v9625
    %v9658 = vsub.f32 0.0, %v9626
    %v9659 = vsub.f32 0.0, %v9627
    %v9660 = vsub.f32 0.0, %v9628
    %v9661 = vsub.f32 0.0, %v9629
    %v9662 = vsub.f32 0.0, %v9630
    %v9663 = vsub.f32 0.0, %v9631
    %v9664 = vsel %vm9632, %v9616, %v9648
    %v9665 = vsel %vm9633, %v9617, %v9649
    %v9666 = vsel %vm9634, %v9618, %v9650
    %v9667 = vsel %vm9635, %v9619, %v9651
    %v9668 = vsel %vm9636, %v9620, %v9652
    %v9669 = vsel %vm9637, %v9621, %v9653
    %v9670 = vsel %vm9638, %v9622, %v9654
    %v9671 = vsel %vm9639, %v9623, %v9655
    %v9672 = vsel %vm9640, %v9624, %v9656
    %v9673 = vsel %vm9641, %v9625, %v9657
    %v9674 = vsel %vm9642, %v9626, %v9658
    %v9675 = vsel %vm9643, %v9627, %v9659
    %v9676 = vsel %vm9644, %v9628, %v9660
    %v9677 = vsel %vm9645, %v9629, %v9661
    %v9678 = vsel %vm9646, %v9630, %v9662
    %v9679 = vsel %vm9647, %v9631, %v9663
    %v9680 = vadd.f32 %v9664, 1.0
    %v9681 = vadd.f32 %v9665, 1.0
    %v9682 = vadd.f32 %v9666, 1.0
    %v9683 = vadd.f32 %v9667, 1.0
    %v9684 = vadd.f32 %v9668, 1.0
    %v9685 = vadd.f32 %v9669, 1.0
    %v9686 = vadd.f32 %v9670, 1.0
    %v9687 = vadd.f32 %v9671, 1.0
    %v9688 = vadd.f32 %v9672, 1.0
    %v9689 = vadd.f32 %v9673, 1.0
    %v9690 = vadd.f32 %v9674, 1.0
    %v9691 = vadd.f32 %v9675, 1.0
    %v9692 = vadd.f32 %v9676, 1.0
    %v9693 = vadd.f32 %v9677, 1.0
    %v9694 = vadd.f32 %v9678, 1.0
    %v9695 = vadd.f32 %v9679, 1.0
    %v9696 = vmul.f32 %v9280, %v9680
    %v9697 = vmul.f32 %v9281, %v9681
    %v9698 = vmul.f32 %v9282, %v9682
    %v9699 = vmul.f32 %v9283, %v9683
    %v9700 = vmul.f32 %v9284, %v9684
    %v9701 = vmul.f32 %v9285, %v9685
    %v9702 = vmul.f32 %v9286, %v9686
    %v9703 = vmul.f32 %v9287, %v9687
    %v9704 = vmul.f32 %v9288, %v9688
    %v9705 = vmul.f32 %v9289, %v9689
    %v9706 = vmul.f32 %v9290, %v9690
    %v9707 = vmul.f32 %v9291, %v9691
    %v9708 = vmul.f32 %v9292, %v9692
    %v9709 = vmul.f32 %v9293, %v9693
    %v9710 = vmul.f32 %v9294, %v9694
    %v9711 = vmul.f32 %v9295, %v9695
    %9713 = vset.pattern.permute.xlu0 0
    %9714 = vperm.xlu0 %9713, %v480
    %v9715 = vpop.permute.xlu0 %9714
    %9718 = vset.pattern.permute.xlu0 0
    %9719 = vperm.xlu0 %9718, %v481
    %v9720 = vpop.permute.xlu0 %9719
    %9723 = vset.pattern.permute.xlu0 0
    %9724 = vperm.xlu0 %9723, %v482
    %v9725 = vpop.permute.xlu0 %9724
    %9728 = vset.pattern.permute.xlu0 0
    %9729 = vperm.xlu0 %9728, %v483
    %v9730 = vpop.permute.xlu0 %9729
    %9733 = vset.pattern.permute.xlu0 0
    %9734 = vperm.xlu0 %9733, %v484
    %v9735 = vpop.permute.xlu0 %9734
    %9738 = vset.pattern.permute.xlu0 0
    %9739 = vperm.xlu0 %9738, %v485
    %v9740 = vpop.permute.xlu0 %9739
    %9743 = vset.pattern.permute.xlu0 0
    %9744 = vperm.xlu0 %9743, %v486
    %v9745 = vpop.permute.xlu0 %9744
    %9748 = vset.pattern.permute.xlu0 0
    %9749 = vperm.xlu0 %9748, %v487
    %v9750 = vpop.permute.xlu0 %9749
    %9753 = vset.pattern.permute.xlu0 0
    %9754 = vperm.xlu0 %9753, %v488
    %v9755 = vpop.permute.xlu0 %9754
    %9758 = vset.pattern.permute.xlu0 0
    %9759 = vperm.xlu0 %9758, %v489
    %v9760 = vpop.permute.xlu0 %9759
    %9763 = vset.pattern.permute.xlu0 0
    %9764 = vperm.xlu0 %9763, %v490
    %v9765 = vpop.permute.xlu0 %9764
    %9768 = vset.pattern.permute.xlu0 0
    %9769 = vperm.xlu0 %9768, %v491
    %v9770 = vpop.permute.xlu0 %9769
    %9773 = vset.pattern.permute.xlu0 0
    %9774 = vperm.xlu0 %9773, %v492
    %v9775 = vpop.permute.xlu0 %9774
    %9778 = vset.pattern.permute.xlu0 0
    %9779 = vperm.xlu0 %9778, %v493
    %v9780 = vpop.permute.xlu0 %9779
    %9783 = vset.pattern.permute.xlu0 0
    %9784 = vperm.xlu0 %9783, %v494
    %v9785 = vpop.permute.xlu0 %9784
    %9788 = vset.pattern.permute.xlu0 0
    %9789 = vperm.xlu0 %9788, %v495
    %v9790 = vpop.permute.xlu0 %9789
    %v9792 = vadd.f32 %v9696, %v9715
    %v9793 = vadd.f32 %v9697, %v9720
    %v9794 = vadd.f32 %v9698, %v9725
    %v9795 = vadd.f32 %v9699, %v9730
    %v9796 = vadd.f32 %v9700, %v9735
    %v9797 = vadd.f32 %v9701, %v9740
    %v9798 = vadd.f32 %v9702, %v9745
    %v9799 = vadd.f32 %v9703, %v9750
    %v9800 = vadd.f32 %v9704, %v9755
    %v9801 = vadd.f32 %v9705, %v9760
    %v9802 = vadd.f32 %v9706, %v9765
    %v9803 = vadd.f32 %v9707, %v9770
    %v9804 = vadd.f32 %v9708, %v9775
    %v9805 = vadd.f32 %v9709, %v9780
    %v9806 = vadd.f32 %v9710, %v9785
    %v9807 = vadd.f32 %v9711, %v9790
    %v9808 = vpack.c.bf16 %v9793, %v9792
    %v9809 = vpack.c.bf16 %v9795, %v9794
    %v9810 = vpack.c.bf16 %v9797, %v9796
    %v9811 = vpack.c.bf16 %v9799, %v9798
    %v9812 = vpack.c.bf16 %v9801, %v9800
    %v9813 = vpack.c.bf16 %v9803, %v9802
    %v9814 = vpack.c.bf16 %v9805, %v9804
    %v9815 = vpack.c.bf16 %v9807, %v9806
    %9817 = vset.pattern.permute.xlu0 0
    %9818 = vperm.xlu0 %9817, %v472
    %v9819 = vpop.permute.xlu0 %9818
    %9822 = vset.pattern.permute.xlu0 0
    %9823 = vperm.xlu0 %9822, %v473
    %v9824 = vpop.permute.xlu0 %9823
    %9827 = vset.pattern.permute.xlu0 0
    %9828 = vperm.xlu0 %9827, %v474
    %v9829 = vpop.permute.xlu0 %9828
    %9832 = vset.pattern.permute.xlu0 0
    %9833 = vperm.xlu0 %9832, %v475
    %v9834 = vpop.permute.xlu0 %9833
    %9837 = vset.pattern.permute.xlu0 0
    %9838 = vperm.xlu0 %9837, %v476
    %v9839 = vpop.permute.xlu0 %9838
    %9842 = vset.pattern.permute.xlu0 0
    %9843 = vperm.xlu0 %9842, %v477
    %v9844 = vpop.permute.xlu0 %9843
    %9847 = vset.pattern.permute.xlu0 0
    %9848 = vperm.xlu0 %9847, %v478
    %v9849 = vpop.permute.xlu0 %9848
    %9852 = vset.pattern.permute.xlu0 0
    %9853 = vperm.xlu0 %9852, %v479
    %v9854 = vpop.permute.xlu0 %9853
    %v9864 = vunpack.c.l.b16 %v464
    %v9865 = vunpack.c.l.b16 %v465
    %v9866 = vunpack.c.l.b16 %v466
    %v9867 = vunpack.c.l.b16 %v467
    %v9868 = vunpack.c.l.b16 %v468
    %v9869 = vunpack.c.l.b16 %v469
    %v9870 = vunpack.c.l.b16 %v470
    %v9871 = vunpack.c.l.b16 %v471
    %v9872 = vpack.c.b16 %v9865, %v9864
    %v9873 = vpack.c.b16 %v9867, %v9866
    %v9874 = vpack.c.b16 %v9869, %v9868
    %v9875 = vpack.c.b16 %v9871, %v9870
    %9880 = vmatprep.subr.bf16.mxu0 0
    %9881 = vmatpush1.bf16.msra.mxu0 %v9808
    %9882 = vmatprep.subr.bf16.mxu0 0
    %9883 = vmatpush1.bf16.msra.mxu0 %v9809
    %9884 = vmatprep.subr.bf16.mxu0 0
    %9885 = vmatpush1.bf16.msra.mxu0 %v9810
    %9886 = vmatprep.subr.bf16.mxu0 0
    %9887 = vmatpush1.bf16.msra.mxu0 %v9811
    %9888 = vmatprep.subr.bf16.mxu0 0
    %9889 = vmatpush1.bf16.msra.mxu0 %v9812
    %9890 = vmatprep.subr.bf16.mxu0 0
    %9891 = vmatpush1.bf16.msra.mxu0 %v9813
    %9892 = vmatprep.subr.bf16.mxu0 0
    %9893 = vmatpush1.bf16.msra.mxu0 %v9814
    %9894 = vmatprep.subr.bf16.mxu0 0
    %9895 = vmatpush1.bf16.msra.mxu0 %v9815
    %9896 = vmatprep.subr.bf16.mxu0 0
    %9897 = vmatpush1.bf16.msra.mxu0 0
    %9898 = vmatprep.subr.bf16.mxu0 0
    %9899 = vmatpush1.bf16.msra.mxu0 0
    %9900 = vmatprep.subr.bf16.mxu0 0
    %9901 = vmatpush1.bf16.msra.mxu0 0
    %9902 = vmatprep.subr.bf16.mxu0 0
    %9903 = vmatpush1.bf16.msra.mxu0 0
    %9904 = vmatprep.subr.bf16.mxu0 0
    %9905 = vmatpush1.bf16.msra.mxu0 0
    %9906 = vmatprep.subr.bf16.mxu0 0
    %9907 = vmatpush1.bf16.msra.mxu0 0
    %9908 = vmatprep.subr.bf16.mxu0 0
    %9909 = vmatpush1.bf16.msra.mxu0 0
    %9910 = vmatprep.subr.bf16.mxu0 0
    %9911 = vmatpush1.bf16.msra.mxu0 0
    %9912 = vmatprep.mubr.bf16.mxu0 0
    %9913 = vmatmul.mubr.bf16.gmra.mrb[0].mxu0 %v9872
    %v9914 = vpop.f32.mrb[0].mxu0
    %v9915 = vadd.f32 %v9819, %v9914
    %v9916 = vpop.f32.mrb[0].mxu0
    %v9917 = vpop.f32.mrb[0].mxu0
    %v9918 = vadd.f32 %v9824, %v9917
    %v9919 = vpop.f32.mrb[0].mxu0
    %9920 = vmatprep.mubr.bf16.mxu0 0
    %9921 = vmatmul.mubr.bf16.gmra.mrb[0].mxu0 %v9873
    %v9922 = vpop.f32.mrb[0].mxu0
    %v9923 = vadd.f32 %v9829, %v9922
    %v9924 = vpop.f32.mrb[0].mxu0
    %v9925 = vpop.f32.mrb[0].mxu0
    %v9926 = vadd.f32 %v9834, %v9925
    %v9927 = vpop.f32.mrb[0].mxu0
    %9928 = vmatprep.mubr.bf16.mxu0 0
    %9929 = vmatmul.mubr.bf16.gmra.mrb[0].mxu0 %v9874
    %v9930 = vpop.f32.mrb[0].mxu0
    %v9931 = vadd.f32 %v9839, %v9930
    %v9932 = vpop.f32.mrb[0].mxu0
    %v9933 = vpop.f32.mrb[0].mxu0
    %v9934 = vadd.f32 %v9844, %v9933
    %v9935 = vpop.f32.mrb[0].mxu0
    %9936 = vmatprep.mubr.bf16.mxu0 0
    %9937 = vmatmul.mubr.bf16.gmra.mrb[0].mxu0 %v9875
    %v9938 = vpop.f32.mrb[0].mxu0
    %v9939 = vadd.f32 %v9849, %v9938
    %v9940 = vpop.f32.mrb[0].mxu0
    %v9941 = vpop.f32.mrb[0].mxu0
    %v9942 = vadd.f32 %v9854, %v9941
    %v9943 = vpop.f32.mrb[0].mxu0
    %9944 = vdwg.mxu0
    %v9945 = vpack.c.bf16 %v9918, %v9915
    %v9946 = vpack.c.bf16 %v9926, %v9923
    %v9947 = vpack.c.bf16 %v9934, %v9931
    %v9948 = vpack.c.bf16 %v9942, %v9939
    %9950 = vset.pattern.permute.xlu0 0
    %9951 = vperm.xlu0 %9950, %v497
    %v9952 = vpop.permute.xlu0 %9951
    %v9955 = vsel %vm6913, %v496, 0
    %9957 = vmatprep.subr.bf16.mxu0 0
    %9958 = vmatpush1.bf16.msra.mxu0 %v9945
    %9959 = vmatprep.subr.bf16.mxu0 0
    %9960 = vmatpush1.bf16.msra.mxu0 %v9946
    %9961 = vmatprep.subr.bf16.mxu0 0
    %9962 = vmatpush1.bf16.msra.mxu0 %v9947
    %9963 = vmatprep.subr.bf16.mxu0 0
    %9964 = vmatpush1.bf16.msra.mxu0 %v9948
    %9965 = vmatprep.subr.bf16.mxu0 0
    %9966 = vmatpush1.bf16.msra.mxu0 0
    %9967 = vmatprep.subr.bf16.mxu0 0
    %9968 = vmatpush1.bf16.msra.mxu0 0
    %9969 = vmatprep.subr.bf16.mxu0 0
    %9970 = vmatpush1.bf16.msra.mxu0 0
    %9971 = vmatprep.subr.bf16.mxu0 0
    %9972 = vmatpush1.bf16.msra.mxu0 0
    %9973 = vmatprep.subr.bf16.mxu0 0
    %9974 = vmatpush1.bf16.msra.mxu0 0
    %9975 = vmatprep.subr.bf16.mxu0 0
    %9976 = vmatpush1.bf16.msra.mxu0 0
    %9977 = vmatprep.subr.bf16.mxu0 0
    %9978 = vmatpush1.bf16.msra.mxu0 0
    %9979 = vmatprep.subr.bf16.mxu0 0
    %9980 = vmatpush1.bf16.msra.mxu0 0
    %9981 = vmatprep.subr.bf16.mxu0 0
    %9982 = vmatpush1.bf16.msra.mxu0 0
    %9983 = vmatprep.subr.bf16.mxu0 0
    %9984 = vmatpush1.bf16.msra.mxu0 0
    %9985 = vmatprep.subr.bf16.mxu0 0
    %9986 = vmatpush1.bf16.msra.mxu0 0
    %9987 = vmatprep.subr.bf16.mxu0 0
    %9988 = vmatpush1.bf16.msra.mxu0 0
    %9989 = vmatprep.mubr.bf16.mxu0 0
    %9990 = vmatmul.mubr.bf16.gmra.mrb[0].mxu0 %v9955
    %v9991 = vpop.f32.mrb[0].mxu0
    %v9992 = vadd.f32 %v9952, %v9991
    %v9993 = vpop.f32.mrb[0].mxu0
    %v9994 = vpop.f32.mrb[0].mxu0
    %v9995 = vpop.f32.mrb[0].mxu0
    %9996 = vdwg.mxu0
    %v9997 = vmax.f32 %v9992, 0.0
    %v9998 = vand.u32 2147483647, %v9992
    %v9999 = vsub.f32 0.0, %v9998
    %v10000 = vmul.f32 %v9999, 1.442695
    %v10001 = vpow.pop %v10000
    %v10002 = vadd.f32 %v10001, 1.0
    %v10003 = vlog2.pop %v10002
    %v10004 = vmul.f32 %v10003, 0.6931472
    %v10005 = vadd.f32 %v9997, %v10004
    %vm10006 = vcmask 254976
    %10007 = vst.msk [vmem:[#allocation5] sm:$0x3] %vm10006, %v10005
    // Predicated region
    $region162: #{tpu_custom_call.1} parent=1 // pred_check
      _
    $region163: #{tpu_custom_call.1} parent=1 // pred_check_branch
      %10009 = sbr.rel (0) target = $region165
    $region164: #{tpu_custom_call.1} parent=1 // pred_region
      %s10011 = ssub.s32 32, 32
      %10012 = vsyncadd [#allocation4], %s10011
      %s10014 = sshll.u32 [#allocation5], 4
      %s10015 = int_to_ptr.vmem [resolvable:$true] %s10014
      %10017 = dma.vmem_to_hbm [thread:$0]  %s10015, 32, %s79, [#allocation4]
    $region165: #{tpu_custom_call.1} parent=1 // pred_fallthru
      _
    // Predicated region
    $region166: #{tpu_custom_call.1} parent=1 // pred_check
      _
    $region167: #{tpu_custom_call.1} parent=1 // pred_check_branch
      %10019 = sbr.rel (0) target = $region169
    $region168: #{tpu_custom_call.1} parent=1 // pred_region
      %10020 = dma.done [#allocation4], 32
    $region169: #{tpu_custom_call.1} parent=1 // pred_fallthru
      _
    %10021 = vsyncpa [#allocation3], 1
    %10022 = vsyncpa [#allocation4], 1

</llo_original>
